<compile_context>
chip_gen: v5e
topology: v5e:2x2
jax: 0.10.0
libtpu: 0.0.40
codegen_flags: <defaults>
</compile_context>

<pallas_src>
import functools

import jax
import jax.numpy as jnp
from jax import lax
from jax.experimental import pallas as pl
from jax.experimental.pallas import tpu as pltpu

LANE = 128
BN_EPS = 1e-5


def _round_up(x, m):
    return (x + m - 1) // m * m


# ---------------------------------------------------------------------------
# Pallas kernels
# ---------------------------------------------------------------------------
def _front_kernel(a_ref, b_ref, y_ref):
    """Tiny (Mp, K) @ (K, 16*d8) matmul for the merged latent/label ConvT."""
    y_ref[...] = jnp.dot(a_ref[...], b_ref[...],
                         preferred_element_type=jnp.float32).astype(y_ref.dtype)


def _convt_kernel(x_ref, scale_ref, shift_ref, mask_ref, w_ref, *rest,
                  h, w, with_bias, with_stats, final_tanh):
    """Fused [BN+ReLU prologue] -> ConvT(k4,s2,p1) -> [bias] [tanh] [BN stats].

    x_ref       : (1, h+2, w+2, cin)  raw pre-BN activation, zero-padded halo
    scale/shift : (1, cin)            previous layer's BN scale / shift
    mask_ref    : (1, h+2, w+2, 1)    1.0 on the interior, 0.0 on the halo
    w_ref       : (4, 4, cin, tn)     parity (2r+s) x tap (2dy+dx) weights
    rest        : [bias (1, tn)], y (4, 1, h*w, tn), [stats (1, 2, tn)]
    """
    idx = 0
    if with_bias:
        bias_ref = rest[idx]
        idx += 1
    y_ref = rest[idx]
    idx += 1
    stats_ref = rest[idx] if with_stats else None

    cin = x_ref.shape[3]
    tn = y_ref.shape[3]

    # --- prologue: BatchNorm-apply + ReLU of the previous layer, fused here.
    # The halo ring is re-zeroed so out-of-range taps contribute nothing.
    x = x_ref[0].astype(jnp.float32)                          # (h+2, w+2, cin)
    a = jnp.maximum(x * scale_ref[...] + shift_ref[...], 0.0) * mask_ref[0]

    if with_stats:
        s_sum = jnp.zeros((1, tn), jnp.float32)
        s_sq = jnp.zeros((1, tn), jnp.float32)

    # --- 4 output parities x 4 taps: in-VMEM im2col, K = cin per matmul.
    for r in (0, 1):
        for s in (0, 1):
            acc = jnp.zeros((h * w, tn), jnp.float32)
            for dy in (0, 1):
                for dx in (0, 1):
                    win = a[r + dy:r + dy + h, s + dx:s + dx + w, :]
                    win = win.reshape(h * w, cin).astype(jnp.bfloat16)
                    acc = acc + jnp.dot(win, w_ref[2 * r + s, 2 * dy + dx],
                                        preferred_element_type=jnp.float32)
            if with_bias:
                acc = acc + bias_ref[...]
            if with_stats:
                s_sum = s_sum + jnp.sum(acc, axis=0, keepdims=True)
                s_sq = s_sq + jnp.sum(acc * acc, axis=0, keepdims=True)
            if final_tanh:
                acc = jnp.tanh(acc)
            y_ref[2 * r + s, 0] = acc.astype(y_ref.dtype)

    if with_stats:
        stats_ref[0] = jnp.concatenate([s_sum, s_sq], axis=0)


# ---------------------------------------------------------------------------
# Kernel wrappers
# ---------------------------------------------------------------------------
def front_matmul(a, b_packed, out_dtype=jnp.bfloat16):
    """a: (M, K) f32, b_packed: (K, Ncols) bf16 -> raw (M, Ncols); no bias."""
    m, k = a.shape
    ncols = b_packed.shape[1]
    mp = _round_up(max(m, 8), 8)
    if mp != m:
        a = jnp.pad(a, ((0, mp - m), (0, 0)))
    y = pl.pallas_call(
        _front_kernel,
        out_shape=jax.ShapeDtypeStruct((mp, ncols), out_dtype),
        grid_spec=pltpu.PrefetchScalarGridSpec(
            num_scalar_prefetch=0,
            grid=(1,),
            in_specs=[pl.BlockSpec((mp, k), lambda i: (0, 0)),
                      pl.BlockSpec((k, ncols), lambda i: (0, 0))],
            out_specs=pl.BlockSpec((mp, ncols), lambda i: (0, 0)),
        ),
        compiler_params=pltpu.CompilerParams(dimension_semantics=("parallel",)),
    )(a.astype(jnp.bfloat16), b_packed)
    return y[:m]


def convt_layer(x_raw, scale, shift, w_packed, bias=None, *,
                with_stats=True, final_tanh=False, out_dtype=jnp.bfloat16):
    """Fused BN+ReLU(prev) -> ConvTranspose2d(k4,s2,p1) -> [bias|tanh|stats].

    x_raw: (N, H, W, Cin) raw pre-BN activation of the previous layer.
    Returns y: (4, N, H*W, Cp) parity-plane raw output and stats (N, 2, Cp).
    """
    n, h, w, cin = x_raw.shape
    cp = w_packed.shape[3]
    hp, wp = h + 2, w + 2
    tn = LANE if cp % LANE == 0 else cp
    n_j = cp // tn

    x_pad = jnp.pad(x_raw, ((0, 0), (1, 1), (1, 1), (0, 0)))
    mask = jnp.pad(jnp.ones((1, h, w, 1), jnp.float32),
                   ((0, 0), (1, 1), (1, 1), (0, 0)))

    in_specs = [
        pl.BlockSpec((1, hp, wp, cin), lambda b, j: (b, 0, 0, 0)),
        pl.BlockSpec((1, cin), lambda b, j: (0, 0)),
        pl.BlockSpec((1, cin), lambda b, j: (0, 0)),
        pl.BlockSpec((1, hp, wp, 1), lambda b, j: (0, 0, 0, 0)),
        pl.BlockSpec((4, 4, cin, tn), lambda b, j: (0, 0, 0, j)),
    ]
    args = [x_pad,
            scale.reshape(1, cin).astype(jnp.float32),
            shift.reshape(1, cin).astype(jnp.float32),
            mask,
            w_packed]
    if bias is not None:
        in_specs.append(pl.BlockSpec((1, tn), lambda b, j: (0, j)))
        args.append(bias.reshape(1, cp).astype(jnp.float32))

    out_shapes = [jax.ShapeDtypeStruct((4, n, h * w, cp), out_dtype)]
    out_specs = [pl.BlockSpec((4, 1, h * w, tn), lambda b, j: (0, b, 0, j))]
    if with_stats:
        out_shapes.append(jax.ShapeDtypeStruct((n, 2, cp), jnp.float32))
        out_specs.append(pl.BlockSpec((1, 2, tn), lambda b, j: (b, 0, j)))

    kern = functools.partial(_convt_kernel, h=h, w=w,
                             with_bias=bias is not None,
                             with_stats=with_stats, final_tanh=final_tanh)
    outs = pl.pallas_call(
        kern,
        out_shape=tuple(out_shapes),
        grid_spec=pltpu.PrefetchScalarGridSpec(
            num_scalar_prefetch=0,
            grid=(n, n_j),
            in_specs=in_specs,
            out_specs=out_specs,
        ),
        compiler_params=pltpu.CompilerParams(
            dimension_semantics=("parallel", "parallel")),
    )(*args)
    if with_stats:
        return outs[0], outs[1]
    return outs[0], None


# ---------------------------------------------------------------------------
# BatchNorm helpers + parity->spatial interleave (tiny XLA glue)
# ---------------------------------------------------------------------------
def _bn_scale_shift(stat, count, gamma, beta, eps=BN_EPS):
    """stat: (2, C) per-channel sum / sum-of-squares -> training-mode BN affine."""
    mean = stat[0] / count
    var = jnp.maximum(stat[1] / count - mean * mean, 0.0)    # biased, torch-style
    inv = lax.rsqrt(var + eps)
    scale = gamma * inv
    shift = beta - mean * scale
    return scale, shift


def _interleave(y, n, h, w, cout):
    """(4, N, H*W, Cp) parity planes (p = 2r+s) -> (N, 2H, 2W, cout) NHWC."""
    y = y[..., :cout].reshape(2, 2, n, h, w, cout)
    return y.transpose(2, 3, 0, 4, 1, 5).reshape(n, 2 * h, 2 * w, cout)


# ---------------------------------------------------------------------------
# Parameters (torch-like) + one-time packing
# ---------------------------------------------------------------------------
def init_params(key, z_dim, y_dim, img_dim):
    d4, d2, d8 = img_dim * 4, img_dim * 2, img_dim * 8
    ks = jax.random.split(key, 10)

    def wn(k, shape):
        return 0.02 * jax.random.normal(k, shape, jnp.float32)

    return {
        # torch layout: ConvTranspose2d weight is (Cin, Cout, kH, kW)
        "latent_w": wn(ks[0], (z_dim, d4, 4, 4)), "latent_b": wn(ks[1], (d4,)),
        "latent_gamma": jnp.ones((d4,), jnp.float32),
        "latent_beta": jnp.zeros((d4,), jnp.float32),
        "label_w": wn(ks[2], (y_dim, d4, 4, 4)), "label_b": wn(ks[3], (d4,)),
        "label_gamma": jnp.ones((d4,), jnp.float32),
        "label_beta": jnp.zeros((d4,), jnp.float32),
        "c1_w": wn(ks[4], (d8, d4, 4, 4)), "c1_b": wn(ks[5], (d4,)),
        "c1_gamma": jnp.ones((d4,), jnp.float32),
        "c1_beta": jnp.zeros((d4,), jnp.float32),
        "c2_w": wn(ks[6], (d4, d2, 4, 4)), "c2_b": wn(ks[7], (d2,)),
        "c2_gamma": jnp.ones((d2,), jnp.float32),
        "c2_beta": jnp.zeros((d2,), jnp.float32),
        "c3_w": wn(ks[8], (d2, 3, 4, 4)), "c3_b": wn(ks[9], (3,)),
    }


def pack_params(p):
    """One-time weight packing: parity/tap split, Cout->128 zero-padding,
    bf16 cast, merged block-diagonal front weights.  Conv biases that are
    followed by BatchNorm (latent/label/c1/c2) are dropped: adding a
    per-channel constant before training-mode BN is an exact no-op."""
    def parity_tap(wt):
        cin, cout = wt.shape[0], wt.shape[1]
        cp = _round_up(cout, LANE)
        out = jnp.zeros((4, 4, cin, cp), jnp.float32)
        for r in (0, 1):
            for s in (0, 1):
                for dy in (0, 1):
                    for dx in (0, 1):
                        out = out.at[2 * r + s, 2 * dy + dx, :, :cout].set(
                            wt[:, :, 3 - r - 2 * dy, 3 - s - 2 * dx])
        return out.astype(jnp.bfloat16)

    z_dim, d4 = p["latent_w"].shape[0], p["latent_w"].shape[1]
    y_dim = p["label_w"].shape[0]
    d8 = 2 * d4
    # merged latent+label ConvT(k4,s1,p0) on a 1x1 input == one block-diagonal
    # (z+y, 16*d8) matmul; columns ordered (kh, kw, ch) with ch = [latent|label].
    bfull = jnp.zeros((z_dim + y_dim, 4, 4, d8), jnp.float32)
    bfull = bfull.at[:z_dim, :, :, :d4].set(p["latent_w"].transpose(0, 2, 3, 1))
    bfull = bfull.at[z_dim:, :, :, d4:].set(p["label_w"].transpose(0, 2, 3, 1))

    c3_cout = p["c3_w"].shape[1]
    return {
        "front_w": bfull.reshape(z_dim + y_dim, 16 * d8).astype(jnp.bfloat16),
        "front_gamma": jnp.concatenate([p["latent_gamma"], p["label_gamma"]]),
        "front_beta": jnp.concatenate([p["latent_beta"], p["label_beta"]]),
        "c1_w": parity_tap(p["c1_w"]),
        "c1_gamma": p["c1_gamma"], "c1_beta": p["c1_beta"],
        "c2_w": parity_tap(p["c2_w"]),
        "c2_gamma": p["c2_gamma"], "c2_beta": p["c2_beta"],
        "c3_w": parity_tap(p["c3_w"]),
        "c3_b": jnp.pad(p["c3_b"],
                        (0, _round_up(c3_cout, LANE) - c3_cout)).astype(jnp.float32),
    }


# ---------------------------------------------------------------------------
# Forward pass
# ---------------------------------------------------------------------------
def generator_forward(packed, z, c):
    n, z_dim = z.shape[0], z.shape[1]
    y_dim = c.shape[1]
    d8 = packed["front_gamma"].shape[0]

    # --- merged latent + label ConvT(k4,s1,p0): one matmul (bias dropped, BN
    #     follows).  BN stats of this tiny (n, 16, d8) slab are reduced in XLA.
    a = jnp.concatenate([z.reshape(n, z_dim), c.reshape(n, y_dim)], axis=1)
    y0 = front_matmul(a, packed["front_w"])                  # (n, 16*d8) bf16
    x0 = y0.reshape(n, 4, 4, d8)
    x0f = x0.astype(jnp.float32)
    stat0 = jnp.stack([jnp.sum(x0f, axis=(0, 1, 2)),
                       jnp.sum(x0f * x0f, axis=(0, 1, 2))])
    scale0, shift0 = _bn_scale_shift(stat0, n * 16,
                                     packed["front_gamma"], packed["front_beta"])
    h0, w0 = x0.shape[1], x0.shape[2]

    # --- c1: BN(front)+ReLU fused into the conv prologue; raw bf16 output.
    c1_out = packed["c1_gamma"].shape[0]
    y1, s1 = convt_layer(x0, scale0, shift0, packed["c1_w"])
    scale1, shift1 = _bn_scale_shift(s1.sum(axis=0)[:, :c1_out], n * 4 * h0 * w0,
                                     packed["c1_gamma"], packed["c1_beta"])
    x1 = _interleave(y1, n, h0, w0, c1_out)                  # (n, 8, 8, d4)
    h1, w1 = x1.shape[1], x1.shape[2]

    # --- c2
    c2_out = packed["c2_gamma"].shape[0]
    y2, s2 = convt_layer(x1, scale1, shift1, packed["c2_w"])
    scale2, shift2 = _bn_scale_shift(s2.sum(axis=0)[:, :c2_out], n * 4 * h1 * w1,
                                     packed["c2_gamma"], packed["c2_beta"])
    x2 = _interleave(y2, n, h1, w1, c2_out)                  # (n, 16, 16, d2)
    h2, w2 = x2.shape[1], x2.shape[2]

    # --- c3: BN(c2)+ReLU prologue, conv + bias + tanh, no BN stats.
    y3, _ = convt_layer(x2, scale2, shift2, packed["c3_w"], bias=packed["c3_b"],
                        with_stats=False, final_tanh=True, out_dtype=jnp.float32)
    img = _interleave(y3, n, h2, w2, 3)                      # (n, 32, 32, 3)
    return img.transpose(0, 3, 1, 2)                         # NCHW (n, 3, 32, 32)


if __name__ == "__main__":
    key = jax.random.PRNGKey(0)
    z_dim, y_dim, img_dim, batch = 8, 4, 8, 2
    kp, kz, kc = jax.random.split(key, 3)
    params = init_params(kp, z_dim, y_dim, img_dim)
    packed = pack_params(params)                 # one-time weight packing
    z = jax.random.normal(kz, (batch, z_dim, 1, 1), jnp.float32)
    c = jax.random.normal(kc, (batch, y_dim, 1, 1), jnp.float32)

    fwd = jax.jit(generator_forward)
    img = jax.block_until_ready(fwd(packed, z, c))
    assert img.shape == (batch, 3, 32, 32), img.shape
    assert bool(jnp.all(jnp.isfinite(img)))
    print("KERNEL_OK")
</pallas_src>

<mosaic_0001>
module attributes {stable_mosaic.version = 11 : i64} {
  func.func @_front_kernel(%arg0: i32, %arg1: memref<8x12xbf16, #tpu.memory_space<vmem>>, %arg2: memref<12x1024xbf16, #tpu.memory_space<vmem>>, %arg3: memref<8x1024xbf16, #tpu.memory_space<vmem>>) attributes {dimension_semantics = [#tpu.dimension_semantics<parallel>], iteration_bounds = array<i64: 1>, scalar_prefetch = 0 : i64, scratch_operands = 0 : i64, tpu.core_type = #tpu.core_type<tc>, window_params = [{pipeline_mode = #tpu.pipeline_mode<synchronous>, transform_indices = @transform_0, window_bounds = array<i64: 8, 12>}, {pipeline_mode = #tpu.pipeline_mode<synchronous>, transform_indices = @transform_1, window_bounds = array<i64: 12, 1024>}, {pipeline_mode = #tpu.pipeline_mode<synchronous>, transform_indices = @transform_2, window_bounds = array<i64: 8, 1024>}]} {
    %c0 = arith.constant 0 : index
    %c0_0 = arith.constant 0 : index
    %0 = vector.load %arg1[%c0, %c0_0] : memref<8x12xbf16, #tpu.memory_space<vmem>>, vector<8x12xbf16>
    %c0_1 = arith.constant 0 : index
    %c0_2 = arith.constant 0 : index
    %1 = vector.load %arg2[%c0_1, %c0_2] : memref<12x1024xbf16, #tpu.memory_space<vmem>>, vector<12x1024xbf16>
    %cst = arith.constant dense<0.000000e+00> : vector<8x1024xf32>
    %2 = tpu.matmul %0, %1, %cst {dimension_numbers = #tpu.dot_dimension_numbers<[1], [0], [0], [1], [0, 0, 1, 1], [], []>} : vector<8x12xbf16>, vector<12x1024xbf16>, vector<8x1024xf32> -> vector<8x1024xf32>
    %3 = arith.truncf %2 : vector<8x1024xf32> to vector<8x1024xbf16>
    %c0_3 = arith.constant 0 : index
    %c0_4 = arith.constant 0 : index
    %4 = vector.load %arg3[%c0_3, %c0_4] : memref<8x1024xbf16, #tpu.memory_space<vmem>>, vector<8x1024xbf16>
    tpu.vector_store %arg3[%c0_3, %c0_4], %3 {strides = array<i32>} : memref<8x1024xbf16, #tpu.memory_space<vmem>>, vector<8x1024xbf16>,
    return
  }
  func.func @transform_0(%arg0: i32) -> (i32, i32) {
    %c0_i32 = arith.constant 0 : i32
    %c0_i32_0 = arith.constant 0 : i32
    %c0_i32_1 = arith.constant 0 : i32
    return %c0_i32, %c0_i32_0 : i32, i32
  }
  func.func @transform_1(%arg0: i32) -> (i32, i32) {
    %c0_i32 = arith.constant 0 : i32
    %c0_i32_0 = arith.constant 0 : i32
    %c0_i32_1 = arith.constant 0 : i32
    return %c0_i32, %c0_i32_0 : i32, i32
  }
  func.func @transform_2(%arg0: i32) -> (i32, i32) {
    %c0_i32 = arith.constant 0 : i32
    %c0_i32_0 = arith.constant 0 : i32
    %c0_i32_1 = arith.constant 0 : i32
    return %c0_i32, %c0_i32_0 : i32, i32
  }
}

module attributes {stable_mosaic.version = 11 : i64} {
  func.func @_convt_kernel(%arg0: i32, %arg1: i32, %arg2: memref<1x6x6x64xbf16, #tpu.memory_space<vmem>>, %arg3: memref<1x64xf32, #tpu.memory_space<vmem>>, %arg4: memref<1x64xf32, #tpu.memory_space<vmem>>, %arg5: memref<1x6x6x1xf32, #tpu.memory_space<vmem>>, %arg6: memref<4x4x64x128xbf16, #tpu.memory_space<vmem>>, %arg7: memref<4x1x16x128xbf16, #tpu.memory_space<vmem>>, %arg8: memref<1x2x128xf32, #tpu.memory_space<vmem>>) attributes {dimension_semantics = [#tpu.dimension_semantics<parallel>, #tpu.dimension_semantics<parallel>], iteration_bounds = array<i64: 2, 1>, scalar_prefetch = 0 : i64, scratch_operands = 0 : i64, tpu.core_type = #tpu.core_type<tc>, window_params = [{transform_indices = @transform_0, window_bounds = array<i64: 1, 6, 6, 64>}, {pipeline_mode = #tpu.pipeline_mode<synchronous>, transform_indices = @transform_1, window_bounds = array<i64: 1, 64>}, {pipeline_mode = #tpu.pipeline_mode<synchronous>, transform_indices = @transform_2, window_bounds = array<i64: 1, 64>}, {pipeline_mode = #tpu.pipeline_mode<synchronous>, transform_indices = @transform_3, window_bounds = array<i64: 1, 6, 6, 1>}, {transform_indices = @transform_4, window_bounds = array<i64: 4, 4, 64, 128>}, {transform_indices = @transform_5, window_bounds = array<i64: 4, 1, 16, 128>}, {transform_indices = @transform_6, window_bounds = array<i64: 1, 2, 128>}]} {
    %c0 = arith.constant 0 : index
    %c0_0 = arith.constant 0 : index
    %c0_1 = arith.constant 0 : index
    %c0_2 = arith.constant 0 : index
    %0 = vector.load %arg2[%c0, %c0_0, %c0_1, %c0_2] : memref<1x6x6x64xbf16, #tpu.memory_space<vmem>>, vector<1x6x6x64xbf16>
    %1 = vector.shape_cast %0 : vector<1x6x6x64xbf16> to vector<6x6x64xbf16>
    %2 = arith.extf %1 : vector<6x6x64xbf16> to vector<6x6x64xf32>
    %c0_3 = arith.constant 0 : index
    %c0_4 = arith.constant 0 : index
    %3 = vector.load %arg3[%c0_3, %c0_4] : memref<1x64xf32, #tpu.memory_space<vmem>>, vector<1x64xf32>
    %4 = vector.shape_cast %3 : vector<1x64xf32> to vector<1x1x64xf32>
    %5 = vector.broadcast %4 : vector<1x1x64xf32> to vector<6x6x64xf32>
    %6 = arith.mulf %2, %5 : vector<6x6x64xf32>
    %c0_5 = arith.constant 0 : index
    %c0_6 = arith.constant 0 : index
    %7 = vector.load %arg4[%c0_5, %c0_6] : memref<1x64xf32, #tpu.memory_space<vmem>>, vector<1x64xf32>
    %8 = vector.shape_cast %7 : vector<1x64xf32> to vector<1x1x64xf32>
    %9 = vector.broadcast %8 : vector<1x1x64xf32> to vector<6x6x64xf32>
    %10 = arith.addf %6, %9 : vector<6x6x64xf32>
    %cst = arith.constant 0.000000e+00 : f32
    %11 = vector.broadcast %cst : f32 to vector<6x6x64xf32>
    %12 = arith.maximumf %10, %11 : vector<6x6x64xf32>
    %c0_7 = arith.constant 0 : index
    %c0_8 = arith.constant 0 : index
    %c0_9 = arith.constant 0 : index
    %c0_10 = arith.constant 0 : index
    %13 = vector.load %arg5[%c0_7, %c0_8, %c0_9, %c0_10] : memref<1x6x6x1xf32, #tpu.memory_space<vmem>>, vector<1x6x6x1xf32>
    %14 = vector.shape_cast %13 : vector<1x6x6x1xf32> to vector<6x6x1xf32>
    %15 = vector.broadcast %14 : vector<6x6x1xf32> to vector<6x6x64xf32>
    %16 = arith.mulf %12, %15 : vector<6x6x64xf32>
    %cst_11 = arith.constant 0.000000e+00 : f32
    %17 = vector.broadcast %cst_11 : f32 to vector<1x128xf32>
    %cst_12 = arith.constant 0.000000e+00 : f32
    %18 = vector.broadcast %cst_12 : f32 to vector<1x128xf32>
    %cst_13 = arith.constant 0.000000e+00 : f32
    %19 = vector.broadcast %cst_13 : f32 to vector<16x128xf32>
    %20 = vector.extract_strided_slice %16 {offsets = [0, 0, 0], sizes = [4, 4, 64], strides = [1, 1, 1]} : vector<6x6x64xf32> to vector<4x4x64xf32>
    %21 = vector.shape_cast %20 : vector<4x4x64xf32> to vector<16x64xf32>
    %22 = arith.truncf %21 : vector<16x64xf32> to vector<16x64xbf16>
    %c0_14 = arith.constant 0 : index
    %c0_15 = arith.constant 0 : index
    %c0_16 = arith.constant 0 : index
    %c0_17 = arith.constant 0 : index
    %23 = vector.load %arg6[%c0_14, %c0_15, %c0_16, %c0_17] : memref<4x4x64x128xbf16, #tpu.memory_space<vmem>>, vector<1x1x64x128xbf16>
    %24 = vector.shape_cast %23 : vector<1x1x64x128xbf16> to vector<64x128xbf16>
    %cst_18 = arith.constant dense<0.000000e+00> : vector<16x128xf32>
    %25 = tpu.matmul %22, %24, %cst_18 {dimension_numbers = #tpu.dot_dimension_numbers<[1], [0], [0], [1], [0, 0, 1, 1], [], []>} : vector<16x64xbf16>, vector<64x128xbf16>, vector<16x128xf32> -> vector<16x128xf32>
    %26 = arith.addf %19, %25 : vector<16x128xf32>
    %27 = vector.extract_strided_slice %16 {offsets = [0, 1, 0], sizes = [4, 4, 64], strides = [1, 1, 1]} : vector<6x6x64xf32> to vector<4x4x64xf32>
    %28 = vector.shape_cast %27 : vector<4x4x64xf32> to vector<16x64xf32>
    %29 = arith.truncf %28 : vector<16x64xf32> to vector<16x64xbf16>
    %c0_19 = arith.constant 0 : index
    %c1 = arith.constant 1 : index
    %c0_20 = arith.constant 0 : index
    %c0_21 = arith.constant 0 : index
    %30 = vector.load %arg6[%c0_19, %c1, %c0_20, %c0_21] : memref<4x4x64x128xbf16, #tpu.memory_space<vmem>>, vector<1x1x64x128xbf16>
    %31 = vector.shape_cast %30 : vector<1x1x64x128xbf16> to vector<64x128xbf16>
    %cst_22 = arith.constant dense<0.000000e+00> : vector<16x128xf32>
    %32 = tpu.matmul %29, %31, %cst_22 {dimension_numbers = #tpu.dot_dimension_numbers<[1], [0], [0], [1], [0, 0, 1, 1], [], []>} : vector<16x64xbf16>, vector<64x128xbf16>, vector<16x128xf32> -> vector<16x128xf32>
    %33 = arith.addf %26, %32 : vector<16x128xf32>
    %34 = vector.extract_strided_slice %16 {offsets = [1, 0, 0], sizes = [4, 4, 64], strides = [1, 1, 1]} : vector<6x6x64xf32> to vector<4x4x64xf32>
    %35 = vector.shape_cast %34 : vector<4x4x64xf32> to vector<16x64xf32>
    %36 = arith.truncf %35 : vector<16x64xf32> to vector<16x64xbf16>
    %c0_23 = arith.constant 0 : index
    %c2 = arith.constant 2 : index
    %c0_24 = arith.constant 0 : index
    %c0_25 = arith.constant 0 : index
    %37 = vector.load %arg6[%c0_23, %c2, %c0_24, %c0_25] : memref<4x4x64x128xbf16, #tpu.memory_space<vmem>>, vector<1x1x64x128xbf16>
    %38 = vector.shape_cast %37 : vector<1x1x64x128xbf16> to vector<64x128xbf16>
    %cst_26 = arith.constant dense<0.000000e+00> : vector<16x128xf32>
    %39 = tpu.matmul %36, %38, %cst_26 {dimension_numbers = #tpu.dot_dimension_numbers<[1], [0], [0], [1], [0, 0, 1, 1], [], []>} : vector<16x64xbf16>, vector<64x128xbf16>, vector<16x128xf32> -> vector<16x128xf32>
    %40 = arith.addf %33, %39 : vector<16x128xf32>
    %41 = vector.extract_strided_slice %16 {offsets = [1, 1, 0], sizes = [4, 4, 64], strides = [1, 1, 1]} : vector<6x6x64xf32> to vector<4x4x64xf32>
    %42 = vector.shape_cast %41 : vector<4x4x64xf32> to vector<16x64xf32>
    %43 = arith.truncf %42 : vector<16x64xf32> to vector<16x64xbf16>
    %c0_27 = arith.constant 0 : index
    %c3 = arith.constant 3 : index
    %c0_28 = arith.constant 0 : index
    %c0_29 = arith.constant 0 : index
    %44 = vector.load %arg6[%c0_27, %c3, %c0_28, %c0_29] : memref<4x4x64x128xbf16, #tpu.memory_space<vmem>>, vector<1x1x64x128xbf16>
    %45 = vector.shape_cast %44 : vector<1x1x64x128xbf16> to vector<64x128xbf16>
    %cst_30 = arith.constant dense<0.000000e+00> : vector<16x128xf32>
    %46 = tpu.matmul %43, %45, %cst_30 {dimension_numbers = #tpu.dot_dimension_numbers<[1], [0], [0], [1], [0, 0, 1, 1], [], []>} : vector<16x64xbf16>, vector<64x128xbf16>, vector<16x128xf32> -> vector<16x128xf32>
    %47 = arith.addf %40, %46 : vector<16x128xf32>
    %cst_31 = arith.constant dense<0.000000e+00> : vector<128xf32>
    %48 = vector.multi_reduction <add>, %47, %cst_31 [0] : vector<16x128xf32> to vector<128xf32>
    %49 = vector.shape_cast %48 : vector<128xf32> to vector<1x128xf32>
    %50 = arith.addf %17, %49 : vector<1x128xf32>
    %51 = arith.mulf %47, %47 : vector<16x128xf32>
    %cst_32 = arith.constant dense<0.000000e+00> : vector<128xf32>
    %52 = vector.multi_reduction <add>, %51, %cst_32 [0] : vector<16x128xf32> to vector<128xf32>
    %53 = vector.shape_cast %52 : vector<128xf32> to vector<1x128xf32>
    %54 = arith.addf %18, %53 : vector<1x128xf32>
    %55 = arith.truncf %47 : vector<16x128xf32> to vector<16x128xbf16>
    %c0_33 = arith.constant 0 : index
    %c0_34 = arith.constant 0 : index
    %c0_35 = arith.constant 0 : index
    %c0_36 = arith.constant 0 : index
    %56 = vector.load %arg7[%c0_33, %c0_34, %c0_35, %c0_36] : memref<4x1x16x128xbf16, #tpu.memory_space<vmem>>, vector<1x1x16x128xbf16>
    %57 = vector.shape_cast %56 : vector<1x1x16x128xbf16> to vector<16x128xbf16>
    %58 = vector.shape_cast %55 : vector<16x128xbf16> to vector<1x1x16x128xbf16>
    tpu.vector_store %arg7[%c0_33, %c0_34, %c0_35, %c0_36], %58 {strides = array<i32>} : memref<4x1x16x128xbf16, #tpu.memory_space<vmem>>, vector<1x1x16x128xbf16>,
    %cst_37 = arith.constant 0.000000e+00 : f32
    %59 = vector.broadcast %cst_37 : f32 to vector<16x128xf32>
    %60 = vector.extract_strided_slice %16 {offsets = [0, 1, 0], sizes = [4, 4, 64], strides = [1, 1, 1]} : vector<6x6x64xf32> to vector<4x4x64xf32>
    %61 = vector.shape_cast %60 : vector<4x4x64xf32> to vector<16x64xf32>
    %62 = arith.truncf %61 : vector<16x64xf32> to vector<16x64xbf16>
    %c1_38 = arith.constant 1 : index
    %c0_39 = arith.constant 0 : index
    %c0_40 = arith.constant 0 : index
    %c0_41 = arith.constant 0 : index
    %63 = vector.load %arg6[%c1_38, %c0_39, %c0_40, %c0_41] : memref<4x4x64x128xbf16, #tpu.memory_space<vmem>>, vector<1x1x64x128xbf16>
    %64 = vector.shape_cast %63 : vector<1x1x64x128xbf16> to vector<64x128xbf16>
    %cst_42 = arith.constant dense<0.000000e+00> : vector<16x128xf32>
    %65 = tpu.matmul %62, %64, %cst_42 {dimension_numbers = #tpu.dot_dimension_numbers<[1], [0], [0], [1], [0, 0, 1, 1], [], []>} : vector<16x64xbf16>, vector<64x128xbf16>, vector<16x128xf32> -> vector<16x128xf32>
    %66 = arith.addf %59, %65 : vector<16x128xf32>
    %67 = vector.extract_strided_slice %16 {offsets = [0, 2, 0], sizes = [4, 4, 64], strides = [1, 1, 1]} : vector<6x6x64xf32> to vector<4x4x64xf32>
    %68 = vector.shape_cast %67 : vector<4x4x64xf32> to vector<16x64xf32>
    %69 = arith.truncf %68 : vector<16x64xf32> to vector<16x64xbf16>
    %c1_43 = arith.constant 1 : index
    %c1_44 = arith.constant 1 : index
    %c0_45 = arith.constant 0 : index
    %c0_46 = arith.constant 0 : index
    %70 = vector.load %arg6[%c1_43, %c1_44, %c0_45, %c0_46] : memref<4x4x64x128xbf16, #tpu.memory_space<vmem>>, vector<1x1x64x128xbf16>
    %71 = vector.shape_cast %70 : vector<1x1x64x128xbf16> to vector<64x128xbf16>
    %cst_47 = arith.constant dense<0.000000e+00> : vector<16x128xf32>
    %72 = tpu.matmul %69, %71, %cst_47 {dimension_numbers = #tpu.dot_dimension_numbers<[1], [0], [0], [1], [0, 0, 1, 1], [], []>} : vector<16x64xbf16>, vector<64x128xbf16>, vector<16x128xf32> -> vector<16x128xf32>
    %73 = arith.addf %66, %72 : vector<16x128xf32>
    %74 = vector.extract_strided_slice %16 {offsets = [1, 1, 0], sizes = [4, 4, 64], strides = [1, 1, 1]} : vector<6x6x64xf32> to vector<4x4x64xf32>
    %75 = vector.shape_cast %74 : vector<4x4x64xf32> to vector<16x64xf32>
    %76 = arith.truncf %75 : vector<16x64xf32> to vector<16x64xbf16>
    %c1_48 = arith.constant 1 : index
    %c2_49 = arith.constant 2 : index
    %c0_50 = arith.constant 0 : index
    %c0_51 = arith.constant 0 : index
    %77 = vector.load %arg6[%c1_48, %c2_49, %c0_50, %c0_51] : memref<4x4x64x128xbf16, #tpu.memory_space<vmem>>, vector<1x1x64x128xbf16>
    %78 = vector.shape_cast %77 : vector<1x1x64x128xbf16> to vector<64x128xbf16>
    %cst_52 = arith.constant dense<0.000000e+00> : vector<16x128xf32>
    %79 = tpu.matmul %76, %78, %cst_52 {dimension_numbers = #tpu.dot_dimension_numbers<[1], [0], [0], [1], [0, 0, 1, 1], [], []>} : vector<16x64xbf16>, vector<64x128xbf16>, vector<16x128xf32> -> vector<16x128xf32>
    %80 = arith.addf %73, %79 : vector<16x128xf32>
    %81 = vector.extract_strided_slice %16 {offsets = [1, 2, 0], sizes = [4, 4, 64], strides = [1, 1, 1]} : vector<6x6x64xf32> to vector<4x4x64xf32>
    %82 = vector.shape_cast %81 : vector<4x4x64xf32> to vector<16x64xf32>
    %83 = arith.truncf %82 : vector<16x64xf32> to vector<16x64xbf16>
    %c1_53 = arith.constant 1 : index
    %c3_54 = arith.constant 3 : index
    %c0_55 = arith.constant 0 : index
    %c0_56 = arith.constant 0 : index
    %84 = vector.load %arg6[%c1_53, %c3_54, %c0_55, %c0_56] : memref<4x4x64x128xbf16, #tpu.memory_space<vmem>>, vector<1x1x64x128xbf16>
    %85 = vector.shape_cast %84 : vector<1x1x64x128xbf16> to vector<64x128xbf16>
    %cst_57 = arith.constant dense<0.000000e+00> : vector<16x128xf32>
    %86 = tpu.matmul %83, %85, %cst_57 {dimension_numbers = #tpu.dot_dimension_numbers<[1], [0], [0], [1], [0, 0, 1, 1], [], []>} : vector<16x64xbf16>, vector<64x128xbf16>, vector<16x128xf32> -> vector<16x128xf32>
    %87 = arith.addf %80, %86 : vector<16x128xf32>
    %cst_58 = arith.constant dense<0.000000e+00> : vector<128xf32>
    %88 = vector.multi_reduction <add>, %87, %cst_58 [0] : vector<16x128xf32> to vector<128xf32>
    %89 = vector.shape_cast %88 : vector<128xf32> to vector<1x128xf32>
    %90 = arith.addf %50, %89 : vector<1x128xf32>
    %91 = arith.mulf %87, %87 : vector<16x128xf32>
    %cst_59 = arith.constant dense<0.000000e+00> : vector<128xf32>
    %92 = vector.multi_reduction <add>, %91, %cst_59 [0] : vector<16x128xf32> to vector<128xf32>
    %93 = vector.shape_cast %92 : vector<128xf32> to vector<1x128xf32>
    %94 = arith.addf %54, %93 : vector<1x128xf32>
    %95 = arith.truncf %87 : vector<16x128xf32> to vector<16x128xbf16>
    %c1_60 = arith.constant 1 : index
    %c0_61 = arith.constant 0 : index
    %c0_62 = arith.constant 0 : index
    %c0_63 = arith.constant 0 : index
    %96 = vector.load %arg7[%c1_60, %c0_61, %c0_62, %c0_63] : memref<4x1x16x128xbf16, #tpu.memory_space<vmem>>, vector<1x1x16x128xbf16>
    %97 = vector.shape_cast %96 : vector<1x1x16x128xbf16> to vector<16x128xbf16>
    %98 = vector.shape_cast %95 : vector<16x128xbf16> to vector<1x1x16x128xbf16>
    tpu.vector_store %arg7[%c1_60, %c0_61, %c0_62, %c0_63], %98 {strides = array<i32>} : memref<4x1x16x128xbf16, #tpu.memory_space<vmem>>, vector<1x1x16x128xbf16>,
    %cst_64 = arith.constant 0.000000e+00 : f32
    %99 = vector.broadcast %cst_64 : f32 to vector<16x128xf32>
    %100 = vector.extract_strided_slice %16 {offsets = [1, 0, 0], sizes = [4, 4, 64], strides = [1, 1, 1]} : vector<6x6x64xf32> to vector<4x4x64xf32>
    %101 = vector.shape_cast %100 : vector<4x4x64xf32> to vector<16x64xf32>
    %102 = arith.truncf %101 : vector<16x64xf32> to vector<16x64xbf16>
    %c2_65 = arith.constant 2 : index
    %c0_66 = arith.constant 0 : index
    %c0_67 = arith.constant 0 : index
    %c0_68 = arith.constant 0 : index
    %103 = vector.load %arg6[%c2_65, %c0_66, %c0_67, %c0_68] : memref<4x4x64x128xbf16, #tpu.memory_space<vmem>>, vector<1x1x64x128xbf16>
    %104 = vector.shape_cast %103 : vector<1x1x64x128xbf16> to vector<64x128xbf16>
    %cst_69 = arith.constant dense<0.000000e+00> : vector<16x128xf32>
    %105 = tpu.matmul %102, %104, %cst_69 {dimension_numbers = #tpu.dot_dimension_numbers<[1], [0], [0], [1], [0, 0, 1, 1], [], []>} : vector<16x64xbf16>, vector<64x128xbf16>, vector<16x128xf32> -> vector<16x128xf32>
    %106 = arith.addf %99, %105 : vector<16x128xf32>
    %107 = vector.extract_strided_slice %16 {offsets = [1, 1, 0], sizes = [4, 4, 64], strides = [1, 1, 1]} : vector<6x6x64xf32> to vector<4x4x64xf32>
    %108 = vector.shape_cast %107 : vector<4x4x64xf32> to vector<16x64xf32>
    %109 = arith.truncf %108 : vector<16x64xf32> to vector<16x64xbf16>
    %c2_70 = arith.constant 2 : index
    %c1_71 = arith.constant 1 : index
    %c0_72 = arith.constant 0 : index
    %c0_73 = arith.constant 0 : index
    %110 = vector.load %arg6[%c2_70, %c1_71, %c0_72, %c0_73] : memref<4x4x64x128xbf16, #tpu.memory_space<vmem>>, vector<1x1x64x128xbf16>
    %111 = vector.shape_cast %110 : vector<1x1x64x128xbf16> to vector<64x128xbf16>
    %cst_74 = arith.constant dense<0.000000e+00> : vector<16x128xf32>
    %112 = tpu.matmul %109, %111, %cst_74 {dimension_numbers = #tpu.dot_dimension_numbers<[1], [0], [0], [1], [0, 0, 1, 1], [], []>} : vector<16x64xbf16>, vector<64x128xbf16>, vector<16x128xf32> -> vector<16x128xf32>
    %113 = arith.addf %106, %112 : vector<16x128xf32>
    %114 = vector.extract_strided_slice %16 {offsets = [2, 0, 0], sizes = [4, 4, 64], strides = [1, 1, 1]} : vector<6x6x64xf32> to vector<4x4x64xf32>
    %115 = vector.shape_cast %114 : vector<4x4x64xf32> to vector<16x64xf32>
    %116 = arith.truncf %115 : vector<16x64xf32> to vector<16x64xbf16>
    %c2_75 = arith.constant 2 : index
    %c2_76 = arith.constant 2 : index
    %c0_77 = arith.constant 0 : index
    %c0_78 = arith.constant 0 : index
    %117 = vector.load %arg6[%c2_75, %c2_76, %c0_77, %c0_78] : memref<4x4x64x128xbf16, #tpu.memory_space<vmem>>, vector<1x1x64x128xbf16>
    %118 = vector.shape_cast %117 : vector<1x1x64x128xbf16> to vector<64x128xbf16>
    %cst_79 = arith.constant dense<0.000000e+00> : vector<16x128xf32>
    %119 = tpu.matmul %116, %118, %cst_79 {dimension_numbers = #tpu.dot_dimension_numbers<[1], [0], [0], [1], [0, 0, 1, 1], [], []>} : vector<16x64xbf16>, vector<64x128xbf16>, vector<16x128xf32> -> vector<16x128xf32>
    %120 = arith.addf %113, %119 : vector<16x128xf32>
    %121 = vector.extract_strided_slice %16 {offsets = [2, 1, 0], sizes = [4, 4, 64], strides = [1, 1, 1]} : vector<6x6x64xf32> to vector<4x4x64xf32>
    %122 = vector.shape_cast %121 : vector<4x4x64xf32> to vector<16x64xf32>
    %123 = arith.truncf %122 : vector<16x64xf32> to vector<16x64xbf16>
    %c2_80 = arith.constant 2 : index
    %c3_81 = arith.constant 3 : index
    %c0_82 = arith.constant 0 : index
    %c0_83 = arith.constant 0 : index
    %124 = vector.load %arg6[%c2_80, %c3_81, %c0_82, %c0_83] : memref<4x4x64x128xbf16, #tpu.memory_space<vmem>>, vector<1x1x64x128xbf16>
    %125 = vector.shape_cast %124 : vector<1x1x64x128xbf16> to vector<64x128xbf16>
    %cst_84 = arith.constant dense<0.000000e+00> : vector<16x128xf32>
    %126 = tpu.matmul %123, %125, %cst_84 {dimension_numbers = #tpu.dot_dimension_numbers<[1], [0], [0], [1], [0, 0, 1, 1], [], []>} : vector<16x64xbf16>, vector<64x128xbf16>, vector<16x128xf32> -> vector<16x128xf32>
    %127 = arith.addf %120, %126 : vector<16x128xf32>
    %cst_85 = arith.constant dense<0.000000e+00> : vector<128xf32>
    %128 = vector.multi_reduction <add>, %127, %cst_85 [0] : vector<16x128xf32> to vector<128xf32>
    %129 = vector.shape_cast %128 : vector<128xf32> to vector<1x128xf32>
    %130 = arith.addf %90, %129 : vector<1x128xf32>
    %131 = arith.mulf %127, %127 : vector<16x128xf32>
    %cst_86 = arith.constant dense<0.000000e+00> : vector<128xf32>
    %132 = vector.multi_reduction <add>, %131, %cst_86 [0] : vector<16x128xf32> to vector<128xf32>
    %133 = vector.shape_cast %132 : vector<128xf32> to vector<1x128xf32>
    %134 = arith.addf %94, %133 : vector<1x128xf32>
    %135 = arith.truncf %127 : vector<16x128xf32> to vector<16x128xbf16>
    %c2_87 = arith.constant 2 : index
    %c0_88 = arith.constant 0 : index
    %c0_89 = arith.constant 0 : index
    %c0_90 = arith.constant 0 : index
    %136 = vector.load %arg7[%c2_87, %c0_88, %c0_89, %c0_90] : memref<4x1x16x128xbf16, #tpu.memory_space<vmem>>, vector<1x1x16x128xbf16>
    %137 = vector.shape_cast %136 : vector<1x1x16x128xbf16> to vector<16x128xbf16>
    %138 = vector.shape_cast %135 : vector<16x128xbf16> to vector<1x1x16x128xbf16>
    tpu.vector_store %arg7[%c2_87, %c0_88, %c0_89, %c0_90], %138 {strides = array<i32>} : memref<4x1x16x128xbf16, #tpu.memory_space<vmem>>, vector<1x1x16x128xbf16>,
    %cst_91 = arith.constant 0.000000e+00 : f32
    %139 = vector.broadcast %cst_91 : f32 to vector<16x128xf32>
    %140 = vector.extract_strided_slice %16 {offsets = [1, 1, 0], sizes = [4, 4, 64], strides = [1, 1, 1]} : vector<6x6x64xf32> to vector<4x4x64xf32>
    %141 = vector.shape_cast %140 : vector<4x4x64xf32> to vector<16x64xf32>
    %142 = arith.truncf %141 : vector<16x64xf32> to vector<16x64xbf16>
    %c3_92 = arith.constant 3 : index
    %c0_93 = arith.constant 0 : index
    %c0_94 = arith.constant 0 : index
    %c0_95 = arith.constant 0 : index
    %143 = vector.load %arg6[%c3_92, %c0_93, %c0_94, %c0_95] : memref<4x4x64x128xbf16, #tpu.memory_space<vmem>>, vector<1x1x64x128xbf16>
    %144 = vector.shape_cast %143 : vector<1x1x64x128xbf16> to vector<64x128xbf16>
    %cst_96 = arith.constant dense<0.000000e+00> : vector<16x128xf32>
    %145 = tpu.matmul %142, %144, %cst_96 {dimension_numbers = #tpu.dot_dimension_numbers<[1], [0], [0], [1], [0, 0, 1, 1], [], []>} : vector<16x64xbf16>, vector<64x128xbf16>, vector<16x128xf32> -> vector<16x128xf32>
    %146 = arith.addf %139, %145 : vector<16x128xf32>
    %147 = vector.extract_strided_slice %16 {offsets = [1, 2, 0], sizes = [4, 4, 64], strides = [1, 1, 1]} : vector<6x6x64xf32> to vector<4x4x64xf32>
    %148 = vector.shape_cast %147 : vector<4x4x64xf32> to vector<16x64xf32>
    %149 = arith.truncf %148 : vector<16x64xf32> to vector<16x64xbf16>
    %c3_97 = arith.constant 3 : index
    %c1_98 = arith.constant 1 : index
    %c0_99 = arith.constant 0 : index
    %c0_100 = arith.constant 0 : index
    %150 = vector.load %arg6[%c3_97, %c1_98, %c0_99, %c0_100] : memref<4x4x64x128xbf16, #tpu.memory_space<vmem>>, vector<1x1x64x128xbf16>
    %151 = vector.shape_cast %150 : vector<1x1x64x128xbf16> to vector<64x128xbf16>
    %cst_101 = arith.constant dense<0.000000e+00> : vector<16x128xf32>
    %152 = tpu.matmul %149, %151, %cst_101 {dimension_numbers = #tpu.dot_dimension_numbers<[1], [0], [0], [1], [0, 0, 1, 1], [], []>} : vector<16x64xbf16>, vector<64x128xbf16>, vector<16x128xf32> -> vector<16x128xf32>
    %153 = arith.addf %146, %152 : vector<16x128xf32>
    %154 = vector.extract_strided_slice %16 {offsets = [2, 1, 0], sizes = [4, 4, 64], strides = [1, 1, 1]} : vector<6x6x64xf32> to vector<4x4x64xf32>
    %155 = vector.shape_cast %154 : vector<4x4x64xf32> to vector<16x64xf32>
    %156 = arith.truncf %155 : vector<16x64xf32> to vector<16x64xbf16>
    %c3_102 = arith.constant 3 : index
    %c2_103 = arith.constant 2 : index
    %c0_104 = arith.constant 0 : index
    %c0_105 = arith.constant 0 : index
    %157 = vector.load %arg6[%c3_102, %c2_103, %c0_104, %c0_105] : memref<4x4x64x128xbf16, #tpu.memory_space<vmem>>, vector<1x1x64x128xbf16>
    %158 = vector.shape_cast %157 : vector<1x1x64x128xbf16> to vector<64x128xbf16>
    %cst_106 = arith.constant dense<0.000000e+00> : vector<16x128xf32>
    %159 = tpu.matmul %156, %158, %cst_106 {dimension_numbers = #tpu.dot_dimension_numbers<[1], [0], [0], [1], [0, 0, 1, 1], [], []>} : vector<16x64xbf16>, vector<64x128xbf16>, vector<16x128xf32> -> vector<16x128xf32>
    %160 = arith.addf %153, %159 : vector<16x128xf32>
    %161 = vector.extract_strided_slice %16 {offsets = [2, 2, 0], sizes = [4, 4, 64], strides = [1, 1, 1]} : vector<6x6x64xf32> to vector<4x4x64xf32>
    %162 = vector.shape_cast %161 : vector<4x4x64xf32> to vector<16x64xf32>
    %163 = arith.truncf %162 : vector<16x64xf32> to vector<16x64xbf16>
    %c3_107 = arith.constant 3 : index
    %c3_108 = arith.constant 3 : index
    %c0_109 = arith.constant 0 : index
    %c0_110 = arith.constant 0 : index
    %164 = vector.load %arg6[%c3_107, %c3_108, %c0_109, %c0_110] : memref<4x4x64x128xbf16, #tpu.memory_space<vmem>>, vector<1x1x64x128xbf16>
    %165 = vector.shape_cast %164 : vector<1x1x64x128xbf16> to vector<64x128xbf16>
    %cst_111 = arith.constant dense<0.000000e+00> : vector<16x128xf32>
    %166 = tpu.matmul %163, %165, %cst_111 {dimension_numbers = #tpu.dot_dimension_numbers<[1], [0], [0], [1], [0, 0, 1, 1], [], []>} : vector<16x64xbf16>, vector<64x128xbf16>, vector<16x128xf32> -> vector<16x128xf32>
    %167 = arith.addf %160, %166 : vector<16x128xf32>
    %cst_112 = arith.constant dense<0.000000e+00> : vector<128xf32>
    %168 = vector.multi_reduction <add>, %167, %cst_112 [0] : vector<16x128xf32> to vector<128xf32>
    %169 = vector.shape_cast %168 : vector<128xf32> to vector<1x128xf32>
    %170 = arith.addf %130, %169 : vector<1x128xf32>
    %171 = arith.mulf %167, %167 : vector<16x128xf32>
    %cst_113 = arith.constant dense<0.000000e+00> : vector<128xf32>
    %172 = vector.multi_reduction <add>, %171, %cst_113 [0] : vector<16x128xf32> to vector<128xf32>
    %173 = vector.shape_cast %172 : vector<128xf32> to vector<1x128xf32>
    %174 = arith.addf %134, %173 : vector<1x128xf32>
    %175 = arith.truncf %167 : vector<16x128xf32> to vector<16x128xbf16>
    %c3_114 = arith.constant 3 : index
    %c0_115 = arith.constant 0 : index
    %c0_116 = arith.constant 0 : index
    %c0_117 = arith.constant 0 : index
    %176 = vector.load %arg7[%c3_114, %c0_115, %c0_116, %c0_117] : memref<4x1x16x128xbf16, #tpu.memory_space<vmem>>, vector<1x1x16x128xbf16>
    %177 = vector.shape_cast %176 : vector<1x1x16x128xbf16> to vector<16x128xbf16>
    %178 = vector.shape_cast %175 : vector<16x128xbf16> to vector<1x1x16x128xbf16>
    tpu.vector_store %arg7[%c3_114, %c0_115, %c0_116, %c0_117], %178 {strides = array<i32>} : memref<4x1x16x128xbf16, #tpu.memory_space<vmem>>, vector<1x1x16x128xbf16>,
    %179 = tpu.concatenate %170, %174 in 0 : vector<1x128xf32>, vector<1x128xf32> -> vector<2x128xf32>
    %c0_118 = arith.constant 0 : index
    %c0_119 = arith.constant 0 : index
    %c0_120 = arith.constant 0 : index
    %180 = vector.load %arg8[%c0_118, %c0_119, %c0_120] : memref<1x2x128xf32, #tpu.memory_space<vmem>>, vector<1x2x128xf32>
    %181 = vector.shape_cast %180 : vector<1x2x128xf32> to vector<2x128xf32>
    %182 = vector.shape_cast %179 : vector<2x128xf32> to vector<1x2x128xf32>
    tpu.vector_store %arg8[%c0_118, %c0_119, %c0_120], %182 {strides = array<i32>} : memref<1x2x128xf32, #tpu.memory_space<vmem>>, vector<1x2x128xf32>,
    return
  }
  func.func @transform_0(%arg0: i32, %arg1: i32) -> (i32, i32, i32, i32) {
    %c0_i32 = arith.constant 0 : i32
    %c0_i32_0 = arith.constant 0 : i32
    %c0_i32_1 = arith.constant 0 : i32
    %c0_i32_2 = arith.constant 0 : i32
    return %arg0, %c0_i32, %c0_i32_0, %c0_i32_1 : i32, i32, i32, i32
  }
  func.func @transform_1(%arg0: i32, %arg1: i32) -> (i32, i32) {
    %c0_i32 = arith.constant 0 : i32
    %c0_i32_0 = arith.constant 0 : i32
    %c0_i32_1 = arith.constant 0 : i32
    return %c0_i32, %c0_i32_0 : i32, i32
  }
  func.func @transform_2(%arg0: i32, %arg1: i32) -> (i32, i32) {
    %c0_i32 = arith.constant 0 : i32
    %c0_i32_0 = arith.constant 0 : i32
    %c0_i32_1 = arith.constant 0 : i32
    return %c0_i32, %c0_i32_0 : i32, i32
  }
  func.func @transform_3(%arg0: i32, %arg1: i32) -> (i32, i32, i32, i32) {
    %c0_i32 = arith.constant 0 : i32
    %c0_i32_0 = arith.constant 0 : i32
    %c0_i32_1 = arith.constant 0 : i32
    %c0_i32_2 = arith.constant 0 : i32
    %c0_i32_3 = arith.constant 0 : i32
    return %c0_i32, %c0_i32_0, %c0_i32_1, %c0_i32_2 : i32, i32, i32, i32
  }
  func.func @transform_4(%arg0: i32, %arg1: i32) -> (i32, i32, i32, i32) {
    %c0_i32 = arith.constant 0 : i32
    %c0_i32_0 = arith.constant 0 : i32
    %c0_i32_1 = arith.constant 0 : i32
    %c0_i32_2 = arith.constant 0 : i32
    return %c0_i32, %c0_i32_0, %c0_i32_1, %arg1 : i32, i32, i32, i32
  }
  func.func @transform_5(%arg0: i32, %arg1: i32) -> (i32, i32, i32, i32) {
    %c0_i32 = arith.constant 0 : i32
    %c0_i32_0 = arith.constant 0 : i32
    %c0_i32_1 = arith.constant 0 : i32
    return %c0_i32, %arg0, %c0_i32_0, %arg1 : i32, i32, i32, i32
  }
  func.func @transform_6(%arg0: i32, %arg1: i32) -> (i32, i32, i32) {
    %c0_i32 = arith.constant 0 : i32
    %c0_i32_0 = arith.constant 0 : i32
    return %arg0, %c0_i32, %arg1 : i32, i32, i32
  }
}

module attributes {stable_mosaic.version = 11 : i64} {
  func.func @_convt_kernel(%arg0: i32, %arg1: i32, %arg2: memref<1x10x10x32xbf16, #tpu.memory_space<vmem>>, %arg3: memref<1x32xf32, #tpu.memory_space<vmem>>, %arg4: memref<1x32xf32, #tpu.memory_space<vmem>>, %arg5: memref<1x10x10x1xf32, #tpu.memory_space<vmem>>, %arg6: memref<4x4x32x128xbf16, #tpu.memory_space<vmem>>, %arg7: memref<4x1x64x128xbf16, #tpu.memory_space<vmem>>, %arg8: memref<1x2x128xf32, #tpu.memory_space<vmem>>) attributes {dimension_semantics = [#tpu.dimension_semantics<parallel>, #tpu.dimension_semantics<parallel>], iteration_bounds = array<i64: 2, 1>, scalar_prefetch = 0 : i64, scratch_operands = 0 : i64, tpu.core_type = #tpu.core_type<tc>, window_params = [{transform_indices = @transform_0, window_bounds = array<i64: 1, 10, 10, 32>}, {pipeline_mode = #tpu.pipeline_mode<synchronous>, transform_indices = @transform_1, window_bounds = array<i64: 1, 32>}, {pipeline_mode = #tpu.pipeline_mode<synchronous>, transform_indices = @transform_2, window_bounds = array<i64: 1, 32>}, {pipeline_mode = #tpu.pipeline_mode<synchronous>, transform_indices = @transform_3, window_bounds = array<i64: 1, 10, 10, 1>}, {transform_indices = @transform_4, window_bounds = array<i64: 4, 4, 32, 128>}, {transform_indices = @transform_5, window_bounds = array<i64: 4, 1, 64, 128>}, {transform_indices = @transform_6, window_bounds = array<i64: 1, 2, 128>}]} {
    %c0 = arith.constant 0 : index
    %c0_0 = arith.constant 0 : index
    %c0_1 = arith.constant 0 : index
    %c0_2 = arith.constant 0 : index
    %0 = vector.load %arg2[%c0, %c0_0, %c0_1, %c0_2] : memref<1x10x10x32xbf16, #tpu.memory_space<vmem>>, vector<1x10x10x32xbf16>
    %1 = vector.shape_cast %0 : vector<1x10x10x32xbf16> to vector<10x10x32xbf16>
    %2 = arith.extf %1 : vector<10x10x32xbf16> to vector<10x10x32xf32>
    %c0_3 = arith.constant 0 : index
    %c0_4 = arith.constant 0 : index
    %3 = vector.load %arg3[%c0_3, %c0_4] : memref<1x32xf32, #tpu.memory_space<vmem>>, vector<1x32xf32>
    %4 = vector.shape_cast %3 : vector<1x32xf32> to vector<1x1x32xf32>
    %5 = vector.broadcast %4 : vector<1x1x32xf32> to vector<10x10x32xf32>
    %6 = arith.mulf %2, %5 : vector<10x10x32xf32>
    %c0_5 = arith.constant 0 : index
    %c0_6 = arith.constant 0 : index
    %7 = vector.load %arg4[%c0_5, %c0_6] : memref<1x32xf32, #tpu.memory_space<vmem>>, vector<1x32xf32>
    %8 = vector.shape_cast %7 : vector<1x32xf32> to vector<1x1x32xf32>
    %9 = vector.broadcast %8 : vector<1x1x32xf32> to vector<10x10x32xf32>
    %10 = arith.addf %6, %9 : vector<10x10x32xf32>
    %cst = arith.constant 0.000000e+00 : f32
    %11 = vector.broadcast %cst : f32 to vector<10x10x32xf32>
    %12 = arith.maximumf %10, %11 : vector<10x10x32xf32>
    %c0_7 = arith.constant 0 : index
    %c0_8 = arith.constant 0 : index
    %c0_9 = arith.constant 0 : index
    %c0_10 = arith.constant 0 : index
    %13 = vector.load %arg5[%c0_7, %c0_8, %c0_9, %c0_10] : memref<1x10x10x1xf32, #tpu.memory_space<vmem>>, vector<1x10x10x1xf32>
    %14 = vector.shape_cast %13 : vector<1x10x10x1xf32> to vector<10x10x1xf32>
    %15 = vector.broadcast %14 : vector<10x10x1xf32> to vector<10x10x32xf32>
    %16 = arith.mulf %12, %15 : vector<10x10x32xf32>
    %cst_11 = arith.constant 0.000000e+00 : f32
    %17 = vector.broadcast %cst_11 : f32 to vector<1x128xf32>
    %cst_12 = arith.constant 0.000000e+00 : f32
    %18 = vector.broadcast %cst_12 : f32 to vector<1x128xf32>
    %cst_13 = arith.constant 0.000000e+00 : f32
    %19 = vector.broadcast %cst_13 : f32 to vector<64x128xf32>
    %20 = vector.extract_strided_slice %16 {offsets = [0, 0, 0], sizes = [8, 8, 32], strides = [1, 1, 1]} : vector<10x10x32xf32> to vector<8x8x32xf32>
    %21 = vector.shape_cast %20 : vector<8x8x32xf32> to vector<64x32xf32>
    %22 = arith.truncf %21 : vector<64x32xf32> to vector<64x32xbf16>
    %c0_14 = arith.constant 0 : index
    %c0_15 = arith.constant 0 : index
    %c0_16 = arith.constant 0 : index
    %c0_17 = arith.constant 0 : index
    %23 = vector.load %arg6[%c0_14, %c0_15, %c0_16, %c0_17] : memref<4x4x32x128xbf16, #tpu.memory_space<vmem>>, vector<1x1x32x128xbf16>
    %24 = vector.shape_cast %23 : vector<1x1x32x128xbf16> to vector<32x128xbf16>
    %cst_18 = arith.constant dense<0.000000e+00> : vector<64x128xf32>
    %25 = tpu.matmul %22, %24, %cst_18 {dimension_numbers = #tpu.dot_dimension_numbers<[1], [0], [0], [1], [0, 0, 1, 1], [], []>} : vector<64x32xbf16>, vector<32x128xbf16>, vector<64x128xf32> -> vector<64x128xf32>
    %26 = arith.addf %19, %25 : vector<64x128xf32>
    %27 = vector.extract_strided_slice %16 {offsets = [0, 1, 0], sizes = [8, 8, 32], strides = [1, 1, 1]} : vector<10x10x32xf32> to vector<8x8x32xf32>
    %28 = vector.shape_cast %27 : vector<8x8x32xf32> to vector<64x32xf32>
    %29 = arith.truncf %28 : vector<64x32xf32> to vector<64x32xbf16>
    %c0_19 = arith.constant 0 : index
    %c1 = arith.constant 1 : index
    %c0_20 = arith.constant 0 : index
    %c0_21 = arith.constant 0 : index
    %30 = vector.load %arg6[%c0_19, %c1, %c0_20, %c0_21] : memref<4x4x32x128xbf16, #tpu.memory_space<vmem>>, vector<1x1x32x128xbf16>
    %31 = vector.shape_cast %30 : vector<1x1x32x128xbf16> to vector<32x128xbf16>
    %cst_22 = arith.constant dense<0.000000e+00> : vector<64x128xf32>
    %32 = tpu.matmul %29, %31, %cst_22 {dimension_numbers = #tpu.dot_dimension_numbers<[1], [0], [0], [1], [0, 0, 1, 1], [], []>} : vector<64x32xbf16>, vector<32x128xbf16>, vector<64x128xf32> -> vector<64x128xf32>
    %33 = arith.addf %26, %32 : vector<64x128xf32>
    %34 = vector.extract_strided_slice %16 {offsets = [1, 0, 0], sizes = [8, 8, 32], strides = [1, 1, 1]} : vector<10x10x32xf32> to vector<8x8x32xf32>
    %35 = vector.shape_cast %34 : vector<8x8x32xf32> to vector<64x32xf32>
    %36 = arith.truncf %35 : vector<64x32xf32> to vector<64x32xbf16>
    %c0_23 = arith.constant 0 : index
    %c2 = arith.constant 2 : index
    %c0_24 = arith.constant 0 : index
    %c0_25 = arith.constant 0 : index
    %37 = vector.load %arg6[%c0_23, %c2, %c0_24, %c0_25] : memref<4x4x32x128xbf16, #tpu.memory_space<vmem>>, vector<1x1x32x128xbf16>
    %38 = vector.shape_cast %37 : vector<1x1x32x128xbf16> to vector<32x128xbf16>
    %cst_26 = arith.constant dense<0.000000e+00> : vector<64x128xf32>
    %39 = tpu.matmul %36, %38, %cst_26 {dimension_numbers = #tpu.dot_dimension_numbers<[1], [0], [0], [1], [0, 0, 1, 1], [], []>} : vector<64x32xbf16>, vector<32x128xbf16>, vector<64x128xf32> -> vector<64x128xf32>
    %40 = arith.addf %33, %39 : vector<64x128xf32>
    %41 = vector.extract_strided_slice %16 {offsets = [1, 1, 0], sizes = [8, 8, 32], strides = [1, 1, 1]} : vector<10x10x32xf32> to vector<8x8x32xf32>
    %42 = vector.shape_cast %41 : vector<8x8x32xf32> to vector<64x32xf32>
    %43 = arith.truncf %42 : vector<64x32xf32> to vector<64x32xbf16>
    %c0_27 = arith.constant 0 : index
    %c3 = arith.constant 3 : index
    %c0_28 = arith.constant 0 : index
    %c0_29 = arith.constant 0 : index
    %44 = vector.load %arg6[%c0_27, %c3, %c0_28, %c0_29] : memref<4x4x32x128xbf16, #tpu.memory_space<vmem>>, vector<1x1x32x128xbf16>
    %45 = vector.shape_cast %44 : vector<1x1x32x128xbf16> to vector<32x128xbf16>
    %cst_30 = arith.constant dense<0.000000e+00> : vector<64x128xf32>
    %46 = tpu.matmul %43, %45, %cst_30 {dimension_numbers = #tpu.dot_dimension_numbers<[1], [0], [0], [1], [0, 0, 1, 1], [], []>} : vector<64x32xbf16>, vector<32x128xbf16>, vector<64x128xf32> -> vector<64x128xf32>
    %47 = arith.addf %40, %46 : vector<64x128xf32>
    %cst_31 = arith.constant dense<0.000000e+00> : vector<128xf32>
    %48 = vector.multi_reduction <add>, %47, %cst_31 [0] : vector<64x128xf32> to vector<128xf32>
    %49 = vector.shape_cast %48 : vector<128xf32> to vector<1x128xf32>
    %50 = arith.addf %17, %49 : vector<1x128xf32>
    %51 = arith.mulf %47, %47 : vector<64x128xf32>
    %cst_32 = arith.constant dense<0.000000e+00> : vector<128xf32>
    %52 = vector.multi_reduction <add>, %51, %cst_32 [0] : vector<64x128xf32> to vector<128xf32>
    %53 = vector.shape_cast %52 : vector<128xf32> to vector<1x128xf32>
    %54 = arith.addf %18, %53 : vector<1x128xf32>
    %55 = arith.truncf %47 : vector<64x128xf32> to vector<64x128xbf16>
    %c0_33 = arith.constant 0 : index
    %c0_34 = arith.constant 0 : index
    %c0_35 = arith.constant 0 : index
    %c0_36 = arith.constant 0 : index
    %56 = vector.load %arg7[%c0_33, %c0_34, %c0_35, %c0_36] : memref<4x1x64x128xbf16, #tpu.memory_space<vmem>>, vector<1x1x64x128xbf16>
    %57 = vector.shape_cast %56 : vector<1x1x64x128xbf16> to vector<64x128xbf16>
    %58 = vector.shape_cast %55 : vector<64x128xbf16> to vector<1x1x64x128xbf16>
    tpu.vector_store %arg7[%c0_33, %c0_34, %c0_35, %c0_36], %58 {strides = array<i32>} : memref<4x1x64x128xbf16, #tpu.memory_space<vmem>>, vector<1x1x64x128xbf16>,
    %cst_37 = arith.constant 0.000000e+00 : f32
    %59 = vector.broadcast %cst_37 : f32 to vector<64x128xf32>
    %60 = vector.extract_strided_slice %16 {offsets = [0, 1, 0], sizes = [8, 8, 32], strides = [1, 1, 1]} : vector<10x10x32xf32> to vector<8x8x32xf32>
    %61 = vector.shape_cast %60 : vector<8x8x32xf32> to vector<64x32xf32>
    %62 = arith.truncf %61 : vector<64x32xf32> to vector<64x32xbf16>
    %c1_38 = arith.constant 1 : index
    %c0_39 = arith.constant 0 : index
    %c0_40 = arith.constant 0 : index
    %c0_41 = arith.constant 0 : index
    %63 = vector.load %arg6[%c1_38, %c0_39, %c0_40, %c0_41] : memref<4x4x32x128xbf16, #tpu.memory_space<vmem>>, vector<1x1x32x128xbf16>
    %64 = vector.shape_cast %63 : vector<1x1x32x128xbf16> to vector<32x128xbf16>
    %cst_42 = arith.constant dense<0.000000e+00> : vector<64x128xf32>
    %65 = tpu.matmul %62, %64, %cst_42 {dimension_numbers = #tpu.dot_dimension_numbers<[1], [0], [0], [1], [0, 0, 1, 1], [], []>} : vector<64x32xbf16>, vector<32x128xbf16>, vector<64x128xf32> -> vector<64x128xf32>
    %66 = arith.addf %59, %65 : vector<64x128xf32>
    %67 = vector.extract_strided_slice %16 {offsets = [0, 2, 0], sizes = [8, 8, 32], strides = [1, 1, 1]} : vector<10x10x32xf32> to vector<8x8x32xf32>
    %68 = vector.shape_cast %67 : vector<8x8x32xf32> to vector<64x32xf32>
    %69 = arith.truncf %68 : vector<64x32xf32> to vector<64x32xbf16>
    %c1_43 = arith.constant 1 : index
    %c1_44 = arith.constant 1 : index
    %c0_45 = arith.constant 0 : index
    %c0_46 = arith.constant 0 : index
    %70 = vector.load %arg6[%c1_43, %c1_44, %c0_45, %c0_46] : memref<4x4x32x128xbf16, #tpu.memory_space<vmem>>, vector<1x1x32x128xbf16>
    %71 = vector.shape_cast %70 : vector<1x1x32x128xbf16> to vector<32x128xbf16>
    %cst_47 = arith.constant dense<0.000000e+00> : vector<64x128xf32>
    %72 = tpu.matmul %69, %71, %cst_47 {dimension_numbers = #tpu.dot_dimension_numbers<[1], [0], [0], [1], [0, 0, 1, 1], [], []>} : vector<64x32xbf16>, vector<32x128xbf16>, vector<64x128xf32> -> vector<64x128xf32>
    %73 = arith.addf %66, %72 : vector<64x128xf32>
    %74 = vector.extract_strided_slice %16 {offsets = [1, 1, 0], sizes = [8, 8, 32], strides = [1, 1, 1]} : vector<10x10x32xf32> to vector<8x8x32xf32>
    %75 = vector.shape_cast %74 : vector<8x8x32xf32> to vector<64x32xf32>
    %76 = arith.truncf %75 : vector<64x32xf32> to vector<64x32xbf16>
    %c1_48 = arith.constant 1 : index
    %c2_49 = arith.constant 2 : index
    %c0_50 = arith.constant 0 : index
    %c0_51 = arith.constant 0 : index
    %77 = vector.load %arg6[%c1_48, %c2_49, %c0_50, %c0_51] : memref<4x4x32x128xbf16, #tpu.memory_space<vmem>>, vector<1x1x32x128xbf16>
    %78 = vector.shape_cast %77 : vector<1x1x32x128xbf16> to vector<32x128xbf16>
    %cst_52 = arith.constant dense<0.000000e+00> : vector<64x128xf32>
    %79 = tpu.matmul %76, %78, %cst_52 {dimension_numbers = #tpu.dot_dimension_numbers<[1], [0], [0], [1], [0, 0, 1, 1], [], []>} : vector<64x32xbf16>, vector<32x128xbf16>, vector<64x128xf32> -> vector<64x128xf32>
    %80 = arith.addf %73, %79 : vector<64x128xf32>
    %81 = vector.extract_strided_slice %16 {offsets = [1, 2, 0], sizes = [8, 8, 32], strides = [1, 1, 1]} : vector<10x10x32xf32> to vector<8x8x32xf32>
    %82 = vector.shape_cast %81 : vector<8x8x32xf32> to vector<64x32xf32>
    %83 = arith.truncf %82 : vector<64x32xf32> to vector<64x32xbf16>
    %c1_53 = arith.constant 1 : index
    %c3_54 = arith.constant 3 : index
    %c0_55 = arith.constant 0 : index
    %c0_56 = arith.constant 0 : index
    %84 = vector.load %arg6[%c1_53, %c3_54, %c0_55, %c0_56] : memref<4x4x32x128xbf16, #tpu.memory_space<vmem>>, vector<1x1x32x128xbf16>
    %85 = vector.shape_cast %84 : vector<1x1x32x128xbf16> to vector<32x128xbf16>
    %cst_57 = arith.constant dense<0.000000e+00> : vector<64x128xf32>
    %86 = tpu.matmul %83, %85, %cst_57 {dimension_numbers = #tpu.dot_dimension_numbers<[1], [0], [0], [1], [0, 0, 1, 1], [], []>} : vector<64x32xbf16>, vector<32x128xbf16>, vector<64x128xf32> -> vector<64x128xf32>
    %87 = arith.addf %80, %86 : vector<64x128xf32>
    %cst_58 = arith.constant dense<0.000000e+00> : vector<128xf32>
    %88 = vector.multi_reduction <add>, %87, %cst_58 [0] : vector<64x128xf32> to vector<128xf32>
    %89 = vector.shape_cast %88 : vector<128xf32> to vector<1x128xf32>
    %90 = arith.addf %50, %89 : vector<1x128xf32>
    %91 = arith.mulf %87, %87 : vector<64x128xf32>
    %cst_59 = arith.constant dense<0.000000e+00> : vector<128xf32>
    %92 = vector.multi_reduction <add>, %91, %cst_59 [0] : vector<64x128xf32> to vector<128xf32>
    %93 = vector.shape_cast %92 : vector<128xf32> to vector<1x128xf32>
    %94 = arith.addf %54, %93 : vector<1x128xf32>
    %95 = arith.truncf %87 : vector<64x128xf32> to vector<64x128xbf16>
    %c1_60 = arith.constant 1 : index
    %c0_61 = arith.constant 0 : index
    %c0_62 = arith.constant 0 : index
    %c0_63 = arith.constant 0 : index
    %96 = vector.load %arg7[%c1_60, %c0_61, %c0_62, %c0_63] : memref<4x1x64x128xbf16, #tpu.memory_space<vmem>>, vector<1x1x64x128xbf16>
    %97 = vector.shape_cast %96 : vector<1x1x64x128xbf16> to vector<64x128xbf16>
    %98 = vector.shape_cast %95 : vector<64x128xbf16> to vector<1x1x64x128xbf16>
    tpu.vector_store %arg7[%c1_60, %c0_61, %c0_62, %c0_63], %98 {strides = array<i32>} : memref<4x1x64x128xbf16, #tpu.memory_space<vmem>>, vector<1x1x64x128xbf16>,
    %cst_64 = arith.constant 0.000000e+00 : f32
    %99 = vector.broadcast %cst_64 : f32 to vector<64x128xf32>
    %100 = vector.extract_strided_slice %16 {offsets = [1, 0, 0], sizes = [8, 8, 32], strides = [1, 1, 1]} : vector<10x10x32xf32> to vector<8x8x32xf32>
    %101 = vector.shape_cast %100 : vector<8x8x32xf32> to vector<64x32xf32>
    %102 = arith.truncf %101 : vector<64x32xf32> to vector<64x32xbf16>
    %c2_65 = arith.constant 2 : index
    %c0_66 = arith.constant 0 : index
    %c0_67 = arith.constant 0 : index
    %c0_68 = arith.constant 0 : index
    %103 = vector.load %arg6[%c2_65, %c0_66, %c0_67, %c0_68] : memref<4x4x32x128xbf16, #tpu.memory_space<vmem>>, vector<1x1x32x128xbf16>
    %104 = vector.shape_cast %103 : vector<1x1x32x128xbf16> to vector<32x128xbf16>
    %cst_69 = arith.constant dense<0.000000e+00> : vector<64x128xf32>
    %105 = tpu.matmul %102, %104, %cst_69 {dimension_numbers = #tpu.dot_dimension_numbers<[1], [0], [0], [1], [0, 0, 1, 1], [], []>} : vector<64x32xbf16>, vector<32x128xbf16>, vector<64x128xf32> -> vector<64x128xf32>
    %106 = arith.addf %99, %105 : vector<64x128xf32>
    %107 = vector.extract_strided_slice %16 {offsets = [1, 1, 0], sizes = [8, 8, 32], strides = [1, 1, 1]} : vector<10x10x32xf32> to vector<8x8x32xf32>
    %108 = vector.shape_cast %107 : vector<8x8x32xf32> to vector<64x32xf32>
    %109 = arith.truncf %108 : vector<64x32xf32> to vector<64x32xbf16>
    %c2_70 = arith.constant 2 : index
    %c1_71 = arith.constant 1 : index
    %c0_72 = arith.constant 0 : index
    %c0_73 = arith.constant 0 : index
    %110 = vector.load %arg6[%c2_70, %c1_71, %c0_72, %c0_73] : memref<4x4x32x128xbf16, #tpu.memory_space<vmem>>, vector<1x1x32x128xbf16>
    %111 = vector.shape_cast %110 : vector<1x1x32x128xbf16> to vector<32x128xbf16>
    %cst_74 = arith.constant dense<0.000000e+00> : vector<64x128xf32>
    %112 = tpu.matmul %109, %111, %cst_74 {dimension_numbers = #tpu.dot_dimension_numbers<[1], [0], [0], [1], [0, 0, 1, 1], [], []>} : vector<64x32xbf16>, vector<32x128xbf16>, vector<64x128xf32> -> vector<64x128xf32>
    %113 = arith.addf %106, %112 : vector<64x128xf32>
    %114 = vector.extract_strided_slice %16 {offsets = [2, 0, 0], sizes = [8, 8, 32], strides = [1, 1, 1]} : vector<10x10x32xf32> to vector<8x8x32xf32>
    %115 = vector.shape_cast %114 : vector<8x8x32xf32> to vector<64x32xf32>
    %116 = arith.truncf %115 : vector<64x32xf32> to vector<64x32xbf16>
    %c2_75 = arith.constant 2 : index
    %c2_76 = arith.constant 2 : index
    %c0_77 = arith.constant 0 : index
    %c0_78 = arith.constant 0 : index
    %117 = vector.load %arg6[%c2_75, %c2_76, %c0_77, %c0_78] : memref<4x4x32x128xbf16, #tpu.memory_space<vmem>>, vector<1x1x32x128xbf16>
    %118 = vector.shape_cast %117 : vector<1x1x32x128xbf16> to vector<32x128xbf16>
    %cst_79 = arith.constant dense<0.000000e+00> : vector<64x128xf32>
    %119 = tpu.matmul %116, %118, %cst_79 {dimension_numbers = #tpu.dot_dimension_numbers<[1], [0], [0], [1], [0, 0, 1, 1], [], []>} : vector<64x32xbf16>, vector<32x128xbf16>, vector<64x128xf32> -> vector<64x128xf32>
    %120 = arith.addf %113, %119 : vector<64x128xf32>
    %121 = vector.extract_strided_slice %16 {offsets = [2, 1, 0], sizes = [8, 8, 32], strides = [1, 1, 1]} : vector<10x10x32xf32> to vector<8x8x32xf32>
    %122 = vector.shape_cast %121 : vector<8x8x32xf32> to vector<64x32xf32>
    %123 = arith.truncf %122 : vector<64x32xf32> to vector<64x32xbf16>
    %c2_80 = arith.constant 2 : index
    %c3_81 = arith.constant 3 : index
    %c0_82 = arith.constant 0 : index
    %c0_83 = arith.constant 0 : index
    %124 = vector.load %arg6[%c2_80, %c3_81, %c0_82, %c0_83] : memref<4x4x32x128xbf16, #tpu.memory_space<vmem>>, vector<1x1x32x128xbf16>
    %125 = vector.shape_cast %124 : vector<1x1x32x128xbf16> to vector<32x128xbf16>
    %cst_84 = arith.constant dense<0.000000e+00> : vector<64x128xf32>
    %126 = tpu.matmul %123, %125, %cst_84 {dimension_numbers = #tpu.dot_dimension_numbers<[1], [0], [0], [1], [0, 0, 1, 1], [], []>} : vector<64x32xbf16>, vector<32x128xbf16>, vector<64x128xf32> -> vector<64x128xf32>
    %127 = arith.addf %120, %126 : vector<64x128xf32>
    %cst_85 = arith.constant dense<0.000000e+00> : vector<128xf32>
    %128 = vector.multi_reduction <add>, %127, %cst_85 [0] : vector<64x128xf32> to vector<128xf32>
    %129 = vector.shape_cast %128 : vector<128xf32> to vector<1x128xf32>
    %130 = arith.addf %90, %129 : vector<1x128xf32>
    %131 = arith.mulf %127, %127 : vector<64x128xf32>
    %cst_86 = arith.constant dense<0.000000e+00> : vector<128xf32>
    %132 = vector.multi_reduction <add>, %131, %cst_86 [0] : vector<64x128xf32> to vector<128xf32>
    %133 = vector.shape_cast %132 : vector<128xf32> to vector<1x128xf32>
    %134 = arith.addf %94, %133 : vector<1x128xf32>
    %135 = arith.truncf %127 : vector<64x128xf32> to vector<64x128xbf16>
    %c2_87 = arith.constant 2 : index
    %c0_88 = arith.constant 0 : index
    %c0_89 = arith.constant 0 : index
    %c0_90 = arith.constant 0 : index
    %136 = vector.load %arg7[%c2_87, %c0_88, %c0_89, %c0_90] : memref<4x1x64x128xbf16, #tpu.memory_space<vmem>>, vector<1x1x64x128xbf16>
    %137 = vector.shape_cast %136 : vector<1x1x64x128xbf16> to vector<64x128xbf16>
    %138 = vector.shape_cast %135 : vector<64x128xbf16> to vector<1x1x64x128xbf16>
    tpu.vector_store %arg7[%c2_87, %c0_88, %c0_89, %c0_90], %138 {strides = array<i32>} : memref<4x1x64x128xbf16, #tpu.memory_space<vmem>>, vector<1x1x64x128xbf16>,
    %cst_91 = arith.constant 0.000000e+00 : f32
    %139 = vector.broadcast %cst_91 : f32 to vector<64x128xf32>
    %140 = vector.extract_strided_slice %16 {offsets = [1, 1, 0], sizes = [8, 8, 32], strides = [1, 1, 1]} : vector<10x10x32xf32> to vector<8x8x32xf32>
    %141 = vector.shape_cast %140 : vector<8x8x32xf32> to vector<64x32xf32>
    %142 = arith.truncf %141 : vector<64x32xf32> to vector<64x32xbf16>
    %c3_92 = arith.constant 3 : index
    %c0_93 = arith.constant 0 : index
    %c0_94 = arith.constant 0 : index
    %c0_95 = arith.constant 0 : index
    %143 = vector.load %arg6[%c3_92, %c0_93, %c0_94, %c0_95] : memref<4x4x32x128xbf16, #tpu.memory_space<vmem>>, vector<1x1x32x128xbf16>
    %144 = vector.shape_cast %143 : vector<1x1x32x128xbf16> to vector<32x128xbf16>
    %cst_96 = arith.constant dense<0.000000e+00> : vector<64x128xf32>
    %145 = tpu.matmul %142, %144, %cst_96 {dimension_numbers = #tpu.dot_dimension_numbers<[1], [0], [0], [1], [0, 0, 1, 1], [], []>} : vector<64x32xbf16>, vector<32x128xbf16>, vector<64x128xf32> -> vector<64x128xf32>
    %146 = arith.addf %139, %145 : vector<64x128xf32>
    %147 = vector.extract_strided_slice %16 {offsets = [1, 2, 0], sizes = [8, 8, 32], strides = [1, 1, 1]} : vector<10x10x32xf32> to vector<8x8x32xf32>
    %148 = vector.shape_cast %147 : vector<8x8x32xf32> to vector<64x32xf32>
    %149 = arith.truncf %148 : vector<64x32xf32> to vector<64x32xbf16>
    %c3_97 = arith.constant 3 : index
    %c1_98 = arith.constant 1 : index
    %c0_99 = arith.constant 0 : index
    %c0_100 = arith.constant 0 : index
    %150 = vector.load %arg6[%c3_97, %c1_98, %c0_99, %c0_100] : memref<4x4x32x128xbf16, #tpu.memory_space<vmem>>, vector<1x1x32x128xbf16>
    %151 = vector.shape_cast %150 : vector<1x1x32x128xbf16> to vector<32x128xbf16>
    %cst_101 = arith.constant dense<0.000000e+00> : vector<64x128xf32>
    %152 = tpu.matmul %149, %151, %cst_101 {dimension_numbers = #tpu.dot_dimension_numbers<[1], [0], [0], [1], [0, 0, 1, 1], [], []>} : vector<64x32xbf16>, vector<32x128xbf16>, vector<64x128xf32> -> vector<64x128xf32>
    %153 = arith.addf %146, %152 : vector<64x128xf32>
    %154 = vector.extract_strided_slice %16 {offsets = [2, 1, 0], sizes = [8, 8, 32], strides = [1, 1, 1]} : vector<10x10x32xf32> to vector<8x8x32xf32>
    %155 = vector.shape_cast %154 : vector<8x8x32xf32> to vector<64x32xf32>
    %156 = arith.truncf %155 : vector<64x32xf32> to vector<64x32xbf16>
    %c3_102 = arith.constant 3 : index
    %c2_103 = arith.constant 2 : index
    %c0_104 = arith.constant 0 : index
    %c0_105 = arith.constant 0 : index
    %157 = vector.load %arg6[%c3_102, %c2_103, %c0_104, %c0_105] : memref<4x4x32x128xbf16, #tpu.memory_space<vmem>>, vector<1x1x32x128xbf16>
    %158 = vector.shape_cast %157 : vector<1x1x32x128xbf16> to vector<32x128xbf16>
    %cst_106 = arith.constant dense<0.000000e+00> : vector<64x128xf32>
    %159 = tpu.matmul %156, %158, %cst_106 {dimension_numbers = #tpu.dot_dimension_numbers<[1], [0], [0], [1], [0, 0, 1, 1], [], []>} : vector<64x32xbf16>, vector<32x128xbf16>, vector<64x128xf32> -> vector<64x128xf32>
    %160 = arith.addf %153, %159 : vector<64x128xf32>
    %161 = vector.extract_strided_slice %16 {offsets = [2, 2, 0], sizes = [8, 8, 32], strides = [1, 1, 1]} : vector<10x10x32xf32> to vector<8x8x32xf32>
    %162 = vector.shape_cast %161 : vector<8x8x32xf32> to vector<64x32xf32>
    %163 = arith.truncf %162 : vector<64x32xf32> to vector<64x32xbf16>
    %c3_107 = arith.constant 3 : index
    %c3_108 = arith.constant 3 : index
    %c0_109 = arith.constant 0 : index
    %c0_110 = arith.constant 0 : index
    %164 = vector.load %arg6[%c3_107, %c3_108, %c0_109, %c0_110] : memref<4x4x32x128xbf16, #tpu.memory_space<vmem>>, vector<1x1x32x128xbf16>
    %165 = vector.shape_cast %164 : vector<1x1x32x128xbf16> to vector<32x128xbf16>
    %cst_111 = arith.constant dense<0.000000e+00> : vector<64x128xf32>
    %166 = tpu.matmul %163, %165, %cst_111 {dimension_numbers = #tpu.dot_dimension_numbers<[1], [0], [0], [1], [0, 0, 1, 1], [], []>} : vector<64x32xbf16>, vector<32x128xbf16>, vector<64x128xf32> -> vector<64x128xf32>
    %167 = arith.addf %160, %166 : vector<64x128xf32>
    %cst_112 = arith.constant dense<0.000000e+00> : vector<128xf32>
    %168 = vector.multi_reduction <add>, %167, %cst_112 [0] : vector<64x128xf32> to vector<128xf32>
    %169 = vector.shape_cast %168 : vector<128xf32> to vector<1x128xf32>
    %170 = arith.addf %130, %169 : vector<1x128xf32>
    %171 = arith.mulf %167, %167 : vector<64x128xf32>
    %cst_113 = arith.constant dense<0.000000e+00> : vector<128xf32>
    %172 = vector.multi_reduction <add>, %171, %cst_113 [0] : vector<64x128xf32> to vector<128xf32>
    %173 = vector.shape_cast %172 : vector<128xf32> to vector<1x128xf32>
    %174 = arith.addf %134, %173 : vector<1x128xf32>
    %175 = arith.truncf %167 : vector<64x128xf32> to vector<64x128xbf16>
    %c3_114 = arith.constant 3 : index
    %c0_115 = arith.constant 0 : index
    %c0_116 = arith.constant 0 : index
    %c0_117 = arith.constant 0 : index
    %176 = vector.load %arg7[%c3_114, %c0_115, %c0_116, %c0_117] : memref<4x1x64x128xbf16, #tpu.memory_space<vmem>>, vector<1x1x64x128xbf16>
    %177 = vector.shape_cast %176 : vector<1x1x64x128xbf16> to vector<64x128xbf16>
    %178 = vector.shape_cast %175 : vector<64x128xbf16> to vector<1x1x64x128xbf16>
    tpu.vector_store %arg7[%c3_114, %c0_115, %c0_116, %c0_117], %178 {strides = array<i32>} : memref<4x1x64x128xbf16, #tpu.memory_space<vmem>>, vector<1x1x64x128xbf16>,
    %179 = tpu.concatenate %170, %174 in 0 : vector<1x128xf32>, vector<1x128xf32> -> vector<2x128xf32>
    %c0_118 = arith.constant 0 : index
    %c0_119 = arith.constant 0 : index
    %c0_120 = arith.constant 0 : index
    %180 = vector.load %arg8[%c0_118, %c0_119, %c0_120] : memref<1x2x128xf32, #tpu.memory_space<vmem>>, vector<1x2x128xf32>
    %181 = vector.shape_cast %180 : vector<1x2x128xf32> to vector<2x128xf32>
    %182 = vector.shape_cast %179 : vector<2x128xf32> to vector<1x2x128xf32>
    tpu.vector_store %arg8[%c0_118, %c0_119, %c0_120], %182 {strides = array<i32>} : memref<1x2x128xf32, #tpu.memory_space<vmem>>, vector<1x2x128xf32>,
    return
  }
  func.func @transform_0(%arg0: i32, %arg1: i32) -> (i32, i32, i32, i32) {
    %c0_i32 = arith.constant 0 : i32
    %c0_i32_0 = arith.constant 0 : i32
    %c0_i32_1 = arith.constant 0 : i32
    %c0_i32_2 = arith.constant 0 : i32
    return %arg0, %c0_i32, %c0_i32_0, %c0_i32_1 : i32, i32, i32, i32
  }
  func.func @transform_1(%arg0: i32, %arg1: i32) -> (i32, i32) {
    %c0_i32 = arith.constant 0 : i32
    %c0_i32_0 = arith.constant 0 : i32
    %c0_i32_1 = arith.constant 0 : i32
    return %c0_i32, %c0_i32_0 : i32, i32
  }
  func.func @transform_2(%arg0: i32, %arg1: i32) -> (i32, i32) {
    %c0_i32 = arith.constant 0 : i32
    %c0_i32_0 = arith.constant 0 : i32
    %c0_i32_1 = arith.constant 0 : i32
    return %c0_i32, %c0_i32_0 : i32, i32
  }
  func.func @transform_3(%arg0: i32, %arg1: i32) -> (i32, i32, i32, i32) {
    %c0_i32 = arith.constant 0 : i32
    %c0_i32_0 = arith.constant 0 : i32
    %c0_i32_1 = arith.constant 0 : i32
    %c0_i32_2 = arith.constant 0 : i32
    %c0_i32_3 = arith.constant 0 : i32
    return %c0_i32, %c0_i32_0, %c0_i32_1, %c0_i32_2 : i32, i32, i32, i32
  }
  func.func @transform_4(%arg0: i32, %arg1: i32) -> (i32, i32, i32, i32) {
    %c0_i32 = arith.constant 0 : i32
    %c0_i32_0 = arith.constant 0 : i32
    %c0_i32_1 = arith.constant 0 : i32
    %c0_i32_2 = arith.constant 0 : i32
    return %c0_i32, %c0_i32_0, %c0_i32_1, %arg1 : i32, i32, i32, i32
  }
  func.func @transform_5(%arg0: i32, %arg1: i32) -> (i32, i32, i32, i32) {
    %c0_i32 = arith.constant 0 : i32
    %c0_i32_0 = arith.constant 0 : i32
    %c0_i32_1 = arith.constant 0 : i32
    return %c0_i32, %arg0, %c0_i32_0, %arg1 : i32, i32, i32, i32
  }
  func.func @transform_6(%arg0: i32, %arg1: i32) -> (i32, i32, i32) {
    %c0_i32 = arith.constant 0 : i32
    %c0_i32_0 = arith.constant 0 : i32
    return %arg0, %c0_i32, %arg1 : i32, i32, i32
  }
}

module attributes {stable_mosaic.version = 11 : i64} {
  func.func @_convt_kernel(%arg0: i32, %arg1: i32, %arg2: memref<1x18x18x16xbf16, #tpu.memory_space<vmem>>, %arg3: memref<1x16xf32, #tpu.memory_space<vmem>>, %arg4: memref<1x16xf32, #tpu.memory_space<vmem>>, %arg5: memref<1x18x18x1xf32, #tpu.memory_space<vmem>>, %arg6: memref<4x4x16x128xbf16, #tpu.memory_space<vmem>>, %arg7: memref<1x128xf32, #tpu.memory_space<vmem>>, %arg8: memref<4x1x256x128xf32, #tpu.memory_space<vmem>>) attributes {dimension_semantics = [#tpu.dimension_semantics<parallel>, #tpu.dimension_semantics<parallel>], iteration_bounds = array<i64: 2, 1>, scalar_prefetch = 0 : i64, scratch_operands = 0 : i64, tpu.core_type = #tpu.core_type<tc>, window_params = [{transform_indices = @transform_0, window_bounds = array<i64: 1, 18, 18, 16>}, {pipeline_mode = #tpu.pipeline_mode<synchronous>, transform_indices = @transform_1, window_bounds = array<i64: 1, 16>}, {pipeline_mode = #tpu.pipeline_mode<synchronous>, transform_indices = @transform_2, window_bounds = array<i64: 1, 16>}, {pipeline_mode = #tpu.pipeline_mode<synchronous>, transform_indices = @transform_3, window_bounds = array<i64: 1, 18, 18, 1>}, {transform_indices = @transform_4, window_bounds = array<i64: 4, 4, 16, 128>}, {transform_indices = @transform_5, window_bounds = array<i64: 1, 128>}, {transform_indices = @transform_6, window_bounds = array<i64: 4, 1, 256, 128>}]} {
    %c0 = arith.constant 0 : index
    %c0_0 = arith.constant 0 : index
    %c0_1 = arith.constant 0 : index
    %c0_2 = arith.constant 0 : index
    %0 = vector.load %arg2[%c0, %c0_0, %c0_1, %c0_2] : memref<1x18x18x16xbf16, #tpu.memory_space<vmem>>, vector<1x18x18x16xbf16>
    %1 = vector.shape_cast %0 : vector<1x18x18x16xbf16> to vector<18x18x16xbf16>
    %2 = arith.extf %1 : vector<18x18x16xbf16> to vector<18x18x16xf32>
    %c0_3 = arith.constant 0 : index
    %c0_4 = arith.constant 0 : index
    %3 = vector.load %arg3[%c0_3, %c0_4] : memref<1x16xf32, #tpu.memory_space<vmem>>, vector<1x16xf32>
    %4 = vector.shape_cast %3 : vector<1x16xf32> to vector<1x1x16xf32>
    %5 = vector.broadcast %4 : vector<1x1x16xf32> to vector<18x18x16xf32>
    %6 = arith.mulf %2, %5 : vector<18x18x16xf32>
    %c0_5 = arith.constant 0 : index
    %c0_6 = arith.constant 0 : index
    %7 = vector.load %arg4[%c0_5, %c0_6] : memref<1x16xf32, #tpu.memory_space<vmem>>, vector<1x16xf32>
    %8 = vector.shape_cast %7 : vector<1x16xf32> to vector<1x1x16xf32>
    %9 = vector.broadcast %8 : vector<1x1x16xf32> to vector<18x18x16xf32>
    %10 = arith.addf %6, %9 : vector<18x18x16xf32>
    %cst = arith.constant 0.000000e+00 : f32
    %11 = vector.broadcast %cst : f32 to vector<18x18x16xf32>
    %12 = arith.maximumf %10, %11 : vector<18x18x16xf32>
    %c0_7 = arith.constant 0 : index
    %c0_8 = arith.constant 0 : index
    %c0_9 = arith.constant 0 : index
    %c0_10 = arith.constant 0 : index
    %13 = vector.load %arg5[%c0_7, %c0_8, %c0_9, %c0_10] : memref<1x18x18x1xf32, #tpu.memory_space<vmem>>, vector<1x18x18x1xf32>
    %14 = vector.shape_cast %13 : vector<1x18x18x1xf32> to vector<18x18x1xf32>
    %15 = vector.broadcast %14 : vector<18x18x1xf32> to vector<18x18x16xf32>
    %16 = arith.mulf %12, %15 : vector<18x18x16xf32>
    %cst_11 = arith.constant 0.000000e+00 : f32
    %17 = vector.broadcast %cst_11 : f32 to vector<256x128xf32>
    %18 = vector.extract_strided_slice %16 {offsets = [0, 0, 0], sizes = [16, 16, 16], strides = [1, 1, 1]} : vector<18x18x16xf32> to vector<16x16x16xf32>
    %19 = vector.shape_cast %18 : vector<16x16x16xf32> to vector<256x16xf32>
    %20 = arith.truncf %19 : vector<256x16xf32> to vector<256x16xbf16>
    %c0_12 = arith.constant 0 : index
    %c0_13 = arith.constant 0 : index
    %c0_14 = arith.constant 0 : index
    %c0_15 = arith.constant 0 : index
    %21 = vector.load %arg6[%c0_12, %c0_13, %c0_14, %c0_15] : memref<4x4x16x128xbf16, #tpu.memory_space<vmem>>, vector<1x1x16x128xbf16>
    %22 = vector.shape_cast %21 : vector<1x1x16x128xbf16> to vector<16x128xbf16>
    %cst_16 = arith.constant dense<0.000000e+00> : vector<256x128xf32>
    %23 = tpu.matmul %20, %22, %cst_16 {dimension_numbers = #tpu.dot_dimension_numbers<[1], [0], [0], [1], [0, 0, 1, 1], [], []>} : vector<256x16xbf16>, vector<16x128xbf16>, vector<256x128xf32> -> vector<256x128xf32>
    %24 = arith.addf %17, %23 : vector<256x128xf32>
    %25 = vector.extract_strided_slice %16 {offsets = [0, 1, 0], sizes = [16, 16, 16], strides = [1, 1, 1]} : vector<18x18x16xf32> to vector<16x16x16xf32>
    %26 = vector.shape_cast %25 : vector<16x16x16xf32> to vector<256x16xf32>
    %27 = arith.truncf %26 : vector<256x16xf32> to vector<256x16xbf16>
    %c0_17 = arith.constant 0 : index
    %c1 = arith.constant 1 : index
    %c0_18 = arith.constant 0 : index
    %c0_19 = arith.constant 0 : index
    %28 = vector.load %arg6[%c0_17, %c1, %c0_18, %c0_19] : memref<4x4x16x128xbf16, #tpu.memory_space<vmem>>, vector<1x1x16x128xbf16>
    %29 = vector.shape_cast %28 : vector<1x1x16x128xbf16> to vector<16x128xbf16>
    %cst_20 = arith.constant dense<0.000000e+00> : vector<256x128xf32>
    %30 = tpu.matmul %27, %29, %cst_20 {dimension_numbers = #tpu.dot_dimension_numbers<[1], [0], [0], [1], [0, 0, 1, 1], [], []>} : vector<256x16xbf16>, vector<16x128xbf16>, vector<256x128xf32> -> vector<256x128xf32>
    %31 = arith.addf %24, %30 : vector<256x128xf32>
    %32 = vector.extract_strided_slice %16 {offsets = [1, 0, 0], sizes = [16, 16, 16], strides = [1, 1, 1]} : vector<18x18x16xf32> to vector<16x16x16xf32>
    %33 = vector.shape_cast %32 : vector<16x16x16xf32> to vector<256x16xf32>
    %34 = arith.truncf %33 : vector<256x16xf32> to vector<256x16xbf16>
    %c0_21 = arith.constant 0 : index
    %c2 = arith.constant 2 : index
    %c0_22 = arith.constant 0 : index
    %c0_23 = arith.constant 0 : index
    %35 = vector.load %arg6[%c0_21, %c2, %c0_22, %c0_23] : memref<4x4x16x128xbf16, #tpu.memory_space<vmem>>, vector<1x1x16x128xbf16>
    %36 = vector.shape_cast %35 : vector<1x1x16x128xbf16> to vector<16x128xbf16>
    %cst_24 = arith.constant dense<0.000000e+00> : vector<256x128xf32>
    %37 = tpu.matmul %34, %36, %cst_24 {dimension_numbers = #tpu.dot_dimension_numbers<[1], [0], [0], [1], [0, 0, 1, 1], [], []>} : vector<256x16xbf16>, vector<16x128xbf16>, vector<256x128xf32> -> vector<256x128xf32>
    %38 = arith.addf %31, %37 : vector<256x128xf32>
    %39 = vector.extract_strided_slice %16 {offsets = [1, 1, 0], sizes = [16, 16, 16], strides = [1, 1, 1]} : vector<18x18x16xf32> to vector<16x16x16xf32>
    %40 = vector.shape_cast %39 : vector<16x16x16xf32> to vector<256x16xf32>
    %41 = arith.truncf %40 : vector<256x16xf32> to vector<256x16xbf16>
    %c0_25 = arith.constant 0 : index
    %c3 = arith.constant 3 : index
    %c0_26 = arith.constant 0 : index
    %c0_27 = arith.constant 0 : index
    %42 = vector.load %arg6[%c0_25, %c3, %c0_26, %c0_27] : memref<4x4x16x128xbf16, #tpu.memory_space<vmem>>, vector<1x1x16x128xbf16>
    %43 = vector.shape_cast %42 : vector<1x1x16x128xbf16> to vector<16x128xbf16>
    %cst_28 = arith.constant dense<0.000000e+00> : vector<256x128xf32>
    %44 = tpu.matmul %41, %43, %cst_28 {dimension_numbers = #tpu.dot_dimension_numbers<[1], [0], [0], [1], [0, 0, 1, 1], [], []>} : vector<256x16xbf16>, vector<16x128xbf16>, vector<256x128xf32> -> vector<256x128xf32>
    %45 = arith.addf %38, %44 : vector<256x128xf32>
    %c0_29 = arith.constant 0 : index
    %c0_30 = arith.constant 0 : index
    %46 = vector.load %arg7[%c0_29, %c0_30] : memref<1x128xf32, #tpu.memory_space<vmem>>, vector<1x128xf32>
    %47 = vector.broadcast %46 : vector<1x128xf32> to vector<256x128xf32>
    %48 = arith.addf %45, %47 : vector<256x128xf32>
    %49 = math.tanh %48 : vector<256x128xf32>
    %c0_31 = arith.constant 0 : index
    %c0_32 = arith.constant 0 : index
    %c0_33 = arith.constant 0 : index
    %c0_34 = arith.constant 0 : index
    %50 = vector.load %arg8[%c0_31, %c0_32, %c0_33, %c0_34] : memref<4x1x256x128xf32, #tpu.memory_space<vmem>>, vector<1x1x256x128xf32>
    %51 = vector.shape_cast %50 : vector<1x1x256x128xf32> to vector<256x128xf32>
    %52 = vector.shape_cast %49 : vector<256x128xf32> to vector<1x1x256x128xf32>
    tpu.vector_store %arg8[%c0_31, %c0_32, %c0_33, %c0_34], %52 {strides = array<i32>} : memref<4x1x256x128xf32, #tpu.memory_space<vmem>>, vector<1x1x256x128xf32>,
    %cst_35 = arith.constant 0.000000e+00 : f32
    %53 = vector.broadcast %cst_35 : f32 to vector<256x128xf32>
    %54 = vector.extract_strided_slice %16 {offsets = [0, 1, 0], sizes = [16, 16, 16], strides = [1, 1, 1]} : vector<18x18x16xf32> to vector<16x16x16xf32>
    %55 = vector.shape_cast %54 : vector<16x16x16xf32> to vector<256x16xf32>
    %56 = arith.truncf %55 : vector<256x16xf32> to vector<256x16xbf16>
    %c1_36 = arith.constant 1 : index
    %c0_37 = arith.constant 0 : index
    %c0_38 = arith.constant 0 : index
    %c0_39 = arith.constant 0 : index
    %57 = vector.load %arg6[%c1_36, %c0_37, %c0_38, %c0_39] : memref<4x4x16x128xbf16, #tpu.memory_space<vmem>>, vector<1x1x16x128xbf16>
    %58 = vector.shape_cast %57 : vector<1x1x16x128xbf16> to vector<16x128xbf16>
    %cst_40 = arith.constant dense<0.000000e+00> : vector<256x128xf32>
    %59 = tpu.matmul %56, %58, %cst_40 {dimension_numbers = #tpu.dot_dimension_numbers<[1], [0], [0], [1], [0, 0, 1, 1], [], []>} : vector<256x16xbf16>, vector<16x128xbf16>, vector<256x128xf32> -> vector<256x128xf32>
    %60 = arith.addf %53, %59 : vector<256x128xf32>
    %61 = vector.extract_strided_slice %16 {offsets = [0, 2, 0], sizes = [16, 16, 16], strides = [1, 1, 1]} : vector<18x18x16xf32> to vector<16x16x16xf32>
    %62 = vector.shape_cast %61 : vector<16x16x16xf32> to vector<256x16xf32>
    %63 = arith.truncf %62 : vector<256x16xf32> to vector<256x16xbf16>
    %c1_41 = arith.constant 1 : index
    %c1_42 = arith.constant 1 : index
    %c0_43 = arith.constant 0 : index
    %c0_44 = arith.constant 0 : index
    %64 = vector.load %arg6[%c1_41, %c1_42, %c0_43, %c0_44] : memref<4x4x16x128xbf16, #tpu.memory_space<vmem>>, vector<1x1x16x128xbf16>
    %65 = vector.shape_cast %64 : vector<1x1x16x128xbf16> to vector<16x128xbf16>
    %cst_45 = arith.constant dense<0.000000e+00> : vector<256x128xf32>
    %66 = tpu.matmul %63, %65, %cst_45 {dimension_numbers = #tpu.dot_dimension_numbers<[1], [0], [0], [1], [0, 0, 1, 1], [], []>} : vector<256x16xbf16>, vector<16x128xbf16>, vector<256x128xf32> -> vector<256x128xf32>
    %67 = arith.addf %60, %66 : vector<256x128xf32>
    %68 = vector.extract_strided_slice %16 {offsets = [1, 1, 0], sizes = [16, 16, 16], strides = [1, 1, 1]} : vector<18x18x16xf32> to vector<16x16x16xf32>
    %69 = vector.shape_cast %68 : vector<16x16x16xf32> to vector<256x16xf32>
    %70 = arith.truncf %69 : vector<256x16xf32> to vector<256x16xbf16>
    %c1_46 = arith.constant 1 : index
    %c2_47 = arith.constant 2 : index
    %c0_48 = arith.constant 0 : index
    %c0_49 = arith.constant 0 : index
    %71 = vector.load %arg6[%c1_46, %c2_47, %c0_48, %c0_49] : memref<4x4x16x128xbf16, #tpu.memory_space<vmem>>, vector<1x1x16x128xbf16>
    %72 = vector.shape_cast %71 : vector<1x1x16x128xbf16> to vector<16x128xbf16>
    %cst_50 = arith.constant dense<0.000000e+00> : vector<256x128xf32>
    %73 = tpu.matmul %70, %72, %cst_50 {dimension_numbers = #tpu.dot_dimension_numbers<[1], [0], [0], [1], [0, 0, 1, 1], [], []>} : vector<256x16xbf16>, vector<16x128xbf16>, vector<256x128xf32> -> vector<256x128xf32>
    %74 = arith.addf %67, %73 : vector<256x128xf32>
    %75 = vector.extract_strided_slice %16 {offsets = [1, 2, 0], sizes = [16, 16, 16], strides = [1, 1, 1]} : vector<18x18x16xf32> to vector<16x16x16xf32>
    %76 = vector.shape_cast %75 : vector<16x16x16xf32> to vector<256x16xf32>
    %77 = arith.truncf %76 : vector<256x16xf32> to vector<256x16xbf16>
    %c1_51 = arith.constant 1 : index
    %c3_52 = arith.constant 3 : index
    %c0_53 = arith.constant 0 : index
    %c0_54 = arith.constant 0 : index
    %78 = vector.load %arg6[%c1_51, %c3_52, %c0_53, %c0_54] : memref<4x4x16x128xbf16, #tpu.memory_space<vmem>>, vector<1x1x16x128xbf16>
    %79 = vector.shape_cast %78 : vector<1x1x16x128xbf16> to vector<16x128xbf16>
    %cst_55 = arith.constant dense<0.000000e+00> : vector<256x128xf32>
    %80 = tpu.matmul %77, %79, %cst_55 {dimension_numbers = #tpu.dot_dimension_numbers<[1], [0], [0], [1], [0, 0, 1, 1], [], []>} : vector<256x16xbf16>, vector<16x128xbf16>, vector<256x128xf32> -> vector<256x128xf32>
    %81 = arith.addf %74, %80 : vector<256x128xf32>
    %c0_56 = arith.constant 0 : index
    %c0_57 = arith.constant 0 : index
    %82 = vector.load %arg7[%c0_56, %c0_57] : memref<1x128xf32, #tpu.memory_space<vmem>>, vector<1x128xf32>
    %83 = vector.broadcast %82 : vector<1x128xf32> to vector<256x128xf32>
    %84 = arith.addf %81, %83 : vector<256x128xf32>
    %85 = math.tanh %84 : vector<256x128xf32>
    %c1_58 = arith.constant 1 : index
    %c0_59 = arith.constant 0 : index
    %c0_60 = arith.constant 0 : index
    %c0_61 = arith.constant 0 : index
    %86 = vector.load %arg8[%c1_58, %c0_59, %c0_60, %c0_61] : memref<4x1x256x128xf32, #tpu.memory_space<vmem>>, vector<1x1x256x128xf32>
    %87 = vector.shape_cast %86 : vector<1x1x256x128xf32> to vector<256x128xf32>
    %88 = vector.shape_cast %85 : vector<256x128xf32> to vector<1x1x256x128xf32>
    tpu.vector_store %arg8[%c1_58, %c0_59, %c0_60, %c0_61], %88 {strides = array<i32>} : memref<4x1x256x128xf32, #tpu.memory_space<vmem>>, vector<1x1x256x128xf32>,
    %cst_62 = arith.constant 0.000000e+00 : f32
    %89 = vector.broadcast %cst_62 : f32 to vector<256x128xf32>
    %90 = vector.extract_strided_slice %16 {offsets = [1, 0, 0], sizes = [16, 16, 16], strides = [1, 1, 1]} : vector<18x18x16xf32> to vector<16x16x16xf32>
    %91 = vector.shape_cast %90 : vector<16x16x16xf32> to vector<256x16xf32>
    %92 = arith.truncf %91 : vector<256x16xf32> to vector<256x16xbf16>
    %c2_63 = arith.constant 2 : index
    %c0_64 = arith.constant 0 : index
    %c0_65 = arith.constant 0 : index
    %c0_66 = arith.constant 0 : index
    %93 = vector.load %arg6[%c2_63, %c0_64, %c0_65, %c0_66] : memref<4x4x16x128xbf16, #tpu.memory_space<vmem>>, vector<1x1x16x128xbf16>
    %94 = vector.shape_cast %93 : vector<1x1x16x128xbf16> to vector<16x128xbf16>
    %cst_67 = arith.constant dense<0.000000e+00> : vector<256x128xf32>
    %95 = tpu.matmul %92, %94, %cst_67 {dimension_numbers = #tpu.dot_dimension_numbers<[1], [0], [0], [1], [0, 0, 1, 1], [], []>} : vector<256x16xbf16>, vector<16x128xbf16>, vector<256x128xf32> -> vector<256x128xf32>
    %96 = arith.addf %89, %95 : vector<256x128xf32>
    %97 = vector.extract_strided_slice %16 {offsets = [1, 1, 0], sizes = [16, 16, 16], strides = [1, 1, 1]} : vector<18x18x16xf32> to vector<16x16x16xf32>
    %98 = vector.shape_cast %97 : vector<16x16x16xf32> to vector<256x16xf32>
    %99 = arith.truncf %98 : vector<256x16xf32> to vector<256x16xbf16>
    %c2_68 = arith.constant 2 : index
    %c1_69 = arith.constant 1 : index
    %c0_70 = arith.constant 0 : index
    %c0_71 = arith.constant 0 : index
    %100 = vector.load %arg6[%c2_68, %c1_69, %c0_70, %c0_71] : memref<4x4x16x128xbf16, #tpu.memory_space<vmem>>, vector<1x1x16x128xbf16>
    %101 = vector.shape_cast %100 : vector<1x1x16x128xbf16> to vector<16x128xbf16>
    %cst_72 = arith.constant dense<0.000000e+00> : vector<256x128xf32>
    %102 = tpu.matmul %99, %101, %cst_72 {dimension_numbers = #tpu.dot_dimension_numbers<[1], [0], [0], [1], [0, 0, 1, 1], [], []>} : vector<256x16xbf16>, vector<16x128xbf16>, vector<256x128xf32> -> vector<256x128xf32>
    %103 = arith.addf %96, %102 : vector<256x128xf32>
    %104 = vector.extract_strided_slice %16 {offsets = [2, 0, 0], sizes = [16, 16, 16], strides = [1, 1, 1]} : vector<18x18x16xf32> to vector<16x16x16xf32>
    %105 = vector.shape_cast %104 : vector<16x16x16xf32> to vector<256x16xf32>
    %106 = arith.truncf %105 : vector<256x16xf32> to vector<256x16xbf16>
    %c2_73 = arith.constant 2 : index
    %c2_74 = arith.constant 2 : index
    %c0_75 = arith.constant 0 : index
    %c0_76 = arith.constant 0 : index
    %107 = vector.load %arg6[%c2_73, %c2_74, %c0_75, %c0_76] : memref<4x4x16x128xbf16, #tpu.memory_space<vmem>>, vector<1x1x16x128xbf16>
    %108 = vector.shape_cast %107 : vector<1x1x16x128xbf16> to vector<16x128xbf16>
    %cst_77 = arith.constant dense<0.000000e+00> : vector<256x128xf32>
    %109 = tpu.matmul %106, %108, %cst_77 {dimension_numbers = #tpu.dot_dimension_numbers<[1], [0], [0], [1], [0, 0, 1, 1], [], []>} : vector<256x16xbf16>, vector<16x128xbf16>, vector<256x128xf32> -> vector<256x128xf32>
    %110 = arith.addf %103, %109 : vector<256x128xf32>
    %111 = vector.extract_strided_slice %16 {offsets = [2, 1, 0], sizes = [16, 16, 16], strides = [1, 1, 1]} : vector<18x18x16xf32> to vector<16x16x16xf32>
    %112 = vector.shape_cast %111 : vector<16x16x16xf32> to vector<256x16xf32>
    %113 = arith.truncf %112 : vector<256x16xf32> to vector<256x16xbf16>
    %c2_78 = arith.constant 2 : index
    %c3_79 = arith.constant 3 : index
    %c0_80 = arith.constant 0 : index
    %c0_81 = arith.constant 0 : index
    %114 = vector.load %arg6[%c2_78, %c3_79, %c0_80, %c0_81] : memref<4x4x16x128xbf16, #tpu.memory_space<vmem>>, vector<1x1x16x128xbf16>
    %115 = vector.shape_cast %114 : vector<1x1x16x128xbf16> to vector<16x128xbf16>
    %cst_82 = arith.constant dense<0.000000e+00> : vector<256x128xf32>
    %116 = tpu.matmul %113, %115, %cst_82 {dimension_numbers = #tpu.dot_dimension_numbers<[1], [0], [0], [1], [0, 0, 1, 1], [], []>} : vector<256x16xbf16>, vector<16x128xbf16>, vector<256x128xf32> -> vector<256x128xf32>
    %117 = arith.addf %110, %116 : vector<256x128xf32>
    %c0_83 = arith.constant 0 : index
    %c0_84 = arith.constant 0 : index
    %118 = vector.load %arg7[%c0_83, %c0_84] : memref<1x128xf32, #tpu.memory_space<vmem>>, vector<1x128xf32>
    %119 = vector.broadcast %118 : vector<1x128xf32> to vector<256x128xf32>
    %120 = arith.addf %117, %119 : vector<256x128xf32>
    %121 = math.tanh %120 : vector<256x128xf32>
    %c2_85 = arith.constant 2 : index
    %c0_86 = arith.constant 0 : index
    %c0_87 = arith.constant 0 : index
    %c0_88 = arith.constant 0 : index
    %122 = vector.load %arg8[%c2_85, %c0_86, %c0_87, %c0_88] : memref<4x1x256x128xf32, #tpu.memory_space<vmem>>, vector<1x1x256x128xf32>
    %123 = vector.shape_cast %122 : vector<1x1x256x128xf32> to vector<256x128xf32>
    %124 = vector.shape_cast %121 : vector<256x128xf32> to vector<1x1x256x128xf32>
    tpu.vector_store %arg8[%c2_85, %c0_86, %c0_87, %c0_88], %124 {strides = array<i32>} : memref<4x1x256x128xf32, #tpu.memory_space<vmem>>, vector<1x1x256x128xf32>,
    %cst_89 = arith.constant 0.000000e+00 : f32
    %125 = vector.broadcast %cst_89 : f32 to vector<256x128xf32>
    %126 = vector.extract_strided_slice %16 {offsets = [1, 1, 0], sizes = [16, 16, 16], strides = [1, 1, 1]} : vector<18x18x16xf32> to vector<16x16x16xf32>
    %127 = vector.shape_cast %126 : vector<16x16x16xf32> to vector<256x16xf32>
    %128 = arith.truncf %127 : vector<256x16xf32> to vector<256x16xbf16>
    %c3_90 = arith.constant 3 : index
    %c0_91 = arith.constant 0 : index
    %c0_92 = arith.constant 0 : index
    %c0_93 = arith.constant 0 : index
    %129 = vector.load %arg6[%c3_90, %c0_91, %c0_92, %c0_93] : memref<4x4x16x128xbf16, #tpu.memory_space<vmem>>, vector<1x1x16x128xbf16>
    %130 = vector.shape_cast %129 : vector<1x1x16x128xbf16> to vector<16x128xbf16>
    %cst_94 = arith.constant dense<0.000000e+00> : vector<256x128xf32>
    %131 = tpu.matmul %128, %130, %cst_94 {dimension_numbers = #tpu.dot_dimension_numbers<[1], [0], [0], [1], [0, 0, 1, 1], [], []>} : vector<256x16xbf16>, vector<16x128xbf16>, vector<256x128xf32> -> vector<256x128xf32>
    %132 = arith.addf %125, %131 : vector<256x128xf32>
    %133 = vector.extract_strided_slice %16 {offsets = [1, 2, 0], sizes = [16, 16, 16], strides = [1, 1, 1]} : vector<18x18x16xf32> to vector<16x16x16xf32>
    %134 = vector.shape_cast %133 : vector<16x16x16xf32> to vector<256x16xf32>
    %135 = arith.truncf %134 : vector<256x16xf32> to vector<256x16xbf16>
    %c3_95 = arith.constant 3 : index
    %c1_96 = arith.constant 1 : index
    %c0_97 = arith.constant 0 : index
    %c0_98 = arith.constant 0 : index
    %136 = vector.load %arg6[%c3_95, %c1_96, %c0_97, %c0_98] : memref<4x4x16x128xbf16, #tpu.memory_space<vmem>>, vector<1x1x16x128xbf16>
    %137 = vector.shape_cast %136 : vector<1x1x16x128xbf16> to vector<16x128xbf16>
    %cst_99 = arith.constant dense<0.000000e+00> : vector<256x128xf32>
    %138 = tpu.matmul %135, %137, %cst_99 {dimension_numbers = #tpu.dot_dimension_numbers<[1], [0], [0], [1], [0, 0, 1, 1], [], []>} : vector<256x16xbf16>, vector<16x128xbf16>, vector<256x128xf32> -> vector<256x128xf32>
    %139 = arith.addf %132, %138 : vector<256x128xf32>
    %140 = vector.extract_strided_slice %16 {offsets = [2, 1, 0], sizes = [16, 16, 16], strides = [1, 1, 1]} : vector<18x18x16xf32> to vector<16x16x16xf32>
    %141 = vector.shape_cast %140 : vector<16x16x16xf32> to vector<256x16xf32>
    %142 = arith.truncf %141 : vector<256x16xf32> to vector<256x16xbf16>
    %c3_100 = arith.constant 3 : index
    %c2_101 = arith.constant 2 : index
    %c0_102 = arith.constant 0 : index
    %c0_103 = arith.constant 0 : index
    %143 = vector.load %arg6[%c3_100, %c2_101, %c0_102, %c0_103] : memref<4x4x16x128xbf16, #tpu.memory_space<vmem>>, vector<1x1x16x128xbf16>
    %144 = vector.shape_cast %143 : vector<1x1x16x128xbf16> to vector<16x128xbf16>
    %cst_104 = arith.constant dense<0.000000e+00> : vector<256x128xf32>
    %145 = tpu.matmul %142, %144, %cst_104 {dimension_numbers = #tpu.dot_dimension_numbers<[1], [0], [0], [1], [0, 0, 1, 1], [], []>} : vector<256x16xbf16>, vector<16x128xbf16>, vector<256x128xf32> -> vector<256x128xf32>
    %146 = arith.addf %139, %145 : vector<256x128xf32>
    %147 = vector.extract_strided_slice %16 {offsets = [2, 2, 0], sizes = [16, 16, 16], strides = [1, 1, 1]} : vector<18x18x16xf32> to vector<16x16x16xf32>
    %148 = vector.shape_cast %147 : vector<16x16x16xf32> to vector<256x16xf32>
    %149 = arith.truncf %148 : vector<256x16xf32> to vector<256x16xbf16>
    %c3_105 = arith.constant 3 : index
    %c3_106 = arith.constant 3 : index
    %c0_107 = arith.constant 0 : index
    %c0_108 = arith.constant 0 : index
    %150 = vector.load %arg6[%c3_105, %c3_106, %c0_107, %c0_108] : memref<4x4x16x128xbf16, #tpu.memory_space<vmem>>, vector<1x1x16x128xbf16>
    %151 = vector.shape_cast %150 : vector<1x1x16x128xbf16> to vector<16x128xbf16>
    %cst_109 = arith.constant dense<0.000000e+00> : vector<256x128xf32>
    %152 = tpu.matmul %149, %151, %cst_109 {dimension_numbers = #tpu.dot_dimension_numbers<[1], [0], [0], [1], [0, 0, 1, 1], [], []>} : vector<256x16xbf16>, vector<16x128xbf16>, vector<256x128xf32> -> vector<256x128xf32>
    %153 = arith.addf %146, %152 : vector<256x128xf32>
    %c0_110 = arith.constant 0 : index
    %c0_111 = arith.constant 0 : index
    %154 = vector.load %arg7[%c0_110, %c0_111] : memref<1x128xf32, #tpu.memory_space<vmem>>, vector<1x128xf32>
    %155 = vector.broadcast %154 : vector<1x128xf32> to vector<256x128xf32>
    %156 = arith.addf %153, %155 : vector<256x128xf32>
    %157 = math.tanh %156 : vector<256x128xf32>
    %c3_112 = arith.constant 3 : index
    %c0_113 = arith.constant 0 : index
    %c0_114 = arith.constant 0 : index
    %c0_115 = arith.constant 0 : index
    %158 = vector.load %arg8[%c3_112, %c0_113, %c0_114, %c0_115] : memref<4x1x256x128xf32, #tpu.memory_space<vmem>>, vector<1x1x256x128xf32>
    %159 = vector.shape_cast %158 : vector<1x1x256x128xf32> to vector<256x128xf32>
    %160 = vector.shape_cast %157 : vector<256x128xf32> to vector<1x1x256x128xf32>
    tpu.vector_store %arg8[%c3_112, %c0_113, %c0_114, %c0_115], %160 {strides = array<i32>} : memref<4x1x256x128xf32, #tpu.memory_space<vmem>>, vector<1x1x256x128xf32>,
    return
  }
  func.func @transform_0(%arg0: i32, %arg1: i32) -> (i32, i32, i32, i32) {
    %c0_i32 = arith.constant 0 : i32
    %c0_i32_0 = arith.constant 0 : i32
    %c0_i32_1 = arith.constant 0 : i32
    %c0_i32_2 = arith.constant 0 : i32
    return %arg0, %c0_i32, %c0_i32_0, %c0_i32_1 : i32, i32, i32, i32
  }
  func.func @transform_1(%arg0: i32, %arg1: i32) -> (i32, i32) {
    %c0_i32 = arith.constant 0 : i32
    %c0_i32_0 = arith.constant 0 : i32
    %c0_i32_1 = arith.constant 0 : i32
    return %c0_i32, %c0_i32_0 : i32, i32
  }
  func.func @transform_2(%arg0: i32, %arg1: i32) -> (i32, i32) {
    %c0_i32 = arith.constant 0 : i32
    %c0_i32_0 = arith.constant 0 : i32
    %c0_i32_1 = arith.constant 0 : i32
    return %c0_i32, %c0_i32_0 : i32, i32
  }
  func.func @transform_3(%arg0: i32, %arg1: i32) -> (i32, i32, i32, i32) {
    %c0_i32 = arith.constant 0 : i32
    %c0_i32_0 = arith.constant 0 : i32
    %c0_i32_1 = arith.constant 0 : i32
    %c0_i32_2 = arith.constant 0 : i32
    %c0_i32_3 = arith.constant 0 : i32
    return %c0_i32, %c0_i32_0, %c0_i32_1, %c0_i32_2 : i32, i32, i32, i32
  }
  func.func @transform_4(%arg0: i32, %arg1: i32) -> (i32, i32, i32, i32) {
    %c0_i32 = arith.constant 0 : i32
    %c0_i32_0 = arith.constant 0 : i32
    %c0_i32_1 = arith.constant 0 : i32
    %c0_i32_2 = arith.constant 0 : i32
    return %c0_i32, %c0_i32_0, %c0_i32_1, %arg1 : i32, i32, i32, i32
  }
  func.func @transform_5(%arg0: i32, %arg1: i32) -> (i32, i32) {
    %c0_i32 = arith.constant 0 : i32
    %c0_i32_0 = arith.constant 0 : i32
    return %c0_i32, %arg1 : i32, i32
  }
  func.func @transform_6(%arg0: i32, %arg1: i32) -> (i32, i32, i32, i32) {
    %c0_i32 = arith.constant 0 : i32
    %c0_i32_0 = arith.constant 0 : i32
    %c0_i32_1 = arith.constant 0 : i32
    return %c0_i32, %arg0, %c0_i32_0, %arg1 : i32, i32, i32, i32
  }
}

</mosaic_0001>

<llo_original>
// kernel: generator_forward.4
$region0: #{generator_forward.4}
  #allocation0 [shape = 'u32[]', space=smem, size = 0x4, offset = 0x4, fixed_abs, tag = 'smem constant byte address 0x4 - core index']
  #allocation1 [shape = 'u32[72,128]{1,0:T(1,128)}', space=vmem, size = 0x9000, scoped, tag = 'internal scratch']
  %s0 = inlined_call_operand.vmem [shape: bf16[8,12], index: 0, kind: input, shape index: {}]
  %s1 = inlined_call_operand.hbm [shape: bf16[12,1024], index: 1, kind: input, shape index: {}]
  %s2 = inlined_call_operand.vmem [shape: bf16[8,1024], index: 2, kind: output, shape index: {}]
  %s3 = sld [smem:[#allocation0]]
  $region22: #{generator_forward.4} parent=0
    _
  %s5 = ssub.s32 1, %s3
  %s6 = scalar_select 0, %s5, %s3
  $region1: #{generator_forward.4} parent=0
    #allocation2 [shape = 'u8[32768]{0}', space=vmem, size = 0x8000, scoped, tag = 'input window, operand 1, single buffered']
    #allocation3 [shape = 's32[1]{0}', space=sflag, size = 0x4, scoped, tag = 'scoped memory for generator_forward.4']
    %7 = vsyncpa [#allocation3], 0
    // Predicated region
    $region2: #{generator_forward.4} parent=1 // pred_check
      _
    $region3: #{generator_forward.4} parent=1 // pred_check_branch
      %9 = sbr.rel (0) target = $region5
    $region4: #{generator_forward.4} parent=1 // pred_region
      _
    $region5: #{generator_forward.4} parent=1 // pred_fallthru
      _
    // Predicated region
    $region6: #{generator_forward.4} parent=1 // pred_check
      _
    $region7: #{generator_forward.4} parent=1 // pred_check_branch
      %11 = sbr.rel (0) target = $region9
    $region8: #{generator_forward.4} parent=1 // pred_region
      %13 = vsyncadd [#allocation3], 0
      %s14 = sshll.u32 %s1, 4
      %s15 = int_to_ptr.hbm [resolvable:$true] %s14
      %s16 = sshll.u32 [#allocation2], 4
      %s17 = int_to_ptr.vmem [resolvable:$true] %s16
      %22 = dma.hbm_to_vmem [thread:$0]  %s15, 1024, %s17, [#allocation3], 512, 512, 32
    $region9: #{generator_forward.4} parent=1 // pred_fallthru
      _
    // Predicated region
    $region10: #{generator_forward.4} parent=1 // pred_check
      _
    $region11: #{generator_forward.4} parent=1 // pred_check_branch
      %24 = sbr.rel (0) target = $region13
    $region12: #{generator_forward.4} parent=1 // pred_region
      %26 = dma.done [#allocation3], 1024
    $region13: #{generator_forward.4} parent=1 // pred_fallthru
      _
    %v28 = vld [vmem:[%s0] sm:$0xf]
    %v29 = vld [vmem:[#allocation2] sm:$0xff]
    %v30 = vld [vmem:[#allocation2 + $0x8] sm:$0xff]
    %v31 = vld [vmem:[#allocation2 + $0x10] sm:$0xff]
    %v32 = vld [vmem:[#allocation2 + $0x18] sm:$0xff]
    %v33 = vld [vmem:[#allocation2 + $0x20] sm:$0x33]
    %v34 = vld [vmem:[#allocation2 + $0x28] sm:$0x33]
    %v35 = vld [vmem:[#allocation2 + $0x30] sm:$0x33]
    %v36 = vld [vmem:[#allocation2 + $0x38] sm:$0x33]
    %v45 = vunpack.c.l.b16 %v29
    %v46 = vunpack.c.h.b16 %v29
    %v47 = vunpack.c.l.b16 %v30
    %v48 = vunpack.c.h.b16 %v30
    %v49 = vunpack.c.l.b16 %v31
    %v50 = vunpack.c.h.b16 %v31
    %v51 = vunpack.c.l.b16 %v32
    %v52 = vunpack.c.h.b16 %v32
    %v53 = vunpack.c.l.b16 %v33
    %v54 = vunpack.c.h.b16 %v33
    %v55 = vunpack.c.l.b16 %v34
    %v56 = vunpack.c.h.b16 %v34
    %v57 = vunpack.c.l.b16 %v35
    %v58 = vunpack.c.h.b16 %v35
    %v59 = vunpack.c.l.b16 %v36
    %v60 = vunpack.c.h.b16 %v36
    %v61 = vpack.c.b16 %v53, %v45
    %v62 = vpack.c.b16 %v54, %v46
    %v63 = vpack.c.b16 %v55, %v47
    %v64 = vpack.c.b16 %v56, %v48
    %v65 = vpack.c.b16 %v57, %v49
    %v66 = vpack.c.b16 %v58, %v50
    %v67 = vpack.c.b16 %v59, %v51
    %v68 = vpack.c.b16 %v60, %v52
    %vm69 = vcmask 97280
    %v71 = vsel %vm69, %v28, 0
    %vm73 = vcmask 1045504
    %v75 = vsel %vm73, %v61, 0
    %v78 = vsel %vm73, %v62, 0
    %v81 = vsel %vm73, %v63, 0
    %v84 = vsel %vm73, %v64, 0
    %v87 = vsel %vm73, %v65, 0
    %v90 = vsel %vm73, %v66, 0
    %v93 = vsel %vm73, %v67, 0
    %v96 = vsel %vm73, %v68, 0
    %98 = vmatpush.bf16.msra.mxu0 0
    %99 = vmatpush.bf16.msra.mxu0 0
    %100 = vmatpush.bf16.msra.mxu0 0
    %101 = vmatpush.bf16.msra.mxu0 0
    %102 = vmatpush.bf16.msra.mxu0 0
    %103 = vmatpush.bf16.msra.mxu0 0
    %104 = vmatpush.bf16.msra.mxu0 0
    %105 = vmatpush.bf16.msra.mxu0 %v75
    %106 = vmatmul.bf16.gmra.mxu0 %v71
    %v107 = vpop.f32.mrf.mxu0
    %v108 = vadd.f32 0.0, %v107
    %v109 = vpop.f32.mrf.mxu0
    %110 = vdwg.mxu0
    %111 = vmatpush.bf16.msra.mxu0 0
    %112 = vmatpush.bf16.msra.mxu0 0
    %113 = vmatpush.bf16.msra.mxu0 0
    %114 = vmatpush.bf16.msra.mxu0 0
    %115 = vmatpush.bf16.msra.mxu0 0
    %116 = vmatpush.bf16.msra.mxu0 0
    %117 = vmatpush.bf16.msra.mxu0 0
    %118 = vmatpush.bf16.msra.mxu0 %v78
    %119 = vmatmul.bf16.gmra.mxu0 %v71
    %v120 = vpop.f32.mrf.mxu0
    %v121 = vadd.f32 0.0, %v120
    %v122 = vpop.f32.mrf.mxu0
    %123 = vdwg.mxu0
    %124 = vmatpush.bf16.msra.mxu0 0
    %125 = vmatpush.bf16.msra.mxu0 0
    %126 = vmatpush.bf16.msra.mxu0 0
    %127 = vmatpush.bf16.msra.mxu0 0
    %128 = vmatpush.bf16.msra.mxu0 0
    %129 = vmatpush.bf16.msra.mxu0 0
    %130 = vmatpush.bf16.msra.mxu0 0
    %131 = vmatpush.bf16.msra.mxu0 %v81
    %132 = vmatmul.bf16.gmra.mxu0 %v71
    %v133 = vpop.f32.mrf.mxu0
    %v134 = vadd.f32 0.0, %v133
    %v135 = vpop.f32.mrf.mxu0
    %136 = vdwg.mxu0
    %137 = vmatpush.bf16.msra.mxu0 0
    %138 = vmatpush.bf16.msra.mxu0 0
    %139 = vmatpush.bf16.msra.mxu0 0
    %140 = vmatpush.bf16.msra.mxu0 0
    %141 = vmatpush.bf16.msra.mxu0 0
    %142 = vmatpush.bf16.msra.mxu0 0
    %143 = vmatpush.bf16.msra.mxu0 0
    %144 = vmatpush.bf16.msra.mxu0 %v84
    %145 = vmatmul.bf16.gmra.mxu0 %v71
    %v146 = vpop.f32.mrf.mxu0
    %v147 = vadd.f32 0.0, %v146
    %v148 = vpop.f32.mrf.mxu0
    %149 = vdwg.mxu0
    %150 = vmatpush.bf16.msra.mxu0 0
    %151 = vmatpush.bf16.msra.mxu0 0
    %152 = vmatpush.bf16.msra.mxu0 0
    %153 = vmatpush.bf16.msra.mxu0 0
    %154 = vmatpush.bf16.msra.mxu0 0
    %155 = vmatpush.bf16.msra.mxu0 0
    %156 = vmatpush.bf16.msra.mxu0 0
    %157 = vmatpush.bf16.msra.mxu0 %v87
    %158 = vmatmul.bf16.gmra.mxu0 %v71
    %v159 = vpop.f32.mrf.mxu0
    %v160 = vadd.f32 0.0, %v159
    %v161 = vpop.f32.mrf.mxu0
    %162 = vdwg.mxu0
    %163 = vmatpush.bf16.msra.mxu0 0
    %164 = vmatpush.bf16.msra.mxu0 0
    %165 = vmatpush.bf16.msra.mxu0 0
    %166 = vmatpush.bf16.msra.mxu0 0
    %167 = vmatpush.bf16.msra.mxu0 0
    %168 = vmatpush.bf16.msra.mxu0 0
    %169 = vmatpush.bf16.msra.mxu0 0
    %170 = vmatpush.bf16.msra.mxu0 %v90
    %171 = vmatmul.bf16.gmra.mxu0 %v71
    %v172 = vpop.f32.mrf.mxu0
    %v173 = vadd.f32 0.0, %v172
    %v174 = vpop.f32.mrf.mxu0
    %175 = vdwg.mxu0
    %176 = vmatpush.bf16.msra.mxu0 0
    %177 = vmatpush.bf16.msra.mxu0 0
    %178 = vmatpush.bf16.msra.mxu0 0
    %179 = vmatpush.bf16.msra.mxu0 0
    %180 = vmatpush.bf16.msra.mxu0 0
    %181 = vmatpush.bf16.msra.mxu0 0
    %182 = vmatpush.bf16.msra.mxu0 0
    %183 = vmatpush.bf16.msra.mxu0 %v93
    %184 = vmatmul.bf16.gmra.mxu0 %v71
    %v185 = vpop.f32.mrf.mxu0
    %v186 = vadd.f32 0.0, %v185
    %v187 = vpop.f32.mrf.mxu0
    %188 = vdwg.mxu0
    %189 = vmatpush.bf16.msra.mxu0 0
    %190 = vmatpush.bf16.msra.mxu0 0
    %191 = vmatpush.bf16.msra.mxu0 0
    %192 = vmatpush.bf16.msra.mxu0 0
    %193 = vmatpush.bf16.msra.mxu0 0
    %194 = vmatpush.bf16.msra.mxu0 0
    %195 = vmatpush.bf16.msra.mxu0 0
    %196 = vmatpush.bf16.msra.mxu0 %v96
    %197 = vmatmul.bf16.gmra.mxu0 %v71
    %v198 = vpop.f32.mrf.mxu0
    %v199 = vadd.f32 0.0, %v198
    %v200 = vpop.f32.mrf.mxu0
    %201 = vdwg.mxu0
    %v202 = vpack.c.bf16 %v121, %v108
    %v203 = vpack.c.bf16 %v147, %v134
    %v204 = vpack.c.bf16 %v173, %v160
    %v205 = vpack.c.bf16 %v199, %v186
    %206 = vst [vmem:[%s2] sm:$0xff] %v202
    %207 = vst [vmem:[%s2 + $0x8] sm:$0xff] %v203
    %208 = vst [vmem:[%s2 + $0x10] sm:$0xff] %v204
    %209 = vst [vmem:[%s2 + $0x18] sm:$0xff] %v205
    // Predicated region
    $region14: #{generator_forward.4} parent=1 // pred_check
      _
    $region15: #{generator_forward.4} parent=1 // pred_check_branch
      %211 = sbr.rel (0) target = $region17
    $region16: #{generator_forward.4} parent=1 // pred_region
      _
    $region17: #{generator_forward.4} parent=1 // pred_fallthru
      _
    // Predicated region
    $region18: #{generator_forward.4} parent=1 // pred_check
      _
    $region19: #{generator_forward.4} parent=1 // pred_check_branch
      %213 = sbr.rel (0) target = $region21
    $region20: #{generator_forward.4} parent=1 // pred_region
      _
    $region21: #{generator_forward.4} parent=1 // pred_fallthru
      _
    %214 = vsyncpa [#allocation3], 1

// kernel: generator_forward.5
$region0: #{generator_forward.5}
  #allocation0 [shape = 'u32[]', space=smem, size = 0x4, offset = 0x4, fixed_abs, tag = 'smem constant byte address 0x4 - core index']
  #allocation1 [shape = 'u32[72,128]{1,0:T(1,128)}', space=vmem, size = 0x9000, scoped, tag = 'internal scratch']
  %s0 = inlined_call_operand.vmem [shape: bf16[2,6,6,64], index: 0, kind: input, shape index: {}]
  %s1 = inlined_call_operand.vmem [shape: f32[1,64], index: 1, kind: input, shape index: {}]
  %s2 = inlined_call_operand.vmem [shape: f32[1,64], index: 2, kind: input, shape index: {}]
  %s3 = inlined_call_operand.vmem [shape: f32[1,6,6,1], index: 3, kind: input, shape index: {}]
  %s4 = inlined_call_operand.hbm [shape: bf16[4,4,64,128], index: 4, kind: input, shape index: {}]
  %s5 = inlined_call_operand.vmem [shape: bf16[4,2,16,128], index: 5, kind: output, shape index: {0}]
  %s6 = inlined_call_operand.vmem [shape: f32[2,2,128], index: 6, kind: output, shape index: {1}]
  %7 = xla_tuple %s5, %s6
  %s8 = sld [smem:[#allocation0]]
  $region102: #{generator_forward.5} parent=0
    _
  %s10 = ssub.s32 1, %s8
  %s11 = scalar_select 0, %s10, %s8
  $region1: #{generator_forward.5} parent=0
    #allocation2 [shape = 'u8[262144]{0}', space=vmem, size = 0x40000, scoped, tag = 'input window, operand 4, single buffered']
    #allocation3 [shape = 's32[2]{0}', space=sflag, size = 0x8, scoped, tag = 'scoped memory for generator_forward.5']
    #allocation4 [shape = 'u8[32768]{0}', space=vmem, size = 0x8000, scoped, tag = 'output window, operand 0']
    %12 = vsyncpa [#allocation3], 0
    loop: start=0, step=1, limit=4
    $region2: #{generator_forward.5} parent=1 // loop_pre_header
      _
    $region3: #{generator_forward.5} parent=1 // loop_header
      %s14 = sphi 0, %s18
      %p15 = scmp.ge.s32.totalorder %s14, 4
      %s21 = sphi 0, %s33
      %s22 = sphi 0, %s29
      %s23 = sphi 0, %s21
      %s24 = sphi 0, %s22
      %s25 = sphi 0, %s23
      %s26 = sphi 0, %s24
      %s36 = sphi 0, %s38
      %s39 = sphi 0, %s36
      %s40 = sphi 0, %s39
      %s56 = sphi 0, %s40
      %s60 = sphi 0, %s60
      %s62 = sphi 0, %s60
      %s63 = sphi 0, %s62
      %s77 = sphi 0, %s63
      %s81 = sphi 0, %s81
      %s83 = sphi 0, %s81
      %s84 = sphi 0, %s83
      %s98 = sphi 0, %s84
      %s102 = sphi 0, %s102
      %s104 = sphi 0, %s102
      %s105 = sphi 0, %s104
      %s119 = sphi 0, %s105
      %s125 = sphi 0, %s127
      %s128 = sphi 0, %s125
      %s129 = sphi 0, %s128
      %s145 = sphi 0, %s129
      %s153 = sphi 0, %s155
      %s156 = sphi 0, %s153
      %s157 = sphi 0, %s156
      %s173 = sphi 0, %s157
      %s181 = sphi 0, %s183
      %s184 = sphi 0, %s181
      %s185 = sphi 0, %s184
      %s201 = sphi 0, %s185
    $region4: #{generator_forward.5} parent=1 // loop_header_branch
      %17 = sbr.rel (%p15) target = $region8
    $region5: #{generator_forward.5} parent=1 // loop_body
      %s19 = ssub.s32 %s14, 1
      %s20 = ssub.s32 %s14, 2
      %s27 = sadd.s32 1, %s22
      %p28 = scmp.ge.s32.totalorder %s27, 1
      %s29 = scalar_select %p28, 0, %s27
      %s30 = sadd.s32 1, %s21
      %s31 = scalar_select %p28, %s30, %s21
      %p32 = scmp.ge.s32.totalorder %s31, 2
      %s33 = scalar_select %p32, 0, %s31
      %s34 = ssub.s32 %s21, %s33
      %p35 = scmp.eq.s32.totalorder %s34, 0
      %s37 = sadd.s32 %s36, 1
      %s38 = scalar_select %p35, %s36, %s37
      %p41 = pneg %p35
      %p42 = scmp.eq.s32.totalorder %s14, 1
      %p43 = por %p41, %p42
      %p44 = scmp.ne.s32.totalorder %s36, %s39
      %p45 = scmp.eq.s32.totalorder %s14, 0
      %p46 = por %p44, %p45
      %p47 = scmp.ne.s32.totalorder %s36, %s39
      %p48 = scmp.eq.s32.totalorder %s19, 1
      %p49 = por %p47, %p48
      %p50 = scmp.ne.s32.totalorder %s39, %s40
      %p51 = scmp.eq.s32.totalorder %s19, 0
      %p52 = por %p50, %p51
      %p53 = scmp.ne.s32.totalorder %s39, %s40
      %p54 = scmp.eq.s32.totalorder %s20, 1
      %p55 = por %p53, %p54
      %p57 = scmp.ne.s32.totalorder %s40, %s56
      %p58 = scmp.eq.s32.totalorder %s20, 0
      %p59 = por %p57, %p58
      %s61 = sadd.s32 %s60, 1
      %p64 = scmp.eq.s32.totalorder %s14, 1
      %p65 = scmp.ne.s32.totalorder %s60, %s62
      %p66 = scmp.eq.s32.totalorder %s14, 0
      %p67 = por %p65, %p66
      %p68 = scmp.ne.s32.totalorder %s60, %s62
      %p69 = scmp.eq.s32.totalorder %s19, 1
      %p70 = por %p68, %p69
      %p71 = scmp.ne.s32.totalorder %s62, %s63
      %p72 = scmp.eq.s32.totalorder %s19, 0
      %p73 = por %p71, %p72
      %p74 = scmp.ne.s32.totalorder %s62, %s63
      %p75 = scmp.eq.s32.totalorder %s20, 1
      %p76 = por %p74, %p75
      %p78 = scmp.ne.s32.totalorder %s63, %s77
      %p79 = scmp.eq.s32.totalorder %s20, 0
      %p80 = por %p78, %p79
      %s82 = sadd.s32 %s81, 1
      %p85 = scmp.eq.s32.totalorder %s14, 1
      %p86 = scmp.ne.s32.totalorder %s81, %s83
      %p87 = scmp.eq.s32.totalorder %s14, 0
      %p88 = por %p86, %p87
      %p89 = scmp.ne.s32.totalorder %s81, %s83
      %p90 = scmp.eq.s32.totalorder %s19, 1
      %p91 = por %p89, %p90
      %p92 = scmp.ne.s32.totalorder %s83, %s84
      %p93 = scmp.eq.s32.totalorder %s19, 0
      %p94 = por %p92, %p93
      %p95 = scmp.ne.s32.totalorder %s83, %s84
      %p96 = scmp.eq.s32.totalorder %s20, 1
      %p97 = por %p95, %p96
      %p99 = scmp.ne.s32.totalorder %s84, %s98
      %p100 = scmp.eq.s32.totalorder %s20, 0
      %p101 = por %p99, %p100
      %s103 = sadd.s32 %s102, 1
      %p106 = scmp.eq.s32.totalorder %s14, 1
      %p107 = scmp.ne.s32.totalorder %s102, %s104
      %p108 = scmp.eq.s32.totalorder %s14, 0
      %p109 = por %p107, %p108
      %p110 = scmp.ne.s32.totalorder %s102, %s104
      %p111 = scmp.eq.s32.totalorder %s19, 1
      %p112 = por %p110, %p111
      %p113 = scmp.ne.s32.totalorder %s104, %s105
      %p114 = scmp.eq.s32.totalorder %s19, 0
      %p115 = por %p113, %p114
      %p116 = scmp.ne.s32.totalorder %s104, %s105
      %p117 = scmp.eq.s32.totalorder %s20, 1
      %p118 = por %p116, %p117
      %p120 = scmp.ne.s32.totalorder %s105, %s119
      %p121 = scmp.eq.s32.totalorder %s20, 0
      %p122 = por %p120, %p121
      %s123 = ssub.s32 %s22, %s29
      %p124 = scmp.eq.s32.totalorder %s123, 0
      %s126 = sadd.s32 %s125, 1
      %s127 = scalar_select %p124, %s125, %s126
      %p130 = pneg %p124
      %p131 = scmp.eq.s32.totalorder %s14, 1
      %p132 = por %p130, %p131
      %p133 = scmp.ne.s32.totalorder %s125, %s128
      %p134 = scmp.eq.s32.totalorder %s14, 0
      %p135 = por %p133, %p134
      %p136 = scmp.ne.s32.totalorder %s125, %s128
      %p137 = scmp.eq.s32.totalorder %s19, 1
      %p138 = por %p136, %p137
      %p139 = scmp.ne.s32.totalorder %s128, %s129
      %p140 = scmp.eq.s32.totalorder %s19, 0
      %p141 = por %p139, %p140
      %p142 = scmp.ne.s32.totalorder %s128, %s129
      %p143 = scmp.eq.s32.totalorder %s20, 1
      %p144 = por %p142, %p143
      %p146 = scmp.ne.s32.totalorder %s129, %s145
      %p147 = scmp.eq.s32.totalorder %s20, 0
      %p148 = por %p146, %p147
      %s149 = ssub.s32 %s21, %s33
      %s150 = ssub.s32 %s22, %s29
      %s151 = sor.u32 %s149, %s150
      %p152 = scmp.eq.s32.totalorder %s151, 0
      %s154 = sadd.s32 %s153, 1
      %s155 = scalar_select %p152, %s153, %s154
      %p158 = pneg %p152
      %p159 = scmp.eq.s32.totalorder %s14, 1
      %p160 = por %p158, %p159
      %p161 = scmp.ne.s32.totalorder %s153, %s156
      %p162 = scmp.eq.s32.totalorder %s14, 0
      %p163 = por %p161, %p162
      %p164 = scmp.ne.s32.totalorder %s153, %s156
      %p165 = scmp.eq.s32.totalorder %s19, 1
      %p166 = por %p164, %p165
      %p167 = scmp.ne.s32.totalorder %s156, %s157
      %p168 = scmp.eq.s32.totalorder %s19, 0
      %p169 = por %p167, %p168
      %p170 = scmp.ne.s32.totalorder %s156, %s157
      %p171 = scmp.eq.s32.totalorder %s20, 1
      %p172 = por %p170, %p171
      %p174 = scmp.ne.s32.totalorder %s157, %s173
      %p175 = scmp.eq.s32.totalorder %s20, 0
      %p176 = por %p174, %p175
      %s177 = ssub.s32 %s21, %s33
      %s178 = ssub.s32 %s22, %s29
      %s179 = sor.u32 %s177, %s178
      %p180 = scmp.eq.s32.totalorder %s179, 0
      %s182 = sadd.s32 %s181, 1
      %s183 = scalar_select %p180, %s181, %s182
      %p186 = pneg %p180
      %p187 = scmp.eq.s32.totalorder %s14, 1
      %p188 = por %p186, %p187
      %p189 = scmp.ne.s32.totalorder %s181, %s184
      %p190 = scmp.eq.s32.totalorder %s14, 0
      %p191 = por %p189, %p190
      %p192 = scmp.ne.s32.totalorder %s181, %s184
      %p193 = scmp.eq.s32.totalorder %s19, 1
      %p194 = por %p192, %p193
      %p195 = scmp.ne.s32.totalorder %s184, %s185
      %p196 = scmp.eq.s32.totalorder %s19, 0
      %p197 = por %p195, %p196
      %p198 = scmp.ne.s32.totalorder %s184, %s185
      %p199 = scmp.eq.s32.totalorder %s20, 1
      %p200 = por %p198, %p199
      %p202 = scmp.ne.s32.totalorder %s185, %s201
      %p203 = scmp.eq.s32.totalorder %s20, 0
      %p204 = por %p202, %p203
      %p205 = scmp.le.s32.totalorder 1, %s14
      %p206 = scmp.lt.s32.totalorder %s14, 3
      %p207 = pnand %p205, %p206
      %p208 = pneg %p207
      // Predicated region
      $region9: #{generator_forward.5} parent=5 // pred_check
        _
      $region10: #{generator_forward.5} parent=5 // pred_check_branch
        %210 = sbr.rel (%p207) target = $region12
      $region11: #{generator_forward.5} parent=5 // pred_region
        %s211 = ssub.s32 %s14, 1
        // Predicated region
        $region13: #{generator_forward.5} parent=11 // pred_check
          %p212 = pneg %p73
        $region14: #{generator_forward.5} parent=11 // pred_check_branch
          %214 = sbr.rel (%p212) target = $region16
        $region15: #{generator_forward.5} parent=11 // pred_region
          _
        $region16: #{generator_forward.5} parent=11 // pred_fallthru
          _
        // Predicated region
        $region17: #{generator_forward.5} parent=11 // pred_check
          %p215 = pneg %p94
        $region18: #{generator_forward.5} parent=11 // pred_check_branch
          %217 = sbr.rel (%p215) target = $region20
        $region19: #{generator_forward.5} parent=11 // pred_region
          _
        $region20: #{generator_forward.5} parent=11 // pred_fallthru
          _
        // Predicated region
        $region21: #{generator_forward.5} parent=11 // pred_check
          %p218 = pneg %p115
        $region22: #{generator_forward.5} parent=11 // pred_check_branch
          %220 = sbr.rel (%p218) target = $region24
        $region23: #{generator_forward.5} parent=11 // pred_region
          _
        $region24: #{generator_forward.5} parent=11 // pred_fallthru
          _
        // Predicated region
        $region25: #{generator_forward.5} parent=11 // pred_check
          %p221 = pneg %p141
        $region26: #{generator_forward.5} parent=11 // pred_check_branch
          %223 = sbr.rel (%p221) target = $region28
        $region27: #{generator_forward.5} parent=11 // pred_region
          %225 = vsyncadd [#allocation3], 0
          %s226 = smul.addr %s24, 4
          %s227 = scalar_lea.hbm %s4, %s226
          %s228 = sshll.u32 %s227, 4
          %s229 = int_to_ptr.hbm [resolvable:$true] %s228
          %s230 = sshll.u32 [#allocation2], 4
          %s231 = int_to_ptr.vmem [resolvable:$true] %s230
          %236 = dma.hbm_to_vmem [thread:$0]  %s229, 8192, %s231, [#allocation3], 64, 64, 4
        $region28: #{generator_forward.5} parent=11 // pred_fallthru
          _
      $region12: #{generator_forward.5} parent=5 // pred_fallthru
        _
      %p237 = scmp.lt.s32.totalorder %s14, 2
      // Predicated region
      $region29: #{generator_forward.5} parent=5 // pred_check
        %p238 = pneg %p237
      $region30: #{generator_forward.5} parent=5 // pred_check_branch
        %240 = sbr.rel (%p238) target = $region32
      $region31: #{generator_forward.5} parent=5 // pred_region
        // Predicated region
        $region33: #{generator_forward.5} parent=31 // pred_check
          %p241 = pneg %p46
        $region34: #{generator_forward.5} parent=31 // pred_check_branch
          %243 = sbr.rel (%p241) target = $region36
        $region35: #{generator_forward.5} parent=31 // pred_region
          %p244 = scmp.lt.s32.totalorder %s21, 1
          %s245 = scalar_select %p244, %s21, 1
          %s246 = smul.addr %s245, 6
          %s247 = smul.addr %s246, 4
          %s248 = scalar_lea.vmem %s0, %s247
        $region36: #{generator_forward.5} parent=31 // pred_fallthru
          _
      $region32: #{generator_forward.5} parent=5 // pred_fallthru
        _
      %p249 = scmp.le.s32.totalorder 1, %s14
      %p250 = scmp.lt.s32.totalorder %s14, 3
      %p251 = pnand %p249, %p250
      %p252 = pneg %p251
      // Predicated region
      $region37: #{generator_forward.5} parent=5 // pred_check
        _
      $region38: #{generator_forward.5} parent=5 // pred_check_branch
        %254 = sbr.rel (%p251) target = $region40
      $region39: #{generator_forward.5} parent=5 // pred_region
        %s255 = ssub.s32 %s14, 1
        // Predicated region
        $region41: #{generator_forward.5} parent=39 // pred_check
          %p256 = pneg %p141
        $region42: #{generator_forward.5} parent=39 // pred_check_branch
          %258 = sbr.rel (%p256) target = $region44
        $region43: #{generator_forward.5} parent=39 // pred_region
          %260 = dma.done [#allocation3], 8192
        $region44: #{generator_forward.5} parent=39 // pred_fallthru
          _
        %p261 = scmp.lt.s32.totalorder %s23, 1
        %s262 = scalar_select %p261, %s23, 1
        %s263 = smul.addr %s262, 6
        %s264 = smul.addr %s263, 4
        %s265 = scalar_lea.vmem %s0, %s264
        %p266 = pneg %p52
        %p267 = pneg %p49
        %p268 = pneg %p73
        %p269 = pneg %p70
        %p270 = pneg %p94
        %p271 = pneg %p91
        %p272 = pneg %p115
        %p273 = pneg %p112
        %p274 = pneg %p141
        %p275 = pneg %p138
        %p276 = pneg %p169
        %p277 = pneg %p166
        %s278 = sand.u32 %s156, 1
        %s279 = sand.u32 %s156, 1
        %s280 = smul.addr %s279, 32
        %s281 = scalar_lea.vmem [#allocation4], %s280
        %p282 = pneg %p197
        %p283 = pneg %p194
        %p284 = scmp.lt.s32.totalorder %s23, 1
        %s285 = scalar_select %p284, %s23, 1
        %p286 = scmp.lt.s32.totalorder %s24, 0
        %s287 = scalar_select %p286, %s24, 0
        %s288 = sadd.s32 %s287, %s285
        %s289 = smul.addr %s288, 2
        %s290 = scalar_lea.vmem %s6, %s289
        %p291 = scmp.lt.s32.totalorder %s23, 1
        %s292 = scalar_select %p291, %s23, 1
        %s293 = smul.addr %s292, 6
        %s294 = smul.addr %s293, 4
        %s295 = scalar_lea.vmem %s0, %s294
        %p296 = scmp.lt.s32.totalorder %s23, 1
        %s297 = scalar_select %p296, %s23, 1
        %p298 = scmp.lt.s32.totalorder %s24, 0
        %s299 = scalar_select %p298, %s24, 0
        %s300 = sadd.s32 %s299, %s297
        %s301 = smul.addr %s300, 2
        %s302 = scalar_lea.vmem %s6, %s301
        %v304 = vld [vmem:[%s295] sm:$0x7]
        %v305 = vld [vmem:[%s295 + $0x4] sm:$0x7]
        %v306 = vld [vmem:[%s295 + $0x8] sm:$0x7]
        %v307 = vld [vmem:[%s295 + $0xc] sm:$0x7]
        %v308 = vld [vmem:[%s295 + $0x10] sm:$0x7]
        %v309 = vld [vmem:[%s295 + $0x14] sm:$0x7]
        %v310 = vunpack.c.l.bf16 %v304
        %v311 = vunpack.c.l.bf16 %v305
        %v312 = vunpack.c.l.bf16 %v306
        %v313 = vunpack.c.l.bf16 %v307
        %v314 = vunpack.c.l.bf16 %v308
        %v315 = vunpack.c.l.bf16 %v309
        %v316 = vld [vmem:[%s1] sm:$0x1]
        %v318 = vperm.slane %v316, 0
        %v320 = vmul.f32 %v310, %v318
        %v321 = vmul.f32 %v311, %v318
        %v322 = vmul.f32 %v312, %v318
        %v323 = vmul.f32 %v313, %v318
        %v324 = vmul.f32 %v314, %v318
        %v325 = vmul.f32 %v315, %v318
        %v326 = vld [vmem:[%s2] sm:$0x1]
        %v328 = vperm.slane %v326, 0
        %v330 = vadd.f32 %v320, %v328
        %v331 = vadd.f32 %v321, %v328
        %v332 = vadd.f32 %v322, %v328
        %v333 = vadd.f32 %v323, %v328
        %v334 = vadd.f32 %v324, %v328
        %v335 = vadd.f32 %v325, %v328
        %v336 = vmax.f32 %v330, 0.0
        %v337 = vmax.f32 %v331, 0.0
        %v338 = vmax.f32 %v332, 0.0
        %v339 = vmax.f32 %v333, 0.0
        %v340 = vmax.f32 %v334, 0.0
        %v341 = vmax.f32 %v335, 0.0
        %v342 = vld [vmem:[%s3] sm:$0x3f]
        %v343 = vld [vmem:[%s3 + $0x8] sm:$0x3f]
        %v344 = vld [vmem:[%s3 + $0x10] sm:$0x3f]
        %v345 = vld [vmem:[%s3 + $0x18] sm:$0x3f]
        %v346 = vld [vmem:[%s3 + $0x20] sm:$0x3f]
        %v347 = vld [vmem:[%s3 + $0x28] sm:$0x3f]
        %349 = vset.pattern.permute.xlu0 0
        %350 = vperm.xlu0 %349, %v342
        %v351 = vpop.permute.xlu0 %350
        %354 = vset.pattern.permute.xlu0 0
        %355 = vperm.xlu0 %354, %v343
        %v356 = vpop.permute.xlu0 %355
        %359 = vset.pattern.permute.xlu0 0
        %360 = vperm.xlu0 %359, %v344
        %v361 = vpop.permute.xlu0 %360
        %364 = vset.pattern.permute.xlu0 0
        %365 = vperm.xlu0 %364, %v345
        %v366 = vpop.permute.xlu0 %365
        %369 = vset.pattern.permute.xlu0 0
        %370 = vperm.xlu0 %369, %v346
        %v371 = vpop.permute.xlu0 %370
        %374 = vset.pattern.permute.xlu0 0
        %375 = vperm.xlu0 %374, %v347
        %v376 = vpop.permute.xlu0 %375
        %v378 = vmul.f32 %v336, %v351
        %v379 = vmul.f32 %v337, %v356
        %v380 = vmul.f32 %v338, %v361
        %v381 = vmul.f32 %v339, %v366
        %v382 = vmul.f32 %v340, %v371
        %v383 = vmul.f32 %v341, %v376
        %388 = vst [vmem:[#allocation1] ss:$2 sm:$0xff] %v378
        %s389 = scalar_lea.vmem [#allocation1], 1
        %390 = vst [vmem:[%s389] ss:$2 sm:$0xff] %v379
        %s391 = scalar_lea.vmem [#allocation1], 16
        %392 = vst [vmem:[%s391] ss:$2 sm:$0xff] %v380
        %s393 = scalar_lea.vmem [#allocation1], 17
        %394 = vst [vmem:[%s393] ss:$2 sm:$0xff] %v381
        %v395 = vld.sshfl [vmem:[#allocation1] sm:$0xff pattern:$0x75316420]
        %v396 = vld.sshfl [vmem:[#allocation1 + $0x10] sm:$0xff pattern:$0x75316420]
        %v399 = vpack.c.bf16 %v396, %v395
        %v400 = vld [vmem:[#allocation2] sm:$0xf]
        %v401 = vld [vmem:[#allocation2 + $0x4] sm:$0xf]
        %v402 = vld [vmem:[#allocation2 + $0x8] sm:$0xf]
        %v403 = vld [vmem:[#allocation2 + $0xc] sm:$0xf]
        %v404 = vld [vmem:[#allocation2 + $0x10] sm:$0xf]
        %v405 = vld [vmem:[#allocation2 + $0x14] sm:$0xf]
        %v406 = vld [vmem:[#allocation2 + $0x18] sm:$0xf]
        %v407 = vld [vmem:[#allocation2 + $0x1c] sm:$0xf]
        %v408 = vrot.slane %v378, 4
        %v409 = vrot.slane %v379, 4
        %v410 = vrot.slane %v380, 4
        %v411 = vrot.slane %v381, 4
        %vm412 = vcmask 1042432
        %vm413 = vcmask 1046532
        %vm414 = vmor %vm412, %vm413
        %v415 = vrot.slane %v378, 5
        %v416 = vrot.slane %v415, 4
        %v417 = vrot.slane %v408, 5
        %v418 = vsel %vm414, %v416, %v417
        %v419 = vrot.slane %v379, 5
        %v420 = vrot.slane %v419, 4
        %v421 = vrot.slane %v409, 5
        %v422 = vsel %vm414, %v420, %v421
        %v423 = vrot.slane %v380, 5
        %v424 = vrot.slane %v423, 4
        %v425 = vrot.slane %v410, 5
        %v426 = vsel %vm414, %v424, %v425
        %v427 = vrot.slane %v381, 5
        %v428 = vrot.slane %v427, 4
        %v429 = vrot.slane %v411, 5
        %v430 = vsel %vm414, %v428, %v429
        %431 = vst [vmem:[#allocation1] ss:$2 sm:$0xff] %v418
        %s432 = scalar_lea.vmem [#allocation1], 1
        %433 = vst [vmem:[%s432] ss:$2 sm:$0xff] %v422
        %s434 = scalar_lea.vmem [#allocation1], 16
        %435 = vst [vmem:[%s434] ss:$2 sm:$0xff] %v426
        %s436 = scalar_lea.vmem [#allocation1], 17
        %437 = vst [vmem:[%s436] ss:$2 sm:$0xff] %v430
        %v438 = vld.sshfl [vmem:[#allocation1] sm:$0xff pattern:$0x75316420]
        %v439 = vld.sshfl [vmem:[#allocation1 + $0x10] sm:$0xff pattern:$0x75316420]
        %v442 = vpack.c.bf16 %v439, %v438
        %s443 = scalar_lea.vmem [#allocation2], 32
        %v444 = vld [vmem:[%s443] sm:$0xf]
        %v445 = vld [vmem:[%s443 + $0x4] sm:$0xf]
        %v446 = vld [vmem:[%s443 + $0x8] sm:$0xf]
        %v447 = vld [vmem:[%s443 + $0xc] sm:$0xf]
        %v448 = vld [vmem:[%s443 + $0x10] sm:$0xf]
        %v449 = vld [vmem:[%s443 + $0x14] sm:$0xf]
        %v450 = vld [vmem:[%s443 + $0x18] sm:$0xf]
        %v451 = vld [vmem:[%s443 + $0x1c] sm:$0xf]
        %v460 = vunpack.c.l.b16 %v444
        %v461 = vunpack.c.l.b16 %v445
        %v462 = vunpack.c.l.b16 %v446
        %v463 = vunpack.c.l.b16 %v447
        %v464 = vunpack.c.l.b16 %v448
        %v465 = vunpack.c.l.b16 %v449
        %v466 = vunpack.c.l.b16 %v450
        %v467 = vunpack.c.l.b16 %v451
        %v468 = vpack.c.b16 %v461, %v460
        %v469 = vpack.c.b16 %v463, %v462
        %v470 = vpack.c.b16 %v465, %v464
        %v471 = vpack.c.b16 %v467, %v466
        %vm476 = vcmask 523264
        %v478 = vsel %vm476, %v442, 0
        %480 = vmatpush.bf16.msra.mxu0 0
        %481 = vmatpush.bf16.msra.mxu0 0
        %482 = vmatpush.bf16.msra.mxu0 0
        %483 = vmatpush.bf16.msra.mxu0 0
        %484 = vmatpush.bf16.msra.mxu0 %v471
        %485 = vmatpush.bf16.msra.mxu0 %v470
        %486 = vmatpush.bf16.msra.mxu0 %v469
        %487 = vmatpush.bf16.msra.mxu0 %v468
        %488 = vmatmul.bf16.gmra.mxu0 %v478
        %v489 = vpop.f32.mrf.mxu0
        %v490 = vadd.f32 0.0, %v489
        %v491 = vpop.f32.mrf.mxu0
        %v492 = vadd.f32 0.0, %v491
        %493 = vdwg.mxu0
        %v502 = vunpack.c.l.b16 %v400
        %v503 = vunpack.c.l.b16 %v401
        %v504 = vunpack.c.l.b16 %v402
        %v505 = vunpack.c.l.b16 %v403
        %v506 = vunpack.c.l.b16 %v404
        %v507 = vunpack.c.l.b16 %v405
        %v508 = vunpack.c.l.b16 %v406
        %v509 = vunpack.c.l.b16 %v407
        %v510 = vpack.c.b16 %v503, %v502
        %v511 = vpack.c.b16 %v505, %v504
        %v512 = vpack.c.b16 %v507, %v506
        %v513 = vpack.c.b16 %v509, %v508
        %v519 = vsel %vm476, %v399, 0
        %521 = vmatpush.bf16.msra.mxu0 0
        %522 = vmatpush.bf16.msra.mxu0 0
        %523 = vmatpush.bf16.msra.mxu0 0
        %524 = vmatpush.bf16.msra.mxu0 0
        %525 = vmatpush.bf16.msra.mxu0 %v513
        %526 = vmatpush.bf16.msra.mxu0 %v512
        %527 = vmatpush.bf16.msra.mxu0 %v511
        %528 = vmatpush.bf16.msra.mxu0 %v510
        %529 = vmatmul.bf16.gmra.mxu0 %v519
        %v530 = vpop.f32.mrf.mxu0
        %v531 = vadd.f32 %v490, %v530
        %v532 = vpop.f32.mrf.mxu0
        %v533 = vadd.f32 %v492, %v532
        %534 = vdwg.mxu0
        %536 = vst [vmem:[#allocation1] ss:$2 sm:$0xff] %v379
        %s537 = scalar_lea.vmem [#allocation1], 1
        %538 = vst [vmem:[%s537] ss:$2 sm:$0xff] %v380
        %s539 = scalar_lea.vmem [#allocation1], 16
        %540 = vst [vmem:[%s539] ss:$2 sm:$0xff] %v381
        %s541 = scalar_lea.vmem [#allocation1], 17
        %542 = vst [vmem:[%s541] ss:$2 sm:$0xff] %v382
        %v543 = vld.sshfl [vmem:[#allocation1] sm:$0xff pattern:$0x75316420]
        %v544 = vld.sshfl [vmem:[#allocation1 + $0x10] sm:$0xff pattern:$0x75316420]
        %v547 = vpack.c.bf16 %v544, %v543
        %s548 = scalar_lea.vmem [#allocation2], 64
        %v549 = vld [vmem:[%s548] sm:$0xf]
        %v550 = vld [vmem:[%s548 + $0x4] sm:$0xf]
        %v551 = vld [vmem:[%s548 + $0x8] sm:$0xf]
        %v552 = vld [vmem:[%s548 + $0xc] sm:$0xf]
        %v553 = vld [vmem:[%s548 + $0x10] sm:$0xf]
        %v554 = vld [vmem:[%s548 + $0x14] sm:$0xf]
        %v555 = vld [vmem:[%s548 + $0x18] sm:$0xf]
        %v556 = vld [vmem:[%s548 + $0x1c] sm:$0xf]
        %v565 = vunpack.c.l.b16 %v549
        %v566 = vunpack.c.l.b16 %v550
        %v567 = vunpack.c.l.b16 %v551
        %v568 = vunpack.c.l.b16 %v552
        %v569 = vunpack.c.l.b16 %v553
        %v570 = vunpack.c.l.b16 %v554
        %v571 = vunpack.c.l.b16 %v555
        %v572 = vunpack.c.l.b16 %v556
        %v573 = vpack.c.b16 %v566, %v565
        %v574 = vpack.c.b16 %v568, %v567
        %v575 = vpack.c.b16 %v570, %v569
        %v576 = vpack.c.b16 %v572, %v571
        %v582 = vsel %vm476, %v547, 0
        %584 = vmatpush.bf16.msra.mxu0 0
        %585 = vmatpush.bf16.msra.mxu0 0
        %586 = vmatpush.bf16.msra.mxu0 0
        %587 = vmatpush.bf16.msra.mxu0 0
        %588 = vmatpush.bf16.msra.mxu0 %v576
        %589 = vmatpush.bf16.msra.mxu0 %v575
        %590 = vmatpush.bf16.msra.mxu0 %v574
        %591 = vmatpush.bf16.msra.mxu0 %v573
        %592 = vmatmul.bf16.gmra.mxu0 %v582
        %v593 = vpop.f32.mrf.mxu0
        %v594 = vadd.f32 0.0, %v593
        %v595 = vpop.f32.mrf.mxu0
        %v596 = vadd.f32 0.0, %v595
        %597 = vdwg.mxu0
        %v598 = vadd.f32 %v531, %v594
        %v599 = vadd.f32 %v533, %v596
        %v600 = vrot.slane %v382, 4
        %v601 = vrot.slane %v382, 5
        %v602 = vrot.slane %v601, 4
        %v603 = vrot.slane %v600, 5
        %v604 = vsel %vm414, %v602, %v603
        %605 = vst [vmem:[#allocation1] ss:$2 sm:$0xff] %v422
        %s606 = scalar_lea.vmem [#allocation1], 1
        %607 = vst [vmem:[%s606] ss:$2 sm:$0xff] %v426
        %s608 = scalar_lea.vmem [#allocation1], 16
        %609 = vst [vmem:[%s608] ss:$2 sm:$0xff] %v430
        %s610 = scalar_lea.vmem [#allocation1], 17
        %611 = vst [vmem:[%s610] ss:$2 sm:$0xff] %v604
        %v612 = vld.sshfl [vmem:[#allocation1] sm:$0xff pattern:$0x75316420]
        %v613 = vld.sshfl [vmem:[#allocation1 + $0x10] sm:$0xff pattern:$0x75316420]
        %v616 = vpack.c.bf16 %v613, %v612
        %s617 = scalar_lea.vmem [#allocation2], 96
        %v618 = vld [vmem:[%s617] sm:$0xf]
        %v619 = vld [vmem:[%s617 + $0x4] sm:$0xf]
        %v620 = vld [vmem:[%s617 + $0x8] sm:$0xf]
        %v621 = vld [vmem:[%s617 + $0xc] sm:$0xf]
        %v622 = vld [vmem:[%s617 + $0x10] sm:$0xf]
        %v623 = vld [vmem:[%s617 + $0x14] sm:$0xf]
        %v624 = vld [vmem:[%s617 + $0x18] sm:$0xf]
        %v625 = vld [vmem:[%s617 + $0x1c] sm:$0xf]
        %v634 = vunpack.c.l.b16 %v618
        %v635 = vunpack.c.l.b16 %v619
        %v636 = vunpack.c.l.b16 %v620
        %v637 = vunpack.c.l.b16 %v621
        %v638 = vunpack.c.l.b16 %v622
        %v639 = vunpack.c.l.b16 %v623
        %v640 = vunpack.c.l.b16 %v624
        %v641 = vunpack.c.l.b16 %v625
        %v642 = vpack.c.b16 %v635, %v634
        %v643 = vpack.c.b16 %v637, %v636
        %v644 = vpack.c.b16 %v639, %v638
        %v645 = vpack.c.b16 %v641, %v640
        %v651 = vsel %vm476, %v616, 0
        %653 = vmatpush.bf16.msra.mxu0 0
        %654 = vmatpush.bf16.msra.mxu0 0
        %655 = vmatpush.bf16.msra.mxu0 0
        %656 = vmatpush.bf16.msra.mxu0 0
        %657 = vmatpush.bf16.msra.mxu0 %v645
        %658 = vmatpush.bf16.msra.mxu0 %v644
        %659 = vmatpush.bf16.msra.mxu0 %v643
        %660 = vmatpush.bf16.msra.mxu0 %v642
        %661 = vmatmul.bf16.gmra.mxu0 %v651
        %v662 = vpop.f32.mrf.mxu0
        %v663 = vadd.f32 0.0, %v662
        %v664 = vpop.f32.mrf.mxu0
        %v665 = vadd.f32 0.0, %v664
        %666 = vdwg.mxu0
        %v667 = vadd.f32 %v598, %v663
        %v668 = vadd.f32 %v599, %v665
        %v669 = vadd.f32 %v667, %v668
        %v670 = vrot.slane %v669, 4
        %v671 = vadd.f32 %v669, %v670
        %v672 = vrot.slane %v671, 2
        %v673 = vadd.f32 %v671, %v672
        %v674 = vrot.slane %v673, 1
        %v675 = vadd.f32 %v673, %v674
        %v676 = vadd.f32 %v675, 0.0
        %v677 = vmul.f32 %v667, %v667
        %v678 = vmul.f32 %v668, %v668
        %v679 = vadd.f32 %v677, %v678
        %v680 = vrot.slane %v679, 4
        %v681 = vadd.f32 %v679, %v680
        %v682 = vrot.slane %v681, 2
        %v683 = vadd.f32 %v681, %v682
        %v684 = vrot.slane %v683, 1
        %v685 = vadd.f32 %v683, %v684
        %v686 = vadd.f32 %v685, 0.0
        %v687 = vpack.c.bf16 %v667, %v667
        %v688 = vpack.c.bf16 %v668, %v668
        %689 = vst [vmem:[%s281] sm:$0xf] %v687
        %690 = vst [vmem:[%s281 + $0x4] sm:$0xf] %v688
        %s691 = scalar_lea.vmem [#allocation2], 128
        %v692 = vld [vmem:[%s691] sm:$0xf]
        %v693 = vld [vmem:[%s691 + $0x4] sm:$0xf]
        %v694 = vld [vmem:[%s691 + $0x8] sm:$0xf]
        %v695 = vld [vmem:[%s691 + $0xc] sm:$0xf]
        %v696 = vld [vmem:[%s691 + $0x10] sm:$0xf]
        %v697 = vld [vmem:[%s691 + $0x14] sm:$0xf]
        %v698 = vld [vmem:[%s691 + $0x18] sm:$0xf]
        %v699 = vld [vmem:[%s691 + $0x1c] sm:$0xf]
        %vm700 = vcmask 1041408
        %vm701 = vcmask 1045508
        %vm702 = vmor %vm700, %vm701
        %v703 = vrot.slane %v378, 6
        %v704 = vrot.slane %v703, 4
        %v705 = vrot.slane %v408, 6
        %v706 = vsel %vm702, %v704, %v705
        %v707 = vrot.slane %v379, 6
        %v708 = vrot.slane %v707, 4
        %v709 = vrot.slane %v409, 6
        %v710 = vsel %vm702, %v708, %v709
        %v711 = vrot.slane %v380, 6
        %v712 = vrot.slane %v711, 4
        %v713 = vrot.slane %v410, 6
        %v714 = vsel %vm702, %v712, %v713
        %v715 = vrot.slane %v381, 6
        %v716 = vrot.slane %v715, 4
        %v717 = vrot.slane %v411, 6
        %v718 = vsel %vm702, %v716, %v717
        %719 = vst [vmem:[#allocation1] ss:$2 sm:$0xff] %v706
        %s720 = scalar_lea.vmem [#allocation1], 1
        %721 = vst [vmem:[%s720] ss:$2 sm:$0xff] %v710
        %s722 = scalar_lea.vmem [#allocation1], 16
        %723 = vst [vmem:[%s722] ss:$2 sm:$0xff] %v714
        %s724 = scalar_lea.vmem [#allocation1], 17
        %725 = vst [vmem:[%s724] ss:$2 sm:$0xff] %v718
        %v726 = vld.sshfl [vmem:[#allocation1] sm:$0xff pattern:$0x75316420]
        %v727 = vld.sshfl [vmem:[#allocation1 + $0x10] sm:$0xff pattern:$0x75316420]
        %v730 = vpack.c.bf16 %v727, %v726
        %s731 = scalar_lea.vmem [#allocation2], 160
        %v732 = vld [vmem:[%s731] sm:$0xf]
        %v733 = vld [vmem:[%s731 + $0x4] sm:$0xf]
        %v734 = vld [vmem:[%s731 + $0x8] sm:$0xf]
        %v735 = vld [vmem:[%s731 + $0xc] sm:$0xf]
        %v736 = vld [vmem:[%s731 + $0x10] sm:$0xf]
        %v737 = vld [vmem:[%s731 + $0x14] sm:$0xf]
        %v738 = vld [vmem:[%s731 + $0x18] sm:$0xf]
        %v739 = vld [vmem:[%s731 + $0x1c] sm:$0xf]
        %v748 = vunpack.c.l.b16 %v732
        %v749 = vunpack.c.l.b16 %v733
        %v750 = vunpack.c.l.b16 %v734
        %v751 = vunpack.c.l.b16 %v735
        %v752 = vunpack.c.l.b16 %v736
        %v753 = vunpack.c.l.b16 %v737
        %v754 = vunpack.c.l.b16 %v738
        %v755 = vunpack.c.l.b16 %v739
        %v756 = vpack.c.b16 %v749, %v748
        %v757 = vpack.c.b16 %v751, %v750
        %v758 = vpack.c.b16 %v753, %v752
        %v759 = vpack.c.b16 %v755, %v754
        %v765 = vsel %vm476, %v730, 0
        %767 = vmatpush.bf16.msra.mxu0 0
        %768 = vmatpush.bf16.msra.mxu0 0
        %769 = vmatpush.bf16.msra.mxu0 0
        %770 = vmatpush.bf16.msra.mxu0 0
        %771 = vmatpush.bf16.msra.mxu0 %v759
        %772 = vmatpush.bf16.msra.mxu0 %v758
        %773 = vmatpush.bf16.msra.mxu0 %v757
        %774 = vmatpush.bf16.msra.mxu0 %v756
        %775 = vmatmul.bf16.gmra.mxu0 %v765
        %v776 = vpop.f32.mrf.mxu0
        %v777 = vadd.f32 0.0, %v776
        %v778 = vpop.f32.mrf.mxu0
        %v779 = vadd.f32 0.0, %v778
        %780 = vdwg.mxu0
        %v789 = vunpack.c.l.b16 %v692
        %v790 = vunpack.c.l.b16 %v693
        %v791 = vunpack.c.l.b16 %v694
        %v792 = vunpack.c.l.b16 %v695
        %v793 = vunpack.c.l.b16 %v696
        %v794 = vunpack.c.l.b16 %v697
        %v795 = vunpack.c.l.b16 %v698
        %v796 = vunpack.c.l.b16 %v699
        %v797 = vpack.c.b16 %v790, %v789
        %v798 = vpack.c.b16 %v792, %v791
        %v799 = vpack.c.b16 %v794, %v793
        %v800 = vpack.c.b16 %v796, %v795
        %805 = vmatpush.bf16.msra.mxu0 0
        %806 = vmatpush.bf16.msra.mxu0 0
        %807 = vmatpush.bf16.msra.mxu0 0
        %808 = vmatpush.bf16.msra.mxu0 0
        %809 = vmatpush.bf16.msra.mxu0 %v800
        %810 = vmatpush.bf16.msra.mxu0 %v799
        %811 = vmatpush.bf16.msra.mxu0 %v798
        %812 = vmatpush.bf16.msra.mxu0 %v797
        %813 = vmatmul.bf16.gmra.mxu0 %v478
        %v814 = vpop.f32.mrf.mxu0
        %v815 = vadd.f32 %v777, %v814
        %v816 = vpop.f32.mrf.mxu0
        %v817 = vadd.f32 %v779, %v816
        %818 = vdwg.mxu0
        %s819 = scalar_lea.vmem [#allocation2], 192
        %v820 = vld [vmem:[%s819] sm:$0xf]
        %v821 = vld [vmem:[%s819 + $0x4] sm:$0xf]
        %v822 = vld [vmem:[%s819 + $0x8] sm:$0xf]
        %v823 = vld [vmem:[%s819 + $0xc] sm:$0xf]
        %v824 = vld [vmem:[%s819 + $0x10] sm:$0xf]
        %v825 = vld [vmem:[%s819 + $0x14] sm:$0xf]
        %v826 = vld [vmem:[%s819 + $0x18] sm:$0xf]
        %v827 = vld [vmem:[%s819 + $0x1c] sm:$0xf]
        %v836 = vunpack.c.l.b16 %v820
        %v837 = vunpack.c.l.b16 %v821
        %v838 = vunpack.c.l.b16 %v822
        %v839 = vunpack.c.l.b16 %v823
        %v840 = vunpack.c.l.b16 %v824
        %v841 = vunpack.c.l.b16 %v825
        %v842 = vunpack.c.l.b16 %v826
        %v843 = vunpack.c.l.b16 %v827
        %v844 = vpack.c.b16 %v837, %v836
        %v845 = vpack.c.b16 %v839, %v838
        %v846 = vpack.c.b16 %v841, %v840
        %v847 = vpack.c.b16 %v843, %v842
        %852 = vmatpush.bf16.msra.mxu0 0
        %853 = vmatpush.bf16.msra.mxu0 0
        %854 = vmatpush.bf16.msra.mxu0 0
        %855 = vmatpush.bf16.msra.mxu0 0
        %856 = vmatpush.bf16.msra.mxu0 %v847
        %857 = vmatpush.bf16.msra.mxu0 %v846
        %858 = vmatpush.bf16.msra.mxu0 %v845
        %859 = vmatpush.bf16.msra.mxu0 %v844
        %860 = vmatmul.bf16.gmra.mxu0 %v651
        %v861 = vpop.f32.mrf.mxu0
        %v862 = vadd.f32 0.0, %v861
        %v863 = vpop.f32.mrf.mxu0
        %v864 = vadd.f32 0.0, %v863
        %865 = vdwg.mxu0
        %v866 = vadd.f32 %v815, %v862
        %v867 = vadd.f32 %v817, %v864
        %v868 = vrot.slane %v382, 6
        %v869 = vrot.slane %v868, 4
        %v870 = vrot.slane %v600, 6
        %v871 = vsel %vm702, %v869, %v870
        %872 = vst [vmem:[#allocation1] ss:$2 sm:$0xff] %v710
        %s873 = scalar_lea.vmem [#allocation1], 1
        %874 = vst [vmem:[%s873] ss:$2 sm:$0xff] %v714
        %s875 = scalar_lea.vmem [#allocation1], 16
        %876 = vst [vmem:[%s875] ss:$2 sm:$0xff] %v718
        %s877 = scalar_lea.vmem [#allocation1], 17
        %878 = vst [vmem:[%s877] ss:$2 sm:$0xff] %v871
        %v879 = vld.sshfl [vmem:[#allocation1] sm:$0xff pattern:$0x75316420]
        %v880 = vld.sshfl [vmem:[#allocation1 + $0x10] sm:$0xff pattern:$0x75316420]
        %v883 = vpack.c.bf16 %v880, %v879
        %s884 = scalar_lea.vmem [#allocation2], 224
        %v885 = vld [vmem:[%s884] sm:$0xf]
        %v886 = vld [vmem:[%s884 + $0x4] sm:$0xf]
        %v887 = vld [vmem:[%s884 + $0x8] sm:$0xf]
        %v888 = vld [vmem:[%s884 + $0xc] sm:$0xf]
        %v889 = vld [vmem:[%s884 + $0x10] sm:$0xf]
        %v890 = vld [vmem:[%s884 + $0x14] sm:$0xf]
        %v891 = vld [vmem:[%s884 + $0x18] sm:$0xf]
        %v892 = vld [vmem:[%s884 + $0x1c] sm:$0xf]
        %v901 = vunpack.c.l.b16 %v885
        %v902 = vunpack.c.l.b16 %v886
        %v903 = vunpack.c.l.b16 %v887
        %v904 = vunpack.c.l.b16 %v888
        %v905 = vunpack.c.l.b16 %v889
        %v906 = vunpack.c.l.b16 %v890
        %v907 = vunpack.c.l.b16 %v891
        %v908 = vunpack.c.l.b16 %v892
        %v909 = vpack.c.b16 %v902, %v901
        %v910 = vpack.c.b16 %v904, %v903
        %v911 = vpack.c.b16 %v906, %v905
        %v912 = vpack.c.b16 %v908, %v907
        %v918 = vsel %vm476, %v883, 0
        %920 = vmatpush.bf16.msra.mxu0 0
        %921 = vmatpush.bf16.msra.mxu0 0
        %922 = vmatpush.bf16.msra.mxu0 0
        %923 = vmatpush.bf16.msra.mxu0 0
        %924 = vmatpush.bf16.msra.mxu0 %v912
        %925 = vmatpush.bf16.msra.mxu0 %v911
        %926 = vmatpush.bf16.msra.mxu0 %v910
        %927 = vmatpush.bf16.msra.mxu0 %v909
        %928 = vmatmul.bf16.gmra.mxu0 %v918
        %v929 = vpop.f32.mrf.mxu0
        %v930 = vadd.f32 0.0, %v929
        %v931 = vpop.f32.mrf.mxu0
        %v932 = vadd.f32 0.0, %v931
        %933 = vdwg.mxu0
        %v934 = vadd.f32 %v866, %v930
        %v935 = vadd.f32 %v867, %v932
        %v936 = vadd.f32 %v934, %v935
        %v937 = vrot.slane %v936, 4
        %v938 = vadd.f32 %v936, %v937
        %v939 = vrot.slane %v938, 2
        %v940 = vadd.f32 %v938, %v939
        %v941 = vrot.slane %v940, 1
        %v942 = vadd.f32 %v940, %v941
        %v943 = vadd.f32 %v676, %v942
        %v944 = vmul.f32 %v934, %v934
        %v945 = vmul.f32 %v935, %v935
        %v946 = vadd.f32 %v944, %v945
        %v947 = vrot.slane %v946, 4
        %v948 = vadd.f32 %v946, %v947
        %v949 = vrot.slane %v948, 2
        %v950 = vadd.f32 %v948, %v949
        %v951 = vrot.slane %v950, 1
        %v952 = vadd.f32 %v950, %v951
        %v953 = vadd.f32 %v686, %v952
        %v954 = vpack.c.bf16 %v934, %v934
        %v955 = vpack.c.bf16 %v935, %v935
        %s956 = scalar_lea.vmem %s281, 8 [#allocation4]
        %957 = vst [vmem:[%s956] sm:$0xf] %v954
        %958 = vst [vmem:[%s956 + $0x4] sm:$0xf] %v955
        %s959 = scalar_lea.vmem [#allocation2], 256
        %v960 = vld [vmem:[%s959] sm:$0xf]
        %v961 = vld [vmem:[%s959 + $0x4] sm:$0xf]
        %v962 = vld [vmem:[%s959 + $0x8] sm:$0xf]
        %v963 = vld [vmem:[%s959 + $0xc] sm:$0xf]
        %v964 = vld [vmem:[%s959 + $0x10] sm:$0xf]
        %v965 = vld [vmem:[%s959 + $0x14] sm:$0xf]
        %v966 = vld [vmem:[%s959 + $0x18] sm:$0xf]
        %v967 = vld [vmem:[%s959 + $0x1c] sm:$0xf]
        %s968 = scalar_lea.vmem [#allocation2], 288
        %v969 = vld [vmem:[%s968] sm:$0xf]
        %v970 = vld [vmem:[%s968 + $0x4] sm:$0xf]
        %v971 = vld [vmem:[%s968 + $0x8] sm:$0xf]
        %v972 = vld [vmem:[%s968 + $0xc] sm:$0xf]
        %v973 = vld [vmem:[%s968 + $0x10] sm:$0xf]
        %v974 = vld [vmem:[%s968 + $0x14] sm:$0xf]
        %v975 = vld [vmem:[%s968 + $0x18] sm:$0xf]
        %v976 = vld [vmem:[%s968 + $0x1c] sm:$0xf]
        %v985 = vunpack.c.l.b16 %v969
        %v986 = vunpack.c.l.b16 %v970
        %v987 = vunpack.c.l.b16 %v971
        %v988 = vunpack.c.l.b16 %v972
        %v989 = vunpack.c.l.b16 %v973
        %v990 = vunpack.c.l.b16 %v974
        %v991 = vunpack.c.l.b16 %v975
        %v992 = vunpack.c.l.b16 %v976
        %v993 = vpack.c.b16 %v986, %v985
        %v994 = vpack.c.b16 %v988, %v987
        %v995 = vpack.c.b16 %v990, %v989
        %v996 = vpack.c.b16 %v992, %v991
        %1001 = vmatpush.bf16.msra.mxu0 0
        %1002 = vmatpush.bf16.msra.mxu0 0
        %1003 = vmatpush.bf16.msra.mxu0 0
        %1004 = vmatpush.bf16.msra.mxu0 0
        %1005 = vmatpush.bf16.msra.mxu0 %v996
        %1006 = vmatpush.bf16.msra.mxu0 %v995
        %1007 = vmatpush.bf16.msra.mxu0 %v994
        %1008 = vmatpush.bf16.msra.mxu0 %v993
        %1009 = vmatmul.bf16.gmra.mxu0 %v651
        %v1010 = vpop.f32.mrf.mxu0
        %v1011 = vadd.f32 0.0, %v1010
        %v1012 = vpop.f32.mrf.mxu0
        %v1013 = vadd.f32 0.0, %v1012
        %1014 = vdwg.mxu0
        %v1023 = vunpack.c.l.b16 %v960
        %v1024 = vunpack.c.l.b16 %v961
        %v1025 = vunpack.c.l.b16 %v962
        %v1026 = vunpack.c.l.b16 %v963
        %v1027 = vunpack.c.l.b16 %v964
        %v1028 = vunpack.c.l.b16 %v965
        %v1029 = vunpack.c.l.b16 %v966
        %v1030 = vunpack.c.l.b16 %v967
        %v1031 = vpack.c.b16 %v1024, %v1023
        %v1032 = vpack.c.b16 %v1026, %v1025
        %v1033 = vpack.c.b16 %v1028, %v1027
        %v1034 = vpack.c.b16 %v1030, %v1029
        %1039 = vmatpush.bf16.msra.mxu0 0
        %1040 = vmatpush.bf16.msra.mxu0 0
        %1041 = vmatpush.bf16.msra.mxu0 0
        %1042 = vmatpush.bf16.msra.mxu0 0
        %1043 = vmatpush.bf16.msra.mxu0 %v1034
        %1044 = vmatpush.bf16.msra.mxu0 %v1033
        %1045 = vmatpush.bf16.msra.mxu0 %v1032
        %1046 = vmatpush.bf16.msra.mxu0 %v1031
        %1047 = vmatmul.bf16.gmra.mxu0 %v582
        %v1048 = vpop.f32.mrf.mxu0
        %v1049 = vadd.f32 %v1011, %v1048
        %v1050 = vpop.f32.mrf.mxu0
        %v1051 = vadd.f32 %v1013, %v1050
        %1052 = vdwg.mxu0
        %1054 = vst [vmem:[#allocation1] ss:$2 sm:$0xff] %v380
        %s1055 = scalar_lea.vmem [#allocation1], 1
        %1056 = vst [vmem:[%s1055] ss:$2 sm:$0xff] %v381
        %s1057 = scalar_lea.vmem [#allocation1], 16
        %1058 = vst [vmem:[%s1057] ss:$2 sm:$0xff] %v382
        %s1059 = scalar_lea.vmem [#allocation1], 17
        %1060 = vst [vmem:[%s1059] ss:$2 sm:$0xff] %v383
        %v1061 = vld.sshfl [vmem:[#allocation1] sm:$0xff pattern:$0x75316420]
        %v1062 = vld.sshfl [vmem:[#allocation1 + $0x10] sm:$0xff pattern:$0x75316420]
        %v1065 = vpack.c.bf16 %v1062, %v1061
        %s1066 = scalar_lea.vmem [#allocation2], 320
        %v1067 = vld [vmem:[%s1066] sm:$0xf]
        %v1068 = vld [vmem:[%s1066 + $0x4] sm:$0xf]
        %v1069 = vld [vmem:[%s1066 + $0x8] sm:$0xf]
        %v1070 = vld [vmem:[%s1066 + $0xc] sm:$0xf]
        %v1071 = vld [vmem:[%s1066 + $0x10] sm:$0xf]
        %v1072 = vld [vmem:[%s1066 + $0x14] sm:$0xf]
        %v1073 = vld [vmem:[%s1066 + $0x18] sm:$0xf]
        %v1074 = vld [vmem:[%s1066 + $0x1c] sm:$0xf]
        %v1083 = vunpack.c.l.b16 %v1067
        %v1084 = vunpack.c.l.b16 %v1068
        %v1085 = vunpack.c.l.b16 %v1069
        %v1086 = vunpack.c.l.b16 %v1070
        %v1087 = vunpack.c.l.b16 %v1071
        %v1088 = vunpack.c.l.b16 %v1072
        %v1089 = vunpack.c.l.b16 %v1073
        %v1090 = vunpack.c.l.b16 %v1074
        %v1091 = vpack.c.b16 %v1084, %v1083
        %v1092 = vpack.c.b16 %v1086, %v1085
        %v1093 = vpack.c.b16 %v1088, %v1087
        %v1094 = vpack.c.b16 %v1090, %v1089
        %v1100 = vsel %vm476, %v1065, 0
        %1102 = vmatpush.bf16.msra.mxu0 0
        %1103 = vmatpush.bf16.msra.mxu0 0
        %1104 = vmatpush.bf16.msra.mxu0 0
        %1105 = vmatpush.bf16.msra.mxu0 0
        %1106 = vmatpush.bf16.msra.mxu0 %v1094
        %1107 = vmatpush.bf16.msra.mxu0 %v1093
        %1108 = vmatpush.bf16.msra.mxu0 %v1092
        %1109 = vmatpush.bf16.msra.mxu0 %v1091
        %1110 = vmatmul.bf16.gmra.mxu0 %v1100
        %v1111 = vpop.f32.mrf.mxu0
        %v1112 = vadd.f32 0.0, %v1111
        %v1113 = vpop.f32.mrf.mxu0
        %v1114 = vadd.f32 0.0, %v1113
        %1115 = vdwg.mxu0
        %v1116 = vadd.f32 %v1049, %v1112
        %v1117 = vadd.f32 %v1051, %v1114
        %v1118 = vrot.slane %v383, 4
        %v1119 = vrot.slane %v383, 5
        %v1120 = vrot.slane %v1119, 4
        %v1121 = vrot.slane %v1118, 5
        %v1122 = vsel %vm414, %v1120, %v1121
        %1123 = vst [vmem:[#allocation1] ss:$2 sm:$0xff] %v426
        %s1124 = scalar_lea.vmem [#allocation1], 1
        %1125 = vst [vmem:[%s1124] ss:$2 sm:$0xff] %v430
        %s1126 = scalar_lea.vmem [#allocation1], 16
        %1127 = vst [vmem:[%s1126] ss:$2 sm:$0xff] %v604
        %s1128 = scalar_lea.vmem [#allocation1], 17
        %1129 = vst [vmem:[%s1128] ss:$2 sm:$0xff] %v1122
        %v1130 = vld.sshfl [vmem:[#allocation1] sm:$0xff pattern:$0x75316420]
        %v1131 = vld.sshfl [vmem:[#allocation1 + $0x10] sm:$0xff pattern:$0x75316420]
        %v1134 = vpack.c.bf16 %v1131, %v1130
        %s1135 = scalar_lea.vmem [#allocation2], 352
        %v1136 = vld [vmem:[%s1135] sm:$0xf]
        %v1137 = vld [vmem:[%s1135 + $0x4] sm:$0xf]
        %v1138 = vld [vmem:[%s1135 + $0x8] sm:$0xf]
        %v1139 = vld [vmem:[%s1135 + $0xc] sm:$0xf]
        %v1140 = vld [vmem:[%s1135 + $0x10] sm:$0xf]
        %v1141 = vld [vmem:[%s1135 + $0x14] sm:$0xf]
        %v1142 = vld [vmem:[%s1135 + $0x18] sm:$0xf]
        %v1143 = vld [vmem:[%s1135 + $0x1c] sm:$0xf]
        %v1152 = vunpack.c.l.b16 %v1136
        %v1153 = vunpack.c.l.b16 %v1137
        %v1154 = vunpack.c.l.b16 %v1138
        %v1155 = vunpack.c.l.b16 %v1139
        %v1156 = vunpack.c.l.b16 %v1140
        %v1157 = vunpack.c.l.b16 %v1141
        %v1158 = vunpack.c.l.b16 %v1142
        %v1159 = vunpack.c.l.b16 %v1143
        %v1160 = vpack.c.b16 %v1153, %v1152
        %v1161 = vpack.c.b16 %v1155, %v1154
        %v1162 = vpack.c.b16 %v1157, %v1156
        %v1163 = vpack.c.b16 %v1159, %v1158
        %v1169 = vsel %vm476, %v1134, 0
        %1171 = vmatpush.bf16.msra.mxu0 0
        %1172 = vmatpush.bf16.msra.mxu0 0
        %1173 = vmatpush.bf16.msra.mxu0 0
        %1174 = vmatpush.bf16.msra.mxu0 0
        %1175 = vmatpush.bf16.msra.mxu0 %v1163
        %1176 = vmatpush.bf16.msra.mxu0 %v1162
        %1177 = vmatpush.bf16.msra.mxu0 %v1161
        %1178 = vmatpush.bf16.msra.mxu0 %v1160
        %1179 = vmatmul.bf16.gmra.mxu0 %v1169
        %v1180 = vpop.f32.mrf.mxu0
        %v1181 = vadd.f32 0.0, %v1180
        %v1182 = vpop.f32.mrf.mxu0
        %v1183 = vadd.f32 0.0, %v1182
        %1184 = vdwg.mxu0
        %v1185 = vadd.f32 %v1116, %v1181
        %v1186 = vadd.f32 %v1117, %v1183
        %v1187 = vadd.f32 %v1185, %v1186
        %v1188 = vrot.slane %v1187, 4
        %v1189 = vadd.f32 %v1187, %v1188
        %v1190 = vrot.slane %v1189, 2
        %v1191 = vadd.f32 %v1189, %v1190
        %v1192 = vrot.slane %v1191, 1
        %v1193 = vadd.f32 %v1191, %v1192
        %v1194 = vadd.f32 %v943, %v1193
        %v1195 = vmul.f32 %v1185, %v1185
        %v1196 = vmul.f32 %v1186, %v1186
        %v1197 = vadd.f32 %v1195, %v1196
        %v1198 = vrot.slane %v1197, 4
        %v1199 = vadd.f32 %v1197, %v1198
        %v1200 = vrot.slane %v1199, 2
        %v1201 = vadd.f32 %v1199, %v1200
        %v1202 = vrot.slane %v1201, 1
        %v1203 = vadd.f32 %v1201, %v1202
        %v1204 = vadd.f32 %v953, %v1203
        %v1205 = vpack.c.bf16 %v1185, %v1185
        %v1206 = vpack.c.bf16 %v1186, %v1186
        %s1207 = scalar_lea.vmem %s281, 16 [#allocation4]
        %1208 = vst [vmem:[%s1207] sm:$0xf] %v1205
        %1209 = vst [vmem:[%s1207 + $0x4] sm:$0xf] %v1206
        %s1210 = scalar_lea.vmem [#allocation2], 384
        %v1211 = vld [vmem:[%s1210] sm:$0xf]
        %v1212 = vld [vmem:[%s1210 + $0x4] sm:$0xf]
        %v1213 = vld [vmem:[%s1210 + $0x8] sm:$0xf]
        %v1214 = vld [vmem:[%s1210 + $0xc] sm:$0xf]
        %v1215 = vld [vmem:[%s1210 + $0x10] sm:$0xf]
        %v1216 = vld [vmem:[%s1210 + $0x14] sm:$0xf]
        %v1217 = vld [vmem:[%s1210 + $0x18] sm:$0xf]
        %v1218 = vld [vmem:[%s1210 + $0x1c] sm:$0xf]
        %s1219 = scalar_lea.vmem [#allocation2], 416
        %v1220 = vld [vmem:[%s1219] sm:$0xf]
        %v1221 = vld [vmem:[%s1219 + $0x4] sm:$0xf]
        %v1222 = vld [vmem:[%s1219 + $0x8] sm:$0xf]
        %v1223 = vld [vmem:[%s1219 + $0xc] sm:$0xf]
        %v1224 = vld [vmem:[%s1219 + $0x10] sm:$0xf]
        %v1225 = vld [vmem:[%s1219 + $0x14] sm:$0xf]
        %v1226 = vld [vmem:[%s1219 + $0x18] sm:$0xf]
        %v1227 = vld [vmem:[%s1219 + $0x1c] sm:$0xf]
        %v1236 = vunpack.c.l.b16 %v1220
        %v1237 = vunpack.c.l.b16 %v1221
        %v1238 = vunpack.c.l.b16 %v1222
        %v1239 = vunpack.c.l.b16 %v1223
        %v1240 = vunpack.c.l.b16 %v1224
        %v1241 = vunpack.c.l.b16 %v1225
        %v1242 = vunpack.c.l.b16 %v1226
        %v1243 = vunpack.c.l.b16 %v1227
        %v1244 = vpack.c.b16 %v1237, %v1236
        %v1245 = vpack.c.b16 %v1239, %v1238
        %v1246 = vpack.c.b16 %v1241, %v1240
        %v1247 = vpack.c.b16 %v1243, %v1242
        %1252 = vmatpush.bf16.msra.mxu0 0
        %1253 = vmatpush.bf16.msra.mxu0 0
        %1254 = vmatpush.bf16.msra.mxu0 0
        %1255 = vmatpush.bf16.msra.mxu0 0
        %1256 = vmatpush.bf16.msra.mxu0 %v1247
        %1257 = vmatpush.bf16.msra.mxu0 %v1246
        %1258 = vmatpush.bf16.msra.mxu0 %v1245
        %1259 = vmatpush.bf16.msra.mxu0 %v1244
        %1260 = vmatmul.bf16.gmra.mxu0 %v918
        %v1261 = vpop.f32.mrf.mxu0
        %v1262 = vadd.f32 0.0, %v1261
        %v1263 = vpop.f32.mrf.mxu0
        %v1264 = vadd.f32 0.0, %v1263
        %1265 = vdwg.mxu0
        %v1274 = vunpack.c.l.b16 %v1211
        %v1275 = vunpack.c.l.b16 %v1212
        %v1276 = vunpack.c.l.b16 %v1213
        %v1277 = vunpack.c.l.b16 %v1214
        %v1278 = vunpack.c.l.b16 %v1215
        %v1279 = vunpack.c.l.b16 %v1216
        %v1280 = vunpack.c.l.b16 %v1217
        %v1281 = vunpack.c.l.b16 %v1218
        %v1282 = vpack.c.b16 %v1275, %v1274
        %v1283 = vpack.c.b16 %v1277, %v1276
        %v1284 = vpack.c.b16 %v1279, %v1278
        %v1285 = vpack.c.b16 %v1281, %v1280
        %1290 = vmatpush.bf16.msra.mxu0 0
        %1291 = vmatpush.bf16.msra.mxu0 0
        %1292 = vmatpush.bf16.msra.mxu0 0
        %1293 = vmatpush.bf16.msra.mxu0 0
        %1294 = vmatpush.bf16.msra.mxu0 %v1285
        %1295 = vmatpush.bf16.msra.mxu0 %v1284
        %1296 = vmatpush.bf16.msra.mxu0 %v1283
        %1297 = vmatpush.bf16.msra.mxu0 %v1282
        %1298 = vmatmul.bf16.gmra.mxu0 %v651
        %v1299 = vpop.f32.mrf.mxu0
        %v1300 = vadd.f32 %v1262, %v1299
        %v1301 = vpop.f32.mrf.mxu0
        %v1302 = vadd.f32 %v1264, %v1301
        %1303 = vdwg.mxu0
        %s1304 = scalar_lea.vmem [#allocation2], 448
        %v1305 = vld [vmem:[%s1304] sm:$0xf]
        %v1306 = vld [vmem:[%s1304 + $0x4] sm:$0xf]
        %v1307 = vld [vmem:[%s1304 + $0x8] sm:$0xf]
        %v1308 = vld [vmem:[%s1304 + $0xc] sm:$0xf]
        %v1309 = vld [vmem:[%s1304 + $0x10] sm:$0xf]
        %v1310 = vld [vmem:[%s1304 + $0x14] sm:$0xf]
        %v1311 = vld [vmem:[%s1304 + $0x18] sm:$0xf]
        %v1312 = vld [vmem:[%s1304 + $0x1c] sm:$0xf]
        %v1321 = vunpack.c.l.b16 %v1305
        %v1322 = vunpack.c.l.b16 %v1306
        %v1323 = vunpack.c.l.b16 %v1307
        %v1324 = vunpack.c.l.b16 %v1308
        %v1325 = vunpack.c.l.b16 %v1309
        %v1326 = vunpack.c.l.b16 %v1310
        %v1327 = vunpack.c.l.b16 %v1311
        %v1328 = vunpack.c.l.b16 %v1312
        %v1329 = vpack.c.b16 %v1322, %v1321
        %v1330 = vpack.c.b16 %v1324, %v1323
        %v1331 = vpack.c.b16 %v1326, %v1325
        %v1332 = vpack.c.b16 %v1328, %v1327
        %1337 = vmatpush.bf16.msra.mxu0 0
        %1338 = vmatpush.bf16.msra.mxu0 0
        %1339 = vmatpush.bf16.msra.mxu0 0
        %1340 = vmatpush.bf16.msra.mxu0 0
        %1341 = vmatpush.bf16.msra.mxu0 %v1332
        %1342 = vmatpush.bf16.msra.mxu0 %v1331
        %1343 = vmatpush.bf16.msra.mxu0 %v1330
        %1344 = vmatpush.bf16.msra.mxu0 %v1329
        %1345 = vmatmul.bf16.gmra.mxu0 %v1169
        %v1346 = vpop.f32.mrf.mxu0
        %v1347 = vadd.f32 0.0, %v1346
        %v1348 = vpop.f32.mrf.mxu0
        %v1349 = vadd.f32 0.0, %v1348
        %1350 = vdwg.mxu0
        %v1351 = vadd.f32 %v1300, %v1347
        %v1352 = vadd.f32 %v1302, %v1349
        %v1353 = vrot.slane %v383, 6
        %v1354 = vrot.slane %v1353, 4
        %v1355 = vrot.slane %v1118, 6
        %v1356 = vsel %vm702, %v1354, %v1355
        %1357 = vst [vmem:[#allocation1] ss:$2 sm:$0xff] %v714
        %s1358 = scalar_lea.vmem [#allocation1], 1
        %1359 = vst [vmem:[%s1358] ss:$2 sm:$0xff] %v718
        %s1360 = scalar_lea.vmem [#allocation1], 16
        %1361 = vst [vmem:[%s1360] ss:$2 sm:$0xff] %v871
        %s1362 = scalar_lea.vmem [#allocation1], 17
        %1363 = vst [vmem:[%s1362] ss:$2 sm:$0xff] %v1356
        %v1364 = vld.sshfl [vmem:[#allocation1] sm:$0xff pattern:$0x75316420]
        %v1365 = vld.sshfl [vmem:[#allocation1 + $0x10] sm:$0xff pattern:$0x75316420]
        %v1368 = vpack.c.bf16 %v1365, %v1364
        %s1369 = scalar_lea.vmem [#allocation2], 480
        %v1370 = vld [vmem:[%s1369] sm:$0xf]
        %v1371 = vld [vmem:[%s1369 + $0x4] sm:$0xf]
        %v1372 = vld [vmem:[%s1369 + $0x8] sm:$0xf]
        %v1373 = vld [vmem:[%s1369 + $0xc] sm:$0xf]
        %v1374 = vld [vmem:[%s1369 + $0x10] sm:$0xf]
        %v1375 = vld [vmem:[%s1369 + $0x14] sm:$0xf]
        %v1376 = vld [vmem:[%s1369 + $0x18] sm:$0xf]
        %v1377 = vld [vmem:[%s1369 + $0x1c] sm:$0xf]
        %v1386 = vunpack.c.l.b16 %v1370
        %v1387 = vunpack.c.l.b16 %v1371
        %v1388 = vunpack.c.l.b16 %v1372
        %v1389 = vunpack.c.l.b16 %v1373
        %v1390 = vunpack.c.l.b16 %v1374
        %v1391 = vunpack.c.l.b16 %v1375
        %v1392 = vunpack.c.l.b16 %v1376
        %v1393 = vunpack.c.l.b16 %v1377
        %v1394 = vpack.c.b16 %v1387, %v1386
        %v1395 = vpack.c.b16 %v1389, %v1388
        %v1396 = vpack.c.b16 %v1391, %v1390
        %v1397 = vpack.c.b16 %v1393, %v1392
        %v1403 = vsel %vm476, %v1368, 0
        %1405 = vmatpush.bf16.msra.mxu0 0
        %1406 = vmatpush.bf16.msra.mxu0 0
        %1407 = vmatpush.bf16.msra.mxu0 0
        %1408 = vmatpush.bf16.msra.mxu0 0
        %1409 = vmatpush.bf16.msra.mxu0 %v1397
        %1410 = vmatpush.bf16.msra.mxu0 %v1396
        %1411 = vmatpush.bf16.msra.mxu0 %v1395
        %1412 = vmatpush.bf16.msra.mxu0 %v1394
        %1413 = vmatmul.bf16.gmra.mxu0 %v1403
        %v1414 = vpop.f32.mrf.mxu0
        %v1415 = vadd.f32 0.0, %v1414
        %v1416 = vpop.f32.mrf.mxu0
        %v1417 = vadd.f32 0.0, %v1416
        %1418 = vdwg.mxu0
        %v1419 = vadd.f32 %v1351, %v1415
        %v1420 = vadd.f32 %v1352, %v1417
        %v1421 = vadd.f32 %v1419, %v1420
        %v1422 = vrot.slane %v1421, 4
        %v1423 = vadd.f32 %v1421, %v1422
        %v1424 = vrot.slane %v1423, 2
        %v1425 = vadd.f32 %v1423, %v1424
        %v1426 = vrot.slane %v1425, 1
        %v1427 = vadd.f32 %v1425, %v1426
        %v1428 = vadd.f32 %v1194, %v1427
        %v1429 = vmul.f32 %v1419, %v1419
        %v1430 = vmul.f32 %v1420, %v1420
        %v1431 = vadd.f32 %v1429, %v1430
        %v1432 = vrot.slane %v1431, 4
        %v1433 = vadd.f32 %v1431, %v1432
        %v1434 = vrot.slane %v1433, 2
        %v1435 = vadd.f32 %v1433, %v1434
        %v1436 = vrot.slane %v1435, 1
        %v1437 = vadd.f32 %v1435, %v1436
        %v1438 = vadd.f32 %v1204, %v1437
        %v1439 = vpack.c.bf16 %v1419, %v1419
        %v1440 = vpack.c.bf16 %v1420, %v1420
        %s1441 = scalar_lea.vmem %s281, 24 [#allocation4]
        %1442 = vst [vmem:[%s1441] sm:$0xf] %v1439
        %1443 = vst [vmem:[%s1441 + $0x4] sm:$0xf] %v1440
        %vm1444 = vcmask 1040384
        %v1445 = vsel %vm1444, %v1428, %v1438
        %1446 = vst [vmem:[%s302] sm:$0x3] %v1445
        %s1447 = sand.u32 %s156, 1
        %s1448 = sand.u32 %s156, 1
        %s1449 = smul.addr %s1448, 32
        %s1450 = scalar_lea.vmem [#allocation4], %s1449
        %p1451 = scmp.lt.s32.totalorder %s23, 1
        %s1452 = scalar_select %p1451, %s23, 1
        %p1453 = scmp.lt.s32.totalorder %s24, 0
        %s1454 = scalar_select %p1453, %s24, 0
        %s1455 = sadd.s32 %s1454, %s1452
        %s1456 = smul.addr %s1455, 2
        %s1457 = scalar_lea.vmem %s6, %s1456
        // Predicated region
        $region45: #{generator_forward.5} parent=39 // pred_check
          %p1458 = pneg %p166
        $region46: #{generator_forward.5} parent=39 // pred_check_branch
          %1460 = sbr.rel (%p1458) target = $region48
        $region47: #{generator_forward.5} parent=39 // pred_region
          %s1461 = smul.addr %s23, 2
          %s1462 = sadd.s32 %s24, %s1461
          %s1463 = smul.addr %s1462, 4
          %s1464 = scalar_lea.vmem %s5, %s1463
          // Predicated region
          $region49: #{generator_forward.5} parent=47 // pred_check
            _
          $region50: #{generator_forward.5} parent=47 // pred_check_branch
            %1466 = sbr.rel (0) target = $region52
          $region51: #{generator_forward.5} parent=47 // pred_region
            // Predicated region
            $region53: #{generator_forward.5} parent=51 // pred_check
              _
            $region54: #{generator_forward.5} parent=51 // pred_check_branch
              %1468 = sbr.rel target = $region56
            $region55: #{generator_forward.5} parent=51 // pred_region
              // Predicated region
              $region68: #{generator_forward.5} parent=55 // pred_check
                _
              $region69: #{generator_forward.5} parent=55 // pred_check_branch
                %1498 = sbr.rel (0) target = $region71
              $region70: #{generator_forward.5} parent=55 // pred_region
                loop: start=0, step=1, limit=1
                $region72: #{generator_forward.5} parent=70 // loop_pre_header
                  _
                $region73: #{generator_forward.5} parent=70 // loop_header
                  %s1500 = sphi 0, %s1504
                  %p1501 = scmp.ge.s32.totalorder %s1500, 1
                  %s1505 = sphi %s1450, %s1450
                  %s1506 = sphi %s1464, %s1464
                $region74: #{generator_forward.5} parent=70 // loop_header_branch
                  %1503 = sbr.rel (%p1501) target = $region78
                $region75: #{generator_forward.5} parent=70 // loop_body
                  _
                $region76: #{generator_forward.5} parent=70 // loop_footer
                  %s1504 = sadd.s32 1, %s1500
                $region77: #{generator_forward.5} parent=70 // loop_footer_branch
                  %1499 = sbr.rel target = $region73
                $region78: #{generator_forward.5} parent=70 // loop_exit
                  _
                %s1508 = ssub.s32 16, 1
                loop: start=0, step=1, limit=1
                $region79: #{generator_forward.5} parent=70 // loop_pre_header
                  _
                $region80: #{generator_forward.5} parent=70 // loop_header
                  %s1510 = sphi 0, %s1514
                  %p1511 = scmp.ge.s32.totalorder %s1510, 1
                  %s1515 = sphi %s1450, %s1450
                  %s1516 = sphi %s1464, %s1464
                $region81: #{generator_forward.5} parent=70 // loop_header_branch
                  %1513 = sbr.rel (%p1511) target = $region85
                $region82: #{generator_forward.5} parent=70 // loop_body
                  %v1517 = vld [vmem:[%s1515] sm:%s1508]
                  %1518 = vst [vmem:[%s1516] sm:%s1508] %v1517
                  %v1519 = vld [vmem:[%s1515 + $0x4] sm:%s1508]
                  %1520 = vst [vmem:[%s1516 + $0x4] sm:%s1508] %v1519
                  %v1521 = vld [vmem:[%s1515 + $0x8] sm:%s1508]
                  %1522 = vst [vmem:[%s1516 + $0x10] sm:%s1508] %v1521
                  %v1523 = vld [vmem:[%s1515 + $0xc] sm:%s1508]
                  %1524 = vst [vmem:[%s1516 + $0x14] sm:%s1508] %v1523
                  %v1525 = vld [vmem:[%s1515 + $0x10] sm:%s1508]
                  %1526 = vst [vmem:[%s1516 + $0x20] sm:%s1508] %v1525
                  %v1527 = vld [vmem:[%s1515 + $0x14] sm:%s1508]
                  %1528 = vst [vmem:[%s1516 + $0x24] sm:%s1508] %v1527
                  %v1529 = vld [vmem:[%s1515 + $0x18] sm:%s1508]
                  %1530 = vst [vmem:[%s1516 + $0x30] sm:%s1508] %v1529
                  %v1531 = vld [vmem:[%s1515 + $0x1c] sm:%s1508]
                  %1532 = vst [vmem:[%s1516 + $0x34] sm:%s1508] %v1531
                $region83: #{generator_forward.5} parent=70 // loop_footer
                  %s1514 = sadd.s32 1, %s1510
                $region84: #{generator_forward.5} parent=70 // loop_footer_branch
                  %1509 = sbr.rel target = $region80
                $region85: #{generator_forward.5} parent=70 // loop_exit
                  _
              $region71: #{generator_forward.5} parent=55 // pred_fallthru
                _
            $region56: #{generator_forward.5} parent=51 // pred_fallthru
              _
            // Predicated region
            $region57: #{generator_forward.5} parent=51 // pred_check
              _
            $region58: #{generator_forward.5} parent=51 // pred_check_branch
              %1470 = sbr.rel (0) target = $region60
            $region59: #{generator_forward.5} parent=51 // pred_region
              %s1472 = ssub.s32 16, 1
              loop: start=0, step=1, limit=1
              $region61: #{generator_forward.5} parent=59 // loop_pre_header
                _
              $region62: #{generator_forward.5} parent=59 // loop_header
                %s1474 = sphi 0, %s1478
                %p1475 = scmp.ge.s32.totalorder %s1474, 1
                %s1479 = sphi %s1450, %s1450
                %s1480 = sphi %s1464, %s1464
              $region63: #{generator_forward.5} parent=59 // loop_header_branch
                %1477 = sbr.rel (%p1475) target = $region67
              $region64: #{generator_forward.5} parent=59 // loop_body
                %v1481 = vld [vmem:[%s1479] sm:%s1472]
                %1482 = vst [vmem:[%s1480] sm:%s1472] %v1481
                %v1483 = vld [vmem:[%s1479 + $0x4] sm:%s1472]
                %1484 = vst [vmem:[%s1480 + $0x4] sm:%s1472] %v1483
                %v1485 = vld [vmem:[%s1479 + $0x8] sm:%s1472]
                %1486 = vst [vmem:[%s1480 + $0x10] sm:%s1472] %v1485
                %v1487 = vld [vmem:[%s1479 + $0xc] sm:%s1472]
                %1488 = vst [vmem:[%s1480 + $0x14] sm:%s1472] %v1487
                %v1489 = vld [vmem:[%s1479 + $0x10] sm:%s1472]
                %1490 = vst [vmem:[%s1480 + $0x20] sm:%s1472] %v1489
                %v1491 = vld [vmem:[%s1479 + $0x14] sm:%s1472]
                %1492 = vst [vmem:[%s1480 + $0x24] sm:%s1472] %v1491
                %v1493 = vld [vmem:[%s1479 + $0x18] sm:%s1472]
                %1494 = vst [vmem:[%s1480 + $0x30] sm:%s1472] %v1493
                %v1495 = vld [vmem:[%s1479 + $0x1c] sm:%s1472]
                %1496 = vst [vmem:[%s1480 + $0x34] sm:%s1472] %v1495
              $region65: #{generator_forward.5} parent=59 // loop_footer
                %s1478 = sadd.s32 1, %s1474
              $region66: #{generator_forward.5} parent=59 // loop_footer_branch
                %1473 = sbr.rel target = $region62
              $region67: #{generator_forward.5} parent=59 // loop_exit
                _
            $region60: #{generator_forward.5} parent=51 // pred_fallthru
              _
          $region52: #{generator_forward.5} parent=47 // pred_fallthru
            _
          %1533 = vnop
        $region48: #{generator_forward.5} parent=39 // pred_fallthru
          _
        // Predicated region
        $region86: #{generator_forward.5} parent=39 // pred_check
          %p1534 = pneg %p194
        $region87: #{generator_forward.5} parent=39 // pred_check_branch
          %1536 = sbr.rel (%p1534) target = $region89
        $region88: #{generator_forward.5} parent=39 // pred_region
          _
        $region89: #{generator_forward.5} parent=39 // pred_fallthru
          _
      $region40: #{generator_forward.5} parent=5 // pred_fallthru
        _
      %p1537 = scmp.le.s32.totalorder 2, %s14
      // Predicated region
      $region90: #{generator_forward.5} parent=5 // pred_check
        %p1538 = pneg %p1537
      $region91: #{generator_forward.5} parent=5 // pred_check_branch
        %1540 = sbr.rel (%p1538) target = $region93
      $region92: #{generator_forward.5} parent=5 // pred_region
        %s1541 = ssub.s32 %s14, 2
        // Predicated region
        $region94: #{generator_forward.5} parent=92 // pred_check
          %p1542 = pneg %p172
        $region95: #{generator_forward.5} parent=92 // pred_check_branch
          %1544 = sbr.rel (%p1542) target = $region97
        $region96: #{generator_forward.5} parent=92 // pred_region
          %s1545 = sand.u32 %s157, 1
          %s1546 = sand.u32 %s157, 1
          %s1547 = smul.addr %s1546, 32
          %s1548 = scalar_lea.vmem [#allocation4], %s1547
        $region97: #{generator_forward.5} parent=92 // pred_fallthru
          _
        // Predicated region
        $region98: #{generator_forward.5} parent=92 // pred_check
          %p1549 = pneg %p200
        $region99: #{generator_forward.5} parent=92 // pred_check_branch
          %1551 = sbr.rel (%p1549) target = $region101
        $region100: #{generator_forward.5} parent=92 // pred_region
          %p1552 = scmp.lt.s32.totalorder %s25, 1
          %s1553 = scalar_select %p1552, %s25, 1
          %p1554 = scmp.lt.s32.totalorder %s26, 0
          %s1555 = scalar_select %p1554, %s26, 0
          %s1556 = sadd.s32 %s1555, %s1553
          %s1557 = smul.addr %s1556, 2
          %s1558 = scalar_lea.vmem %s6, %s1557
        $region101: #{generator_forward.5} parent=92 // pred_fallthru
          _
      $region93: #{generator_forward.5} parent=5 // pred_fallthru
        _
    $region6: #{generator_forward.5} parent=1 // loop_footer
      %s18 = sadd.s32 1, %s14
    $region7: #{generator_forward.5} parent=1 // loop_footer_branch
      %13 = sbr.rel target = $region3
    $region8: #{generator_forward.5} parent=1 // loop_exit
      _
    %1559 = vsyncpa [#allocation3], 1
    %s1560 = scalar_lea.sflag [#allocation3], 1
    %1561 = vsyncpa %s1560, 1

// kernel: generator_forward.6
$region0: #{generator_forward.6}
  #allocation0 [shape = 'u32[]', space=smem, size = 0x4, offset = 0x4, fixed_abs, tag = 'smem constant byte address 0x4 - core index']
  #allocation1 [shape = 'u32[72,128]{1,0:T(1,128)}', space=vmem, size = 0x9000, scoped, tag = 'internal scratch']
  %s0 = inlined_call_operand.vmem [shape: bf16[2,10,10,32], index: 0, kind: input, shape index: {}]
  %s1 = inlined_call_operand.vmem [shape: f32[1,32], index: 1, kind: input, shape index: {}]
  %s2 = inlined_call_operand.vmem [shape: f32[1,32], index: 2, kind: input, shape index: {}]
  %s3 = inlined_call_operand.vmem [shape: f32[1,10,10,1], index: 3, kind: input, shape index: {}]
  %s4 = inlined_call_operand.hbm [shape: bf16[4,4,32,128], index: 4, kind: input, shape index: {}]
  %s5 = inlined_call_operand.vmem [shape: bf16[4,2,64,128], index: 5, kind: output, shape index: {0}]
  %s6 = inlined_call_operand.vmem [shape: f32[2,2,128], index: 6, kind: output, shape index: {1}]
  %7 = xla_tuple %s5, %s6
  %s8 = sld [smem:[#allocation0]]
  $region102: #{generator_forward.6} parent=0
    _
  %s10 = ssub.s32 1, %s8
  %s11 = scalar_select 0, %s10, %s8
  $region1: #{generator_forward.6} parent=0
    #allocation2 [shape = 'u8[131072]{0}', space=vmem, size = 0x20000, scoped, tag = 'input window, operand 4, single buffered']
    #allocation3 [shape = 's32[2]{0}', space=sflag, size = 0x8, scoped, tag = 'scoped memory for generator_forward.6']
    #allocation4 [shape = 'u8[131072]{0}', space=vmem, size = 0x20000, scoped, tag = 'output window, operand 0']
    %12 = vsyncpa [#allocation3], 0
    loop: start=0, step=1, limit=4
    $region2: #{generator_forward.6} parent=1 // loop_pre_header
      _
    $region3: #{generator_forward.6} parent=1 // loop_header
      %s14 = sphi 0, %s18
      %p15 = scmp.ge.s32.totalorder %s14, 4
      %s21 = sphi 0, %s33
      %s22 = sphi 0, %s29
      %s23 = sphi 0, %s21
      %s24 = sphi 0, %s22
      %s25 = sphi 0, %s23
      %s26 = sphi 0, %s24
      %s36 = sphi 0, %s38
      %s39 = sphi 0, %s36
      %s40 = sphi 0, %s39
      %s56 = sphi 0, %s40
      %s60 = sphi 0, %s60
      %s62 = sphi 0, %s60
      %s63 = sphi 0, %s62
      %s77 = sphi 0, %s63
      %s81 = sphi 0, %s81
      %s83 = sphi 0, %s81
      %s84 = sphi 0, %s83
      %s98 = sphi 0, %s84
      %s102 = sphi 0, %s102
      %s104 = sphi 0, %s102
      %s105 = sphi 0, %s104
      %s119 = sphi 0, %s105
      %s125 = sphi 0, %s127
      %s128 = sphi 0, %s125
      %s129 = sphi 0, %s128
      %s145 = sphi 0, %s129
      %s153 = sphi 0, %s155
      %s156 = sphi 0, %s153
      %s157 = sphi 0, %s156
      %s173 = sphi 0, %s157
      %s181 = sphi 0, %s183
      %s184 = sphi 0, %s181
      %s185 = sphi 0, %s184
      %s201 = sphi 0, %s185
    $region4: #{generator_forward.6} parent=1 // loop_header_branch
      %17 = sbr.rel (%p15) target = $region8
    $region5: #{generator_forward.6} parent=1 // loop_body
      %s19 = ssub.s32 %s14, 1
      %s20 = ssub.s32 %s14, 2
      %s27 = sadd.s32 1, %s22
      %p28 = scmp.ge.s32.totalorder %s27, 1
      %s29 = scalar_select %p28, 0, %s27
      %s30 = sadd.s32 1, %s21
      %s31 = scalar_select %p28, %s30, %s21
      %p32 = scmp.ge.s32.totalorder %s31, 2
      %s33 = scalar_select %p32, 0, %s31
      %s34 = ssub.s32 %s21, %s33
      %p35 = scmp.eq.s32.totalorder %s34, 0
      %s37 = sadd.s32 %s36, 1
      %s38 = scalar_select %p35, %s36, %s37
      %p41 = pneg %p35
      %p42 = scmp.eq.s32.totalorder %s14, 1
      %p43 = por %p41, %p42
      %p44 = scmp.ne.s32.totalorder %s36, %s39
      %p45 = scmp.eq.s32.totalorder %s14, 0
      %p46 = por %p44, %p45
      %p47 = scmp.ne.s32.totalorder %s36, %s39
      %p48 = scmp.eq.s32.totalorder %s19, 1
      %p49 = por %p47, %p48
      %p50 = scmp.ne.s32.totalorder %s39, %s40
      %p51 = scmp.eq.s32.totalorder %s19, 0
      %p52 = por %p50, %p51
      %p53 = scmp.ne.s32.totalorder %s39, %s40
      %p54 = scmp.eq.s32.totalorder %s20, 1
      %p55 = por %p53, %p54
      %p57 = scmp.ne.s32.totalorder %s40, %s56
      %p58 = scmp.eq.s32.totalorder %s20, 0
      %p59 = por %p57, %p58
      %s61 = sadd.s32 %s60, 1
      %p64 = scmp.eq.s32.totalorder %s14, 1
      %p65 = scmp.ne.s32.totalorder %s60, %s62
      %p66 = scmp.eq.s32.totalorder %s14, 0
      %p67 = por %p65, %p66
      %p68 = scmp.ne.s32.totalorder %s60, %s62
      %p69 = scmp.eq.s32.totalorder %s19, 1
      %p70 = por %p68, %p69
      %p71 = scmp.ne.s32.totalorder %s62, %s63
      %p72 = scmp.eq.s32.totalorder %s19, 0
      %p73 = por %p71, %p72
      %p74 = scmp.ne.s32.totalorder %s62, %s63
      %p75 = scmp.eq.s32.totalorder %s20, 1
      %p76 = por %p74, %p75
      %p78 = scmp.ne.s32.totalorder %s63, %s77
      %p79 = scmp.eq.s32.totalorder %s20, 0
      %p80 = por %p78, %p79
      %s82 = sadd.s32 %s81, 1
      %p85 = scmp.eq.s32.totalorder %s14, 1
      %p86 = scmp.ne.s32.totalorder %s81, %s83
      %p87 = scmp.eq.s32.totalorder %s14, 0
      %p88 = por %p86, %p87
      %p89 = scmp.ne.s32.totalorder %s81, %s83
      %p90 = scmp.eq.s32.totalorder %s19, 1
      %p91 = por %p89, %p90
      %p92 = scmp.ne.s32.totalorder %s83, %s84
      %p93 = scmp.eq.s32.totalorder %s19, 0
      %p94 = por %p92, %p93
      %p95 = scmp.ne.s32.totalorder %s83, %s84
      %p96 = scmp.eq.s32.totalorder %s20, 1
      %p97 = por %p95, %p96
      %p99 = scmp.ne.s32.totalorder %s84, %s98
      %p100 = scmp.eq.s32.totalorder %s20, 0
      %p101 = por %p99, %p100
      %s103 = sadd.s32 %s102, 1
      %p106 = scmp.eq.s32.totalorder %s14, 1
      %p107 = scmp.ne.s32.totalorder %s102, %s104
      %p108 = scmp.eq.s32.totalorder %s14, 0
      %p109 = por %p107, %p108
      %p110 = scmp.ne.s32.totalorder %s102, %s104
      %p111 = scmp.eq.s32.totalorder %s19, 1
      %p112 = por %p110, %p111
      %p113 = scmp.ne.s32.totalorder %s104, %s105
      %p114 = scmp.eq.s32.totalorder %s19, 0
      %p115 = por %p113, %p114
      %p116 = scmp.ne.s32.totalorder %s104, %s105
      %p117 = scmp.eq.s32.totalorder %s20, 1
      %p118 = por %p116, %p117
      %p120 = scmp.ne.s32.totalorder %s105, %s119
      %p121 = scmp.eq.s32.totalorder %s20, 0
      %p122 = por %p120, %p121
      %s123 = ssub.s32 %s22, %s29
      %p124 = scmp.eq.s32.totalorder %s123, 0
      %s126 = sadd.s32 %s125, 1
      %s127 = scalar_select %p124, %s125, %s126
      %p130 = pneg %p124
      %p131 = scmp.eq.s32.totalorder %s14, 1
      %p132 = por %p130, %p131
      %p133 = scmp.ne.s32.totalorder %s125, %s128
      %p134 = scmp.eq.s32.totalorder %s14, 0
      %p135 = por %p133, %p134
      %p136 = scmp.ne.s32.totalorder %s125, %s128
      %p137 = scmp.eq.s32.totalorder %s19, 1
      %p138 = por %p136, %p137
      %p139 = scmp.ne.s32.totalorder %s128, %s129
      %p140 = scmp.eq.s32.totalorder %s19, 0
      %p141 = por %p139, %p140
      %p142 = scmp.ne.s32.totalorder %s128, %s129
      %p143 = scmp.eq.s32.totalorder %s20, 1
      %p144 = por %p142, %p143
      %p146 = scmp.ne.s32.totalorder %s129, %s145
      %p147 = scmp.eq.s32.totalorder %s20, 0
      %p148 = por %p146, %p147
      %s149 = ssub.s32 %s21, %s33
      %s150 = ssub.s32 %s22, %s29
      %s151 = sor.u32 %s149, %s150
      %p152 = scmp.eq.s32.totalorder %s151, 0
      %s154 = sadd.s32 %s153, 1
      %s155 = scalar_select %p152, %s153, %s154
      %p158 = pneg %p152
      %p159 = scmp.eq.s32.totalorder %s14, 1
      %p160 = por %p158, %p159
      %p161 = scmp.ne.s32.totalorder %s153, %s156
      %p162 = scmp.eq.s32.totalorder %s14, 0
      %p163 = por %p161, %p162
      %p164 = scmp.ne.s32.totalorder %s153, %s156
      %p165 = scmp.eq.s32.totalorder %s19, 1
      %p166 = por %p164, %p165
      %p167 = scmp.ne.s32.totalorder %s156, %s157
      %p168 = scmp.eq.s32.totalorder %s19, 0
      %p169 = por %p167, %p168
      %p170 = scmp.ne.s32.totalorder %s156, %s157
      %p171 = scmp.eq.s32.totalorder %s20, 1
      %p172 = por %p170, %p171
      %p174 = scmp.ne.s32.totalorder %s157, %s173
      %p175 = scmp.eq.s32.totalorder %s20, 0
      %p176 = por %p174, %p175
      %s177 = ssub.s32 %s21, %s33
      %s178 = ssub.s32 %s22, %s29
      %s179 = sor.u32 %s177, %s178
      %p180 = scmp.eq.s32.totalorder %s179, 0
      %s182 = sadd.s32 %s181, 1
      %s183 = scalar_select %p180, %s181, %s182
      %p186 = pneg %p180
      %p187 = scmp.eq.s32.totalorder %s14, 1
      %p188 = por %p186, %p187
      %p189 = scmp.ne.s32.totalorder %s181, %s184
      %p190 = scmp.eq.s32.totalorder %s14, 0
      %p191 = por %p189, %p190
      %p192 = scmp.ne.s32.totalorder %s181, %s184
      %p193 = scmp.eq.s32.totalorder %s19, 1
      %p194 = por %p192, %p193
      %p195 = scmp.ne.s32.totalorder %s184, %s185
      %p196 = scmp.eq.s32.totalorder %s19, 0
      %p197 = por %p195, %p196
      %p198 = scmp.ne.s32.totalorder %s184, %s185
      %p199 = scmp.eq.s32.totalorder %s20, 1
      %p200 = por %p198, %p199
      %p202 = scmp.ne.s32.totalorder %s185, %s201
      %p203 = scmp.eq.s32.totalorder %s20, 0
      %p204 = por %p202, %p203
      %p205 = scmp.le.s32.totalorder 1, %s14
      %p206 = scmp.lt.s32.totalorder %s14, 3
      %p207 = pnand %p205, %p206
      %p208 = pneg %p207
      // Predicated region
      $region9: #{generator_forward.6} parent=5 // pred_check
        _
      $region10: #{generator_forward.6} parent=5 // pred_check_branch
        %210 = sbr.rel (%p207) target = $region12
      $region11: #{generator_forward.6} parent=5 // pred_region
        %s211 = ssub.s32 %s14, 1
        // Predicated region
        $region13: #{generator_forward.6} parent=11 // pred_check
          %p212 = pneg %p73
        $region14: #{generator_forward.6} parent=11 // pred_check_branch
          %214 = sbr.rel (%p212) target = $region16
        $region15: #{generator_forward.6} parent=11 // pred_region
          _
        $region16: #{generator_forward.6} parent=11 // pred_fallthru
          _
        // Predicated region
        $region17: #{generator_forward.6} parent=11 // pred_check
          %p215 = pneg %p94
        $region18: #{generator_forward.6} parent=11 // pred_check_branch
          %217 = sbr.rel (%p215) target = $region20
        $region19: #{generator_forward.6} parent=11 // pred_region
          _
        $region20: #{generator_forward.6} parent=11 // pred_fallthru
          _
        // Predicated region
        $region21: #{generator_forward.6} parent=11 // pred_check
          %p218 = pneg %p115
        $region22: #{generator_forward.6} parent=11 // pred_check_branch
          %220 = sbr.rel (%p218) target = $region24
        $region23: #{generator_forward.6} parent=11 // pred_region
          _
        $region24: #{generator_forward.6} parent=11 // pred_fallthru
          _
        // Predicated region
        $region25: #{generator_forward.6} parent=11 // pred_check
          %p221 = pneg %p141
        $region26: #{generator_forward.6} parent=11 // pred_check_branch
          %223 = sbr.rel (%p221) target = $region28
        $region27: #{generator_forward.6} parent=11 // pred_region
          %225 = vsyncadd [#allocation3], 0
          %s226 = smul.addr %s24, 4
          %s227 = scalar_lea.hbm %s4, %s226
          %s228 = sshll.u32 %s227, 4
          %s229 = int_to_ptr.hbm [resolvable:$true] %s228
          %s230 = sshll.u32 [#allocation2], 4
          %s231 = int_to_ptr.vmem [resolvable:$true] %s230
          %236 = dma.hbm_to_vmem [thread:$0]  %s229, 4096, %s231, [#allocation3], 64, 64, 4
        $region28: #{generator_forward.6} parent=11 // pred_fallthru
          _
      $region12: #{generator_forward.6} parent=5 // pred_fallthru
        _
      %p237 = scmp.lt.s32.totalorder %s14, 2
      // Predicated region
      $region29: #{generator_forward.6} parent=5 // pred_check
        %p238 = pneg %p237
      $region30: #{generator_forward.6} parent=5 // pred_check_branch
        %240 = sbr.rel (%p238) target = $region32
      $region31: #{generator_forward.6} parent=5 // pred_region
        // Predicated region
        $region33: #{generator_forward.6} parent=31 // pred_check
          %p241 = pneg %p46
        $region34: #{generator_forward.6} parent=31 // pred_check_branch
          %243 = sbr.rel (%p241) target = $region36
        $region35: #{generator_forward.6} parent=31 // pred_region
          %p244 = scmp.lt.s32.totalorder %s21, 1
          %s245 = scalar_select %p244, %s21, 1
          %s246 = smul.addr %s245, 20
          %s247 = smul.addr %s246, 4
          %s248 = scalar_lea.vmem %s0, %s247
        $region36: #{generator_forward.6} parent=31 // pred_fallthru
          _
      $region32: #{generator_forward.6} parent=5 // pred_fallthru
        _
      %p249 = scmp.le.s32.totalorder 1, %s14
      %p250 = scmp.lt.s32.totalorder %s14, 3
      %p251 = pnand %p249, %p250
      %p252 = pneg %p251
      // Predicated region
      $region37: #{generator_forward.6} parent=5 // pred_check
        _
      $region38: #{generator_forward.6} parent=5 // pred_check_branch
        %254 = sbr.rel (%p251) target = $region40
      $region39: #{generator_forward.6} parent=5 // pred_region
        %s255 = ssub.s32 %s14, 1
        // Predicated region
        $region41: #{generator_forward.6} parent=39 // pred_check
          %p256 = pneg %p141
        $region42: #{generator_forward.6} parent=39 // pred_check_branch
          %258 = sbr.rel (%p256) target = $region44
        $region43: #{generator_forward.6} parent=39 // pred_region
          %260 = dma.done [#allocation3], 4096
        $region44: #{generator_forward.6} parent=39 // pred_fallthru
          _
        %p261 = scmp.lt.s32.totalorder %s23, 1
        %s262 = scalar_select %p261, %s23, 1
        %s263 = smul.addr %s262, 20
        %s264 = smul.addr %s263, 4
        %s265 = scalar_lea.vmem %s0, %s264
        %p266 = pneg %p52
        %p267 = pneg %p49
        %p268 = pneg %p73
        %p269 = pneg %p70
        %p270 = pneg %p94
        %p271 = pneg %p91
        %p272 = pneg %p115
        %p273 = pneg %p112
        %p274 = pneg %p141
        %p275 = pneg %p138
        %p276 = pneg %p169
        %p277 = pneg %p166
        %s278 = sand.u32 %s156, 1
        %s279 = sand.u32 %s156, 1
        %s280 = smul.addr %s279, 128
        %s281 = scalar_lea.vmem [#allocation4], %s280
        %p282 = pneg %p197
        %p283 = pneg %p194
        %p284 = scmp.lt.s32.totalorder %s23, 1
        %s285 = scalar_select %p284, %s23, 1
        %p286 = scmp.lt.s32.totalorder %s24, 0
        %s287 = scalar_select %p286, %s24, 0
        %s288 = sadd.s32 %s287, %s285
        %s289 = smul.addr %s288, 2
        %s290 = scalar_lea.vmem %s6, %s289
        %p291 = scmp.lt.s32.totalorder %s23, 1
        %s292 = scalar_select %p291, %s23, 1
        %s293 = smul.addr %s292, 20
        %s294 = smul.addr %s293, 4
        %s295 = scalar_lea.vmem %s0, %s294
        %p296 = scmp.lt.s32.totalorder %s23, 1
        %s297 = scalar_select %p296, %s23, 1
        %p298 = scmp.lt.s32.totalorder %s24, 0
        %s299 = scalar_select %p298, %s24, 0
        %s300 = sadd.s32 %s299, %s297
        %s301 = smul.addr %s300, 2
        %s302 = scalar_lea.vmem %s6, %s301
        %v304 = vld [vmem:[%s295] sm:$0xf]
        %v305 = vld [vmem:[%s295 + $0x4] sm:$0x1]
        %v306 = vld [vmem:[%s295 + $0x8] sm:$0xf]
        %v307 = vld [vmem:[%s295 + $0xc] sm:$0x1]
        %v308 = vld [vmem:[%s295 + $0x10] sm:$0xf]
        %v309 = vld [vmem:[%s295 + $0x14] sm:$0x1]
        %v310 = vld [vmem:[%s295 + $0x18] sm:$0xf]
        %v311 = vld [vmem:[%s295 + $0x1c] sm:$0x1]
        %v312 = vld [vmem:[%s295 + $0x20] sm:$0xf]
        %v313 = vld [vmem:[%s295 + $0x24] sm:$0x1]
        %v314 = vld [vmem:[%s295 + $0x28] sm:$0xf]
        %v315 = vld [vmem:[%s295 + $0x2c] sm:$0x1]
        %v316 = vld [vmem:[%s295 + $0x30] sm:$0xf]
        %v317 = vld [vmem:[%s295 + $0x34] sm:$0x1]
        %v318 = vld [vmem:[%s295 + $0x38] sm:$0xf]
        %v319 = vld [vmem:[%s295 + $0x3c] sm:$0x1]
        %v320 = vld [vmem:[%s295 + $0x40] sm:$0xf]
        %v321 = vld [vmem:[%s295 + $0x44] sm:$0x1]
        %v322 = vld [vmem:[%s295 + $0x48] sm:$0xf]
        %v323 = vld [vmem:[%s295 + $0x4c] sm:$0x1]
        %v324 = vunpack.c.l.bf16 %v304
        %v325 = vunpack.c.l.bf16 %v305
        %v326 = vunpack.c.l.bf16 %v306
        %v327 = vunpack.c.l.bf16 %v307
        %v328 = vunpack.c.l.bf16 %v308
        %v329 = vunpack.c.l.bf16 %v309
        %v330 = vunpack.c.l.bf16 %v310
        %v331 = vunpack.c.l.bf16 %v311
        %v332 = vunpack.c.l.bf16 %v312
        %v333 = vunpack.c.l.bf16 %v313
        %v334 = vunpack.c.l.bf16 %v314
        %v335 = vunpack.c.l.bf16 %v315
        %v336 = vunpack.c.l.bf16 %v316
        %v337 = vunpack.c.l.bf16 %v317
        %v338 = vunpack.c.l.bf16 %v318
        %v339 = vunpack.c.l.bf16 %v319
        %v340 = vunpack.c.l.bf16 %v320
        %v341 = vunpack.c.l.bf16 %v321
        %v342 = vunpack.c.l.bf16 %v322
        %v343 = vunpack.c.l.bf16 %v323
        %v344 = vld [vmem:[%s1] sm:$0x1]
        %v346 = vperm.slane %v344, 0
        %v348 = vmul.f32 %v324, %v346
        %v349 = vmul.f32 %v325, %v346
        %v350 = vmul.f32 %v326, %v346
        %v351 = vmul.f32 %v327, %v346
        %v352 = vmul.f32 %v328, %v346
        %v353 = vmul.f32 %v329, %v346
        %v354 = vmul.f32 %v330, %v346
        %v355 = vmul.f32 %v331, %v346
        %v356 = vmul.f32 %v332, %v346
        %v357 = vmul.f32 %v333, %v346
        %v358 = vmul.f32 %v334, %v346
        %v359 = vmul.f32 %v335, %v346
        %v360 = vmul.f32 %v336, %v346
        %v361 = vmul.f32 %v337, %v346
        %v362 = vmul.f32 %v338, %v346
        %v363 = vmul.f32 %v339, %v346
        %v364 = vmul.f32 %v340, %v346
        %v365 = vmul.f32 %v341, %v346
        %v366 = vmul.f32 %v342, %v346
        %v367 = vmul.f32 %v343, %v346
        %v368 = vld [vmem:[%s2] sm:$0x1]
        %v370 = vperm.slane %v368, 0
        %v372 = vadd.f32 %v348, %v370
        %v373 = vadd.f32 %v349, %v370
        %v374 = vadd.f32 %v350, %v370
        %v375 = vadd.f32 %v351, %v370
        %v376 = vadd.f32 %v352, %v370
        %v377 = vadd.f32 %v353, %v370
        %v378 = vadd.f32 %v354, %v370
        %v379 = vadd.f32 %v355, %v370
        %v380 = vadd.f32 %v356, %v370
        %v381 = vadd.f32 %v357, %v370
        %v382 = vadd.f32 %v358, %v370
        %v383 = vadd.f32 %v359, %v370
        %v384 = vadd.f32 %v360, %v370
        %v385 = vadd.f32 %v361, %v370
        %v386 = vadd.f32 %v362, %v370
        %v387 = vadd.f32 %v363, %v370
        %v388 = vadd.f32 %v364, %v370
        %v389 = vadd.f32 %v365, %v370
        %v390 = vadd.f32 %v366, %v370
        %v391 = vadd.f32 %v367, %v370
        %v392 = vmax.f32 %v372, 0.0
        %v393 = vmax.f32 %v373, 0.0
        %v394 = vmax.f32 %v374, 0.0
        %v395 = vmax.f32 %v375, 0.0
        %v396 = vmax.f32 %v376, 0.0
        %v397 = vmax.f32 %v377, 0.0
        %v398 = vmax.f32 %v378, 0.0
        %v399 = vmax.f32 %v379, 0.0
        %v400 = vmax.f32 %v380, 0.0
        %v401 = vmax.f32 %v381, 0.0
        %v402 = vmax.f32 %v382, 0.0
        %v403 = vmax.f32 %v383, 0.0
        %v404 = vmax.f32 %v384, 0.0
        %v405 = vmax.f32 %v385, 0.0
        %v406 = vmax.f32 %v386, 0.0
        %v407 = vmax.f32 %v387, 0.0
        %v408 = vmax.f32 %v388, 0.0
        %v409 = vmax.f32 %v389, 0.0
        %v410 = vmax.f32 %v390, 0.0
        %v411 = vmax.f32 %v391, 0.0
        %v412 = vld [vmem:[%s3] sm:$0xff]
        %v413 = vld [vmem:[%s3 + $0x8] sm:$0x3]
        %v414 = vld [vmem:[%s3 + $0x10] sm:$0xff]
        %v415 = vld [vmem:[%s3 + $0x18] sm:$0x3]
        %v416 = vld [vmem:[%s3 + $0x20] sm:$0xff]
        %v417 = vld [vmem:[%s3 + $0x28] sm:$0x3]
        %v418 = vld [vmem:[%s3 + $0x30] sm:$0xff]
        %v419 = vld [vmem:[%s3 + $0x38] sm:$0x3]
        %v420 = vld [vmem:[%s3 + $0x40] sm:$0xff]
        %v421 = vld [vmem:[%s3 + $0x48] sm:$0x3]
        %v422 = vld [vmem:[%s3 + $0x50] sm:$0xff]
        %v423 = vld [vmem:[%s3 + $0x58] sm:$0x3]
        %v424 = vld [vmem:[%s3 + $0x60] sm:$0xff]
        %v425 = vld [vmem:[%s3 + $0x68] sm:$0x3]
        %v426 = vld [vmem:[%s3 + $0x70] sm:$0xff]
        %v427 = vld [vmem:[%s3 + $0x78] sm:$0x3]
        %v428 = vld [vmem:[%s3 + $0x80] sm:$0xff]
        %v429 = vld [vmem:[%s3 + $0x88] sm:$0x3]
        %v430 = vld [vmem:[%s3 + $0x90] sm:$0xff]
        %v431 = vld [vmem:[%s3 + $0x98] sm:$0x3]
        %433 = vset.pattern.permute.xlu0 0
        %434 = vperm.xlu0 %433, %v412
        %v435 = vpop.permute.xlu0 %434
        %438 = vset.pattern.permute.xlu0 0
        %439 = vperm.xlu0 %438, %v413
        %v440 = vpop.permute.xlu0 %439
        %443 = vset.pattern.permute.xlu0 0
        %444 = vperm.xlu0 %443, %v414
        %v445 = vpop.permute.xlu0 %444
        %448 = vset.pattern.permute.xlu0 0
        %449 = vperm.xlu0 %448, %v415
        %v450 = vpop.permute.xlu0 %449
        %453 = vset.pattern.permute.xlu0 0
        %454 = vperm.xlu0 %453, %v416
        %v455 = vpop.permute.xlu0 %454
        %458 = vset.pattern.permute.xlu0 0
        %459 = vperm.xlu0 %458, %v417
        %v460 = vpop.permute.xlu0 %459
        %463 = vset.pattern.permute.xlu0 0
        %464 = vperm.xlu0 %463, %v418
        %v465 = vpop.permute.xlu0 %464
        %468 = vset.pattern.permute.xlu0 0
        %469 = vperm.xlu0 %468, %v419
        %v470 = vpop.permute.xlu0 %469
        %473 = vset.pattern.permute.xlu0 0
        %474 = vperm.xlu0 %473, %v420
        %v475 = vpop.permute.xlu0 %474
        %478 = vset.pattern.permute.xlu0 0
        %479 = vperm.xlu0 %478, %v421
        %v480 = vpop.permute.xlu0 %479
        %483 = vset.pattern.permute.xlu0 0
        %484 = vperm.xlu0 %483, %v422
        %v485 = vpop.permute.xlu0 %484
        %488 = vset.pattern.permute.xlu0 0
        %489 = vperm.xlu0 %488, %v423
        %v490 = vpop.permute.xlu0 %489
        %493 = vset.pattern.permute.xlu0 0
        %494 = vperm.xlu0 %493, %v424
        %v495 = vpop.permute.xlu0 %494
        %498 = vset.pattern.permute.xlu0 0
        %499 = vperm.xlu0 %498, %v425
        %v500 = vpop.permute.xlu0 %499
        %503 = vset.pattern.permute.xlu0 0
        %504 = vperm.xlu0 %503, %v426
        %v505 = vpop.permute.xlu0 %504
        %508 = vset.pattern.permute.xlu0 0
        %509 = vperm.xlu0 %508, %v427
        %v510 = vpop.permute.xlu0 %509
        %513 = vset.pattern.permute.xlu0 0
        %514 = vperm.xlu0 %513, %v428
        %v515 = vpop.permute.xlu0 %514
        %518 = vset.pattern.permute.xlu0 0
        %519 = vperm.xlu0 %518, %v429
        %v520 = vpop.permute.xlu0 %519
        %523 = vset.pattern.permute.xlu0 0
        %524 = vperm.xlu0 %523, %v430
        %v525 = vpop.permute.xlu0 %524
        %528 = vset.pattern.permute.xlu0 0
        %529 = vperm.xlu0 %528, %v431
        %v530 = vpop.permute.xlu0 %529
        %v532 = vmul.f32 %v392, %v435
        %v533 = vmul.f32 %v393, %v440
        %v534 = vmul.f32 %v394, %v445
        %v535 = vmul.f32 %v395, %v450
        %v536 = vmul.f32 %v396, %v455
        %v537 = vmul.f32 %v397, %v460
        %v538 = vmul.f32 %v398, %v465
        %v539 = vmul.f32 %v399, %v470
        %v540 = vmul.f32 %v400, %v475
        %v541 = vmul.f32 %v401, %v480
        %v542 = vmul.f32 %v402, %v485
        %v543 = vmul.f32 %v403, %v490
        %v544 = vmul.f32 %v404, %v495
        %v545 = vmul.f32 %v405, %v500
        %v546 = vmul.f32 %v406, %v505
        %v547 = vmul.f32 %v407, %v510
        %v548 = vmul.f32 %v408, %v515
        %v549 = vmul.f32 %v409, %v520
        %v550 = vmul.f32 %v410, %v525
        %v551 = vmul.f32 %v411, %v530
        %v552 = vpack.c.bf16 %v534, %v532
        %v553 = vpack.c.bf16 %v538, %v536
        %v554 = vpack.c.bf16 %v542, %v540
        %v555 = vpack.c.bf16 %v546, %v544
        %v556 = vld [vmem:[#allocation2] sm:$0xf]
        %v557 = vld [vmem:[#allocation2 + $0x4] sm:$0xf]
        %v558 = vld [vmem:[#allocation2 + $0x8] sm:$0xf]
        %v559 = vld [vmem:[#allocation2 + $0xc] sm:$0xf]
        %vm576 = vcmask 1046528
        %v577 = vrot.slane %v532, 1
        %v578 = vrot.slane %v533, 1
        %v579 = vsel %vm576, %v577, %v578
        %v580 = vrot.slane %v534, 1
        %v581 = vrot.slane %v535, 1
        %v582 = vsel %vm576, %v580, %v581
        %v583 = vrot.slane %v536, 1
        %v584 = vrot.slane %v537, 1
        %v585 = vsel %vm576, %v583, %v584
        %v586 = vrot.slane %v538, 1
        %v587 = vrot.slane %v539, 1
        %v588 = vsel %vm576, %v586, %v587
        %v589 = vrot.slane %v540, 1
        %v590 = vrot.slane %v541, 1
        %v591 = vsel %vm576, %v589, %v590
        %v592 = vrot.slane %v542, 1
        %v593 = vrot.slane %v543, 1
        %v594 = vsel %vm576, %v592, %v593
        %v595 = vrot.slane %v544, 1
        %v596 = vrot.slane %v545, 1
        %v597 = vsel %vm576, %v595, %v596
        %v598 = vrot.slane %v546, 1
        %v599 = vrot.slane %v547, 1
        %v600 = vsel %vm576, %v598, %v599
        %v609 = vpack.c.bf16 %v582, %v579
        %v610 = vpack.c.bf16 %v588, %v585
        %v611 = vpack.c.bf16 %v594, %v591
        %v612 = vpack.c.bf16 %v600, %v597
        %s613 = scalar_lea.vmem [#allocation2], 16
        %v614 = vld [vmem:[%s613] sm:$0xf]
        %v615 = vld [vmem:[%s613 + $0x4] sm:$0xf]
        %v616 = vld [vmem:[%s613 + $0x8] sm:$0xf]
        %v617 = vld [vmem:[%s613 + $0xc] sm:$0xf]
        %v622 = vunpack.c.l.b16 %v614
        %v623 = vunpack.c.l.b16 %v615
        %v624 = vunpack.c.l.b16 %v616
        %v625 = vunpack.c.l.b16 %v617
        %v626 = vpack.c.b16 %v623, %v622
        %v627 = vpack.c.b16 %v625, %v624
        %vm630 = vcmask 261120
        %v632 = vsel %vm630, %v609, 0
        %v635 = vsel %vm630, %v610, 0
        %v638 = vsel %vm630, %v611, 0
        %v641 = vsel %vm630, %v612, 0
        %643 = vmatpush.bf16.msra.mxu0 0
        %644 = vmatpush.bf16.msra.mxu0 0
        %645 = vmatpush.bf16.msra.mxu0 0
        %646 = vmatpush.bf16.msra.mxu0 0
        %647 = vmatpush.bf16.msra.mxu0 0
        %648 = vmatpush.bf16.msra.mxu0 0
        %649 = vmatpush.bf16.msra.mxu0 %v627
        %650 = vmatpush.bf16.msra.mxu0 %v626
        %651 = vmatmul.bf16.gmra.mxu0 %v632
        %v652 = vpop.f32.mrf.mxu0
        %v653 = vadd.f32 0.0, %v652
        %v654 = vpop.f32.mrf.mxu0
        %v655 = vadd.f32 0.0, %v654
        %656 = vmatmul.bf16.gmra.mxu0 %v635
        %v657 = vpop.f32.mrf.mxu0
        %v658 = vadd.f32 0.0, %v657
        %v659 = vpop.f32.mrf.mxu0
        %v660 = vadd.f32 0.0, %v659
        %661 = vmatmul.bf16.gmra.mxu0 %v638
        %v662 = vpop.f32.mrf.mxu0
        %v663 = vadd.f32 0.0, %v662
        %v664 = vpop.f32.mrf.mxu0
        %v665 = vadd.f32 0.0, %v664
        %666 = vmatmul.bf16.gmra.mxu0 %v641
        %v667 = vpop.f32.mrf.mxu0
        %v668 = vadd.f32 0.0, %v667
        %v669 = vpop.f32.mrf.mxu0
        %v670 = vadd.f32 0.0, %v669
        %671 = vdwg.mxu0
        %v676 = vunpack.c.l.b16 %v556
        %v677 = vunpack.c.l.b16 %v557
        %v678 = vunpack.c.l.b16 %v558
        %v679 = vunpack.c.l.b16 %v559
        %v680 = vpack.c.b16 %v677, %v676
        %v681 = vpack.c.b16 %v679, %v678
        %v685 = vsel %vm630, %v552, 0
        %v688 = vsel %vm630, %v553, 0
        %v691 = vsel %vm630, %v554, 0
        %v694 = vsel %vm630, %v555, 0
        %696 = vmatpush.bf16.msra.mxu0 0
        %697 = vmatpush.bf16.msra.mxu0 0
        %698 = vmatpush.bf16.msra.mxu0 0
        %699 = vmatpush.bf16.msra.mxu0 0
        %700 = vmatpush.bf16.msra.mxu0 0
        %701 = vmatpush.bf16.msra.mxu0 0
        %702 = vmatpush.bf16.msra.mxu0 %v681
        %703 = vmatpush.bf16.msra.mxu0 %v680
        %704 = vmatmul.bf16.gmra.mxu0 %v685
        %v705 = vpop.f32.mrf.mxu0
        %v706 = vadd.f32 %v653, %v705
        %v707 = vpop.f32.mrf.mxu0
        %v708 = vadd.f32 %v655, %v707
        %709 = vmatmul.bf16.gmra.mxu0 %v688
        %v710 = vpop.f32.mrf.mxu0
        %v711 = vadd.f32 %v658, %v710
        %v712 = vpop.f32.mrf.mxu0
        %v713 = vadd.f32 %v660, %v712
        %714 = vmatmul.bf16.gmra.mxu0 %v691
        %v715 = vpop.f32.mrf.mxu0
        %v716 = vadd.f32 %v663, %v715
        %v717 = vpop.f32.mrf.mxu0
        %v718 = vadd.f32 %v665, %v717
        %719 = vmatmul.bf16.gmra.mxu0 %v694
        %v720 = vpop.f32.mrf.mxu0
        %v721 = vadd.f32 %v668, %v720
        %v722 = vpop.f32.mrf.mxu0
        %v723 = vadd.f32 %v670, %v722
        %724 = vdwg.mxu0
        %v725 = vpack.c.bf16 %v536, %v534
        %v726 = vpack.c.bf16 %v540, %v538
        %v727 = vpack.c.bf16 %v544, %v542
        %v728 = vpack.c.bf16 %v548, %v546
        %s729 = scalar_lea.vmem [#allocation2], 32
        %v730 = vld [vmem:[%s729] sm:$0xf]
        %v731 = vld [vmem:[%s729 + $0x4] sm:$0xf]
        %v732 = vld [vmem:[%s729 + $0x8] sm:$0xf]
        %v733 = vld [vmem:[%s729 + $0xc] sm:$0xf]
        %v738 = vunpack.c.l.b16 %v730
        %v739 = vunpack.c.l.b16 %v731
        %v740 = vunpack.c.l.b16 %v732
        %v741 = vunpack.c.l.b16 %v733
        %v742 = vpack.c.b16 %v739, %v738
        %v743 = vpack.c.b16 %v741, %v740
        %v747 = vsel %vm630, %v725, 0
        %v750 = vsel %vm630, %v726, 0
        %v753 = vsel %vm630, %v727, 0
        %v756 = vsel %vm630, %v728, 0
        %758 = vmatpush.bf16.msra.mxu0 0
        %759 = vmatpush.bf16.msra.mxu0 0
        %760 = vmatpush.bf16.msra.mxu0 0
        %761 = vmatpush.bf16.msra.mxu0 0
        %762 = vmatpush.bf16.msra.mxu0 0
        %763 = vmatpush.bf16.msra.mxu0 0
        %764 = vmatpush.bf16.msra.mxu0 %v743
        %765 = vmatpush.bf16.msra.mxu0 %v742
        %766 = vmatmul.bf16.gmra.mxu0 %v747
        %v767 = vpop.f32.mrf.mxu0
        %v768 = vadd.f32 0.0, %v767
        %v769 = vpop.f32.mrf.mxu0
        %v770 = vadd.f32 0.0, %v769
        %771 = vmatmul.bf16.gmra.mxu0 %v750
        %v772 = vpop.f32.mrf.mxu0
        %v773 = vadd.f32 0.0, %v772
        %v774 = vpop.f32.mrf.mxu0
        %v775 = vadd.f32 0.0, %v774
        %776 = vmatmul.bf16.gmra.mxu0 %v753
        %v777 = vpop.f32.mrf.mxu0
        %v778 = vadd.f32 0.0, %v777
        %v779 = vpop.f32.mrf.mxu0
        %v780 = vadd.f32 0.0, %v779
        %781 = vmatmul.bf16.gmra.mxu0 %v756
        %v782 = vpop.f32.mrf.mxu0
        %v783 = vadd.f32 0.0, %v782
        %v784 = vpop.f32.mrf.mxu0
        %v785 = vadd.f32 0.0, %v784
        %786 = vdwg.mxu0
        %v787 = vadd.f32 %v706, %v768
        %v788 = vadd.f32 %v708, %v770
        %v789 = vadd.f32 %v711, %v773
        %v790 = vadd.f32 %v713, %v775
        %v791 = vadd.f32 %v716, %v778
        %v792 = vadd.f32 %v718, %v780
        %v793 = vadd.f32 %v721, %v783
        %v794 = vadd.f32 %v723, %v785
        %v797 = vrot.slane %v548, 1
        %v798 = vrot.slane %v549, 1
        %v799 = vsel %vm576, %v797, %v798
        %v801 = vpack.c.bf16 %v585, %v582
        %v802 = vpack.c.bf16 %v591, %v588
        %v803 = vpack.c.bf16 %v597, %v594
        %v804 = vpack.c.bf16 %v799, %v600
        %s805 = scalar_lea.vmem [#allocation2], 48
        %v806 = vld [vmem:[%s805] sm:$0xf]
        %v807 = vld [vmem:[%s805 + $0x4] sm:$0xf]
        %v808 = vld [vmem:[%s805 + $0x8] sm:$0xf]
        %v809 = vld [vmem:[%s805 + $0xc] sm:$0xf]
        %v814 = vunpack.c.l.b16 %v806
        %v815 = vunpack.c.l.b16 %v807
        %v816 = vunpack.c.l.b16 %v808
        %v817 = vunpack.c.l.b16 %v809
        %v818 = vpack.c.b16 %v815, %v814
        %v819 = vpack.c.b16 %v817, %v816
        %v823 = vsel %vm630, %v801, 0
        %v826 = vsel %vm630, %v802, 0
        %v829 = vsel %vm630, %v803, 0
        %v832 = vsel %vm630, %v804, 0
        %834 = vmatpush.bf16.msra.mxu0 0
        %835 = vmatpush.bf16.msra.mxu0 0
        %836 = vmatpush.bf16.msra.mxu0 0
        %837 = vmatpush.bf16.msra.mxu0 0
        %838 = vmatpush.bf16.msra.mxu0 0
        %839 = vmatpush.bf16.msra.mxu0 0
        %840 = vmatpush.bf16.msra.mxu0 %v819
        %841 = vmatpush.bf16.msra.mxu0 %v818
        %842 = vmatmul.bf16.gmra.mxu0 %v823
        %v843 = vpop.f32.mrf.mxu0
        %v844 = vadd.f32 0.0, %v843
        %v845 = vpop.f32.mrf.mxu0
        %v846 = vadd.f32 0.0, %v845
        %847 = vmatmul.bf16.gmra.mxu0 %v826
        %v848 = vpop.f32.mrf.mxu0
        %v849 = vadd.f32 0.0, %v848
        %v850 = vpop.f32.mrf.mxu0
        %v851 = vadd.f32 0.0, %v850
        %852 = vmatmul.bf16.gmra.mxu0 %v829
        %v853 = vpop.f32.mrf.mxu0
        %v854 = vadd.f32 0.0, %v853
        %v855 = vpop.f32.mrf.mxu0
        %v856 = vadd.f32 0.0, %v855
        %857 = vmatmul.bf16.gmra.mxu0 %v832
        %v858 = vpop.f32.mrf.mxu0
        %v859 = vadd.f32 0.0, %v858
        %v860 = vpop.f32.mrf.mxu0
        %v861 = vadd.f32 0.0, %v860
        %862 = vdwg.mxu0
        %v863 = vadd.f32 %v787, %v844
        %v864 = vadd.f32 %v788, %v846
        %v865 = vadd.f32 %v789, %v849
        %v866 = vadd.f32 %v790, %v851
        %v867 = vadd.f32 %v791, %v854
        %v868 = vadd.f32 %v792, %v856
        %v869 = vadd.f32 %v793, %v859
        %v870 = vadd.f32 %v794, %v861
        %v871 = vadd.f32 %v863, %v864
        %v872 = vadd.f32 %v871, %v865
        %v873 = vadd.f32 %v872, %v866
        %v874 = vadd.f32 %v873, %v867
        %v875 = vadd.f32 %v874, %v868
        %v876 = vadd.f32 %v875, %v869
        %v877 = vadd.f32 %v876, %v870
        %v878 = vrot.slane %v877, 4
        %v879 = vadd.f32 %v877, %v878
        %v880 = vrot.slane %v879, 2
        %v881 = vadd.f32 %v879, %v880
        %v882 = vrot.slane %v881, 1
        %v883 = vadd.f32 %v881, %v882
        %v884 = vadd.f32 %v883, 0.0
        %v885 = vmul.f32 %v863, %v863
        %v886 = vmul.f32 %v864, %v864
        %v887 = vmul.f32 %v865, %v865
        %v888 = vmul.f32 %v866, %v866
        %v889 = vmul.f32 %v867, %v867
        %v890 = vmul.f32 %v868, %v868
        %v891 = vmul.f32 %v869, %v869
        %v892 = vmul.f32 %v870, %v870
        %v893 = vadd.f32 %v885, %v886
        %v894 = vadd.f32 %v893, %v887
        %v895 = vadd.f32 %v894, %v888
        %v896 = vadd.f32 %v895, %v889
        %v897 = vadd.f32 %v896, %v890
        %v898 = vadd.f32 %v897, %v891
        %v899 = vadd.f32 %v898, %v892
        %v900 = vrot.slane %v899, 4
        %v901 = vadd.f32 %v899, %v900
        %v902 = vrot.slane %v901, 2
        %v903 = vadd.f32 %v901, %v902
        %v904 = vrot.slane %v903, 1
        %v905 = vadd.f32 %v903, %v904
        %v906 = vadd.f32 %v905, 0.0
        %v907 = vpack.c.bf16 %v863, %v863
        %v908 = vpack.c.bf16 %v864, %v864
        %v909 = vpack.c.bf16 %v865, %v865
        %v910 = vpack.c.bf16 %v866, %v866
        %v911 = vpack.c.bf16 %v867, %v867
        %v912 = vpack.c.bf16 %v868, %v868
        %v913 = vpack.c.bf16 %v869, %v869
        %v914 = vpack.c.bf16 %v870, %v870
        %915 = vst [vmem:[%s281] sm:$0xf] %v907
        %916 = vst [vmem:[%s281 + $0x4] sm:$0xf] %v908
        %917 = vst [vmem:[%s281 + $0x8] sm:$0xf] %v909
        %918 = vst [vmem:[%s281 + $0xc] sm:$0xf] %v910
        %919 = vst [vmem:[%s281 + $0x10] sm:$0xf] %v911
        %920 = vst [vmem:[%s281 + $0x14] sm:$0xf] %v912
        %921 = vst [vmem:[%s281 + $0x18] sm:$0xf] %v913
        %922 = vst [vmem:[%s281 + $0x1c] sm:$0xf] %v914
        %s923 = scalar_lea.vmem [#allocation2], 64
        %v924 = vld [vmem:[%s923] sm:$0xf]
        %v925 = vld [vmem:[%s923 + $0x4] sm:$0xf]
        %v926 = vld [vmem:[%s923 + $0x8] sm:$0xf]
        %v927 = vld [vmem:[%s923 + $0xc] sm:$0xf]
        %vm928 = vcmask 1045504
        %v929 = vrot.slane %v532, 2
        %v930 = vrot.slane %v533, 2
        %v931 = vsel %vm928, %v929, %v930
        %v932 = vrot.slane %v534, 2
        %v933 = vrot.slane %v535, 2
        %v934 = vsel %vm928, %v932, %v933
        %v935 = vrot.slane %v536, 2
        %v936 = vrot.slane %v537, 2
        %v937 = vsel %vm928, %v935, %v936
        %v938 = vrot.slane %v538, 2
        %v939 = vrot.slane %v539, 2
        %v940 = vsel %vm928, %v938, %v939
        %v941 = vrot.slane %v540, 2
        %v942 = vrot.slane %v541, 2
        %v943 = vsel %vm928, %v941, %v942
        %v944 = vrot.slane %v542, 2
        %v945 = vrot.slane %v543, 2
        %v946 = vsel %vm928, %v944, %v945
        %v947 = vrot.slane %v544, 2
        %v948 = vrot.slane %v545, 2
        %v949 = vsel %vm928, %v947, %v948
        %v950 = vrot.slane %v546, 2
        %v951 = vrot.slane %v547, 2
        %v952 = vsel %vm928, %v950, %v951
        %v961 = vpack.c.bf16 %v934, %v931
        %v962 = vpack.c.bf16 %v940, %v937
        %v963 = vpack.c.bf16 %v946, %v943
        %v964 = vpack.c.bf16 %v952, %v949
        %s965 = scalar_lea.vmem [#allocation2], 80
        %v966 = vld [vmem:[%s965] sm:$0xf]
        %v967 = vld [vmem:[%s965 + $0x4] sm:$0xf]
        %v968 = vld [vmem:[%s965 + $0x8] sm:$0xf]
        %v969 = vld [vmem:[%s965 + $0xc] sm:$0xf]
        %v974 = vunpack.c.l.b16 %v966
        %v975 = vunpack.c.l.b16 %v967
        %v976 = vunpack.c.l.b16 %v968
        %v977 = vunpack.c.l.b16 %v969
        %v978 = vpack.c.b16 %v975, %v974
        %v979 = vpack.c.b16 %v977, %v976
        %v983 = vsel %vm630, %v961, 0
        %v986 = vsel %vm630, %v962, 0
        %v989 = vsel %vm630, %v963, 0
        %v992 = vsel %vm630, %v964, 0
        %994 = vmatpush.bf16.msra.mxu0 0
        %995 = vmatpush.bf16.msra.mxu0 0
        %996 = vmatpush.bf16.msra.mxu0 0
        %997 = vmatpush.bf16.msra.mxu0 0
        %998 = vmatpush.bf16.msra.mxu0 0
        %999 = vmatpush.bf16.msra.mxu0 0
        %1000 = vmatpush.bf16.msra.mxu0 %v979
        %1001 = vmatpush.bf16.msra.mxu0 %v978
        %1002 = vmatmul.bf16.gmra.mxu0 %v983
        %v1003 = vpop.f32.mrf.mxu0
        %v1004 = vadd.f32 0.0, %v1003
        %v1005 = vpop.f32.mrf.mxu0
        %v1006 = vadd.f32 0.0, %v1005
        %1007 = vmatmul.bf16.gmra.mxu0 %v986
        %v1008 = vpop.f32.mrf.mxu0
        %v1009 = vadd.f32 0.0, %v1008
        %v1010 = vpop.f32.mrf.mxu0
        %v1011 = vadd.f32 0.0, %v1010
        %1012 = vmatmul.bf16.gmra.mxu0 %v989
        %v1013 = vpop.f32.mrf.mxu0
        %v1014 = vadd.f32 0.0, %v1013
        %v1015 = vpop.f32.mrf.mxu0
        %v1016 = vadd.f32 0.0, %v1015
        %1017 = vmatmul.bf16.gmra.mxu0 %v992
        %v1018 = vpop.f32.mrf.mxu0
        %v1019 = vadd.f32 0.0, %v1018
        %v1020 = vpop.f32.mrf.mxu0
        %v1021 = vadd.f32 0.0, %v1020
        %1022 = vdwg.mxu0
        %v1027 = vunpack.c.l.b16 %v924
        %v1028 = vunpack.c.l.b16 %v925
        %v1029 = vunpack.c.l.b16 %v926
        %v1030 = vunpack.c.l.b16 %v927
        %v1031 = vpack.c.b16 %v1028, %v1027
        %v1032 = vpack.c.b16 %v1030, %v1029
        %1035 = vmatpush.bf16.msra.mxu0 0
        %1036 = vmatpush.bf16.msra.mxu0 0
        %1037 = vmatpush.bf16.msra.mxu0 0
        %1038 = vmatpush.bf16.msra.mxu0 0
        %1039 = vmatpush.bf16.msra.mxu0 0
        %1040 = vmatpush.bf16.msra.mxu0 0
        %1041 = vmatpush.bf16.msra.mxu0 %v1032
        %1042 = vmatpush.bf16.msra.mxu0 %v1031
        %1043 = vmatmul.bf16.gmra.mxu0 %v632
        %v1044 = vpop.f32.mrf.mxu0
        %v1045 = vadd.f32 %v1004, %v1044
        %v1046 = vpop.f32.mrf.mxu0
        %v1047 = vadd.f32 %v1006, %v1046
        %1048 = vmatmul.bf16.gmra.mxu0 %v635
        %v1049 = vpop.f32.mrf.mxu0
        %v1050 = vadd.f32 %v1009, %v1049
        %v1051 = vpop.f32.mrf.mxu0
        %v1052 = vadd.f32 %v1011, %v1051
        %1053 = vmatmul.bf16.gmra.mxu0 %v638
        %v1054 = vpop.f32.mrf.mxu0
        %v1055 = vadd.f32 %v1014, %v1054
        %v1056 = vpop.f32.mrf.mxu0
        %v1057 = vadd.f32 %v1016, %v1056
        %1058 = vmatmul.bf16.gmra.mxu0 %v641
        %v1059 = vpop.f32.mrf.mxu0
        %v1060 = vadd.f32 %v1019, %v1059
        %v1061 = vpop.f32.mrf.mxu0
        %v1062 = vadd.f32 %v1021, %v1061
        %1063 = vdwg.mxu0
        %s1064 = scalar_lea.vmem [#allocation2], 96
        %v1065 = vld [vmem:[%s1064] sm:$0xf]
        %v1066 = vld [vmem:[%s1064 + $0x4] sm:$0xf]
        %v1067 = vld [vmem:[%s1064 + $0x8] sm:$0xf]
        %v1068 = vld [vmem:[%s1064 + $0xc] sm:$0xf]
        %v1073 = vunpack.c.l.b16 %v1065
        %v1074 = vunpack.c.l.b16 %v1066
        %v1075 = vunpack.c.l.b16 %v1067
        %v1076 = vunpack.c.l.b16 %v1068
        %v1077 = vpack.c.b16 %v1074, %v1073
        %v1078 = vpack.c.b16 %v1076, %v1075
        %1081 = vmatpush.bf16.msra.mxu0 0
        %1082 = vmatpush.bf16.msra.mxu0 0
        %1083 = vmatpush.bf16.msra.mxu0 0
        %1084 = vmatpush.bf16.msra.mxu0 0
        %1085 = vmatpush.bf16.msra.mxu0 0
        %1086 = vmatpush.bf16.msra.mxu0 0
        %1087 = vmatpush.bf16.msra.mxu0 %v1078
        %1088 = vmatpush.bf16.msra.mxu0 %v1077
        %1089 = vmatmul.bf16.gmra.mxu0 %v823
        %v1090 = vpop.f32.mrf.mxu0
        %v1091 = vadd.f32 0.0, %v1090
        %v1092 = vpop.f32.mrf.mxu0
        %v1093 = vadd.f32 0.0, %v1092
        %1094 = vmatmul.bf16.gmra.mxu0 %v826
        %v1095 = vpop.f32.mrf.mxu0
        %v1096 = vadd.f32 0.0, %v1095
        %v1097 = vpop.f32.mrf.mxu0
        %v1098 = vadd.f32 0.0, %v1097
        %1099 = vmatmul.bf16.gmra.mxu0 %v829
        %v1100 = vpop.f32.mrf.mxu0
        %v1101 = vadd.f32 0.0, %v1100
        %v1102 = vpop.f32.mrf.mxu0
        %v1103 = vadd.f32 0.0, %v1102
        %1104 = vmatmul.bf16.gmra.mxu0 %v832
        %v1105 = vpop.f32.mrf.mxu0
        %v1106 = vadd.f32 0.0, %v1105
        %v1107 = vpop.f32.mrf.mxu0
        %v1108 = vadd.f32 0.0, %v1107
        %1109 = vdwg.mxu0
        %v1110 = vadd.f32 %v1045, %v1091
        %v1111 = vadd.f32 %v1047, %v1093
        %v1112 = vadd.f32 %v1050, %v1096
        %v1113 = vadd.f32 %v1052, %v1098
        %v1114 = vadd.f32 %v1055, %v1101
        %v1115 = vadd.f32 %v1057, %v1103
        %v1116 = vadd.f32 %v1060, %v1106
        %v1117 = vadd.f32 %v1062, %v1108
        %v1118 = vrot.slane %v548, 2
        %v1119 = vrot.slane %v549, 2
        %v1120 = vsel %vm928, %v1118, %v1119
        %v1122 = vpack.c.bf16 %v937, %v934
        %v1123 = vpack.c.bf16 %v943, %v940
        %v1124 = vpack.c.bf16 %v949, %v946
        %v1125 = vpack.c.bf16 %v1120, %v952
        %s1126 = scalar_lea.vmem [#allocation2], 112
        %v1127 = vld [vmem:[%s1126] sm:$0xf]
        %v1128 = vld [vmem:[%s1126 + $0x4] sm:$0xf]
        %v1129 = vld [vmem:[%s1126 + $0x8] sm:$0xf]
        %v1130 = vld [vmem:[%s1126 + $0xc] sm:$0xf]
        %v1135 = vunpack.c.l.b16 %v1127
        %v1136 = vunpack.c.l.b16 %v1128
        %v1137 = vunpack.c.l.b16 %v1129
        %v1138 = vunpack.c.l.b16 %v1130
        %v1139 = vpack.c.b16 %v1136, %v1135
        %v1140 = vpack.c.b16 %v1138, %v1137
        %v1144 = vsel %vm630, %v1122, 0
        %v1147 = vsel %vm630, %v1123, 0
        %v1150 = vsel %vm630, %v1124, 0
        %v1153 = vsel %vm630, %v1125, 0
        %1155 = vmatpush.bf16.msra.mxu0 0
        %1156 = vmatpush.bf16.msra.mxu0 0
        %1157 = vmatpush.bf16.msra.mxu0 0
        %1158 = vmatpush.bf16.msra.mxu0 0
        %1159 = vmatpush.bf16.msra.mxu0 0
        %1160 = vmatpush.bf16.msra.mxu0 0
        %1161 = vmatpush.bf16.msra.mxu0 %v1140
        %1162 = vmatpush.bf16.msra.mxu0 %v1139
        %1163 = vmatmul.bf16.gmra.mxu0 %v1144
        %v1164 = vpop.f32.mrf.mxu0
        %v1165 = vadd.f32 0.0, %v1164
        %v1166 = vpop.f32.mrf.mxu0
        %v1167 = vadd.f32 0.0, %v1166
        %1168 = vmatmul.bf16.gmra.mxu0 %v1147
        %v1169 = vpop.f32.mrf.mxu0
        %v1170 = vadd.f32 0.0, %v1169
        %v1171 = vpop.f32.mrf.mxu0
        %v1172 = vadd.f32 0.0, %v1171
        %1173 = vmatmul.bf16.gmra.mxu0 %v1150
        %v1174 = vpop.f32.mrf.mxu0
        %v1175 = vadd.f32 0.0, %v1174
        %v1176 = vpop.f32.mrf.mxu0
        %v1177 = vadd.f32 0.0, %v1176
        %1178 = vmatmul.bf16.gmra.mxu0 %v1153
        %v1179 = vpop.f32.mrf.mxu0
        %v1180 = vadd.f32 0.0, %v1179
        %v1181 = vpop.f32.mrf.mxu0
        %v1182 = vadd.f32 0.0, %v1181
        %1183 = vdwg.mxu0
        %v1184 = vadd.f32 %v1110, %v1165
        %v1185 = vadd.f32 %v1111, %v1167
        %v1186 = vadd.f32 %v1112, %v1170
        %v1187 = vadd.f32 %v1113, %v1172
        %v1188 = vadd.f32 %v1114, %v1175
        %v1189 = vadd.f32 %v1115, %v1177
        %v1190 = vadd.f32 %v1116, %v1180
        %v1191 = vadd.f32 %v1117, %v1182
        %v1192 = vadd.f32 %v1184, %v1185
        %v1193 = vadd.f32 %v1192, %v1186
        %v1194 = vadd.f32 %v1193, %v1187
        %v1195 = vadd.f32 %v1194, %v1188
        %v1196 = vadd.f32 %v1195, %v1189
        %v1197 = vadd.f32 %v1196, %v1190
        %v1198 = vadd.f32 %v1197, %v1191
        %v1199 = vrot.slane %v1198, 4
        %v1200 = vadd.f32 %v1198, %v1199
        %v1201 = vrot.slane %v1200, 2
        %v1202 = vadd.f32 %v1200, %v1201
        %v1203 = vrot.slane %v1202, 1
        %v1204 = vadd.f32 %v1202, %v1203
        %v1205 = vadd.f32 %v884, %v1204
        %v1206 = vmul.f32 %v1184, %v1184
        %v1207 = vmul.f32 %v1185, %v1185
        %v1208 = vmul.f32 %v1186, %v1186
        %v1209 = vmul.f32 %v1187, %v1187
        %v1210 = vmul.f32 %v1188, %v1188
        %v1211 = vmul.f32 %v1189, %v1189
        %v1212 = vmul.f32 %v1190, %v1190
        %v1213 = vmul.f32 %v1191, %v1191
        %v1214 = vadd.f32 %v1206, %v1207
        %v1215 = vadd.f32 %v1214, %v1208
        %v1216 = vadd.f32 %v1215, %v1209
        %v1217 = vadd.f32 %v1216, %v1210
        %v1218 = vadd.f32 %v1217, %v1211
        %v1219 = vadd.f32 %v1218, %v1212
        %v1220 = vadd.f32 %v1219, %v1213
        %v1221 = vrot.slane %v1220, 4
        %v1222 = vadd.f32 %v1220, %v1221
        %v1223 = vrot.slane %v1222, 2
        %v1224 = vadd.f32 %v1222, %v1223
        %v1225 = vrot.slane %v1224, 1
        %v1226 = vadd.f32 %v1224, %v1225
        %v1227 = vadd.f32 %v906, %v1226
        %v1228 = vpack.c.bf16 %v1184, %v1184
        %v1229 = vpack.c.bf16 %v1185, %v1185
        %v1230 = vpack.c.bf16 %v1186, %v1186
        %v1231 = vpack.c.bf16 %v1187, %v1187
        %v1232 = vpack.c.bf16 %v1188, %v1188
        %v1233 = vpack.c.bf16 %v1189, %v1189
        %v1234 = vpack.c.bf16 %v1190, %v1190
        %v1235 = vpack.c.bf16 %v1191, %v1191
        %s1236 = scalar_lea.vmem %s281, 32 [#allocation4]
        %1237 = vst [vmem:[%s1236] sm:$0xf] %v1228
        %1238 = vst [vmem:[%s1236 + $0x4] sm:$0xf] %v1229
        %1239 = vst [vmem:[%s1236 + $0x8] sm:$0xf] %v1230
        %1240 = vst [vmem:[%s1236 + $0xc] sm:$0xf] %v1231
        %1241 = vst [vmem:[%s1236 + $0x10] sm:$0xf] %v1232
        %1242 = vst [vmem:[%s1236 + $0x14] sm:$0xf] %v1233
        %1243 = vst [vmem:[%s1236 + $0x18] sm:$0xf] %v1234
        %1244 = vst [vmem:[%s1236 + $0x1c] sm:$0xf] %v1235
        %s1245 = scalar_lea.vmem [#allocation2], 128
        %v1246 = vld [vmem:[%s1245] sm:$0xf]
        %v1247 = vld [vmem:[%s1245 + $0x4] sm:$0xf]
        %v1248 = vld [vmem:[%s1245 + $0x8] sm:$0xf]
        %v1249 = vld [vmem:[%s1245 + $0xc] sm:$0xf]
        %s1250 = scalar_lea.vmem [#allocation2], 144
        %v1251 = vld [vmem:[%s1250] sm:$0xf]
        %v1252 = vld [vmem:[%s1250 + $0x4] sm:$0xf]
        %v1253 = vld [vmem:[%s1250 + $0x8] sm:$0xf]
        %v1254 = vld [vmem:[%s1250 + $0xc] sm:$0xf]
        %v1259 = vunpack.c.l.b16 %v1251
        %v1260 = vunpack.c.l.b16 %v1252
        %v1261 = vunpack.c.l.b16 %v1253
        %v1262 = vunpack.c.l.b16 %v1254
        %v1263 = vpack.c.b16 %v1260, %v1259
        %v1264 = vpack.c.b16 %v1262, %v1261
        %1267 = vmatpush.bf16.msra.mxu0 0
        %1268 = vmatpush.bf16.msra.mxu0 0
        %1269 = vmatpush.bf16.msra.mxu0 0
        %1270 = vmatpush.bf16.msra.mxu0 0
        %1271 = vmatpush.bf16.msra.mxu0 0
        %1272 = vmatpush.bf16.msra.mxu0 0
        %1273 = vmatpush.bf16.msra.mxu0 %v1264
        %1274 = vmatpush.bf16.msra.mxu0 %v1263
        %1275 = vmatmul.bf16.gmra.mxu0 %v823
        %v1276 = vpop.f32.mrf.mxu0
        %v1277 = vadd.f32 0.0, %v1276
        %v1278 = vpop.f32.mrf.mxu0
        %v1279 = vadd.f32 0.0, %v1278
        %1280 = vmatmul.bf16.gmra.mxu0 %v826
        %v1281 = vpop.f32.mrf.mxu0
        %v1282 = vadd.f32 0.0, %v1281
        %v1283 = vpop.f32.mrf.mxu0
        %v1284 = vadd.f32 0.0, %v1283
        %1285 = vmatmul.bf16.gmra.mxu0 %v829
        %v1286 = vpop.f32.mrf.mxu0
        %v1287 = vadd.f32 0.0, %v1286
        %v1288 = vpop.f32.mrf.mxu0
        %v1289 = vadd.f32 0.0, %v1288
        %1290 = vmatmul.bf16.gmra.mxu0 %v832
        %v1291 = vpop.f32.mrf.mxu0
        %v1292 = vadd.f32 0.0, %v1291
        %v1293 = vpop.f32.mrf.mxu0
        %v1294 = vadd.f32 0.0, %v1293
        %1295 = vdwg.mxu0
        %v1300 = vunpack.c.l.b16 %v1246
        %v1301 = vunpack.c.l.b16 %v1247
        %v1302 = vunpack.c.l.b16 %v1248
        %v1303 = vunpack.c.l.b16 %v1249
        %v1304 = vpack.c.b16 %v1301, %v1300
        %v1305 = vpack.c.b16 %v1303, %v1302
        %1308 = vmatpush.bf16.msra.mxu0 0
        %1309 = vmatpush.bf16.msra.mxu0 0
        %1310 = vmatpush.bf16.msra.mxu0 0
        %1311 = vmatpush.bf16.msra.mxu0 0
        %1312 = vmatpush.bf16.msra.mxu0 0
        %1313 = vmatpush.bf16.msra.mxu0 0
        %1314 = vmatpush.bf16.msra.mxu0 %v1305
        %1315 = vmatpush.bf16.msra.mxu0 %v1304
        %1316 = vmatmul.bf16.gmra.mxu0 %v747
        %v1317 = vpop.f32.mrf.mxu0
        %v1318 = vadd.f32 %v1277, %v1317
        %v1319 = vpop.f32.mrf.mxu0
        %v1320 = vadd.f32 %v1279, %v1319
        %1321 = vmatmul.bf16.gmra.mxu0 %v750
        %v1322 = vpop.f32.mrf.mxu0
        %v1323 = vadd.f32 %v1282, %v1322
        %v1324 = vpop.f32.mrf.mxu0
        %v1325 = vadd.f32 %v1284, %v1324
        %1326 = vmatmul.bf16.gmra.mxu0 %v753
        %v1327 = vpop.f32.mrf.mxu0
        %v1328 = vadd.f32 %v1287, %v1327
        %v1329 = vpop.f32.mrf.mxu0
        %v1330 = vadd.f32 %v1289, %v1329
        %1331 = vmatmul.bf16.gmra.mxu0 %v756
        %v1332 = vpop.f32.mrf.mxu0
        %v1333 = vadd.f32 %v1292, %v1332
        %v1334 = vpop.f32.mrf.mxu0
        %v1335 = vadd.f32 %v1294, %v1334
        %1336 = vdwg.mxu0
        %v1337 = vpack.c.bf16 %v550, %v548
        %s1338 = scalar_lea.vmem [#allocation2], 160
        %v1339 = vld [vmem:[%s1338] sm:$0xf]
        %v1340 = vld [vmem:[%s1338 + $0x4] sm:$0xf]
        %v1341 = vld [vmem:[%s1338 + $0x8] sm:$0xf]
        %v1342 = vld [vmem:[%s1338 + $0xc] sm:$0xf]
        %v1347 = vunpack.c.l.b16 %v1339
        %v1348 = vunpack.c.l.b16 %v1340
        %v1349 = vunpack.c.l.b16 %v1341
        %v1350 = vunpack.c.l.b16 %v1342
        %v1351 = vpack.c.b16 %v1348, %v1347
        %v1352 = vpack.c.b16 %v1350, %v1349
        %v1356 = vsel %vm630, %v1337, 0
        %1358 = vmatpush.bf16.msra.mxu0 0
        %1359 = vmatpush.bf16.msra.mxu0 0
        %1360 = vmatpush.bf16.msra.mxu0 0
        %1361 = vmatpush.bf16.msra.mxu0 0
        %1362 = vmatpush.bf16.msra.mxu0 0
        %1363 = vmatpush.bf16.msra.mxu0 0
        %1364 = vmatpush.bf16.msra.mxu0 %v1352
        %1365 = vmatpush.bf16.msra.mxu0 %v1351
        %1366 = vmatmul.bf16.gmra.mxu0 %v688
        %v1367 = vpop.f32.mrf.mxu0
        %v1368 = vadd.f32 0.0, %v1367
        %v1369 = vpop.f32.mrf.mxu0
        %v1370 = vadd.f32 0.0, %v1369
        %1371 = vmatmul.bf16.gmra.mxu0 %v691
        %v1372 = vpop.f32.mrf.mxu0
        %v1373 = vadd.f32 0.0, %v1372
        %v1374 = vpop.f32.mrf.mxu0
        %v1375 = vadd.f32 0.0, %v1374
        %1376 = vmatmul.bf16.gmra.mxu0 %v694
        %v1377 = vpop.f32.mrf.mxu0
        %v1378 = vadd.f32 0.0, %v1377
        %v1379 = vpop.f32.mrf.mxu0
        %v1380 = vadd.f32 0.0, %v1379
        %1381 = vmatmul.bf16.gmra.mxu0 %v1356
        %v1382 = vpop.f32.mrf.mxu0
        %v1383 = vadd.f32 0.0, %v1382
        %v1384 = vpop.f32.mrf.mxu0
        %v1385 = vadd.f32 0.0, %v1384
        %1386 = vdwg.mxu0
        %v1387 = vadd.f32 %v1318, %v1368
        %v1388 = vadd.f32 %v1320, %v1370
        %v1389 = vadd.f32 %v1323, %v1373
        %v1390 = vadd.f32 %v1325, %v1375
        %v1391 = vadd.f32 %v1328, %v1378
        %v1392 = vadd.f32 %v1330, %v1380
        %v1393 = vadd.f32 %v1333, %v1383
        %v1394 = vadd.f32 %v1335, %v1385
        %v1397 = vrot.slane %v550, 1
        %v1398 = vrot.slane %v551, 1
        %v1399 = vsel %vm576, %v1397, %v1398
        %v1401 = vpack.c.bf16 %v1399, %v799
        %s1402 = scalar_lea.vmem [#allocation2], 176
        %v1403 = vld [vmem:[%s1402] sm:$0xf]
        %v1404 = vld [vmem:[%s1402 + $0x4] sm:$0xf]
        %v1405 = vld [vmem:[%s1402 + $0x8] sm:$0xf]
        %v1406 = vld [vmem:[%s1402 + $0xc] sm:$0xf]
        %v1411 = vunpack.c.l.b16 %v1403
        %v1412 = vunpack.c.l.b16 %v1404
        %v1413 = vunpack.c.l.b16 %v1405
        %v1414 = vunpack.c.l.b16 %v1406
        %v1415 = vpack.c.b16 %v1412, %v1411
        %v1416 = vpack.c.b16 %v1414, %v1413
        %v1420 = vsel %vm630, %v1401, 0
        %1422 = vmatpush.bf16.msra.mxu0 0
        %1423 = vmatpush.bf16.msra.mxu0 0
        %1424 = vmatpush.bf16.msra.mxu0 0
        %1425 = vmatpush.bf16.msra.mxu0 0
        %1426 = vmatpush.bf16.msra.mxu0 0
        %1427 = vmatpush.bf16.msra.mxu0 0
        %1428 = vmatpush.bf16.msra.mxu0 %v1416
        %1429 = vmatpush.bf16.msra.mxu0 %v1415
        %1430 = vmatmul.bf16.gmra.mxu0 %v635
        %v1431 = vpop.f32.mrf.mxu0
        %v1432 = vadd.f32 0.0, %v1431
        %v1433 = vpop.f32.mrf.mxu0
        %v1434 = vadd.f32 0.0, %v1433
        %1435 = vmatmul.bf16.gmra.mxu0 %v638
        %v1436 = vpop.f32.mrf.mxu0
        %v1437 = vadd.f32 0.0, %v1436
        %v1438 = vpop.f32.mrf.mxu0
        %v1439 = vadd.f32 0.0, %v1438
        %1440 = vmatmul.bf16.gmra.mxu0 %v641
        %v1441 = vpop.f32.mrf.mxu0
        %v1442 = vadd.f32 0.0, %v1441
        %v1443 = vpop.f32.mrf.mxu0
        %v1444 = vadd.f32 0.0, %v1443
        %1445 = vmatmul.bf16.gmra.mxu0 %v1420
        %v1446 = vpop.f32.mrf.mxu0
        %v1447 = vadd.f32 0.0, %v1446
        %v1448 = vpop.f32.mrf.mxu0
        %v1449 = vadd.f32 0.0, %v1448
        %1450 = vdwg.mxu0
        %v1451 = vadd.f32 %v1387, %v1432
        %v1452 = vadd.f32 %v1388, %v1434
        %v1453 = vadd.f32 %v1389, %v1437
        %v1454 = vadd.f32 %v1390, %v1439
        %v1455 = vadd.f32 %v1391, %v1442
        %v1456 = vadd.f32 %v1392, %v1444
        %v1457 = vadd.f32 %v1393, %v1447
        %v1458 = vadd.f32 %v1394, %v1449
        %v1459 = vadd.f32 %v1451, %v1452
        %v1460 = vadd.f32 %v1459, %v1453
        %v1461 = vadd.f32 %v1460, %v1454
        %v1462 = vadd.f32 %v1461, %v1455
        %v1463 = vadd.f32 %v1462, %v1456
        %v1464 = vadd.f32 %v1463, %v1457
        %v1465 = vadd.f32 %v1464, %v1458
        %v1466 = vrot.slane %v1465, 4
        %v1467 = vadd.f32 %v1465, %v1466
        %v1468 = vrot.slane %v1467, 2
        %v1469 = vadd.f32 %v1467, %v1468
        %v1470 = vrot.slane %v1469, 1
        %v1471 = vadd.f32 %v1469, %v1470
        %v1472 = vadd.f32 %v1205, %v1471
        %v1473 = vmul.f32 %v1451, %v1451
        %v1474 = vmul.f32 %v1452, %v1452
        %v1475 = vmul.f32 %v1453, %v1453
        %v1476 = vmul.f32 %v1454, %v1454
        %v1477 = vmul.f32 %v1455, %v1455
        %v1478 = vmul.f32 %v1456, %v1456
        %v1479 = vmul.f32 %v1457, %v1457
        %v1480 = vmul.f32 %v1458, %v1458
        %v1481 = vadd.f32 %v1473, %v1474
        %v1482 = vadd.f32 %v1481, %v1475
        %v1483 = vadd.f32 %v1482, %v1476
        %v1484 = vadd.f32 %v1483, %v1477
        %v1485 = vadd.f32 %v1484, %v1478
        %v1486 = vadd.f32 %v1485, %v1479
        %v1487 = vadd.f32 %v1486, %v1480
        %v1488 = vrot.slane %v1487, 4
        %v1489 = vadd.f32 %v1487, %v1488
        %v1490 = vrot.slane %v1489, 2
        %v1491 = vadd.f32 %v1489, %v1490
        %v1492 = vrot.slane %v1491, 1
        %v1493 = vadd.f32 %v1491, %v1492
        %v1494 = vadd.f32 %v1227, %v1493
        %v1495 = vpack.c.bf16 %v1451, %v1451
        %v1496 = vpack.c.bf16 %v1452, %v1452
        %v1497 = vpack.c.bf16 %v1453, %v1453
        %v1498 = vpack.c.bf16 %v1454, %v1454
        %v1499 = vpack.c.bf16 %v1455, %v1455
        %v1500 = vpack.c.bf16 %v1456, %v1456
        %v1501 = vpack.c.bf16 %v1457, %v1457
        %v1502 = vpack.c.bf16 %v1458, %v1458
        %s1503 = scalar_lea.vmem %s281, 64 [#allocation4]
        %1504 = vst [vmem:[%s1503] sm:$0xf] %v1495
        %1505 = vst [vmem:[%s1503 + $0x4] sm:$0xf] %v1496
        %1506 = vst [vmem:[%s1503 + $0x8] sm:$0xf] %v1497
        %1507 = vst [vmem:[%s1503 + $0xc] sm:$0xf] %v1498
        %1508 = vst [vmem:[%s1503 + $0x10] sm:$0xf] %v1499
        %1509 = vst [vmem:[%s1503 + $0x14] sm:$0xf] %v1500
        %1510 = vst [vmem:[%s1503 + $0x18] sm:$0xf] %v1501
        %1511 = vst [vmem:[%s1503 + $0x1c] sm:$0xf] %v1502
        %s1512 = scalar_lea.vmem [#allocation2], 192
        %v1513 = vld [vmem:[%s1512] sm:$0xf]
        %v1514 = vld [vmem:[%s1512 + $0x4] sm:$0xf]
        %v1515 = vld [vmem:[%s1512 + $0x8] sm:$0xf]
        %v1516 = vld [vmem:[%s1512 + $0xc] sm:$0xf]
        %s1517 = scalar_lea.vmem [#allocation2], 208
        %v1518 = vld [vmem:[%s1517] sm:$0xf]
        %v1519 = vld [vmem:[%s1517 + $0x4] sm:$0xf]
        %v1520 = vld [vmem:[%s1517 + $0x8] sm:$0xf]
        %v1521 = vld [vmem:[%s1517 + $0xc] sm:$0xf]
        %v1526 = vunpack.c.l.b16 %v1518
        %v1527 = vunpack.c.l.b16 %v1519
        %v1528 = vunpack.c.l.b16 %v1520
        %v1529 = vunpack.c.l.b16 %v1521
        %v1530 = vpack.c.b16 %v1527, %v1526
        %v1531 = vpack.c.b16 %v1529, %v1528
        %1534 = vmatpush.bf16.msra.mxu0 0
        %1535 = vmatpush.bf16.msra.mxu0 0
        %1536 = vmatpush.bf16.msra.mxu0 0
        %1537 = vmatpush.bf16.msra.mxu0 0
        %1538 = vmatpush.bf16.msra.mxu0 0
        %1539 = vmatpush.bf16.msra.mxu0 0
        %1540 = vmatpush.bf16.msra.mxu0 %v1531
        %1541 = vmatpush.bf16.msra.mxu0 %v1530
        %1542 = vmatmul.bf16.gmra.mxu0 %v1144
        %v1543 = vpop.f32.mrf.mxu0
        %v1544 = vadd.f32 0.0, %v1543
        %v1545 = vpop.f32.mrf.mxu0
        %v1546 = vadd.f32 0.0, %v1545
        %1547 = vmatmul.bf16.gmra.mxu0 %v1147
        %v1548 = vpop.f32.mrf.mxu0
        %v1549 = vadd.f32 0.0, %v1548
        %v1550 = vpop.f32.mrf.mxu0
        %v1551 = vadd.f32 0.0, %v1550
        %1552 = vmatmul.bf16.gmra.mxu0 %v1150
        %v1553 = vpop.f32.mrf.mxu0
        %v1554 = vadd.f32 0.0, %v1553
        %v1555 = vpop.f32.mrf.mxu0
        %v1556 = vadd.f32 0.0, %v1555
        %1557 = vmatmul.bf16.gmra.mxu0 %v1153
        %v1558 = vpop.f32.mrf.mxu0
        %v1559 = vadd.f32 0.0, %v1558
        %v1560 = vpop.f32.mrf.mxu0
        %v1561 = vadd.f32 0.0, %v1560
        %1562 = vdwg.mxu0
        %v1567 = vunpack.c.l.b16 %v1513
        %v1568 = vunpack.c.l.b16 %v1514
        %v1569 = vunpack.c.l.b16 %v1515
        %v1570 = vunpack.c.l.b16 %v1516
        %v1571 = vpack.c.b16 %v1568, %v1567
        %v1572 = vpack.c.b16 %v1570, %v1569
        %1575 = vmatpush.bf16.msra.mxu0 0
        %1576 = vmatpush.bf16.msra.mxu0 0
        %1577 = vmatpush.bf16.msra.mxu0 0
        %1578 = vmatpush.bf16.msra.mxu0 0
        %1579 = vmatpush.bf16.msra.mxu0 0
        %1580 = vmatpush.bf16.msra.mxu0 0
        %1581 = vmatpush.bf16.msra.mxu0 %v1572
        %1582 = vmatpush.bf16.msra.mxu0 %v1571
        %1583 = vmatmul.bf16.gmra.mxu0 %v823
        %v1584 = vpop.f32.mrf.mxu0
        %v1585 = vadd.f32 %v1544, %v1584
        %v1586 = vpop.f32.mrf.mxu0
        %v1587 = vadd.f32 %v1546, %v1586
        %1588 = vmatmul.bf16.gmra.mxu0 %v826
        %v1589 = vpop.f32.mrf.mxu0
        %v1590 = vadd.f32 %v1549, %v1589
        %v1591 = vpop.f32.mrf.mxu0
        %v1592 = vadd.f32 %v1551, %v1591
        %1593 = vmatmul.bf16.gmra.mxu0 %v829
        %v1594 = vpop.f32.mrf.mxu0
        %v1595 = vadd.f32 %v1554, %v1594
        %v1596 = vpop.f32.mrf.mxu0
        %v1597 = vadd.f32 %v1556, %v1596
        %1598 = vmatmul.bf16.gmra.mxu0 %v832
        %v1599 = vpop.f32.mrf.mxu0
        %v1600 = vadd.f32 %v1559, %v1599
        %v1601 = vpop.f32.mrf.mxu0
        %v1602 = vadd.f32 %v1561, %v1601
        %1603 = vdwg.mxu0
        %s1604 = scalar_lea.vmem [#allocation2], 224
        %v1605 = vld [vmem:[%s1604] sm:$0xf]
        %v1606 = vld [vmem:[%s1604 + $0x4] sm:$0xf]
        %v1607 = vld [vmem:[%s1604 + $0x8] sm:$0xf]
        %v1608 = vld [vmem:[%s1604 + $0xc] sm:$0xf]
        %v1613 = vunpack.c.l.b16 %v1605
        %v1614 = vunpack.c.l.b16 %v1606
        %v1615 = vunpack.c.l.b16 %v1607
        %v1616 = vunpack.c.l.b16 %v1608
        %v1617 = vpack.c.b16 %v1614, %v1613
        %v1618 = vpack.c.b16 %v1616, %v1615
        %1621 = vmatpush.bf16.msra.mxu0 0
        %1622 = vmatpush.bf16.msra.mxu0 0
        %1623 = vmatpush.bf16.msra.mxu0 0
        %1624 = vmatpush.bf16.msra.mxu0 0
        %1625 = vmatpush.bf16.msra.mxu0 0
        %1626 = vmatpush.bf16.msra.mxu0 0
        %1627 = vmatpush.bf16.msra.mxu0 %v1618
        %1628 = vmatpush.bf16.msra.mxu0 %v1617
        %1629 = vmatmul.bf16.gmra.mxu0 %v635
        %v1630 = vpop.f32.mrf.mxu0
        %v1631 = vadd.f32 0.0, %v1630
        %v1632 = vpop.f32.mrf.mxu0
        %v1633 = vadd.f32 0.0, %v1632
        %1634 = vmatmul.bf16.gmra.mxu0 %v638
        %v1635 = vpop.f32.mrf.mxu0
        %v1636 = vadd.f32 0.0, %v1635
        %v1637 = vpop.f32.mrf.mxu0
        %v1638 = vadd.f32 0.0, %v1637
        %1639 = vmatmul.bf16.gmra.mxu0 %v641
        %v1640 = vpop.f32.mrf.mxu0
        %v1641 = vadd.f32 0.0, %v1640
        %v1642 = vpop.f32.mrf.mxu0
        %v1643 = vadd.f32 0.0, %v1642
        %1644 = vmatmul.bf16.gmra.mxu0 %v1420
        %v1645 = vpop.f32.mrf.mxu0
        %v1646 = vadd.f32 0.0, %v1645
        %v1647 = vpop.f32.mrf.mxu0
        %v1648 = vadd.f32 0.0, %v1647
        %1649 = vdwg.mxu0
        %v1650 = vadd.f32 %v1585, %v1631
        %v1651 = vadd.f32 %v1587, %v1633
        %v1652 = vadd.f32 %v1590, %v1636
        %v1653 = vadd.f32 %v1592, %v1638
        %v1654 = vadd.f32 %v1595, %v1641
        %v1655 = vadd.f32 %v1597, %v1643
        %v1656 = vadd.f32 %v1600, %v1646
        %v1657 = vadd.f32 %v1602, %v1648
        %v1658 = vrot.slane %v550, 2
        %v1659 = vrot.slane %v551, 2
        %v1660 = vsel %vm928, %v1658, %v1659
        %v1662 = vpack.c.bf16 %v1660, %v1120
        %s1663 = scalar_lea.vmem [#allocation2], 240
        %v1664 = vld [vmem:[%s1663] sm:$0xf]
        %v1665 = vld [vmem:[%s1663 + $0x4] sm:$0xf]
        %v1666 = vld [vmem:[%s1663 + $0x8] sm:$0xf]
        %v1667 = vld [vmem:[%s1663 + $0xc] sm:$0xf]
        %v1672 = vunpack.c.l.b16 %v1664
        %v1673 = vunpack.c.l.b16 %v1665
        %v1674 = vunpack.c.l.b16 %v1666
        %v1675 = vunpack.c.l.b16 %v1667
        %v1676 = vpack.c.b16 %v1673, %v1672
        %v1677 = vpack.c.b16 %v1675, %v1674
        %v1681 = vsel %vm630, %v1662, 0
        %1683 = vmatpush.bf16.msra.mxu0 0
        %1684 = vmatpush.bf16.msra.mxu0 0
        %1685 = vmatpush.bf16.msra.mxu0 0
        %1686 = vmatpush.bf16.msra.mxu0 0
        %1687 = vmatpush.bf16.msra.mxu0 0
        %1688 = vmatpush.bf16.msra.mxu0 0
        %1689 = vmatpush.bf16.msra.mxu0 %v1677
        %1690 = vmatpush.bf16.msra.mxu0 %v1676
        %1691 = vmatmul.bf16.gmra.mxu0 %v986
        %v1692 = vpop.f32.mrf.mxu0
        %v1693 = vadd.f32 0.0, %v1692
        %v1694 = vpop.f32.mrf.mxu0
        %v1695 = vadd.f32 0.0, %v1694
        %1696 = vmatmul.bf16.gmra.mxu0 %v989
        %v1697 = vpop.f32.mrf.mxu0
        %v1698 = vadd.f32 0.0, %v1697
        %v1699 = vpop.f32.mrf.mxu0
        %v1700 = vadd.f32 0.0, %v1699
        %1701 = vmatmul.bf16.gmra.mxu0 %v992
        %v1702 = vpop.f32.mrf.mxu0
        %v1703 = vadd.f32 0.0, %v1702
        %v1704 = vpop.f32.mrf.mxu0
        %v1705 = vadd.f32 0.0, %v1704
        %1706 = vmatmul.bf16.gmra.mxu0 %v1681
        %v1707 = vpop.f32.mrf.mxu0
        %v1708 = vadd.f32 0.0, %v1707
        %v1709 = vpop.f32.mrf.mxu0
        %v1710 = vadd.f32 0.0, %v1709
        %1711 = vdwg.mxu0
        %v1712 = vadd.f32 %v1650, %v1693
        %v1713 = vadd.f32 %v1651, %v1695
        %v1714 = vadd.f32 %v1652, %v1698
        %v1715 = vadd.f32 %v1653, %v1700
        %v1716 = vadd.f32 %v1654, %v1703
        %v1717 = vadd.f32 %v1655, %v1705
        %v1718 = vadd.f32 %v1656, %v1708
        %v1719 = vadd.f32 %v1657, %v1710
        %v1720 = vadd.f32 %v1712, %v1713
        %v1721 = vadd.f32 %v1720, %v1714
        %v1722 = vadd.f32 %v1721, %v1715
        %v1723 = vadd.f32 %v1722, %v1716
        %v1724 = vadd.f32 %v1723, %v1717
        %v1725 = vadd.f32 %v1724, %v1718
        %v1726 = vadd.f32 %v1725, %v1719
        %v1727 = vrot.slane %v1726, 4
        %v1728 = vadd.f32 %v1726, %v1727
        %v1729 = vrot.slane %v1728, 2
        %v1730 = vadd.f32 %v1728, %v1729
        %v1731 = vrot.slane %v1730, 1
        %v1732 = vadd.f32 %v1730, %v1731
        %v1733 = vadd.f32 %v1472, %v1732
        %v1734 = vmul.f32 %v1712, %v1712
        %v1735 = vmul.f32 %v1713, %v1713
        %v1736 = vmul.f32 %v1714, %v1714
        %v1737 = vmul.f32 %v1715, %v1715
        %v1738 = vmul.f32 %v1716, %v1716
        %v1739 = vmul.f32 %v1717, %v1717
        %v1740 = vmul.f32 %v1718, %v1718
        %v1741 = vmul.f32 %v1719, %v1719
        %v1742 = vadd.f32 %v1734, %v1735
        %v1743 = vadd.f32 %v1742, %v1736
        %v1744 = vadd.f32 %v1743, %v1737
        %v1745 = vadd.f32 %v1744, %v1738
        %v1746 = vadd.f32 %v1745, %v1739
        %v1747 = vadd.f32 %v1746, %v1740
        %v1748 = vadd.f32 %v1747, %v1741
        %v1749 = vrot.slane %v1748, 4
        %v1750 = vadd.f32 %v1748, %v1749
        %v1751 = vrot.slane %v1750, 2
        %v1752 = vadd.f32 %v1750, %v1751
        %v1753 = vrot.slane %v1752, 1
        %v1754 = vadd.f32 %v1752, %v1753
        %v1755 = vadd.f32 %v1494, %v1754
        %v1756 = vpack.c.bf16 %v1712, %v1712
        %v1757 = vpack.c.bf16 %v1713, %v1713
        %v1758 = vpack.c.bf16 %v1714, %v1714
        %v1759 = vpack.c.bf16 %v1715, %v1715
        %v1760 = vpack.c.bf16 %v1716, %v1716
        %v1761 = vpack.c.bf16 %v1717, %v1717
        %v1762 = vpack.c.bf16 %v1718, %v1718
        %v1763 = vpack.c.bf16 %v1719, %v1719
        %s1764 = scalar_lea.vmem %s281, 96 [#allocation4]
        %1765 = vst [vmem:[%s1764] sm:$0xf] %v1756
        %1766 = vst [vmem:[%s1764 + $0x4] sm:$0xf] %v1757
        %1767 = vst [vmem:[%s1764 + $0x8] sm:$0xf] %v1758
        %1768 = vst [vmem:[%s1764 + $0xc] sm:$0xf] %v1759
        %1769 = vst [vmem:[%s1764 + $0x10] sm:$0xf] %v1760
        %1770 = vst [vmem:[%s1764 + $0x14] sm:$0xf] %v1761
        %1771 = vst [vmem:[%s1764 + $0x18] sm:$0xf] %v1762
        %1772 = vst [vmem:[%s1764 + $0x1c] sm:$0xf] %v1763
        %vm1773 = vcmask 1040384
        %v1774 = vsel %vm1773, %v1733, %v1755
        %1775 = vst [vmem:[%s302] sm:$0x3] %v1774
        %s1776 = sand.u32 %s156, 1
        %s1777 = sand.u32 %s156, 1
        %s1778 = smul.addr %s1777, 128
        %s1779 = scalar_lea.vmem [#allocation4], %s1778
        %p1780 = scmp.lt.s32.totalorder %s23, 1
        %s1781 = scalar_select %p1780, %s23, 1
        %p1782 = scmp.lt.s32.totalorder %s24, 0
        %s1783 = scalar_select %p1782, %s24, 0
        %s1784 = sadd.s32 %s1783, %s1781
        %s1785 = smul.addr %s1784, 2
        %s1786 = scalar_lea.vmem %s6, %s1785
        // Predicated region
        $region45: #{generator_forward.6} parent=39 // pred_check
          %p1787 = pneg %p166
        $region46: #{generator_forward.6} parent=39 // pred_check_branch
          %1789 = sbr.rel (%p1787) target = $region48
        $region47: #{generator_forward.6} parent=39 // pred_region
          %s1790 = smul.addr %s23, 8
          %s1791 = sadd.s32 %s24, %s1790
          %s1792 = smul.addr %s1791, 4
          %s1793 = scalar_lea.vmem %s5, %s1792
          // Predicated region
          $region49: #{generator_forward.6} parent=47 // pred_check
            _
          $region50: #{generator_forward.6} parent=47 // pred_check_branch
            %1795 = sbr.rel (0) target = $region52
          $region51: #{generator_forward.6} parent=47 // pred_region
            // Predicated region
            $region53: #{generator_forward.6} parent=51 // pred_check
              _
            $region54: #{generator_forward.6} parent=51 // pred_check_branch
              %1797 = sbr.rel target = $region56
            $region55: #{generator_forward.6} parent=51 // pred_region
              // Predicated region
              $region68: #{generator_forward.6} parent=55 // pred_check
                _
              $region69: #{generator_forward.6} parent=55 // pred_check_branch
                %1875 = sbr.rel (0) target = $region71
              $region70: #{generator_forward.6} parent=55 // pred_region
                loop: start=0, step=1, limit=1
                $region72: #{generator_forward.6} parent=70 // loop_pre_header
                  _
                $region73: #{generator_forward.6} parent=70 // loop_header
                  %s1877 = sphi 0, %s1881
                  %p1878 = scmp.ge.s32.totalorder %s1877, 1
                  %s1882 = sphi %s1779, %s1779
                  %s1883 = sphi %s1793, %s1793
                $region74: #{generator_forward.6} parent=70 // loop_header_branch
                  %1880 = sbr.rel (%p1878) target = $region78
                $region75: #{generator_forward.6} parent=70 // loop_body
                  _
                $region76: #{generator_forward.6} parent=70 // loop_footer
                  %s1881 = sadd.s32 1, %s1877
                $region77: #{generator_forward.6} parent=70 // loop_footer_branch
                  %1876 = sbr.rel target = $region73
                $region78: #{generator_forward.6} parent=70 // loop_exit
                  _
                %s1885 = ssub.s32 16, 1
                loop: start=0, step=1, limit=1
                $region79: #{generator_forward.6} parent=70 // loop_pre_header
                  _
                $region80: #{generator_forward.6} parent=70 // loop_header
                  %s1887 = sphi 0, %s1891
                  %p1888 = scmp.ge.s32.totalorder %s1887, 1
                  %s1892 = sphi %s1779, %s1779
                  %s1893 = sphi %s1793, %s1793
                $region81: #{generator_forward.6} parent=70 // loop_header_branch
                  %1890 = sbr.rel (%p1888) target = $region85
                $region82: #{generator_forward.6} parent=70 // loop_body
                  %v1894 = vld [vmem:[%s1892] sm:%s1885]
                  %1895 = vst [vmem:[%s1893] sm:%s1885] %v1894
                  %v1896 = vld [vmem:[%s1892 + $0x4] sm:%s1885]
                  %1897 = vst [vmem:[%s1893 + $0x4] sm:%s1885] %v1896
                  %v1898 = vld [vmem:[%s1892 + $0x8] sm:%s1885]
                  %1899 = vst [vmem:[%s1893 + $0x8] sm:%s1885] %v1898
                  %v1900 = vld [vmem:[%s1892 + $0xc] sm:%s1885]
                  %1901 = vst [vmem:[%s1893 + $0xc] sm:%s1885] %v1900
                  %v1902 = vld [vmem:[%s1892 + $0x10] sm:%s1885]
                  %1903 = vst [vmem:[%s1893 + $0x10] sm:%s1885] %v1902
                  %v1904 = vld [vmem:[%s1892 + $0x14] sm:%s1885]
                  %1905 = vst [vmem:[%s1893 + $0x14] sm:%s1885] %v1904
                  %v1906 = vld [vmem:[%s1892 + $0x18] sm:%s1885]
                  %1907 = vst [vmem:[%s1893 + $0x18] sm:%s1885] %v1906
                  %v1908 = vld [vmem:[%s1892 + $0x1c] sm:%s1885]
                  %1909 = vst [vmem:[%s1893 + $0x1c] sm:%s1885] %v1908
                  %v1910 = vld [vmem:[%s1892 + $0x20] sm:%s1885]
                  %1911 = vst [vmem:[%s1893 + $0x40] sm:%s1885] %v1910
                  %v1912 = vld [vmem:[%s1892 + $0x24] sm:%s1885]
                  %1913 = vst [vmem:[%s1893 + $0x44] sm:%s1885] %v1912
                  %v1914 = vld [vmem:[%s1892 + $0x28] sm:%s1885]
                  %1915 = vst [vmem:[%s1893 + $0x48] sm:%s1885] %v1914
                  %v1916 = vld [vmem:[%s1892 + $0x2c] sm:%s1885]
                  %1917 = vst [vmem:[%s1893 + $0x4c] sm:%s1885] %v1916
                  %v1918 = vld [vmem:[%s1892 + $0x30] sm:%s1885]
                  %1919 = vst [vmem:[%s1893 + $0x50] sm:%s1885] %v1918
                  %v1920 = vld [vmem:[%s1892 + $0x34] sm:%s1885]
                  %1921 = vst [vmem:[%s1893 + $0x54] sm:%s1885] %v1920
                  %v1922 = vld [vmem:[%s1892 + $0x38] sm:%s1885]
                  %1923 = vst [vmem:[%s1893 + $0x58] sm:%s1885] %v1922
                  %v1924 = vld [vmem:[%s1892 + $0x3c] sm:%s1885]
                  %1925 = vst [vmem:[%s1893 + $0x5c] sm:%s1885] %v1924
                  %v1926 = vld [vmem:[%s1892 + $0x40] sm:%s1885]
                  %1927 = vst [vmem:[%s1893 + $0x80] sm:%s1885] %v1926
                  %v1928 = vld [vmem:[%s1892 + $0x44] sm:%s1885]
                  %1929 = vst [vmem:[%s1893 + $0x84] sm:%s1885] %v1928
                  %v1930 = vld [vmem:[%s1892 + $0x48] sm:%s1885]
                  %1931 = vst [vmem:[%s1893 + $0x88] sm:%s1885] %v1930
                  %v1932 = vld [vmem:[%s1892 + $0x4c] sm:%s1885]
                  %1933 = vst [vmem:[%s1893 + $0x8c] sm:%s1885] %v1932
                  %v1934 = vld [vmem:[%s1892 + $0x50] sm:%s1885]
                  %1935 = vst [vmem:[%s1893 + $0x90] sm:%s1885] %v1934
                  %v1936 = vld [vmem:[%s1892 + $0x54] sm:%s1885]
                  %1937 = vst [vmem:[%s1893 + $0x94] sm:%s1885] %v1936
                  %v1938 = vld [vmem:[%s1892 + $0x58] sm:%s1885]
                  %1939 = vst [vmem:[%s1893 + $0x98] sm:%s1885] %v1938
                  %v1940 = vld [vmem:[%s1892 + $0x5c] sm:%s1885]
                  %1941 = vst [vmem:[%s1893 + $0x9c] sm:%s1885] %v1940
                  %v1942 = vld [vmem:[%s1892 + $0x60] sm:%s1885]
                  %1943 = vst [vmem:[%s1893 + $0xc0] sm:%s1885] %v1942
                  %v1944 = vld [vmem:[%s1892 + $0x64] sm:%s1885]
                  %1945 = vst [vmem:[%s1893 + $0xc4] sm:%s1885] %v1944
                  %v1946 = vld [vmem:[%s1892 + $0x68] sm:%s1885]
                  %1947 = vst [vmem:[%s1893 + $0xc8] sm:%s1885] %v1946
                  %v1948 = vld [vmem:[%s1892 + $0x6c] sm:%s1885]
                  %1949 = vst [vmem:[%s1893 + $0xcc] sm:%s1885] %v1948
                  %v1950 = vld [vmem:[%s1892 + $0x70] sm:%s1885]
                  %1951 = vst [vmem:[%s1893 + $0xd0] sm:%s1885] %v1950
                  %v1952 = vld [vmem:[%s1892 + $0x74] sm:%s1885]
                  %1953 = vst [vmem:[%s1893 + $0xd4] sm:%s1885] %v1952
                  %v1954 = vld [vmem:[%s1892 + $0x78] sm:%s1885]
                  %1955 = vst [vmem:[%s1893 + $0xd8] sm:%s1885] %v1954
                  %v1956 = vld [vmem:[%s1892 + $0x7c] sm:%s1885]
                  %1957 = vst [vmem:[%s1893 + $0xdc] sm:%s1885] %v1956
                $region83: #{generator_forward.6} parent=70 // loop_footer
                  %s1891 = sadd.s32 1, %s1887
                $region84: #{generator_forward.6} parent=70 // loop_footer_branch
                  %1886 = sbr.rel target = $region80
                $region85: #{generator_forward.6} parent=70 // loop_exit
                  _
              $region71: #{generator_forward.6} parent=55 // pred_fallthru
                _
            $region56: #{generator_forward.6} parent=51 // pred_fallthru
              _
            // Predicated region
            $region57: #{generator_forward.6} parent=51 // pred_check
              _
            $region58: #{generator_forward.6} parent=51 // pred_check_branch
              %1799 = sbr.rel (0) target = $region60
            $region59: #{generator_forward.6} parent=51 // pred_region
              %s1801 = ssub.s32 16, 1
              loop: start=0, step=1, limit=1
              $region61: #{generator_forward.6} parent=59 // loop_pre_header
                _
              $region62: #{generator_forward.6} parent=59 // loop_header
                %s1803 = sphi 0, %s1807
                %p1804 = scmp.ge.s32.totalorder %s1803, 1
                %s1808 = sphi %s1779, %s1779
                %s1809 = sphi %s1793, %s1793
              $region63: #{generator_forward.6} parent=59 // loop_header_branch
                %1806 = sbr.rel (%p1804) target = $region67
              $region64: #{generator_forward.6} parent=59 // loop_body
                %v1810 = vld [vmem:[%s1808] sm:%s1801]
                %1811 = vst [vmem:[%s1809] sm:%s1801] %v1810
                %v1812 = vld [vmem:[%s1808 + $0x4] sm:%s1801]
                %1813 = vst [vmem:[%s1809 + $0x4] sm:%s1801] %v1812
                %v1814 = vld [vmem:[%s1808 + $0x8] sm:%s1801]
                %1815 = vst [vmem:[%s1809 + $0x8] sm:%s1801] %v1814
                %v1816 = vld [vmem:[%s1808 + $0xc] sm:%s1801]
                %1817 = vst [vmem:[%s1809 + $0xc] sm:%s1801] %v1816
                %v1818 = vld [vmem:[%s1808 + $0x10] sm:%s1801]
                %1819 = vst [vmem:[%s1809 + $0x10] sm:%s1801] %v1818
                %v1820 = vld [vmem:[%s1808 + $0x14] sm:%s1801]
                %1821 = vst [vmem:[%s1809 + $0x14] sm:%s1801] %v1820
                %v1822 = vld [vmem:[%s1808 + $0x18] sm:%s1801]
                %1823 = vst [vmem:[%s1809 + $0x18] sm:%s1801] %v1822
                %v1824 = vld [vmem:[%s1808 + $0x1c] sm:%s1801]
                %1825 = vst [vmem:[%s1809 + $0x1c] sm:%s1801] %v1824
                %v1826 = vld [vmem:[%s1808 + $0x20] sm:%s1801]
                %1827 = vst [vmem:[%s1809 + $0x40] sm:%s1801] %v1826
                %v1828 = vld [vmem:[%s1808 + $0x24] sm:%s1801]
                %1829 = vst [vmem:[%s1809 + $0x44] sm:%s1801] %v1828
                %v1830 = vld [vmem:[%s1808 + $0x28] sm:%s1801]
                %1831 = vst [vmem:[%s1809 + $0x48] sm:%s1801] %v1830
                %v1832 = vld [vmem:[%s1808 + $0x2c] sm:%s1801]
                %1833 = vst [vmem:[%s1809 + $0x4c] sm:%s1801] %v1832
                %v1834 = vld [vmem:[%s1808 + $0x30] sm:%s1801]
                %1835 = vst [vmem:[%s1809 + $0x50] sm:%s1801] %v1834
                %v1836 = vld [vmem:[%s1808 + $0x34] sm:%s1801]
                %1837 = vst [vmem:[%s1809 + $0x54] sm:%s1801] %v1836
                %v1838 = vld [vmem:[%s1808 + $0x38] sm:%s1801]
                %1839 = vst [vmem:[%s1809 + $0x58] sm:%s1801] %v1838
                %v1840 = vld [vmem:[%s1808 + $0x3c] sm:%s1801]
                %1841 = vst [vmem:[%s1809 + $0x5c] sm:%s1801] %v1840
                %v1842 = vld [vmem:[%s1808 + $0x40] sm:%s1801]
                %1843 = vst [vmem:[%s1809 + $0x80] sm:%s1801] %v1842
                %v1844 = vld [vmem:[%s1808 + $0x44] sm:%s1801]
                %1845 = vst [vmem:[%s1809 + $0x84] sm:%s1801] %v1844
                %v1846 = vld [vmem:[%s1808 + $0x48] sm:%s1801]
                %1847 = vst [vmem:[%s1809 + $0x88] sm:%s1801] %v1846
                %v1848 = vld [vmem:[%s1808 + $0x4c] sm:%s1801]
                %1849 = vst [vmem:[%s1809 + $0x8c] sm:%s1801] %v1848
                %v1850 = vld [vmem:[%s1808 + $0x50] sm:%s1801]
                %1851 = vst [vmem:[%s1809 + $0x90] sm:%s1801] %v1850
                %v1852 = vld [vmem:[%s1808 + $0x54] sm:%s1801]
                %1853 = vst [vmem:[%s1809 + $0x94] sm:%s1801] %v1852
                %v1854 = vld [vmem:[%s1808 + $0x58] sm:%s1801]
                %1855 = vst [vmem:[%s1809 + $0x98] sm:%s1801] %v1854
                %v1856 = vld [vmem:[%s1808 + $0x5c] sm:%s1801]
                %1857 = vst [vmem:[%s1809 + $0x9c] sm:%s1801] %v1856
                %v1858 = vld [vmem:[%s1808 + $0x60] sm:%s1801]
                %1859 = vst [vmem:[%s1809 + $0xc0] sm:%s1801] %v1858
                %v1860 = vld [vmem:[%s1808 + $0x64] sm:%s1801]
                %1861 = vst [vmem:[%s1809 + $0xc4] sm:%s1801] %v1860
                %v1862 = vld [vmem:[%s1808 + $0x68] sm:%s1801]
                %1863 = vst [vmem:[%s1809 + $0xc8] sm:%s1801] %v1862
                %v1864 = vld [vmem:[%s1808 + $0x6c] sm:%s1801]
                %1865 = vst [vmem:[%s1809 + $0xcc] sm:%s1801] %v1864
                %v1866 = vld [vmem:[%s1808 + $0x70] sm:%s1801]
                %1867 = vst [vmem:[%s1809 + $0xd0] sm:%s1801] %v1866
                %v1868 = vld [vmem:[%s1808 + $0x74] sm:%s1801]
                %1869 = vst [vmem:[%s1809 + $0xd4] sm:%s1801] %v1868
                %v1870 = vld [vmem:[%s1808 + $0x78] sm:%s1801]
                %1871 = vst [vmem:[%s1809 + $0xd8] sm:%s1801] %v1870
                %v1872 = vld [vmem:[%s1808 + $0x7c] sm:%s1801]
                %1873 = vst [vmem:[%s1809 + $0xdc] sm:%s1801] %v1872
              $region65: #{generator_forward.6} parent=59 // loop_footer
                %s1807 = sadd.s32 1, %s1803
              $region66: #{generator_forward.6} parent=59 // loop_footer_branch
                %1802 = sbr.rel target = $region62
              $region67: #{generator_forward.6} parent=59 // loop_exit
                _
            $region60: #{generator_forward.6} parent=51 // pred_fallthru
              _
          $region52: #{generator_forward.6} parent=47 // pred_fallthru
            _
          %1958 = vnop
        $region48: #{generator_forward.6} parent=39 // pred_fallthru
          _
        // Predicated region
        $region86: #{generator_forward.6} parent=39 // pred_check
          %p1959 = pneg %p194
        $region87: #{generator_forward.6} parent=39 // pred_check_branch
          %1961 = sbr.rel (%p1959) target = $region89
        $region88: #{generator_forward.6} parent=39 // pred_region
          _
        $region89: #{generator_forward.6} parent=39 // pred_fallthru
          _
      $region40: #{generator_forward.6} parent=5 // pred_fallthru
        _
      %p1962 = scmp.le.s32.totalorder 2, %s14
      // Predicated region
      $region90: #{generator_forward.6} parent=5 // pred_check
        %p1963 = pneg %p1962
      $region91: #{generator_forward.6} parent=5 // pred_check_branch
        %1965 = sbr.rel (%p1963) target = $region93
      $region92: #{generator_forward.6} parent=5 // pred_region
        %s1966 = ssub.s32 %s14, 2
        // Predicated region
        $region94: #{generator_forward.6} parent=92 // pred_check
          %p1967 = pneg %p172
        $region95: #{generator_forward.6} parent=92 // pred_check_branch
          %1969 = sbr.rel (%p1967) target = $region97
        $region96: #{generator_forward.6} parent=92 // pred_region
          %s1970 = sand.u32 %s157, 1
          %s1971 = sand.u32 %s157, 1
          %s1972 = smul.addr %s1971, 128
          %s1973 = scalar_lea.vmem [#allocation4], %s1972
        $region97: #{generator_forward.6} parent=92 // pred_fallthru
          _
        // Predicated region
        $region98: #{generator_forward.6} parent=92 // pred_check
          %p1974 = pneg %p200
        $region99: #{generator_forward.6} parent=92 // pred_check_branch
          %1976 = sbr.rel (%p1974) target = $region101
        $region100: #{generator_forward.6} parent=92 // pred_region
          %p1977 = scmp.lt.s32.totalorder %s25, 1
          %s1978 = scalar_select %p1977, %s25, 1
          %p1979 = scmp.lt.s32.totalorder %s26, 0
          %s1980 = scalar_select %p1979, %s26, 0
          %s1981 = sadd.s32 %s1980, %s1978
          %s1982 = smul.addr %s1981, 2
          %s1983 = scalar_lea.vmem %s6, %s1982
        $region101: #{generator_forward.6} parent=92 // pred_fallthru
          _
      $region93: #{generator_forward.6} parent=5 // pred_fallthru
        _
    $region6: #{generator_forward.6} parent=1 // loop_footer
      %s18 = sadd.s32 1, %s14
    $region7: #{generator_forward.6} parent=1 // loop_footer_branch
      %13 = sbr.rel target = $region3
    $region8: #{generator_forward.6} parent=1 // loop_exit
      _
    %1984 = vsyncpa [#allocation3], 1
    %s1985 = scalar_lea.sflag [#allocation3], 1
    %1986 = vsyncpa %s1985, 1

// kernel: generator_forward.7
$region0: #{generator_forward.7}
  #allocation0 [shape = 'u32[]', space=smem, size = 0x4, offset = 0x4, fixed_abs, tag = 'smem constant byte address 0x4 - core index']
  #allocation1 [shape = 'u32[72,128]{1,0:T(1,128)}', space=vmem, size = 0x9000, scoped, tag = 'internal scratch']
  %s0 = inlined_call_operand.vmem [shape: bf16[2,18,18,16], index: 0, kind: input, shape index: {}]
  %s1 = inlined_call_operand.vmem [shape: f32[1,16], index: 1, kind: input, shape index: {}]
  %s2 = inlined_call_operand.vmem [shape: f32[1,16], index: 2, kind: input, shape index: {}]
  %s3 = inlined_call_operand.vmem [shape: f32[1,18,18,1], index: 3, kind: input, shape index: {}]
  %s4 = inlined_call_operand.hbm [shape: bf16[4,4,16,128], index: 4, kind: input, shape index: {}]
  %s5 = inlined_call_operand.hbm [shape: f32[1,128], index: 5, kind: input, shape index: {}]
  %s6 = inlined_call_operand.vmem [shape: f32[4,2,256,128], index: 6, kind: output, shape index: {}]
  %s7 = sld [smem:[#allocation0]]
  $region99: #{generator_forward.7} parent=0
    _
  %s9 = ssub.s32 1, %s7
  %s10 = scalar_select 0, %s9, %s7
  $region1: #{generator_forward.7} parent=0
    #allocation2 [shape = 'u8[65536]{0}', space=vmem, size = 0x10000, scoped, tag = 'input window, operand 4, single buffered']
    #allocation3 [shape = 's32[2]{0}', space=sflag, size = 0x8, scoped, tag = 'scoped memory for generator_forward.7']
    #allocation4 [shape = 'u8[512]{0}', space=vmem, size = 0x400, scoped, tag = 'input window, operand 5, single buffered']
    #allocation5 [shape = 's32[1]{0}', space=sflag, size = 0x4, scoped, tag = 'scoped memory for generator_forward.7']
    #allocation6 [shape = 'u8[1048576]{0}', space=vmem, size = 0x100000, scoped, tag = 'output window, operand 0']
    %11 = vsyncpa [#allocation3], 0
    %12 = vsyncpa [#allocation5], 0
    loop: start=0, step=1, limit=4
    $region2: #{generator_forward.7} parent=1 // loop_pre_header
      _
    $region3: #{generator_forward.7} parent=1 // loop_header
      %s14 = sphi 0, %s18
      %p15 = scmp.ge.s32.totalorder %s14, 4
      %s21 = sphi 0, %s33
      %s22 = sphi 0, %s29
      %s23 = sphi 0, %s21
      %s24 = sphi 0, %s22
      %s25 = sphi 0, %s23
      %s26 = sphi 0, %s24
      %s36 = sphi 0, %s38
      %s39 = sphi 0, %s36
      %s40 = sphi 0, %s39
      %s56 = sphi 0, %s40
      %s60 = sphi 0, %s60
      %s62 = sphi 0, %s60
      %s63 = sphi 0, %s62
      %s77 = sphi 0, %s63
      %s81 = sphi 0, %s81
      %s83 = sphi 0, %s81
      %s84 = sphi 0, %s83
      %s98 = sphi 0, %s84
      %s102 = sphi 0, %s102
      %s104 = sphi 0, %s102
      %s105 = sphi 0, %s104
      %s119 = sphi 0, %s105
      %s125 = sphi 0, %s127
      %s128 = sphi 0, %s125
      %s129 = sphi 0, %s128
      %s145 = sphi 0, %s129
      %s151 = sphi 0, %s153
      %s154 = sphi 0, %s151
      %s155 = sphi 0, %s154
      %s171 = sphi 0, %s155
      %s179 = sphi 0, %s181
      %s182 = sphi 0, %s179
      %s183 = sphi 0, %s182
      %s199 = sphi 0, %s183
    $region4: #{generator_forward.7} parent=1 // loop_header_branch
      %17 = sbr.rel (%p15) target = $region8
    $region5: #{generator_forward.7} parent=1 // loop_body
      %s19 = ssub.s32 %s14, 1
      %s20 = ssub.s32 %s14, 2
      %s27 = sadd.s32 1, %s22
      %p28 = scmp.ge.s32.totalorder %s27, 1
      %s29 = scalar_select %p28, 0, %s27
      %s30 = sadd.s32 1, %s21
      %s31 = scalar_select %p28, %s30, %s21
      %p32 = scmp.ge.s32.totalorder %s31, 2
      %s33 = scalar_select %p32, 0, %s31
      %s34 = ssub.s32 %s21, %s33
      %p35 = scmp.eq.s32.totalorder %s34, 0
      %s37 = sadd.s32 %s36, 1
      %s38 = scalar_select %p35, %s36, %s37
      %p41 = pneg %p35
      %p42 = scmp.eq.s32.totalorder %s14, 1
      %p43 = por %p41, %p42
      %p44 = scmp.ne.s32.totalorder %s36, %s39
      %p45 = scmp.eq.s32.totalorder %s14, 0
      %p46 = por %p44, %p45
      %p47 = scmp.ne.s32.totalorder %s36, %s39
      %p48 = scmp.eq.s32.totalorder %s19, 1
      %p49 = por %p47, %p48
      %p50 = scmp.ne.s32.totalorder %s39, %s40
      %p51 = scmp.eq.s32.totalorder %s19, 0
      %p52 = por %p50, %p51
      %p53 = scmp.ne.s32.totalorder %s39, %s40
      %p54 = scmp.eq.s32.totalorder %s20, 1
      %p55 = por %p53, %p54
      %p57 = scmp.ne.s32.totalorder %s40, %s56
      %p58 = scmp.eq.s32.totalorder %s20, 0
      %p59 = por %p57, %p58
      %s61 = sadd.s32 %s60, 1
      %p64 = scmp.eq.s32.totalorder %s14, 1
      %p65 = scmp.ne.s32.totalorder %s60, %s62
      %p66 = scmp.eq.s32.totalorder %s14, 0
      %p67 = por %p65, %p66
      %p68 = scmp.ne.s32.totalorder %s60, %s62
      %p69 = scmp.eq.s32.totalorder %s19, 1
      %p70 = por %p68, %p69
      %p71 = scmp.ne.s32.totalorder %s62, %s63
      %p72 = scmp.eq.s32.totalorder %s19, 0
      %p73 = por %p71, %p72
      %p74 = scmp.ne.s32.totalorder %s62, %s63
      %p75 = scmp.eq.s32.totalorder %s20, 1
      %p76 = por %p74, %p75
      %p78 = scmp.ne.s32.totalorder %s63, %s77
      %p79 = scmp.eq.s32.totalorder %s20, 0
      %p80 = por %p78, %p79
      %s82 = sadd.s32 %s81, 1
      %p85 = scmp.eq.s32.totalorder %s14, 1
      %p86 = scmp.ne.s32.totalorder %s81, %s83
      %p87 = scmp.eq.s32.totalorder %s14, 0
      %p88 = por %p86, %p87
      %p89 = scmp.ne.s32.totalorder %s81, %s83
      %p90 = scmp.eq.s32.totalorder %s19, 1
      %p91 = por %p89, %p90
      %p92 = scmp.ne.s32.totalorder %s83, %s84
      %p93 = scmp.eq.s32.totalorder %s19, 0
      %p94 = por %p92, %p93
      %p95 = scmp.ne.s32.totalorder %s83, %s84
      %p96 = scmp.eq.s32.totalorder %s20, 1
      %p97 = por %p95, %p96
      %p99 = scmp.ne.s32.totalorder %s84, %s98
      %p100 = scmp.eq.s32.totalorder %s20, 0
      %p101 = por %p99, %p100
      %s103 = sadd.s32 %s102, 1
      %p106 = scmp.eq.s32.totalorder %s14, 1
      %p107 = scmp.ne.s32.totalorder %s102, %s104
      %p108 = scmp.eq.s32.totalorder %s14, 0
      %p109 = por %p107, %p108
      %p110 = scmp.ne.s32.totalorder %s102, %s104
      %p111 = scmp.eq.s32.totalorder %s19, 1
      %p112 = por %p110, %p111
      %p113 = scmp.ne.s32.totalorder %s104, %s105
      %p114 = scmp.eq.s32.totalorder %s19, 0
      %p115 = por %p113, %p114
      %p116 = scmp.ne.s32.totalorder %s104, %s105
      %p117 = scmp.eq.s32.totalorder %s20, 1
      %p118 = por %p116, %p117
      %p120 = scmp.ne.s32.totalorder %s105, %s119
      %p121 = scmp.eq.s32.totalorder %s20, 0
      %p122 = por %p120, %p121
      %s123 = ssub.s32 %s22, %s29
      %p124 = scmp.eq.s32.totalorder %s123, 0
      %s126 = sadd.s32 %s125, 1
      %s127 = scalar_select %p124, %s125, %s126
      %p130 = pneg %p124
      %p131 = scmp.eq.s32.totalorder %s14, 1
      %p132 = por %p130, %p131
      %p133 = scmp.ne.s32.totalorder %s125, %s128
      %p134 = scmp.eq.s32.totalorder %s14, 0
      %p135 = por %p133, %p134
      %p136 = scmp.ne.s32.totalorder %s125, %s128
      %p137 = scmp.eq.s32.totalorder %s19, 1
      %p138 = por %p136, %p137
      %p139 = scmp.ne.s32.totalorder %s128, %s129
      %p140 = scmp.eq.s32.totalorder %s19, 0
      %p141 = por %p139, %p140
      %p142 = scmp.ne.s32.totalorder %s128, %s129
      %p143 = scmp.eq.s32.totalorder %s20, 1
      %p144 = por %p142, %p143
      %p146 = scmp.ne.s32.totalorder %s129, %s145
      %p147 = scmp.eq.s32.totalorder %s20, 0
      %p148 = por %p146, %p147
      %s149 = ssub.s32 %s22, %s29
      %p150 = scmp.eq.s32.totalorder %s149, 0
      %s152 = sadd.s32 %s151, 1
      %s153 = scalar_select %p150, %s151, %s152
      %p156 = pneg %p150
      %p157 = scmp.eq.s32.totalorder %s14, 1
      %p158 = por %p156, %p157
      %p159 = scmp.ne.s32.totalorder %s151, %s154
      %p160 = scmp.eq.s32.totalorder %s14, 0
      %p161 = por %p159, %p160
      %p162 = scmp.ne.s32.totalorder %s151, %s154
      %p163 = scmp.eq.s32.totalorder %s19, 1
      %p164 = por %p162, %p163
      %p165 = scmp.ne.s32.totalorder %s154, %s155
      %p166 = scmp.eq.s32.totalorder %s19, 0
      %p167 = por %p165, %p166
      %p168 = scmp.ne.s32.totalorder %s154, %s155
      %p169 = scmp.eq.s32.totalorder %s20, 1
      %p170 = por %p168, %p169
      %p172 = scmp.ne.s32.totalorder %s155, %s171
      %p173 = scmp.eq.s32.totalorder %s20, 0
      %p174 = por %p172, %p173
      %s175 = ssub.s32 %s21, %s33
      %s176 = ssub.s32 %s22, %s29
      %s177 = sor.u32 %s175, %s176
      %p178 = scmp.eq.s32.totalorder %s177, 0
      %s180 = sadd.s32 %s179, 1
      %s181 = scalar_select %p178, %s179, %s180
      %p184 = pneg %p178
      %p185 = scmp.eq.s32.totalorder %s14, 1
      %p186 = por %p184, %p185
      %p187 = scmp.ne.s32.totalorder %s179, %s182
      %p188 = scmp.eq.s32.totalorder %s14, 0
      %p189 = por %p187, %p188
      %p190 = scmp.ne.s32.totalorder %s179, %s182
      %p191 = scmp.eq.s32.totalorder %s19, 1
      %p192 = por %p190, %p191
      %p193 = scmp.ne.s32.totalorder %s182, %s183
      %p194 = scmp.eq.s32.totalorder %s19, 0
      %p195 = por %p193, %p194
      %p196 = scmp.ne.s32.totalorder %s182, %s183
      %p197 = scmp.eq.s32.totalorder %s20, 1
      %p198 = por %p196, %p197
      %p200 = scmp.ne.s32.totalorder %s183, %s199
      %p201 = scmp.eq.s32.totalorder %s20, 0
      %p202 = por %p200, %p201
      %p203 = scmp.le.s32.totalorder 1, %s14
      %p204 = scmp.lt.s32.totalorder %s14, 3
      %p205 = pnand %p203, %p204
      %p206 = pneg %p205
      // Predicated region
      $region9: #{generator_forward.7} parent=5 // pred_check
        _
      $region10: #{generator_forward.7} parent=5 // pred_check_branch
        %208 = sbr.rel (%p205) target = $region12
      $region11: #{generator_forward.7} parent=5 // pred_region
        %s209 = ssub.s32 %s14, 1
        // Predicated region
        $region13: #{generator_forward.7} parent=11 // pred_check
          %p210 = pneg %p73
        $region14: #{generator_forward.7} parent=11 // pred_check_branch
          %212 = sbr.rel (%p210) target = $region16
        $region15: #{generator_forward.7} parent=11 // pred_region
          _
        $region16: #{generator_forward.7} parent=11 // pred_fallthru
          _
        // Predicated region
        $region17: #{generator_forward.7} parent=11 // pred_check
          %p213 = pneg %p94
        $region18: #{generator_forward.7} parent=11 // pred_check_branch
          %215 = sbr.rel (%p213) target = $region20
        $region19: #{generator_forward.7} parent=11 // pred_region
          _
        $region20: #{generator_forward.7} parent=11 // pred_fallthru
          _
        // Predicated region
        $region21: #{generator_forward.7} parent=11 // pred_check
          %p216 = pneg %p115
        $region22: #{generator_forward.7} parent=11 // pred_check_branch
          %218 = sbr.rel (%p216) target = $region24
        $region23: #{generator_forward.7} parent=11 // pred_region
          _
        $region24: #{generator_forward.7} parent=11 // pred_fallthru
          _
        // Predicated region
        $region25: #{generator_forward.7} parent=11 // pred_check
          %p219 = pneg %p141
        $region26: #{generator_forward.7} parent=11 // pred_check_branch
          %221 = sbr.rel (%p219) target = $region28
        $region27: #{generator_forward.7} parent=11 // pred_region
          %223 = vsyncadd [#allocation3], 0
          %s224 = smul.addr %s24, 4
          %s225 = scalar_lea.hbm %s4, %s224
          %s226 = sshll.u32 %s225, 4
          %s227 = int_to_ptr.hbm [resolvable:$true] %s226
          %s228 = sshll.u32 [#allocation2], 4
          %s229 = int_to_ptr.vmem [resolvable:$true] %s228
          %234 = dma.hbm_to_vmem [thread:$0]  %s227, 2048, %s229, [#allocation3], 64, 64, 4
        $region28: #{generator_forward.7} parent=11 // pred_fallthru
          _
        // Predicated region
        $region29: #{generator_forward.7} parent=11 // pred_check
          %p235 = pneg %p167
        $region30: #{generator_forward.7} parent=11 // pred_check_branch
          %237 = sbr.rel (%p235) target = $region32
        $region31: #{generator_forward.7} parent=11 // pred_region
          %239 = vsyncadd [#allocation5], 0
          %s240 = scalar_lea.hbm %s5, %s24
          %s242 = sshll.u32 %s240, 4
          %s243 = int_to_ptr.hbm [resolvable:$true] %s242
          %s244 = sshll.u32 [#allocation4], 4
          %s245 = int_to_ptr.vmem [resolvable:$true] %s244
          %247 = dma.hbm_to_vmem [thread:$0]  %s243, 16, %s245, [#allocation5]
        $region32: #{generator_forward.7} parent=11 // pred_fallthru
          _
      $region12: #{generator_forward.7} parent=5 // pred_fallthru
        _
      %p248 = scmp.lt.s32.totalorder %s14, 2
      // Predicated region
      $region33: #{generator_forward.7} parent=5 // pred_check
        %p249 = pneg %p248
      $region34: #{generator_forward.7} parent=5 // pred_check_branch
        %251 = sbr.rel (%p249) target = $region36
      $region35: #{generator_forward.7} parent=5 // pred_region
        // Predicated region
        $region37: #{generator_forward.7} parent=35 // pred_check
          %p252 = pneg %p46
        $region38: #{generator_forward.7} parent=35 // pred_check_branch
          %254 = sbr.rel (%p252) target = $region40
        $region39: #{generator_forward.7} parent=35 // pred_region
          %p255 = scmp.lt.s32.totalorder %s21, 1
          %s256 = scalar_select %p255, %s21, 1
          %s257 = smul.addr %s256, 54
          %s258 = smul.addr %s257, 4
          %s259 = scalar_lea.vmem %s0, %s258
        $region40: #{generator_forward.7} parent=35 // pred_fallthru
          _
      $region36: #{generator_forward.7} parent=5 // pred_fallthru
        _
      %p260 = scmp.le.s32.totalorder 1, %s14
      %p261 = scmp.lt.s32.totalorder %s14, 3
      %p262 = pnand %p260, %p261
      %p263 = pneg %p262
      // Predicated region
      $region41: #{generator_forward.7} parent=5 // pred_check
        _
      $region42: #{generator_forward.7} parent=5 // pred_check_branch
        %265 = sbr.rel (%p262) target = $region44
      $region43: #{generator_forward.7} parent=5 // pred_region
        %s266 = ssub.s32 %s14, 1
        // Predicated region
        $region45: #{generator_forward.7} parent=43 // pred_check
          %p267 = pneg %p141
        $region46: #{generator_forward.7} parent=43 // pred_check_branch
          %269 = sbr.rel (%p267) target = $region48
        $region47: #{generator_forward.7} parent=43 // pred_region
          %271 = dma.done [#allocation3], 2048
        $region48: #{generator_forward.7} parent=43 // pred_fallthru
          _
        // Predicated region
        $region49: #{generator_forward.7} parent=43 // pred_check
          %p272 = pneg %p167
        $region50: #{generator_forward.7} parent=43 // pred_check_branch
          %274 = sbr.rel (%p272) target = $region52
        $region51: #{generator_forward.7} parent=43 // pred_region
          %276 = dma.done [#allocation5], 16
        $region52: #{generator_forward.7} parent=43 // pred_fallthru
          _
        %p277 = scmp.lt.s32.totalorder %s23, 1
        %s278 = scalar_select %p277, %s23, 1
        %s279 = smul.addr %s278, 54
        %s280 = smul.addr %s279, 4
        %s281 = scalar_lea.vmem %s0, %s280
        %p282 = pneg %p52
        %p283 = pneg %p49
        %p284 = pneg %p73
        %p285 = pneg %p70
        %p286 = pneg %p94
        %p287 = pneg %p91
        %p288 = pneg %p115
        %p289 = pneg %p112
        %p290 = pneg %p141
        %p291 = pneg %p138
        %p292 = pneg %p167
        %p293 = pneg %p164
        %p294 = pneg %p195
        %p295 = pneg %p192
        %s296 = sand.u32 %s182, 1
        %s297 = sand.u32 %s182, 1
        %s298 = smul.addr %s297, 1024
        %s299 = scalar_lea.vmem [#allocation6], %s298
        %p300 = scmp.lt.s32.totalorder %s23, 1
        %s301 = scalar_select %p300, %s23, 1
        %s302 = smul.addr %s301, 54
        %s303 = smul.addr %s302, 4
        %s304 = scalar_lea.vmem %s0, %s303
        %v306 = vld [vmem:[%s304] sm:$0xf]
        %v307 = vld [vmem:[%s304 + $0x4] sm:$0xf]
        %v308 = vld [vmem:[%s304 + $0x8] sm:$0x1]
        %v309 = vld [vmem:[%s304 + $0xc] sm:$0xf]
        %v310 = vld [vmem:[%s304 + $0x10] sm:$0xf]
        %v311 = vld [vmem:[%s304 + $0x14] sm:$0x1]
        %v312 = vld [vmem:[%s304 + $0x18] sm:$0xf]
        %v313 = vld [vmem:[%s304 + $0x1c] sm:$0xf]
        %v314 = vld [vmem:[%s304 + $0x20] sm:$0x1]
        %v315 = vld [vmem:[%s304 + $0x24] sm:$0xf]
        %v316 = vld [vmem:[%s304 + $0x28] sm:$0xf]
        %v317 = vld [vmem:[%s304 + $0x2c] sm:$0x1]
        %v318 = vld [vmem:[%s304 + $0x30] sm:$0xf]
        %v319 = vld [vmem:[%s304 + $0x34] sm:$0xf]
        %v320 = vld [vmem:[%s304 + $0x38] sm:$0x1]
        %v321 = vld [vmem:[%s304 + $0x3c] sm:$0xf]
        %v322 = vld [vmem:[%s304 + $0x40] sm:$0xf]
        %v323 = vld [vmem:[%s304 + $0x44] sm:$0x1]
        %v324 = vld [vmem:[%s304 + $0x48] sm:$0xf]
        %v325 = vld [vmem:[%s304 + $0x4c] sm:$0xf]
        %v326 = vld [vmem:[%s304 + $0x50] sm:$0x1]
        %v327 = vld [vmem:[%s304 + $0x54] sm:$0xf]
        %v328 = vld [vmem:[%s304 + $0x58] sm:$0xf]
        %v329 = vld [vmem:[%s304 + $0x5c] sm:$0x1]
        %v330 = vld [vmem:[%s304 + $0x60] sm:$0xf]
        %v331 = vld [vmem:[%s304 + $0x64] sm:$0xf]
        %v332 = vld [vmem:[%s304 + $0x68] sm:$0x1]
        %v333 = vld [vmem:[%s304 + $0x6c] sm:$0xf]
        %v334 = vld [vmem:[%s304 + $0x70] sm:$0xf]
        %v335 = vld [vmem:[%s304 + $0x74] sm:$0x1]
        %v336 = vld [vmem:[%s304 + $0x78] sm:$0xf]
        %v337 = vld [vmem:[%s304 + $0x7c] sm:$0xf]
        %v338 = vld [vmem:[%s304 + $0x80] sm:$0x1]
        %v339 = vld [vmem:[%s304 + $0x84] sm:$0xf]
        %v340 = vld [vmem:[%s304 + $0x88] sm:$0xf]
        %v341 = vld [vmem:[%s304 + $0x8c] sm:$0x1]
        %v342 = vld [vmem:[%s304 + $0x90] sm:$0xf]
        %v343 = vld [vmem:[%s304 + $0x94] sm:$0xf]
        %v344 = vld [vmem:[%s304 + $0x98] sm:$0x1]
        %v345 = vld [vmem:[%s304 + $0x9c] sm:$0xf]
        %v346 = vld [vmem:[%s304 + $0xa0] sm:$0xf]
        %v347 = vld [vmem:[%s304 + $0xa4] sm:$0x1]
        %v348 = vld [vmem:[%s304 + $0xa8] sm:$0xf]
        %v349 = vld [vmem:[%s304 + $0xac] sm:$0xf]
        %v350 = vld [vmem:[%s304 + $0xb0] sm:$0x1]
        %v351 = vld [vmem:[%s304 + $0xb4] sm:$0xf]
        %v352 = vld [vmem:[%s304 + $0xb8] sm:$0xf]
        %v353 = vld [vmem:[%s304 + $0xbc] sm:$0x1]
        %v354 = vld [vmem:[%s304 + $0xc0] sm:$0xf]
        %v355 = vld [vmem:[%s304 + $0xc4] sm:$0xf]
        %v356 = vld [vmem:[%s304 + $0xc8] sm:$0x1]
        %v357 = vld [vmem:[%s304 + $0xcc] sm:$0xf]
        %v358 = vld [vmem:[%s304 + $0xd0] sm:$0xf]
        %v359 = vld [vmem:[%s304 + $0xd4] sm:$0x1]
        %v360 = vunpack.c.l.bf16 %v306
        %v361 = vunpack.c.l.bf16 %v307
        %v362 = vunpack.c.l.bf16 %v308
        %v363 = vunpack.c.l.bf16 %v309
        %v364 = vunpack.c.l.bf16 %v310
        %v365 = vunpack.c.l.bf16 %v311
        %v366 = vunpack.c.l.bf16 %v312
        %v367 = vunpack.c.l.bf16 %v313
        %v368 = vunpack.c.l.bf16 %v314
        %v369 = vunpack.c.l.bf16 %v315
        %v370 = vunpack.c.l.bf16 %v316
        %v371 = vunpack.c.l.bf16 %v317
        %v372 = vunpack.c.l.bf16 %v318
        %v373 = vunpack.c.l.bf16 %v319
        %v374 = vunpack.c.l.bf16 %v320
        %v375 = vunpack.c.l.bf16 %v321
        %v376 = vunpack.c.l.bf16 %v322
        %v377 = vunpack.c.l.bf16 %v323
        %v378 = vunpack.c.l.bf16 %v324
        %v379 = vunpack.c.l.bf16 %v325
        %v380 = vunpack.c.l.bf16 %v326
        %v381 = vunpack.c.l.bf16 %v327
        %v382 = vunpack.c.l.bf16 %v328
        %v383 = vunpack.c.l.bf16 %v329
        %v384 = vunpack.c.l.bf16 %v330
        %v385 = vunpack.c.l.bf16 %v331
        %v386 = vunpack.c.l.bf16 %v332
        %v387 = vunpack.c.l.bf16 %v333
        %v388 = vunpack.c.l.bf16 %v334
        %v389 = vunpack.c.l.bf16 %v335
        %v390 = vunpack.c.l.bf16 %v336
        %v391 = vunpack.c.l.bf16 %v337
        %v392 = vunpack.c.l.bf16 %v338
        %v393 = vunpack.c.l.bf16 %v339
        %v394 = vunpack.c.l.bf16 %v340
        %v395 = vunpack.c.l.bf16 %v341
        %v396 = vunpack.c.l.bf16 %v342
        %v397 = vunpack.c.l.bf16 %v343
        %v398 = vunpack.c.l.bf16 %v344
        %v399 = vunpack.c.l.bf16 %v345
        %v400 = vunpack.c.l.bf16 %v346
        %v401 = vunpack.c.l.bf16 %v347
        %v402 = vunpack.c.l.bf16 %v348
        %v403 = vunpack.c.l.bf16 %v349
        %v404 = vunpack.c.l.bf16 %v350
        %v405 = vunpack.c.l.bf16 %v351
        %v406 = vunpack.c.l.bf16 %v352
        %v407 = vunpack.c.l.bf16 %v353
        %v408 = vunpack.c.l.bf16 %v354
        %v409 = vunpack.c.l.bf16 %v355
        %v410 = vunpack.c.l.bf16 %v356
        %v411 = vunpack.c.l.bf16 %v357
        %v412 = vunpack.c.l.bf16 %v358
        %v413 = vunpack.c.l.bf16 %v359
        %v414 = vld [vmem:[%s1] sm:$0x1]
        %v416 = vperm.slane %v414, 0
        %v418 = vmul.f32 %v360, %v416
        %v419 = vmul.f32 %v361, %v416
        %v420 = vmul.f32 %v362, %v416
        %v421 = vmul.f32 %v363, %v416
        %v422 = vmul.f32 %v364, %v416
        %v423 = vmul.f32 %v365, %v416
        %v424 = vmul.f32 %v366, %v416
        %v425 = vmul.f32 %v367, %v416
        %v426 = vmul.f32 %v368, %v416
        %v427 = vmul.f32 %v369, %v416
        %v428 = vmul.f32 %v370, %v416
        %v429 = vmul.f32 %v371, %v416
        %v430 = vmul.f32 %v372, %v416
        %v431 = vmul.f32 %v373, %v416
        %v432 = vmul.f32 %v374, %v416
        %v433 = vmul.f32 %v375, %v416
        %v434 = vmul.f32 %v376, %v416
        %v435 = vmul.f32 %v377, %v416
        %v436 = vmul.f32 %v378, %v416
        %v437 = vmul.f32 %v379, %v416
        %v438 = vmul.f32 %v380, %v416
        %v439 = vmul.f32 %v381, %v416
        %v440 = vmul.f32 %v382, %v416
        %v441 = vmul.f32 %v383, %v416
        %v442 = vmul.f32 %v384, %v416
        %v443 = vmul.f32 %v385, %v416
        %v444 = vmul.f32 %v386, %v416
        %v445 = vmul.f32 %v387, %v416
        %v446 = vmul.f32 %v388, %v416
        %v447 = vmul.f32 %v389, %v416
        %v448 = vmul.f32 %v390, %v416
        %v449 = vmul.f32 %v391, %v416
        %v450 = vmul.f32 %v392, %v416
        %v451 = vmul.f32 %v393, %v416
        %v452 = vmul.f32 %v394, %v416
        %v453 = vmul.f32 %v395, %v416
        %v454 = vmul.f32 %v396, %v416
        %v455 = vmul.f32 %v397, %v416
        %v456 = vmul.f32 %v398, %v416
        %v457 = vmul.f32 %v399, %v416
        %v458 = vmul.f32 %v400, %v416
        %v459 = vmul.f32 %v401, %v416
        %v460 = vmul.f32 %v402, %v416
        %v461 = vmul.f32 %v403, %v416
        %v462 = vmul.f32 %v404, %v416
        %v463 = vmul.f32 %v405, %v416
        %v464 = vmul.f32 %v406, %v416
        %v465 = vmul.f32 %v407, %v416
        %v466 = vmul.f32 %v408, %v416
        %v467 = vmul.f32 %v409, %v416
        %v468 = vmul.f32 %v410, %v416
        %v469 = vmul.f32 %v411, %v416
        %v470 = vmul.f32 %v412, %v416
        %v471 = vmul.f32 %v413, %v416
        %v472 = vld [vmem:[%s2] sm:$0x1]
        %v474 = vperm.slane %v472, 0
        %v476 = vadd.f32 %v418, %v474
        %v477 = vadd.f32 %v419, %v474
        %v478 = vadd.f32 %v420, %v474
        %v479 = vadd.f32 %v421, %v474
        %v480 = vadd.f32 %v422, %v474
        %v481 = vadd.f32 %v423, %v474
        %v482 = vadd.f32 %v424, %v474
        %v483 = vadd.f32 %v425, %v474
        %v484 = vadd.f32 %v426, %v474
        %v485 = vadd.f32 %v427, %v474
        %v486 = vadd.f32 %v428, %v474
        %v487 = vadd.f32 %v429, %v474
        %v488 = vadd.f32 %v430, %v474
        %v489 = vadd.f32 %v431, %v474
        %v490 = vadd.f32 %v432, %v474
        %v491 = vadd.f32 %v433, %v474
        %v492 = vadd.f32 %v434, %v474
        %v493 = vadd.f32 %v435, %v474
        %v494 = vadd.f32 %v436, %v474
        %v495 = vadd.f32 %v437, %v474
        %v496 = vadd.f32 %v438, %v474
        %v497 = vadd.f32 %v439, %v474
        %v498 = vadd.f32 %v440, %v474
        %v499 = vadd.f32 %v441, %v474
        %v500 = vadd.f32 %v442, %v474
        %v501 = vadd.f32 %v443, %v474
        %v502 = vadd.f32 %v444, %v474
        %v503 = vadd.f32 %v445, %v474
        %v504 = vadd.f32 %v446, %v474
        %v505 = vadd.f32 %v447, %v474
        %v506 = vadd.f32 %v448, %v474
        %v507 = vadd.f32 %v449, %v474
        %v508 = vadd.f32 %v450, %v474
        %v509 = vadd.f32 %v451, %v474
        %v510 = vadd.f32 %v452, %v474
        %v511 = vadd.f32 %v453, %v474
        %v512 = vadd.f32 %v454, %v474
        %v513 = vadd.f32 %v455, %v474
        %v514 = vadd.f32 %v456, %v474
        %v515 = vadd.f32 %v457, %v474
        %v516 = vadd.f32 %v458, %v474
        %v517 = vadd.f32 %v459, %v474
        %v518 = vadd.f32 %v460, %v474
        %v519 = vadd.f32 %v461, %v474
        %v520 = vadd.f32 %v462, %v474
        %v521 = vadd.f32 %v463, %v474
        %v522 = vadd.f32 %v464, %v474
        %v523 = vadd.f32 %v465, %v474
        %v524 = vadd.f32 %v466, %v474
        %v525 = vadd.f32 %v467, %v474
        %v526 = vadd.f32 %v468, %v474
        %v527 = vadd.f32 %v469, %v474
        %v528 = vadd.f32 %v470, %v474
        %v529 = vadd.f32 %v471, %v474
        %v530 = vmax.f32 %v476, 0.0
        %v531 = vmax.f32 %v477, 0.0
        %v532 = vmax.f32 %v478, 0.0
        %v533 = vmax.f32 %v479, 0.0
        %v534 = vmax.f32 %v480, 0.0
        %v535 = vmax.f32 %v481, 0.0
        %v536 = vmax.f32 %v482, 0.0
        %v537 = vmax.f32 %v483, 0.0
        %v538 = vmax.f32 %v484, 0.0
        %v539 = vmax.f32 %v485, 0.0
        %v540 = vmax.f32 %v486, 0.0
        %v541 = vmax.f32 %v487, 0.0
        %v542 = vmax.f32 %v488, 0.0
        %v543 = vmax.f32 %v489, 0.0
        %v544 = vmax.f32 %v490, 0.0
        %v545 = vmax.f32 %v491, 0.0
        %v546 = vmax.f32 %v492, 0.0
        %v547 = vmax.f32 %v493, 0.0
        %v548 = vmax.f32 %v494, 0.0
        %v549 = vmax.f32 %v495, 0.0
        %v550 = vmax.f32 %v496, 0.0
        %v551 = vmax.f32 %v497, 0.0
        %v552 = vmax.f32 %v498, 0.0
        %v553 = vmax.f32 %v499, 0.0
        %v554 = vmax.f32 %v500, 0.0
        %v555 = vmax.f32 %v501, 0.0
        %v556 = vmax.f32 %v502, 0.0
        %v557 = vmax.f32 %v503, 0.0
        %v558 = vmax.f32 %v504, 0.0
        %v559 = vmax.f32 %v505, 0.0
        %v560 = vmax.f32 %v506, 0.0
        %v561 = vmax.f32 %v507, 0.0
        %v562 = vmax.f32 %v508, 0.0
        %v563 = vmax.f32 %v509, 0.0
        %v564 = vmax.f32 %v510, 0.0
        %v565 = vmax.f32 %v511, 0.0
        %v566 = vmax.f32 %v512, 0.0
        %v567 = vmax.f32 %v513, 0.0
        %v568 = vmax.f32 %v514, 0.0
        %v569 = vmax.f32 %v515, 0.0
        %v570 = vmax.f32 %v516, 0.0
        %v571 = vmax.f32 %v517, 0.0
        %v572 = vmax.f32 %v518, 0.0
        %v573 = vmax.f32 %v519, 0.0
        %v574 = vmax.f32 %v520, 0.0
        %v575 = vmax.f32 %v521, 0.0
        %v576 = vmax.f32 %v522, 0.0
        %v577 = vmax.f32 %v523, 0.0
        %v578 = vmax.f32 %v524, 0.0
        %v579 = vmax.f32 %v525, 0.0
        %v580 = vmax.f32 %v526, 0.0
        %v581 = vmax.f32 %v527, 0.0
        %v582 = vmax.f32 %v528, 0.0
        %v583 = vmax.f32 %v529, 0.0
        %v584 = vld [vmem:[%s3] sm:$0xff]
        %v585 = vld [vmem:[%s3 + $0x8] sm:$0xff]
        %v586 = vld [vmem:[%s3 + $0x10] sm:$0x3]
        %v587 = vld [vmem:[%s3 + $0x18] sm:$0xff]
        %v588 = vld [vmem:[%s3 + $0x20] sm:$0xff]
        %v589 = vld [vmem:[%s3 + $0x28] sm:$0x3]
        %v590 = vld [vmem:[%s3 + $0x30] sm:$0xff]
        %v591 = vld [vmem:[%s3 + $0x38] sm:$0xff]
        %v592 = vld [vmem:[%s3 + $0x40] sm:$0x3]
        %v593 = vld [vmem:[%s3 + $0x48] sm:$0xff]
        %v594 = vld [vmem:[%s3 + $0x50] sm:$0xff]
        %v595 = vld [vmem:[%s3 + $0x58] sm:$0x3]
        %v596 = vld [vmem:[%s3 + $0x60] sm:$0xff]
        %v597 = vld [vmem:[%s3 + $0x68] sm:$0xff]
        %v598 = vld [vmem:[%s3 + $0x70] sm:$0x3]
        %v599 = vld [vmem:[%s3 + $0x78] sm:$0xff]
        %v600 = vld [vmem:[%s3 + $0x80] sm:$0xff]
        %v601 = vld [vmem:[%s3 + $0x88] sm:$0x3]
        %v602 = vld [vmem:[%s3 + $0x90] sm:$0xff]
        %v603 = vld [vmem:[%s3 + $0x98] sm:$0xff]
        %v604 = vld [vmem:[%s3 + $0xa0] sm:$0x3]
        %v605 = vld [vmem:[%s3 + $0xa8] sm:$0xff]
        %v606 = vld [vmem:[%s3 + $0xb0] sm:$0xff]
        %v607 = vld [vmem:[%s3 + $0xb8] sm:$0x3]
        %v608 = vld [vmem:[%s3 + $0xc0] sm:$0xff]
        %v609 = vld [vmem:[%s3 + $0xc8] sm:$0xff]
        %v610 = vld [vmem:[%s3 + $0xd0] sm:$0x3]
        %v611 = vld [vmem:[%s3 + $0xd8] sm:$0xff]
        %v612 = vld [vmem:[%s3 + $0xe0] sm:$0xff]
        %v613 = vld [vmem:[%s3 + $0xe8] sm:$0x3]
        %v614 = vld [vmem:[%s3 + $0xf0] sm:$0xff]
        %v615 = vld [vmem:[%s3 + $0xf8] sm:$0xff]
        %v616 = vld [vmem:[%s3 + $0x100] sm:$0x3]
        %v617 = vld [vmem:[%s3 + $0x108] sm:$0xff]
        %v618 = vld [vmem:[%s3 + $0x110] sm:$0xff]
        %v619 = vld [vmem:[%s3 + $0x118] sm:$0x3]
        %v620 = vld [vmem:[%s3 + $0x120] sm:$0xff]
        %v621 = vld [vmem:[%s3 + $0x128] sm:$0xff]
        %v622 = vld [vmem:[%s3 + $0x130] sm:$0x3]
        %v623 = vld [vmem:[%s3 + $0x138] sm:$0xff]
        %v624 = vld [vmem:[%s3 + $0x140] sm:$0xff]
        %v625 = vld [vmem:[%s3 + $0x148] sm:$0x3]
        %v626 = vld [vmem:[%s3 + $0x150] sm:$0xff]
        %v627 = vld [vmem:[%s3 + $0x158] sm:$0xff]
        %v628 = vld [vmem:[%s3 + $0x160] sm:$0x3]
        %v629 = vld [vmem:[%s3 + $0x168] sm:$0xff]
        %v630 = vld [vmem:[%s3 + $0x170] sm:$0xff]
        %v631 = vld [vmem:[%s3 + $0x178] sm:$0x3]
        %v632 = vld [vmem:[%s3 + $0x180] sm:$0xff]
        %v633 = vld [vmem:[%s3 + $0x188] sm:$0xff]
        %v634 = vld [vmem:[%s3 + $0x190] sm:$0x3]
        %v635 = vld [vmem:[%s3 + $0x198] sm:$0xff]
        %v636 = vld [vmem:[%s3 + $0x1a0] sm:$0xff]
        %v637 = vld [vmem:[%s3 + $0x1a8] sm:$0x3]
        %639 = vset.pattern.permute.xlu0 0
        %640 = vperm.xlu0 %639, %v584
        %v641 = vpop.permute.xlu0 %640
        %644 = vset.pattern.permute.xlu0 0
        %645 = vperm.xlu0 %644, %v585
        %v646 = vpop.permute.xlu0 %645
        %649 = vset.pattern.permute.xlu0 0
        %650 = vperm.xlu0 %649, %v586
        %v651 = vpop.permute.xlu0 %650
        %654 = vset.pattern.permute.xlu0 0
        %655 = vperm.xlu0 %654, %v587
        %v656 = vpop.permute.xlu0 %655
        %659 = vset.pattern.permute.xlu0 0
        %660 = vperm.xlu0 %659, %v588
        %v661 = vpop.permute.xlu0 %660
        %664 = vset.pattern.permute.xlu0 0
        %665 = vperm.xlu0 %664, %v589
        %v666 = vpop.permute.xlu0 %665
        %669 = vset.pattern.permute.xlu0 0
        %670 = vperm.xlu0 %669, %v590
        %v671 = vpop.permute.xlu0 %670
        %674 = vset.pattern.permute.xlu0 0
        %675 = vperm.xlu0 %674, %v591
        %v676 = vpop.permute.xlu0 %675
        %679 = vset.pattern.permute.xlu0 0
        %680 = vperm.xlu0 %679, %v592
        %v681 = vpop.permute.xlu0 %680
        %684 = vset.pattern.permute.xlu0 0
        %685 = vperm.xlu0 %684, %v593
        %v686 = vpop.permute.xlu0 %685
        %689 = vset.pattern.permute.xlu0 0
        %690 = vperm.xlu0 %689, %v594
        %v691 = vpop.permute.xlu0 %690
        %694 = vset.pattern.permute.xlu0 0
        %695 = vperm.xlu0 %694, %v595
        %v696 = vpop.permute.xlu0 %695
        %699 = vset.pattern.permute.xlu0 0
        %700 = vperm.xlu0 %699, %v596
        %v701 = vpop.permute.xlu0 %700
        %704 = vset.pattern.permute.xlu0 0
        %705 = vperm.xlu0 %704, %v597
        %v706 = vpop.permute.xlu0 %705
        %709 = vset.pattern.permute.xlu0 0
        %710 = vperm.xlu0 %709, %v598
        %v711 = vpop.permute.xlu0 %710
        %714 = vset.pattern.permute.xlu0 0
        %715 = vperm.xlu0 %714, %v599
        %v716 = vpop.permute.xlu0 %715
        %719 = vset.pattern.permute.xlu0 0
        %720 = vperm.xlu0 %719, %v600
        %v721 = vpop.permute.xlu0 %720
        %724 = vset.pattern.permute.xlu0 0
        %725 = vperm.xlu0 %724, %v601
        %v726 = vpop.permute.xlu0 %725
        %729 = vset.pattern.permute.xlu0 0
        %730 = vperm.xlu0 %729, %v602
        %v731 = vpop.permute.xlu0 %730
        %734 = vset.pattern.permute.xlu0 0
        %735 = vperm.xlu0 %734, %v603
        %v736 = vpop.permute.xlu0 %735
        %739 = vset.pattern.permute.xlu0 0
        %740 = vperm.xlu0 %739, %v604
        %v741 = vpop.permute.xlu0 %740
        %744 = vset.pattern.permute.xlu0 0
        %745 = vperm.xlu0 %744, %v605
        %v746 = vpop.permute.xlu0 %745
        %749 = vset.pattern.permute.xlu0 0
        %750 = vperm.xlu0 %749, %v606
        %v751 = vpop.permute.xlu0 %750
        %754 = vset.pattern.permute.xlu0 0
        %755 = vperm.xlu0 %754, %v607
        %v756 = vpop.permute.xlu0 %755
        %759 = vset.pattern.permute.xlu0 0
        %760 = vperm.xlu0 %759, %v608
        %v761 = vpop.permute.xlu0 %760
        %764 = vset.pattern.permute.xlu0 0
        %765 = vperm.xlu0 %764, %v609
        %v766 = vpop.permute.xlu0 %765
        %769 = vset.pattern.permute.xlu0 0
        %770 = vperm.xlu0 %769, %v610
        %v771 = vpop.permute.xlu0 %770
        %774 = vset.pattern.permute.xlu0 0
        %775 = vperm.xlu0 %774, %v611
        %v776 = vpop.permute.xlu0 %775
        %779 = vset.pattern.permute.xlu0 0
        %780 = vperm.xlu0 %779, %v612
        %v781 = vpop.permute.xlu0 %780
        %784 = vset.pattern.permute.xlu0 0
        %785 = vperm.xlu0 %784, %v613
        %v786 = vpop.permute.xlu0 %785
        %789 = vset.pattern.permute.xlu0 0
        %790 = vperm.xlu0 %789, %v614
        %v791 = vpop.permute.xlu0 %790
        %794 = vset.pattern.permute.xlu0 0
        %795 = vperm.xlu0 %794, %v615
        %v796 = vpop.permute.xlu0 %795
        %799 = vset.pattern.permute.xlu0 0
        %800 = vperm.xlu0 %799, %v616
        %v801 = vpop.permute.xlu0 %800
        %804 = vset.pattern.permute.xlu0 0
        %805 = vperm.xlu0 %804, %v617
        %v806 = vpop.permute.xlu0 %805
        %809 = vset.pattern.permute.xlu0 0
        %810 = vperm.xlu0 %809, %v618
        %v811 = vpop.permute.xlu0 %810
        %814 = vset.pattern.permute.xlu0 0
        %815 = vperm.xlu0 %814, %v619
        %v816 = vpop.permute.xlu0 %815
        %819 = vset.pattern.permute.xlu0 0
        %820 = vperm.xlu0 %819, %v620
        %v821 = vpop.permute.xlu0 %820
        %824 = vset.pattern.permute.xlu0 0
        %825 = vperm.xlu0 %824, %v621
        %v826 = vpop.permute.xlu0 %825
        %829 = vset.pattern.permute.xlu0 0
        %830 = vperm.xlu0 %829, %v622
        %v831 = vpop.permute.xlu0 %830
        %834 = vset.pattern.permute.xlu0 0
        %835 = vperm.xlu0 %834, %v623
        %v836 = vpop.permute.xlu0 %835
        %839 = vset.pattern.permute.xlu0 0
        %840 = vperm.xlu0 %839, %v624
        %v841 = vpop.permute.xlu0 %840
        %844 = vset.pattern.permute.xlu0 0
        %845 = vperm.xlu0 %844, %v625
        %v846 = vpop.permute.xlu0 %845
        %849 = vset.pattern.permute.xlu0 0
        %850 = vperm.xlu0 %849, %v626
        %v851 = vpop.permute.xlu0 %850
        %854 = vset.pattern.permute.xlu0 0
        %855 = vperm.xlu0 %854, %v627
        %v856 = vpop.permute.xlu0 %855
        %859 = vset.pattern.permute.xlu0 0
        %860 = vperm.xlu0 %859, %v628
        %v861 = vpop.permute.xlu0 %860
        %864 = vset.pattern.permute.xlu0 0
        %865 = vperm.xlu0 %864, %v629
        %v866 = vpop.permute.xlu0 %865
        %869 = vset.pattern.permute.xlu0 0
        %870 = vperm.xlu0 %869, %v630
        %v871 = vpop.permute.xlu0 %870
        %874 = vset.pattern.permute.xlu0 0
        %875 = vperm.xlu0 %874, %v631
        %v876 = vpop.permute.xlu0 %875
        %879 = vset.pattern.permute.xlu0 0
        %880 = vperm.xlu0 %879, %v632
        %v881 = vpop.permute.xlu0 %880
        %884 = vset.pattern.permute.xlu0 0
        %885 = vperm.xlu0 %884, %v633
        %v886 = vpop.permute.xlu0 %885
        %889 = vset.pattern.permute.xlu0 0
        %890 = vperm.xlu0 %889, %v634
        %v891 = vpop.permute.xlu0 %890
        %894 = vset.pattern.permute.xlu0 0
        %895 = vperm.xlu0 %894, %v635
        %v896 = vpop.permute.xlu0 %895
        %899 = vset.pattern.permute.xlu0 0
        %900 = vperm.xlu0 %899, %v636
        %v901 = vpop.permute.xlu0 %900
        %904 = vset.pattern.permute.xlu0 0
        %905 = vperm.xlu0 %904, %v637
        %v906 = vpop.permute.xlu0 %905
        %v908 = vmul.f32 %v530, %v641
        %v909 = vmul.f32 %v531, %v646
        %v910 = vmul.f32 %v532, %v651
        %v911 = vmul.f32 %v533, %v656
        %v912 = vmul.f32 %v534, %v661
        %v913 = vmul.f32 %v535, %v666
        %v914 = vmul.f32 %v536, %v671
        %v915 = vmul.f32 %v537, %v676
        %v916 = vmul.f32 %v538, %v681
        %v917 = vmul.f32 %v539, %v686
        %v918 = vmul.f32 %v540, %v691
        %v919 = vmul.f32 %v541, %v696
        %v920 = vmul.f32 %v542, %v701
        %v921 = vmul.f32 %v543, %v706
        %v922 = vmul.f32 %v544, %v711
        %v923 = vmul.f32 %v545, %v716
        %v924 = vmul.f32 %v546, %v721
        %v925 = vmul.f32 %v547, %v726
        %v926 = vmul.f32 %v548, %v731
        %v927 = vmul.f32 %v549, %v736
        %v928 = vmul.f32 %v550, %v741
        %v929 = vmul.f32 %v551, %v746
        %v930 = vmul.f32 %v552, %v751
        %v931 = vmul.f32 %v553, %v756
        %v932 = vmul.f32 %v554, %v761
        %v933 = vmul.f32 %v555, %v766
        %v934 = vmul.f32 %v556, %v771
        %v935 = vmul.f32 %v557, %v776
        %v936 = vmul.f32 %v558, %v781
        %v937 = vmul.f32 %v559, %v786
        %v938 = vmul.f32 %v560, %v791
        %v939 = vmul.f32 %v561, %v796
        %v940 = vmul.f32 %v562, %v801
        %v941 = vmul.f32 %v563, %v806
        %v942 = vmul.f32 %v564, %v811
        %v943 = vmul.f32 %v565, %v816
        %v944 = vmul.f32 %v566, %v821
        %v945 = vmul.f32 %v567, %v826
        %v946 = vmul.f32 %v568, %v831
        %v947 = vmul.f32 %v569, %v836
        %v948 = vmul.f32 %v570, %v841
        %v949 = vmul.f32 %v571, %v846
        %v950 = vmul.f32 %v572, %v851
        %v951 = vmul.f32 %v573, %v856
        %v952 = vmul.f32 %v574, %v861
        %v953 = vmul.f32 %v575, %v866
        %v954 = vmul.f32 %v576, %v871
        %v955 = vmul.f32 %v577, %v876
        %v956 = vmul.f32 %v578, %v881
        %v957 = vmul.f32 %v579, %v886
        %v958 = vmul.f32 %v580, %v891
        %v959 = vmul.f32 %v581, %v896
        %v960 = vmul.f32 %v582, %v901
        %v961 = vmul.f32 %v583, %v906
        %v962 = vpack.c.bf16 %v909, %v908
        %v963 = vpack.c.bf16 %v912, %v911
        %v964 = vpack.c.bf16 %v915, %v914
        %v965 = vpack.c.bf16 %v918, %v917
        %v966 = vpack.c.bf16 %v921, %v920
        %v967 = vpack.c.bf16 %v924, %v923
        %v968 = vpack.c.bf16 %v927, %v926
        %v969 = vpack.c.bf16 %v930, %v929
        %v970 = vpack.c.bf16 %v933, %v932
        %v971 = vpack.c.bf16 %v936, %v935
        %v972 = vpack.c.bf16 %v939, %v938
        %v973 = vpack.c.bf16 %v942, %v941
        %v974 = vpack.c.bf16 %v945, %v944
        %v975 = vpack.c.bf16 %v948, %v947
        %v976 = vpack.c.bf16 %v951, %v950
        %v977 = vpack.c.bf16 %v954, %v953
        %v978 = vld [vmem:[#allocation2] sm:$0xf]
        %v979 = vld [vmem:[#allocation2 + $0x4] sm:$0xf]
        %vm1028 = vcmask 1046528
        %v1029 = vrot.slane %v908, 1
        %v1030 = vrot.slane %v909, 1
        %v1031 = vsel %vm1028, %v1029, %v1030
        %v1032 = vrot.slane %v910, 1
        %v1033 = vsel %vm1028, %v1030, %v1032
        %v1034 = vrot.slane %v911, 1
        %v1035 = vrot.slane %v912, 1
        %v1036 = vsel %vm1028, %v1034, %v1035
        %v1037 = vrot.slane %v913, 1
        %v1038 = vsel %vm1028, %v1035, %v1037
        %v1039 = vrot.slane %v914, 1
        %v1040 = vrot.slane %v915, 1
        %v1041 = vsel %vm1028, %v1039, %v1040
        %v1042 = vrot.slane %v916, 1
        %v1043 = vsel %vm1028, %v1040, %v1042
        %v1044 = vrot.slane %v917, 1
        %v1045 = vrot.slane %v918, 1
        %v1046 = vsel %vm1028, %v1044, %v1045
        %v1047 = vrot.slane %v919, 1
        %v1048 = vsel %vm1028, %v1045, %v1047
        %v1049 = vrot.slane %v920, 1
        %v1050 = vrot.slane %v921, 1
        %v1051 = vsel %vm1028, %v1049, %v1050
        %v1052 = vrot.slane %v922, 1
        %v1053 = vsel %vm1028, %v1050, %v1052
        %v1054 = vrot.slane %v923, 1
        %v1055 = vrot.slane %v924, 1
        %v1056 = vsel %vm1028, %v1054, %v1055
        %v1057 = vrot.slane %v925, 1
        %v1058 = vsel %vm1028, %v1055, %v1057
        %v1059 = vrot.slane %v926, 1
        %v1060 = vrot.slane %v927, 1
        %v1061 = vsel %vm1028, %v1059, %v1060
        %v1062 = vrot.slane %v928, 1
        %v1063 = vsel %vm1028, %v1060, %v1062
        %v1064 = vrot.slane %v929, 1
        %v1065 = vrot.slane %v930, 1
        %v1066 = vsel %vm1028, %v1064, %v1065
        %v1067 = vrot.slane %v931, 1
        %v1068 = vsel %vm1028, %v1065, %v1067
        %v1069 = vrot.slane %v932, 1
        %v1070 = vrot.slane %v933, 1
        %v1071 = vsel %vm1028, %v1069, %v1070
        %v1072 = vrot.slane %v934, 1
        %v1073 = vsel %vm1028, %v1070, %v1072
        %v1074 = vrot.slane %v935, 1
        %v1075 = vrot.slane %v936, 1
        %v1076 = vsel %vm1028, %v1074, %v1075
        %v1077 = vrot.slane %v937, 1
        %v1078 = vsel %vm1028, %v1075, %v1077
        %v1079 = vrot.slane %v938, 1
        %v1080 = vrot.slane %v939, 1
        %v1081 = vsel %vm1028, %v1079, %v1080
        %v1082 = vrot.slane %v940, 1
        %v1083 = vsel %vm1028, %v1080, %v1082
        %v1084 = vrot.slane %v941, 1
        %v1085 = vrot.slane %v942, 1
        %v1086 = vsel %vm1028, %v1084, %v1085
        %v1087 = vrot.slane %v943, 1
        %v1088 = vsel %vm1028, %v1085, %v1087
        %v1089 = vrot.slane %v944, 1
        %v1090 = vrot.slane %v945, 1
        %v1091 = vsel %vm1028, %v1089, %v1090
        %v1092 = vrot.slane %v946, 1
        %v1093 = vsel %vm1028, %v1090, %v1092
        %v1094 = vrot.slane %v947, 1
        %v1095 = vrot.slane %v948, 1
        %v1096 = vsel %vm1028, %v1094, %v1095
        %v1097 = vrot.slane %v949, 1
        %v1098 = vsel %vm1028, %v1095, %v1097
        %v1099 = vrot.slane %v950, 1
        %v1100 = vrot.slane %v951, 1
        %v1101 = vsel %vm1028, %v1099, %v1100
        %v1102 = vrot.slane %v952, 1
        %v1103 = vsel %vm1028, %v1100, %v1102
        %v1104 = vrot.slane %v953, 1
        %v1105 = vrot.slane %v954, 1
        %v1106 = vsel %vm1028, %v1104, %v1105
        %v1107 = vrot.slane %v955, 1
        %v1108 = vsel %vm1028, %v1105, %v1107
        %v1141 = vpack.c.bf16 %v1033, %v1031
        %v1142 = vpack.c.bf16 %v1038, %v1036
        %v1143 = vpack.c.bf16 %v1043, %v1041
        %v1144 = vpack.c.bf16 %v1048, %v1046
        %v1145 = vpack.c.bf16 %v1053, %v1051
        %v1146 = vpack.c.bf16 %v1058, %v1056
        %v1147 = vpack.c.bf16 %v1063, %v1061
        %v1148 = vpack.c.bf16 %v1068, %v1066
        %v1149 = vpack.c.bf16 %v1073, %v1071
        %v1150 = vpack.c.bf16 %v1078, %v1076
        %v1151 = vpack.c.bf16 %v1083, %v1081
        %v1152 = vpack.c.bf16 %v1088, %v1086
        %v1153 = vpack.c.bf16 %v1093, %v1091
        %v1154 = vpack.c.bf16 %v1098, %v1096
        %v1155 = vpack.c.bf16 %v1103, %v1101
        %v1156 = vpack.c.bf16 %v1108, %v1106
        %s1157 = scalar_lea.vmem [#allocation2], 8
        %v1158 = vld [vmem:[%s1157] sm:$0xf]
        %v1159 = vld [vmem:[%s1157 + $0x4] sm:$0xf]
        %v1162 = vunpack.c.l.b16 %v1158
        %v1163 = vunpack.c.l.b16 %v1159
        %v1164 = vpack.c.b16 %v1163, %v1162
        %vm1166 = vcmask 130048
        %v1168 = vsel %vm1166, %v1141, 0
        %v1171 = vsel %vm1166, %v1142, 0
        %v1174 = vsel %vm1166, %v1143, 0
        %v1177 = vsel %vm1166, %v1144, 0
        %v1180 = vsel %vm1166, %v1145, 0
        %v1183 = vsel %vm1166, %v1146, 0
        %v1186 = vsel %vm1166, %v1147, 0
        %v1189 = vsel %vm1166, %v1148, 0
        %v1192 = vsel %vm1166, %v1149, 0
        %v1195 = vsel %vm1166, %v1150, 0
        %v1198 = vsel %vm1166, %v1151, 0
        %v1201 = vsel %vm1166, %v1152, 0
        %v1204 = vsel %vm1166, %v1153, 0
        %v1207 = vsel %vm1166, %v1154, 0
        %v1210 = vsel %vm1166, %v1155, 0
        %v1213 = vsel %vm1166, %v1156, 0
        %1215 = vmatpush.bf16.msra.mxu0 0
        %1216 = vmatpush.bf16.msra.mxu0 0
        %1217 = vmatpush.bf16.msra.mxu0 0
        %1218 = vmatpush.bf16.msra.mxu0 0
        %1219 = vmatpush.bf16.msra.mxu0 0
        %1220 = vmatpush.bf16.msra.mxu0 0
        %1221 = vmatpush.bf16.msra.mxu0 0
        %1222 = vmatpush.bf16.msra.mxu0 %v1164
        %1223 = vmatmul.bf16.gmra.mxu0 %v1168
        %v1224 = vpop.f32.mrf.mxu0
        %v1225 = vadd.f32 0.0, %v1224
        %v1226 = vpop.f32.mrf.mxu0
        %v1227 = vadd.f32 0.0, %v1226
        %1228 = vmatmul.bf16.gmra.mxu0 %v1171
        %v1229 = vpop.f32.mrf.mxu0
        %v1230 = vadd.f32 0.0, %v1229
        %v1231 = vpop.f32.mrf.mxu0
        %v1232 = vadd.f32 0.0, %v1231
        %1233 = vmatmul.bf16.gmra.mxu0 %v1174
        %v1234 = vpop.f32.mrf.mxu0
        %v1235 = vadd.f32 0.0, %v1234
        %v1236 = vpop.f32.mrf.mxu0
        %v1237 = vadd.f32 0.0, %v1236
        %1238 = vmatmul.bf16.gmra.mxu0 %v1177
        %v1239 = vpop.f32.mrf.mxu0
        %v1240 = vadd.f32 0.0, %v1239
        %v1241 = vpop.f32.mrf.mxu0
        %v1242 = vadd.f32 0.0, %v1241
        %1243 = vmatmul.bf16.gmra.mxu0 %v1180
        %v1244 = vpop.f32.mrf.mxu0
        %v1245 = vadd.f32 0.0, %v1244
        %v1246 = vpop.f32.mrf.mxu0
        %v1247 = vadd.f32 0.0, %v1246
        %1248 = vmatmul.bf16.gmra.mxu0 %v1183
        %v1249 = vpop.f32.mrf.mxu0
        %v1250 = vadd.f32 0.0, %v1249
        %v1251 = vpop.f32.mrf.mxu0
        %v1252 = vadd.f32 0.0, %v1251
        %1253 = vmatmul.bf16.gmra.mxu0 %v1186
        %v1254 = vpop.f32.mrf.mxu0
        %v1255 = vadd.f32 0.0, %v1254
        %v1256 = vpop.f32.mrf.mxu0
        %v1257 = vadd.f32 0.0, %v1256
        %1258 = vmatmul.bf16.gmra.mxu0 %v1189
        %v1259 = vpop.f32.mrf.mxu0
        %v1260 = vadd.f32 0.0, %v1259
        %v1261 = vpop.f32.mrf.mxu0
        %v1262 = vadd.f32 0.0, %v1261
        %1263 = vmatmul.bf16.gmra.mxu0 %v1192
        %v1264 = vpop.f32.mrf.mxu0
        %v1265 = vadd.f32 0.0, %v1264
        %v1266 = vpop.f32.mrf.mxu0
        %v1267 = vadd.f32 0.0, %v1266
        %1268 = vmatmul.bf16.gmra.mxu0 %v1195
        %v1269 = vpop.f32.mrf.mxu0
        %v1270 = vadd.f32 0.0, %v1269
        %v1271 = vpop.f32.mrf.mxu0
        %v1272 = vadd.f32 0.0, %v1271
        %1273 = vmatmul.bf16.gmra.mxu0 %v1198
        %v1274 = vpop.f32.mrf.mxu0
        %v1275 = vadd.f32 0.0, %v1274
        %v1276 = vpop.f32.mrf.mxu0
        %v1277 = vadd.f32 0.0, %v1276
        %1278 = vmatmul.bf16.gmra.mxu0 %v1201
        %v1279 = vpop.f32.mrf.mxu0
        %v1280 = vadd.f32 0.0, %v1279
        %v1281 = vpop.f32.mrf.mxu0
        %v1282 = vadd.f32 0.0, %v1281
        %1283 = vmatmul.bf16.gmra.mxu0 %v1204
        %v1284 = vpop.f32.mrf.mxu0
        %v1285 = vadd.f32 0.0, %v1284
        %v1286 = vpop.f32.mrf.mxu0
        %v1287 = vadd.f32 0.0, %v1286
        %1288 = vmatmul.bf16.gmra.mxu0 %v1207
        %v1289 = vpop.f32.mrf.mxu0
        %v1290 = vadd.f32 0.0, %v1289
        %v1291 = vpop.f32.mrf.mxu0
        %v1292 = vadd.f32 0.0, %v1291
        %1293 = vmatmul.bf16.gmra.mxu0 %v1210
        %v1294 = vpop.f32.mrf.mxu0
        %v1295 = vadd.f32 0.0, %v1294
        %v1296 = vpop.f32.mrf.mxu0
        %v1297 = vadd.f32 0.0, %v1296
        %1298 = vmatmul.bf16.gmra.mxu0 %v1213
        %v1299 = vpop.f32.mrf.mxu0
        %v1300 = vadd.f32 0.0, %v1299
        %v1301 = vpop.f32.mrf.mxu0
        %v1302 = vadd.f32 0.0, %v1301
        %1303 = vdwg.mxu0
        %v1306 = vunpack.c.l.b16 %v978
        %v1307 = vunpack.c.l.b16 %v979
        %v1308 = vpack.c.b16 %v1307, %v1306
        %v1311 = vsel %vm1166, %v962, 0
        %v1314 = vsel %vm1166, %v963, 0
        %v1317 = vsel %vm1166, %v964, 0
        %v1320 = vsel %vm1166, %v965, 0
        %v1323 = vsel %vm1166, %v966, 0
        %v1326 = vsel %vm1166, %v967, 0
        %v1329 = vsel %vm1166, %v968, 0
        %v1332 = vsel %vm1166, %v969, 0
        %v1335 = vsel %vm1166, %v970, 0
        %v1338 = vsel %vm1166, %v971, 0
        %v1341 = vsel %vm1166, %v972, 0
        %v1344 = vsel %vm1166, %v973, 0
        %v1347 = vsel %vm1166, %v974, 0
        %v1350 = vsel %vm1166, %v975, 0
        %v1353 = vsel %vm1166, %v976, 0
        %v1356 = vsel %vm1166, %v977, 0
        %1358 = vmatpush.bf16.msra.mxu0 0
        %1359 = vmatpush.bf16.msra.mxu0 0
        %1360 = vmatpush.bf16.msra.mxu0 0
        %1361 = vmatpush.bf16.msra.mxu0 0
        %1362 = vmatpush.bf16.msra.mxu0 0
        %1363 = vmatpush.bf16.msra.mxu0 0
        %1364 = vmatpush.bf16.msra.mxu0 0
        %1365 = vmatpush.bf16.msra.mxu0 %v1308
        %1366 = vmatmul.bf16.gmra.mxu0 %v1311
        %v1367 = vpop.f32.mrf.mxu0
        %v1368 = vadd.f32 %v1225, %v1367
        %v1369 = vpop.f32.mrf.mxu0
        %v1370 = vadd.f32 %v1227, %v1369
        %1371 = vmatmul.bf16.gmra.mxu0 %v1314
        %v1372 = vpop.f32.mrf.mxu0
        %v1373 = vadd.f32 %v1230, %v1372
        %v1374 = vpop.f32.mrf.mxu0
        %v1375 = vadd.f32 %v1232, %v1374
        %1376 = vmatmul.bf16.gmra.mxu0 %v1317
        %v1377 = vpop.f32.mrf.mxu0
        %v1378 = vadd.f32 %v1235, %v1377
        %v1379 = vpop.f32.mrf.mxu0
        %v1380 = vadd.f32 %v1237, %v1379
        %1381 = vmatmul.bf16.gmra.mxu0 %v1320
        %v1382 = vpop.f32.mrf.mxu0
        %v1383 = vadd.f32 %v1240, %v1382
        %v1384 = vpop.f32.mrf.mxu0
        %v1385 = vadd.f32 %v1242, %v1384
        %1386 = vmatmul.bf16.gmra.mxu0 %v1323
        %v1387 = vpop.f32.mrf.mxu0
        %v1388 = vadd.f32 %v1245, %v1387
        %v1389 = vpop.f32.mrf.mxu0
        %v1390 = vadd.f32 %v1247, %v1389
        %1391 = vmatmul.bf16.gmra.mxu0 %v1326
        %v1392 = vpop.f32.mrf.mxu0
        %v1393 = vadd.f32 %v1250, %v1392
        %v1394 = vpop.f32.mrf.mxu0
        %v1395 = vadd.f32 %v1252, %v1394
        %1396 = vmatmul.bf16.gmra.mxu0 %v1329
        %v1397 = vpop.f32.mrf.mxu0
        %v1398 = vadd.f32 %v1255, %v1397
        %v1399 = vpop.f32.mrf.mxu0
        %v1400 = vadd.f32 %v1257, %v1399
        %1401 = vmatmul.bf16.gmra.mxu0 %v1332
        %v1402 = vpop.f32.mrf.mxu0
        %v1403 = vadd.f32 %v1260, %v1402
        %v1404 = vpop.f32.mrf.mxu0
        %v1405 = vadd.f32 %v1262, %v1404
        %1406 = vmatmul.bf16.gmra.mxu0 %v1335
        %v1407 = vpop.f32.mrf.mxu0
        %v1408 = vadd.f32 %v1265, %v1407
        %v1409 = vpop.f32.mrf.mxu0
        %v1410 = vadd.f32 %v1267, %v1409
        %1411 = vmatmul.bf16.gmra.mxu0 %v1338
        %v1412 = vpop.f32.mrf.mxu0
        %v1413 = vadd.f32 %v1270, %v1412
        %v1414 = vpop.f32.mrf.mxu0
        %v1415 = vadd.f32 %v1272, %v1414
        %1416 = vmatmul.bf16.gmra.mxu0 %v1341
        %v1417 = vpop.f32.mrf.mxu0
        %v1418 = vadd.f32 %v1275, %v1417
        %v1419 = vpop.f32.mrf.mxu0
        %v1420 = vadd.f32 %v1277, %v1419
        %1421 = vmatmul.bf16.gmra.mxu0 %v1344
        %v1422 = vpop.f32.mrf.mxu0
        %v1423 = vadd.f32 %v1280, %v1422
        %v1424 = vpop.f32.mrf.mxu0
        %v1425 = vadd.f32 %v1282, %v1424
        %1426 = vmatmul.bf16.gmra.mxu0 %v1347
        %v1427 = vpop.f32.mrf.mxu0
        %v1428 = vadd.f32 %v1285, %v1427
        %v1429 = vpop.f32.mrf.mxu0
        %v1430 = vadd.f32 %v1287, %v1429
        %1431 = vmatmul.bf16.gmra.mxu0 %v1350
        %v1432 = vpop.f32.mrf.mxu0
        %v1433 = vadd.f32 %v1290, %v1432
        %v1434 = vpop.f32.mrf.mxu0
        %v1435 = vadd.f32 %v1292, %v1434
        %1436 = vmatmul.bf16.gmra.mxu0 %v1353
        %v1437 = vpop.f32.mrf.mxu0
        %v1438 = vadd.f32 %v1295, %v1437
        %v1439 = vpop.f32.mrf.mxu0
        %v1440 = vadd.f32 %v1297, %v1439
        %1441 = vmatmul.bf16.gmra.mxu0 %v1356
        %v1442 = vpop.f32.mrf.mxu0
        %v1443 = vadd.f32 %v1300, %v1442
        %v1444 = vpop.f32.mrf.mxu0
        %v1445 = vadd.f32 %v1302, %v1444
        %1446 = vdwg.mxu0
        %v1447 = vpack.c.bf16 %v957, %v956
        %s1448 = scalar_lea.vmem [#allocation2], 16
        %v1449 = vld [vmem:[%s1448] sm:$0xf]
        %v1450 = vld [vmem:[%s1448 + $0x4] sm:$0xf]
        %v1453 = vunpack.c.l.b16 %v1449
        %v1454 = vunpack.c.l.b16 %v1450
        %v1455 = vpack.c.b16 %v1454, %v1453
        %v1458 = vsel %vm1166, %v1447, 0
        %1460 = vmatpush.bf16.msra.mxu0 0
        %1461 = vmatpush.bf16.msra.mxu0 0
        %1462 = vmatpush.bf16.msra.mxu0 0
        %1463 = vmatpush.bf16.msra.mxu0 0
        %1464 = vmatpush.bf16.msra.mxu0 0
        %1465 = vmatpush.bf16.msra.mxu0 0
        %1466 = vmatpush.bf16.msra.mxu0 0
        %1467 = vmatpush.bf16.msra.mxu0 %v1455
        %1468 = vmatmul.bf16.gmra.mxu0 %v1314
        %v1469 = vpop.f32.mrf.mxu0
        %v1470 = vadd.f32 0.0, %v1469
        %v1471 = vpop.f32.mrf.mxu0
        %v1472 = vadd.f32 0.0, %v1471
        %1473 = vmatmul.bf16.gmra.mxu0 %v1317
        %v1474 = vpop.f32.mrf.mxu0
        %v1475 = vadd.f32 0.0, %v1474
        %v1476 = vpop.f32.mrf.mxu0
        %v1477 = vadd.f32 0.0, %v1476
        %1478 = vmatmul.bf16.gmra.mxu0 %v1320
        %v1479 = vpop.f32.mrf.mxu0
        %v1480 = vadd.f32 0.0, %v1479
        %v1481 = vpop.f32.mrf.mxu0
        %v1482 = vadd.f32 0.0, %v1481
        %1483 = vmatmul.bf16.gmra.mxu0 %v1323
        %v1484 = vpop.f32.mrf.mxu0
        %v1485 = vadd.f32 0.0, %v1484
        %v1486 = vpop.f32.mrf.mxu0
        %v1487 = vadd.f32 0.0, %v1486
        %1488 = vmatmul.bf16.gmra.mxu0 %v1326
        %v1489 = vpop.f32.mrf.mxu0
        %v1490 = vadd.f32 0.0, %v1489
        %v1491 = vpop.f32.mrf.mxu0
        %v1492 = vadd.f32 0.0, %v1491
        %1493 = vmatmul.bf16.gmra.mxu0 %v1329
        %v1494 = vpop.f32.mrf.mxu0
        %v1495 = vadd.f32 0.0, %v1494
        %v1496 = vpop.f32.mrf.mxu0
        %v1497 = vadd.f32 0.0, %v1496
        %1498 = vmatmul.bf16.gmra.mxu0 %v1332
        %v1499 = vpop.f32.mrf.mxu0
        %v1500 = vadd.f32 0.0, %v1499
        %v1501 = vpop.f32.mrf.mxu0
        %v1502 = vadd.f32 0.0, %v1501
        %1503 = vmatmul.bf16.gmra.mxu0 %v1335
        %v1504 = vpop.f32.mrf.mxu0
        %v1505 = vadd.f32 0.0, %v1504
        %v1506 = vpop.f32.mrf.mxu0
        %v1507 = vadd.f32 0.0, %v1506
        %1508 = vmatmul.bf16.gmra.mxu0 %v1338
        %v1509 = vpop.f32.mrf.mxu0
        %v1510 = vadd.f32 0.0, %v1509
        %v1511 = vpop.f32.mrf.mxu0
        %v1512 = vadd.f32 0.0, %v1511
        %1513 = vmatmul.bf16.gmra.mxu0 %v1341
        %v1514 = vpop.f32.mrf.mxu0
        %v1515 = vadd.f32 0.0, %v1514
        %v1516 = vpop.f32.mrf.mxu0
        %v1517 = vadd.f32 0.0, %v1516
        %1518 = vmatmul.bf16.gmra.mxu0 %v1344
        %v1519 = vpop.f32.mrf.mxu0
        %v1520 = vadd.f32 0.0, %v1519
        %v1521 = vpop.f32.mrf.mxu0
        %v1522 = vadd.f32 0.0, %v1521
        %1523 = vmatmul.bf16.gmra.mxu0 %v1347
        %v1524 = vpop.f32.mrf.mxu0
        %v1525 = vadd.f32 0.0, %v1524
        %v1526 = vpop.f32.mrf.mxu0
        %v1527 = vadd.f32 0.0, %v1526
        %1528 = vmatmul.bf16.gmra.mxu0 %v1350
        %v1529 = vpop.f32.mrf.mxu0
        %v1530 = vadd.f32 0.0, %v1529
        %v1531 = vpop.f32.mrf.mxu0
        %v1532 = vadd.f32 0.0, %v1531
        %1533 = vmatmul.bf16.gmra.mxu0 %v1353
        %v1534 = vpop.f32.mrf.mxu0
        %v1535 = vadd.f32 0.0, %v1534
        %v1536 = vpop.f32.mrf.mxu0
        %v1537 = vadd.f32 0.0, %v1536
        %1538 = vmatmul.bf16.gmra.mxu0 %v1356
        %v1539 = vpop.f32.mrf.mxu0
        %v1540 = vadd.f32 0.0, %v1539
        %v1541 = vpop.f32.mrf.mxu0
        %v1542 = vadd.f32 0.0, %v1541
        %1543 = vmatmul.bf16.gmra.mxu0 %v1458
        %v1544 = vpop.f32.mrf.mxu0
        %v1545 = vadd.f32 0.0, %v1544
        %v1546 = vpop.f32.mrf.mxu0
        %v1547 = vadd.f32 0.0, %v1546
        %1548 = vdwg.mxu0
        %v1549 = vadd.f32 %v1368, %v1470
        %v1550 = vadd.f32 %v1370, %v1472
        %v1551 = vadd.f32 %v1373, %v1475
        %v1552 = vadd.f32 %v1375, %v1477
        %v1553 = vadd.f32 %v1378, %v1480
        %v1554 = vadd.f32 %v1380, %v1482
        %v1555 = vadd.f32 %v1383, %v1485
        %v1556 = vadd.f32 %v1385, %v1487
        %v1557 = vadd.f32 %v1388, %v1490
        %v1558 = vadd.f32 %v1390, %v1492
        %v1559 = vadd.f32 %v1393, %v1495
        %v1560 = vadd.f32 %v1395, %v1497
        %v1561 = vadd.f32 %v1398, %v1500
        %v1562 = vadd.f32 %v1400, %v1502
        %v1563 = vadd.f32 %v1403, %v1505
        %v1564 = vadd.f32 %v1405, %v1507
        %v1565 = vadd.f32 %v1408, %v1510
        %v1566 = vadd.f32 %v1410, %v1512
        %v1567 = vadd.f32 %v1413, %v1515
        %v1568 = vadd.f32 %v1415, %v1517
        %v1569 = vadd.f32 %v1418, %v1520
        %v1570 = vadd.f32 %v1420, %v1522
        %v1571 = vadd.f32 %v1423, %v1525
        %v1572 = vadd.f32 %v1425, %v1527
        %v1573 = vadd.f32 %v1428, %v1530
        %v1574 = vadd.f32 %v1430, %v1532
        %v1575 = vadd.f32 %v1433, %v1535
        %v1576 = vadd.f32 %v1435, %v1537
        %v1577 = vadd.f32 %v1438, %v1540
        %v1578 = vadd.f32 %v1440, %v1542
        %v1579 = vadd.f32 %v1443, %v1545
        %v1580 = vadd.f32 %v1445, %v1547
        %v1584 = vrot.slane %v956, 1
        %v1585 = vrot.slane %v957, 1
        %v1586 = vsel %vm1028, %v1584, %v1585
        %v1587 = vrot.slane %v958, 1
        %v1588 = vsel %vm1028, %v1585, %v1587
        %v1591 = vpack.c.bf16 %v1588, %v1586
        %s1592 = scalar_lea.vmem [#allocation2], 24
        %v1593 = vld [vmem:[%s1592] sm:$0xf]
        %v1594 = vld [vmem:[%s1592 + $0x4] sm:$0xf]
        %v1597 = vunpack.c.l.b16 %v1593
        %v1598 = vunpack.c.l.b16 %v1594
        %v1599 = vpack.c.b16 %v1598, %v1597
        %v1602 = vsel %vm1166, %v1591, 0
        %1604 = vmatpush.bf16.msra.mxu0 0
        %1605 = vmatpush.bf16.msra.mxu0 0
        %1606 = vmatpush.bf16.msra.mxu0 0
        %1607 = vmatpush.bf16.msra.mxu0 0
        %1608 = vmatpush.bf16.msra.mxu0 0
        %1609 = vmatpush.bf16.msra.mxu0 0
        %1610 = vmatpush.bf16.msra.mxu0 0
        %1611 = vmatpush.bf16.msra.mxu0 %v1599
        %1612 = vmatmul.bf16.gmra.mxu0 %v1171
        %v1613 = vpop.f32.mrf.mxu0
        %v1614 = vadd.f32 0.0, %v1613
        %v1615 = vpop.f32.mrf.mxu0
        %v1616 = vadd.f32 0.0, %v1615
        %1617 = vmatmul.bf16.gmra.mxu0 %v1174
        %v1618 = vpop.f32.mrf.mxu0
        %v1619 = vadd.f32 0.0, %v1618
        %v1620 = vpop.f32.mrf.mxu0
        %v1621 = vadd.f32 0.0, %v1620
        %1622 = vmatmul.bf16.gmra.mxu0 %v1177
        %v1623 = vpop.f32.mrf.mxu0
        %v1624 = vadd.f32 0.0, %v1623
        %v1625 = vpop.f32.mrf.mxu0
        %v1626 = vadd.f32 0.0, %v1625
        %1627 = vmatmul.bf16.gmra.mxu0 %v1180
        %v1628 = vpop.f32.mrf.mxu0
        %v1629 = vadd.f32 0.0, %v1628
        %v1630 = vpop.f32.mrf.mxu0
        %v1631 = vadd.f32 0.0, %v1630
        %1632 = vmatmul.bf16.gmra.mxu0 %v1183
        %v1633 = vpop.f32.mrf.mxu0
        %v1634 = vadd.f32 0.0, %v1633
        %v1635 = vpop.f32.mrf.mxu0
        %v1636 = vadd.f32 0.0, %v1635
        %1637 = vmatmul.bf16.gmra.mxu0 %v1186
        %v1638 = vpop.f32.mrf.mxu0
        %v1639 = vadd.f32 0.0, %v1638
        %v1640 = vpop.f32.mrf.mxu0
        %v1641 = vadd.f32 0.0, %v1640
        %1642 = vmatmul.bf16.gmra.mxu0 %v1189
        %v1643 = vpop.f32.mrf.mxu0
        %v1644 = vadd.f32 0.0, %v1643
        %v1645 = vpop.f32.mrf.mxu0
        %v1646 = vadd.f32 0.0, %v1645
        %1647 = vmatmul.bf16.gmra.mxu0 %v1192
        %v1648 = vpop.f32.mrf.mxu0
        %v1649 = vadd.f32 0.0, %v1648
        %v1650 = vpop.f32.mrf.mxu0
        %v1651 = vadd.f32 0.0, %v1650
        %1652 = vmatmul.bf16.gmra.mxu0 %v1195
        %v1653 = vpop.f32.mrf.mxu0
        %v1654 = vadd.f32 0.0, %v1653
        %v1655 = vpop.f32.mrf.mxu0
        %v1656 = vadd.f32 0.0, %v1655
        %1657 = vmatmul.bf16.gmra.mxu0 %v1198
        %v1658 = vpop.f32.mrf.mxu0
        %v1659 = vadd.f32 0.0, %v1658
        %v1660 = vpop.f32.mrf.mxu0
        %v1661 = vadd.f32 0.0, %v1660
        %1662 = vmatmul.bf16.gmra.mxu0 %v1201
        %v1663 = vpop.f32.mrf.mxu0
        %v1664 = vadd.f32 0.0, %v1663
        %v1665 = vpop.f32.mrf.mxu0
        %v1666 = vadd.f32 0.0, %v1665
        %1667 = vmatmul.bf16.gmra.mxu0 %v1204
        %v1668 = vpop.f32.mrf.mxu0
        %v1669 = vadd.f32 0.0, %v1668
        %v1670 = vpop.f32.mrf.mxu0
        %v1671 = vadd.f32 0.0, %v1670
        %1672 = vmatmul.bf16.gmra.mxu0 %v1207
        %v1673 = vpop.f32.mrf.mxu0
        %v1674 = vadd.f32 0.0, %v1673
        %v1675 = vpop.f32.mrf.mxu0
        %v1676 = vadd.f32 0.0, %v1675
        %1677 = vmatmul.bf16.gmra.mxu0 %v1210
        %v1678 = vpop.f32.mrf.mxu0
        %v1679 = vadd.f32 0.0, %v1678
        %v1680 = vpop.f32.mrf.mxu0
        %v1681 = vadd.f32 0.0, %v1680
        %1682 = vmatmul.bf16.gmra.mxu0 %v1213
        %v1683 = vpop.f32.mrf.mxu0
        %v1684 = vadd.f32 0.0, %v1683
        %v1685 = vpop.f32.mrf.mxu0
        %v1686 = vadd.f32 0.0, %v1685
        %1687 = vmatmul.bf16.gmra.mxu0 %v1602
        %v1688 = vpop.f32.mrf.mxu0
        %v1689 = vadd.f32 0.0, %v1688
        %v1690 = vpop.f32.mrf.mxu0
        %v1691 = vadd.f32 0.0, %v1690
        %1692 = vdwg.mxu0
        %v1693 = vadd.f32 %v1549, %v1614
        %v1694 = vadd.f32 %v1550, %v1616
        %v1695 = vadd.f32 %v1551, %v1619
        %v1696 = vadd.f32 %v1552, %v1621
        %v1697 = vadd.f32 %v1553, %v1624
        %v1698 = vadd.f32 %v1554, %v1626
        %v1699 = vadd.f32 %v1555, %v1629
        %v1700 = vadd.f32 %v1556, %v1631
        %v1701 = vadd.f32 %v1557, %v1634
        %v1702 = vadd.f32 %v1558, %v1636
        %v1703 = vadd.f32 %v1559, %v1639
        %v1704 = vadd.f32 %v1560, %v1641
        %v1705 = vadd.f32 %v1561, %v1644
        %v1706 = vadd.f32 %v1562, %v1646
        %v1707 = vadd.f32 %v1563, %v1649
        %v1708 = vadd.f32 %v1564, %v1651
        %v1709 = vadd.f32 %v1565, %v1654
        %v1710 = vadd.f32 %v1566, %v1656
        %v1711 = vadd.f32 %v1567, %v1659
        %v1712 = vadd.f32 %v1568, %v1661
        %v1713 = vadd.f32 %v1569, %v1664
        %v1714 = vadd.f32 %v1570, %v1666
        %v1715 = vadd.f32 %v1571, %v1669
        %v1716 = vadd.f32 %v1572, %v1671
        %v1717 = vadd.f32 %v1573, %v1674
        %v1718 = vadd.f32 %v1574, %v1676
        %v1719 = vadd.f32 %v1575, %v1679
        %v1720 = vadd.f32 %v1576, %v1681
        %v1721 = vadd.f32 %v1577, %v1684
        %v1722 = vadd.f32 %v1578, %v1686
        %v1723 = vadd.f32 %v1579, %v1689
        %v1724 = vadd.f32 %v1580, %v1691
        %v1725 = vld [vmem:[#allocation4] sm:$0x1]
        %v1727 = vperm.slane %v1725, 0
        %v1729 = vadd.f32 %v1693, %v1727
        %v1730 = vadd.f32 %v1694, %v1727
        %v1731 = vadd.f32 %v1695, %v1727
        %v1732 = vadd.f32 %v1696, %v1727
        %v1733 = vadd.f32 %v1697, %v1727
        %v1734 = vadd.f32 %v1698, %v1727
        %v1735 = vadd.f32 %v1699, %v1727
        %v1736 = vadd.f32 %v1700, %v1727
        %v1737 = vadd.f32 %v1701, %v1727
        %v1738 = vadd.f32 %v1702, %v1727
        %v1739 = vadd.f32 %v1703, %v1727
        %v1740 = vadd.f32 %v1704, %v1727
        %v1741 = vadd.f32 %v1705, %v1727
        %v1742 = vadd.f32 %v1706, %v1727
        %v1743 = vadd.f32 %v1707, %v1727
        %v1744 = vadd.f32 %v1708, %v1727
        %v1745 = vadd.f32 %v1709, %v1727
        %v1746 = vadd.f32 %v1710, %v1727
        %v1747 = vadd.f32 %v1711, %v1727
        %v1748 = vadd.f32 %v1712, %v1727
        %v1749 = vadd.f32 %v1713, %v1727
        %v1750 = vadd.f32 %v1714, %v1727
        %v1751 = vadd.f32 %v1715, %v1727
        %v1752 = vadd.f32 %v1716, %v1727
        %v1753 = vadd.f32 %v1717, %v1727
        %v1754 = vadd.f32 %v1718, %v1727
        %v1755 = vadd.f32 %v1719, %v1727
        %v1756 = vadd.f32 %v1720, %v1727
        %v1757 = vadd.f32 %v1721, %v1727
        %v1758 = vadd.f32 %v1722, %v1727
        %v1759 = vadd.f32 %v1723, %v1727
        %v1760 = vadd.f32 %v1724, %v1727
        %v1761 = vtanh.pop %v1729
        %v1762 = vtanh.pop %v1730
        %v1763 = vtanh.pop %v1731
        %v1764 = vtanh.pop %v1732
        %v1765 = vtanh.pop %v1733
        %v1766 = vtanh.pop %v1734
        %v1767 = vtanh.pop %v1735
        %v1768 = vtanh.pop %v1736
        %v1769 = vtanh.pop %v1737
        %v1770 = vtanh.pop %v1738
        %v1771 = vtanh.pop %v1739
        %v1772 = vtanh.pop %v1740
        %v1773 = vtanh.pop %v1741
        %v1774 = vtanh.pop %v1742
        %v1775 = vtanh.pop %v1743
        %v1776 = vtanh.pop %v1744
        %v1777 = vtanh.pop %v1745
        %v1778 = vtanh.pop %v1746
        %v1779 = vtanh.pop %v1747
        %v1780 = vtanh.pop %v1748
        %v1781 = vtanh.pop %v1749
        %v1782 = vtanh.pop %v1750
        %v1783 = vtanh.pop %v1751
        %v1784 = vtanh.pop %v1752
        %v1785 = vtanh.pop %v1753
        %v1786 = vtanh.pop %v1754
        %v1787 = vtanh.pop %v1755
        %v1788 = vtanh.pop %v1756
        %v1789 = vtanh.pop %v1757
        %v1790 = vtanh.pop %v1758
        %v1791 = vtanh.pop %v1759
        %v1792 = vtanh.pop %v1760
        %1793 = vst [vmem:[%s299] sm:$0xff] %v1761
        %1794 = vst [vmem:[%s299 + $0x8] sm:$0xff] %v1762
        %1795 = vst [vmem:[%s299 + $0x10] sm:$0xff] %v1763
        %1796 = vst [vmem:[%s299 + $0x18] sm:$0xff] %v1764
        %1797 = vst [vmem:[%s299 + $0x20] sm:$0xff] %v1765
        %1798 = vst [vmem:[%s299 + $0x28] sm:$0xff] %v1766
        %1799 = vst [vmem:[%s299 + $0x30] sm:$0xff] %v1767
        %1800 = vst [vmem:[%s299 + $0x38] sm:$0xff] %v1768
        %1801 = vst [vmem:[%s299 + $0x40] sm:$0xff] %v1769
        %1802 = vst [vmem:[%s299 + $0x48] sm:$0xff] %v1770
        %1803 = vst [vmem:[%s299 + $0x50] sm:$0xff] %v1771
        %1804 = vst [vmem:[%s299 + $0x58] sm:$0xff] %v1772
        %1805 = vst [vmem:[%s299 + $0x60] sm:$0xff] %v1773
        %1806 = vst [vmem:[%s299 + $0x68] sm:$0xff] %v1774
        %1807 = vst [vmem:[%s299 + $0x70] sm:$0xff] %v1775
        %1808 = vst [vmem:[%s299 + $0x78] sm:$0xff] %v1776
        %1809 = vst [vmem:[%s299 + $0x80] sm:$0xff] %v1777
        %1810 = vst [vmem:[%s299 + $0x88] sm:$0xff] %v1778
        %1811 = vst [vmem:[%s299 + $0x90] sm:$0xff] %v1779
        %1812 = vst [vmem:[%s299 + $0x98] sm:$0xff] %v1780
        %1813 = vst [vmem:[%s299 + $0xa0] sm:$0xff] %v1781
        %1814 = vst [vmem:[%s299 + $0xa8] sm:$0xff] %v1782
        %1815 = vst [vmem:[%s299 + $0xb0] sm:$0xff] %v1783
        %1816 = vst [vmem:[%s299 + $0xb8] sm:$0xff] %v1784
        %1817 = vst [vmem:[%s299 + $0xc0] sm:$0xff] %v1785
        %1818 = vst [vmem:[%s299 + $0xc8] sm:$0xff] %v1786
        %1819 = vst [vmem:[%s299 + $0xd0] sm:$0xff] %v1787
        %1820 = vst [vmem:[%s299 + $0xd8] sm:$0xff] %v1788
        %1821 = vst [vmem:[%s299 + $0xe0] sm:$0xff] %v1789
        %1822 = vst [vmem:[%s299 + $0xe8] sm:$0xff] %v1790
        %1823 = vst [vmem:[%s299 + $0xf0] sm:$0xff] %v1791
        %1824 = vst [vmem:[%s299 + $0xf8] sm:$0xff] %v1792
        %s1825 = scalar_lea.vmem [#allocation2], 32
        %v1826 = vld [vmem:[%s1825] sm:$0xf]
        %v1827 = vld [vmem:[%s1825 + $0x4] sm:$0xf]
        %vm1828 = vcmask 1045504
        %v1829 = vrot.slane %v908, 2
        %v1830 = vrot.slane %v909, 2
        %v1831 = vsel %vm1828, %v1829, %v1830
        %v1832 = vrot.slane %v910, 2
        %v1833 = vsel %vm1828, %v1830, %v1832
        %v1834 = vrot.slane %v911, 2
        %v1835 = vrot.slane %v912, 2
        %v1836 = vsel %vm1828, %v1834, %v1835
        %v1837 = vrot.slane %v913, 2
        %v1838 = vsel %vm1828, %v1835, %v1837
        %v1839 = vrot.slane %v914, 2
        %v1840 = vrot.slane %v915, 2
        %v1841 = vsel %vm1828, %v1839, %v1840
        %v1842 = vrot.slane %v916, 2
        %v1843 = vsel %vm1828, %v1840, %v1842
        %v1844 = vrot.slane %v917, 2
        %v1845 = vrot.slane %v918, 2
        %v1846 = vsel %vm1828, %v1844, %v1845
        %v1847 = vrot.slane %v919, 2
        %v1848 = vsel %vm1828, %v1845, %v1847
        %v1849 = vrot.slane %v920, 2
        %v1850 = vrot.slane %v921, 2
        %v1851 = vsel %vm1828, %v1849, %v1850
        %v1852 = vrot.slane %v922, 2
        %v1853 = vsel %vm1828, %v1850, %v1852
        %v1854 = vrot.slane %v923, 2
        %v1855 = vrot.slane %v924, 2
        %v1856 = vsel %vm1828, %v1854, %v1855
        %v1857 = vrot.slane %v925, 2
        %v1858 = vsel %vm1828, %v1855, %v1857
        %v1859 = vrot.slane %v926, 2
        %v1860 = vrot.slane %v927, 2
        %v1861 = vsel %vm1828, %v1859, %v1860
        %v1862 = vrot.slane %v928, 2
        %v1863 = vsel %vm1828, %v1860, %v1862
        %v1864 = vrot.slane %v929, 2
        %v1865 = vrot.slane %v930, 2
        %v1866 = vsel %vm1828, %v1864, %v1865
        %v1867 = vrot.slane %v931, 2
        %v1868 = vsel %vm1828, %v1865, %v1867
        %v1869 = vrot.slane %v932, 2
        %v1870 = vrot.slane %v933, 2
        %v1871 = vsel %vm1828, %v1869, %v1870
        %v1872 = vrot.slane %v934, 2
        %v1873 = vsel %vm1828, %v1870, %v1872
        %v1874 = vrot.slane %v935, 2
        %v1875 = vrot.slane %v936, 2
        %v1876 = vsel %vm1828, %v1874, %v1875
        %v1877 = vrot.slane %v937, 2
        %v1878 = vsel %vm1828, %v1875, %v1877
        %v1879 = vrot.slane %v938, 2
        %v1880 = vrot.slane %v939, 2
        %v1881 = vsel %vm1828, %v1879, %v1880
        %v1882 = vrot.slane %v940, 2
        %v1883 = vsel %vm1828, %v1880, %v1882
        %v1884 = vrot.slane %v941, 2
        %v1885 = vrot.slane %v942, 2
        %v1886 = vsel %vm1828, %v1884, %v1885
        %v1887 = vrot.slane %v943, 2
        %v1888 = vsel %vm1828, %v1885, %v1887
        %v1889 = vrot.slane %v944, 2
        %v1890 = vrot.slane %v945, 2
        %v1891 = vsel %vm1828, %v1889, %v1890
        %v1892 = vrot.slane %v946, 2
        %v1893 = vsel %vm1828, %v1890, %v1892
        %v1894 = vrot.slane %v947, 2
        %v1895 = vrot.slane %v948, 2
        %v1896 = vsel %vm1828, %v1894, %v1895
        %v1897 = vrot.slane %v949, 2
        %v1898 = vsel %vm1828, %v1895, %v1897
        %v1899 = vrot.slane %v950, 2
        %v1900 = vrot.slane %v951, 2
        %v1901 = vsel %vm1828, %v1899, %v1900
        %v1902 = vrot.slane %v952, 2
        %v1903 = vsel %vm1828, %v1900, %v1902
        %v1904 = vrot.slane %v953, 2
        %v1905 = vrot.slane %v954, 2
        %v1906 = vsel %vm1828, %v1904, %v1905
        %v1907 = vrot.slane %v955, 2
        %v1908 = vsel %vm1828, %v1905, %v1907
        %v1941 = vpack.c.bf16 %v1833, %v1831
        %v1942 = vpack.c.bf16 %v1838, %v1836
        %v1943 = vpack.c.bf16 %v1843, %v1841
        %v1944 = vpack.c.bf16 %v1848, %v1846
        %v1945 = vpack.c.bf16 %v1853, %v1851
        %v1946 = vpack.c.bf16 %v1858, %v1856
        %v1947 = vpack.c.bf16 %v1863, %v1861
        %v1948 = vpack.c.bf16 %v1868, %v1866
        %v1949 = vpack.c.bf16 %v1873, %v1871
        %v1950 = vpack.c.bf16 %v1878, %v1876
        %v1951 = vpack.c.bf16 %v1883, %v1881
        %v1952 = vpack.c.bf16 %v1888, %v1886
        %v1953 = vpack.c.bf16 %v1893, %v1891
        %v1954 = vpack.c.bf16 %v1898, %v1896
        %v1955 = vpack.c.bf16 %v1903, %v1901
        %v1956 = vpack.c.bf16 %v1908, %v1906
        %s1957 = scalar_lea.vmem [#allocation2], 40
        %v1958 = vld [vmem:[%s1957] sm:$0xf]
        %v1959 = vld [vmem:[%s1957 + $0x4] sm:$0xf]
        %v1962 = vunpack.c.l.b16 %v1958
        %v1963 = vunpack.c.l.b16 %v1959
        %v1964 = vpack.c.b16 %v1963, %v1962
        %v1967 = vsel %vm1166, %v1941, 0
        %v1970 = vsel %vm1166, %v1942, 0
        %v1973 = vsel %vm1166, %v1943, 0
        %v1976 = vsel %vm1166, %v1944, 0
        %v1979 = vsel %vm1166, %v1945, 0
        %v1982 = vsel %vm1166, %v1946, 0
        %v1985 = vsel %vm1166, %v1947, 0
        %v1988 = vsel %vm1166, %v1948, 0
        %v1991 = vsel %vm1166, %v1949, 0
        %v1994 = vsel %vm1166, %v1950, 0
        %v1997 = vsel %vm1166, %v1951, 0
        %v2000 = vsel %vm1166, %v1952, 0
        %v2003 = vsel %vm1166, %v1953, 0
        %v2006 = vsel %vm1166, %v1954, 0
        %v2009 = vsel %vm1166, %v1955, 0
        %v2012 = vsel %vm1166, %v1956, 0
        %2014 = vmatpush.bf16.msra.mxu0 0
        %2015 = vmatpush.bf16.msra.mxu0 0
        %2016 = vmatpush.bf16.msra.mxu0 0
        %2017 = vmatpush.bf16.msra.mxu0 0
        %2018 = vmatpush.bf16.msra.mxu0 0
        %2019 = vmatpush.bf16.msra.mxu0 0
        %2020 = vmatpush.bf16.msra.mxu0 0
        %2021 = vmatpush.bf16.msra.mxu0 %v1964
        %2022 = vmatmul.bf16.gmra.mxu0 %v1967
        %v2023 = vpop.f32.mrf.mxu0
        %v2024 = vadd.f32 0.0, %v2023
        %v2025 = vpop.f32.mrf.mxu0
        %v2026 = vadd.f32 0.0, %v2025
        %2027 = vmatmul.bf16.gmra.mxu0 %v1970
        %v2028 = vpop.f32.mrf.mxu0
        %v2029 = vadd.f32 0.0, %v2028
        %v2030 = vpop.f32.mrf.mxu0
        %v2031 = vadd.f32 0.0, %v2030
        %2032 = vmatmul.bf16.gmra.mxu0 %v1973
        %v2033 = vpop.f32.mrf.mxu0
        %v2034 = vadd.f32 0.0, %v2033
        %v2035 = vpop.f32.mrf.mxu0
        %v2036 = vadd.f32 0.0, %v2035
        %2037 = vmatmul.bf16.gmra.mxu0 %v1976
        %v2038 = vpop.f32.mrf.mxu0
        %v2039 = vadd.f32 0.0, %v2038
        %v2040 = vpop.f32.mrf.mxu0
        %v2041 = vadd.f32 0.0, %v2040
        %2042 = vmatmul.bf16.gmra.mxu0 %v1979
        %v2043 = vpop.f32.mrf.mxu0
        %v2044 = vadd.f32 0.0, %v2043
        %v2045 = vpop.f32.mrf.mxu0
        %v2046 = vadd.f32 0.0, %v2045
        %2047 = vmatmul.bf16.gmra.mxu0 %v1982
        %v2048 = vpop.f32.mrf.mxu0
        %v2049 = vadd.f32 0.0, %v2048
        %v2050 = vpop.f32.mrf.mxu0
        %v2051 = vadd.f32 0.0, %v2050
        %2052 = vmatmul.bf16.gmra.mxu0 %v1985
        %v2053 = vpop.f32.mrf.mxu0
        %v2054 = vadd.f32 0.0, %v2053
        %v2055 = vpop.f32.mrf.mxu0
        %v2056 = vadd.f32 0.0, %v2055
        %2057 = vmatmul.bf16.gmra.mxu0 %v1988
        %v2058 = vpop.f32.mrf.mxu0
        %v2059 = vadd.f32 0.0, %v2058
        %v2060 = vpop.f32.mrf.mxu0
        %v2061 = vadd.f32 0.0, %v2060
        %2062 = vmatmul.bf16.gmra.mxu0 %v1991
        %v2063 = vpop.f32.mrf.mxu0
        %v2064 = vadd.f32 0.0, %v2063
        %v2065 = vpop.f32.mrf.mxu0
        %v2066 = vadd.f32 0.0, %v2065
        %2067 = vmatmul.bf16.gmra.mxu0 %v1994
        %v2068 = vpop.f32.mrf.mxu0
        %v2069 = vadd.f32 0.0, %v2068
        %v2070 = vpop.f32.mrf.mxu0
        %v2071 = vadd.f32 0.0, %v2070
        %2072 = vmatmul.bf16.gmra.mxu0 %v1997
        %v2073 = vpop.f32.mrf.mxu0
        %v2074 = vadd.f32 0.0, %v2073
        %v2075 = vpop.f32.mrf.mxu0
        %v2076 = vadd.f32 0.0, %v2075
        %2077 = vmatmul.bf16.gmra.mxu0 %v2000
        %v2078 = vpop.f32.mrf.mxu0
        %v2079 = vadd.f32 0.0, %v2078
        %v2080 = vpop.f32.mrf.mxu0
        %v2081 = vadd.f32 0.0, %v2080
        %2082 = vmatmul.bf16.gmra.mxu0 %v2003
        %v2083 = vpop.f32.mrf.mxu0
        %v2084 = vadd.f32 0.0, %v2083
        %v2085 = vpop.f32.mrf.mxu0
        %v2086 = vadd.f32 0.0, %v2085
        %2087 = vmatmul.bf16.gmra.mxu0 %v2006
        %v2088 = vpop.f32.mrf.mxu0
        %v2089 = vadd.f32 0.0, %v2088
        %v2090 = vpop.f32.mrf.mxu0
        %v2091 = vadd.f32 0.0, %v2090
        %2092 = vmatmul.bf16.gmra.mxu0 %v2009
        %v2093 = vpop.f32.mrf.mxu0
        %v2094 = vadd.f32 0.0, %v2093
        %v2095 = vpop.f32.mrf.mxu0
        %v2096 = vadd.f32 0.0, %v2095
        %2097 = vmatmul.bf16.gmra.mxu0 %v2012
        %v2098 = vpop.f32.mrf.mxu0
        %v2099 = vadd.f32 0.0, %v2098
        %v2100 = vpop.f32.mrf.mxu0
        %v2101 = vadd.f32 0.0, %v2100
        %2102 = vdwg.mxu0
        %v2105 = vunpack.c.l.b16 %v1826
        %v2106 = vunpack.c.l.b16 %v1827
        %v2107 = vpack.c.b16 %v2106, %v2105
        %2109 = vmatpush.bf16.msra.mxu0 0
        %2110 = vmatpush.bf16.msra.mxu0 0
        %2111 = vmatpush.bf16.msra.mxu0 0
        %2112 = vmatpush.bf16.msra.mxu0 0
        %2113 = vmatpush.bf16.msra.mxu0 0
        %2114 = vmatpush.bf16.msra.mxu0 0
        %2115 = vmatpush.bf16.msra.mxu0 0
        %2116 = vmatpush.bf16.msra.mxu0 %v2107
        %2117 = vmatmul.bf16.gmra.mxu0 %v1168
        %v2118 = vpop.f32.mrf.mxu0
        %v2119 = vadd.f32 %v2024, %v2118
        %v2120 = vpop.f32.mrf.mxu0
        %v2121 = vadd.f32 %v2026, %v2120
        %2122 = vmatmul.bf16.gmra.mxu0 %v1171
        %v2123 = vpop.f32.mrf.mxu0
        %v2124 = vadd.f32 %v2029, %v2123
        %v2125 = vpop.f32.mrf.mxu0
        %v2126 = vadd.f32 %v2031, %v2125
        %2127 = vmatmul.bf16.gmra.mxu0 %v1174
        %v2128 = vpop.f32.mrf.mxu0
        %v2129 = vadd.f32 %v2034, %v2128
        %v2130 = vpop.f32.mrf.mxu0
        %v2131 = vadd.f32 %v2036, %v2130
        %2132 = vmatmul.bf16.gmra.mxu0 %v1177
        %v2133 = vpop.f32.mrf.mxu0
        %v2134 = vadd.f32 %v2039, %v2133
        %v2135 = vpop.f32.mrf.mxu0
        %v2136 = vadd.f32 %v2041, %v2135
        %2137 = vmatmul.bf16.gmra.mxu0 %v1180
        %v2138 = vpop.f32.mrf.mxu0
        %v2139 = vadd.f32 %v2044, %v2138
        %v2140 = vpop.f32.mrf.mxu0
        %v2141 = vadd.f32 %v2046, %v2140
        %2142 = vmatmul.bf16.gmra.mxu0 %v1183
        %v2143 = vpop.f32.mrf.mxu0
        %v2144 = vadd.f32 %v2049, %v2143
        %v2145 = vpop.f32.mrf.mxu0
        %v2146 = vadd.f32 %v2051, %v2145
        %2147 = vmatmul.bf16.gmra.mxu0 %v1186
        %v2148 = vpop.f32.mrf.mxu0
        %v2149 = vadd.f32 %v2054, %v2148
        %v2150 = vpop.f32.mrf.mxu0
        %v2151 = vadd.f32 %v2056, %v2150
        %2152 = vmatmul.bf16.gmra.mxu0 %v1189
        %v2153 = vpop.f32.mrf.mxu0
        %v2154 = vadd.f32 %v2059, %v2153
        %v2155 = vpop.f32.mrf.mxu0
        %v2156 = vadd.f32 %v2061, %v2155
        %2157 = vmatmul.bf16.gmra.mxu0 %v1192
        %v2158 = vpop.f32.mrf.mxu0
        %v2159 = vadd.f32 %v2064, %v2158
        %v2160 = vpop.f32.mrf.mxu0
        %v2161 = vadd.f32 %v2066, %v2160
        %2162 = vmatmul.bf16.gmra.mxu0 %v1195
        %v2163 = vpop.f32.mrf.mxu0
        %v2164 = vadd.f32 %v2069, %v2163
        %v2165 = vpop.f32.mrf.mxu0
        %v2166 = vadd.f32 %v2071, %v2165
        %2167 = vmatmul.bf16.gmra.mxu0 %v1198
        %v2168 = vpop.f32.mrf.mxu0
        %v2169 = vadd.f32 %v2074, %v2168
        %v2170 = vpop.f32.mrf.mxu0
        %v2171 = vadd.f32 %v2076, %v2170
        %2172 = vmatmul.bf16.gmra.mxu0 %v1201
        %v2173 = vpop.f32.mrf.mxu0
        %v2174 = vadd.f32 %v2079, %v2173
        %v2175 = vpop.f32.mrf.mxu0
        %v2176 = vadd.f32 %v2081, %v2175
        %2177 = vmatmul.bf16.gmra.mxu0 %v1204
        %v2178 = vpop.f32.mrf.mxu0
        %v2179 = vadd.f32 %v2084, %v2178
        %v2180 = vpop.f32.mrf.mxu0
        %v2181 = vadd.f32 %v2086, %v2180
        %2182 = vmatmul.bf16.gmra.mxu0 %v1207
        %v2183 = vpop.f32.mrf.mxu0
        %v2184 = vadd.f32 %v2089, %v2183
        %v2185 = vpop.f32.mrf.mxu0
        %v2186 = vadd.f32 %v2091, %v2185
        %2187 = vmatmul.bf16.gmra.mxu0 %v1210
        %v2188 = vpop.f32.mrf.mxu0
        %v2189 = vadd.f32 %v2094, %v2188
        %v2190 = vpop.f32.mrf.mxu0
        %v2191 = vadd.f32 %v2096, %v2190
        %2192 = vmatmul.bf16.gmra.mxu0 %v1213
        %v2193 = vpop.f32.mrf.mxu0
        %v2194 = vadd.f32 %v2099, %v2193
        %v2195 = vpop.f32.mrf.mxu0
        %v2196 = vadd.f32 %v2101, %v2195
        %2197 = vdwg.mxu0
        %s2198 = scalar_lea.vmem [#allocation2], 48
        %v2199 = vld [vmem:[%s2198] sm:$0xf]
        %v2200 = vld [vmem:[%s2198 + $0x4] sm:$0xf]
        %v2203 = vunpack.c.l.b16 %v2199
        %v2204 = vunpack.c.l.b16 %v2200
        %v2205 = vpack.c.b16 %v2204, %v2203
        %2207 = vmatpush.bf16.msra.mxu0 0
        %2208 = vmatpush.bf16.msra.mxu0 0
        %2209 = vmatpush.bf16.msra.mxu0 0
        %2210 = vmatpush.bf16.msra.mxu0 0
        %2211 = vmatpush.bf16.msra.mxu0 0
        %2212 = vmatpush.bf16.msra.mxu0 0
        %2213 = vmatpush.bf16.msra.mxu0 0
        %2214 = vmatpush.bf16.msra.mxu0 %v2205
        %2215 = vmatmul.bf16.gmra.mxu0 %v1171
        %v2216 = vpop.f32.mrf.mxu0
        %v2217 = vadd.f32 0.0, %v2216
        %v2218 = vpop.f32.mrf.mxu0
        %v2219 = vadd.f32 0.0, %v2218
        %2220 = vmatmul.bf16.gmra.mxu0 %v1174
        %v2221 = vpop.f32.mrf.mxu0
        %v2222 = vadd.f32 0.0, %v2221
        %v2223 = vpop.f32.mrf.mxu0
        %v2224 = vadd.f32 0.0, %v2223
        %2225 = vmatmul.bf16.gmra.mxu0 %v1177
        %v2226 = vpop.f32.mrf.mxu0
        %v2227 = vadd.f32 0.0, %v2226
        %v2228 = vpop.f32.mrf.mxu0
        %v2229 = vadd.f32 0.0, %v2228
        %2230 = vmatmul.bf16.gmra.mxu0 %v1180
        %v2231 = vpop.f32.mrf.mxu0
        %v2232 = vadd.f32 0.0, %v2231
        %v2233 = vpop.f32.mrf.mxu0
        %v2234 = vadd.f32 0.0, %v2233
        %2235 = vmatmul.bf16.gmra.mxu0 %v1183
        %v2236 = vpop.f32.mrf.mxu0
        %v2237 = vadd.f32 0.0, %v2236
        %v2238 = vpop.f32.mrf.mxu0
        %v2239 = vadd.f32 0.0, %v2238
        %2240 = vmatmul.bf16.gmra.mxu0 %v1186
        %v2241 = vpop.f32.mrf.mxu0
        %v2242 = vadd.f32 0.0, %v2241
        %v2243 = vpop.f32.mrf.mxu0
        %v2244 = vadd.f32 0.0, %v2243
        %2245 = vmatmul.bf16.gmra.mxu0 %v1189
        %v2246 = vpop.f32.mrf.mxu0
        %v2247 = vadd.f32 0.0, %v2246
        %v2248 = vpop.f32.mrf.mxu0
        %v2249 = vadd.f32 0.0, %v2248
        %2250 = vmatmul.bf16.gmra.mxu0 %v1192
        %v2251 = vpop.f32.mrf.mxu0
        %v2252 = vadd.f32 0.0, %v2251
        %v2253 = vpop.f32.mrf.mxu0
        %v2254 = vadd.f32 0.0, %v2253
        %2255 = vmatmul.bf16.gmra.mxu0 %v1195
        %v2256 = vpop.f32.mrf.mxu0
        %v2257 = vadd.f32 0.0, %v2256
        %v2258 = vpop.f32.mrf.mxu0
        %v2259 = vadd.f32 0.0, %v2258
        %2260 = vmatmul.bf16.gmra.mxu0 %v1198
        %v2261 = vpop.f32.mrf.mxu0
        %v2262 = vadd.f32 0.0, %v2261
        %v2263 = vpop.f32.mrf.mxu0
        %v2264 = vadd.f32 0.0, %v2263
        %2265 = vmatmul.bf16.gmra.mxu0 %v1201
        %v2266 = vpop.f32.mrf.mxu0
        %v2267 = vadd.f32 0.0, %v2266
        %v2268 = vpop.f32.mrf.mxu0
        %v2269 = vadd.f32 0.0, %v2268
        %2270 = vmatmul.bf16.gmra.mxu0 %v1204
        %v2271 = vpop.f32.mrf.mxu0
        %v2272 = vadd.f32 0.0, %v2271
        %v2273 = vpop.f32.mrf.mxu0
        %v2274 = vadd.f32 0.0, %v2273
        %2275 = vmatmul.bf16.gmra.mxu0 %v1207
        %v2276 = vpop.f32.mrf.mxu0
        %v2277 = vadd.f32 0.0, %v2276
        %v2278 = vpop.f32.mrf.mxu0
        %v2279 = vadd.f32 0.0, %v2278
        %2280 = vmatmul.bf16.gmra.mxu0 %v1210
        %v2281 = vpop.f32.mrf.mxu0
        %v2282 = vadd.f32 0.0, %v2281
        %v2283 = vpop.f32.mrf.mxu0
        %v2284 = vadd.f32 0.0, %v2283
        %2285 = vmatmul.bf16.gmra.mxu0 %v1213
        %v2286 = vpop.f32.mrf.mxu0
        %v2287 = vadd.f32 0.0, %v2286
        %v2288 = vpop.f32.mrf.mxu0
        %v2289 = vadd.f32 0.0, %v2288
        %2290 = vmatmul.bf16.gmra.mxu0 %v1602
        %v2291 = vpop.f32.mrf.mxu0
        %v2292 = vadd.f32 0.0, %v2291
        %v2293 = vpop.f32.mrf.mxu0
        %v2294 = vadd.f32 0.0, %v2293
        %2295 = vdwg.mxu0
        %v2296 = vadd.f32 %v2119, %v2217
        %v2297 = vadd.f32 %v2121, %v2219
        %v2298 = vadd.f32 %v2124, %v2222
        %v2299 = vadd.f32 %v2126, %v2224
        %v2300 = vadd.f32 %v2129, %v2227
        %v2301 = vadd.f32 %v2131, %v2229
        %v2302 = vadd.f32 %v2134, %v2232
        %v2303 = vadd.f32 %v2136, %v2234
        %v2304 = vadd.f32 %v2139, %v2237
        %v2305 = vadd.f32 %v2141, %v2239
        %v2306 = vadd.f32 %v2144, %v2242
        %v2307 = vadd.f32 %v2146, %v2244
        %v2308 = vadd.f32 %v2149, %v2247
        %v2309 = vadd.f32 %v2151, %v2249
        %v2310 = vadd.f32 %v2154, %v2252
        %v2311 = vadd.f32 %v2156, %v2254
        %v2312 = vadd.f32 %v2159, %v2257
        %v2313 = vadd.f32 %v2161, %v2259
        %v2314 = vadd.f32 %v2164, %v2262
        %v2315 = vadd.f32 %v2166, %v2264
        %v2316 = vadd.f32 %v2169, %v2267
        %v2317 = vadd.f32 %v2171, %v2269
        %v2318 = vadd.f32 %v2174, %v2272
        %v2319 = vadd.f32 %v2176, %v2274
        %v2320 = vadd.f32 %v2179, %v2277
        %v2321 = vadd.f32 %v2181, %v2279
        %v2322 = vadd.f32 %v2184, %v2282
        %v2323 = vadd.f32 %v2186, %v2284
        %v2324 = vadd.f32 %v2189, %v2287
        %v2325 = vadd.f32 %v2191, %v2289
        %v2326 = vadd.f32 %v2194, %v2292
        %v2327 = vadd.f32 %v2196, %v2294
        %v2328 = vrot.slane %v956, 2
        %v2329 = vrot.slane %v957, 2
        %v2330 = vsel %vm1828, %v2328, %v2329
        %v2331 = vrot.slane %v958, 2
        %v2332 = vsel %vm1828, %v2329, %v2331
        %v2335 = vpack.c.bf16 %v2332, %v2330
        %s2336 = scalar_lea.vmem [#allocation2], 56
        %v2337 = vld [vmem:[%s2336] sm:$0xf]
        %v2338 = vld [vmem:[%s2336 + $0x4] sm:$0xf]
        %v2341 = vunpack.c.l.b16 %v2337
        %v2342 = vunpack.c.l.b16 %v2338
        %v2343 = vpack.c.b16 %v2342, %v2341
        %v2346 = vsel %vm1166, %v2335, 0
        %2348 = vmatpush.bf16.msra.mxu0 0
        %2349 = vmatpush.bf16.msra.mxu0 0
        %2350 = vmatpush.bf16.msra.mxu0 0
        %2351 = vmatpush.bf16.msra.mxu0 0
        %2352 = vmatpush.bf16.msra.mxu0 0
        %2353 = vmatpush.bf16.msra.mxu0 0
        %2354 = vmatpush.bf16.msra.mxu0 0
        %2355 = vmatpush.bf16.msra.mxu0 %v2343
        %2356 = vmatmul.bf16.gmra.mxu0 %v1970
        %v2357 = vpop.f32.mrf.mxu0
        %v2358 = vadd.f32 0.0, %v2357
        %v2359 = vpop.f32.mrf.mxu0
        %v2360 = vadd.f32 0.0, %v2359
        %2361 = vmatmul.bf16.gmra.mxu0 %v1973
        %v2362 = vpop.f32.mrf.mxu0
        %v2363 = vadd.f32 0.0, %v2362
        %v2364 = vpop.f32.mrf.mxu0
        %v2365 = vadd.f32 0.0, %v2364
        %2366 = vmatmul.bf16.gmra.mxu0 %v1976
        %v2367 = vpop.f32.mrf.mxu0
        %v2368 = vadd.f32 0.0, %v2367
        %v2369 = vpop.f32.mrf.mxu0
        %v2370 = vadd.f32 0.0, %v2369
        %2371 = vmatmul.bf16.gmra.mxu0 %v1979
        %v2372 = vpop.f32.mrf.mxu0
        %v2373 = vadd.f32 0.0, %v2372
        %v2374 = vpop.f32.mrf.mxu0
        %v2375 = vadd.f32 0.0, %v2374
        %2376 = vmatmul.bf16.gmra.mxu0 %v1982
        %v2377 = vpop.f32.mrf.mxu0
        %v2378 = vadd.f32 0.0, %v2377
        %v2379 = vpop.f32.mrf.mxu0
        %v2380 = vadd.f32 0.0, %v2379
        %2381 = vmatmul.bf16.gmra.mxu0 %v1985
        %v2382 = vpop.f32.mrf.mxu0
        %v2383 = vadd.f32 0.0, %v2382
        %v2384 = vpop.f32.mrf.mxu0
        %v2385 = vadd.f32 0.0, %v2384
        %2386 = vmatmul.bf16.gmra.mxu0 %v1988
        %v2387 = vpop.f32.mrf.mxu0
        %v2388 = vadd.f32 0.0, %v2387
        %v2389 = vpop.f32.mrf.mxu0
        %v2390 = vadd.f32 0.0, %v2389
        %2391 = vmatmul.bf16.gmra.mxu0 %v1991
        %v2392 = vpop.f32.mrf.mxu0
        %v2393 = vadd.f32 0.0, %v2392
        %v2394 = vpop.f32.mrf.mxu0
        %v2395 = vadd.f32 0.0, %v2394
        %2396 = vmatmul.bf16.gmra.mxu0 %v1994
        %v2397 = vpop.f32.mrf.mxu0
        %v2398 = vadd.f32 0.0, %v2397
        %v2399 = vpop.f32.mrf.mxu0
        %v2400 = vadd.f32 0.0, %v2399
        %2401 = vmatmul.bf16.gmra.mxu0 %v1997
        %v2402 = vpop.f32.mrf.mxu0
        %v2403 = vadd.f32 0.0, %v2402
        %v2404 = vpop.f32.mrf.mxu0
        %v2405 = vadd.f32 0.0, %v2404
        %2406 = vmatmul.bf16.gmra.mxu0 %v2000
        %v2407 = vpop.f32.mrf.mxu0
        %v2408 = vadd.f32 0.0, %v2407
        %v2409 = vpop.f32.mrf.mxu0
        %v2410 = vadd.f32 0.0, %v2409
        %2411 = vmatmul.bf16.gmra.mxu0 %v2003
        %v2412 = vpop.f32.mrf.mxu0
        %v2413 = vadd.f32 0.0, %v2412
        %v2414 = vpop.f32.mrf.mxu0
        %v2415 = vadd.f32 0.0, %v2414
        %2416 = vmatmul.bf16.gmra.mxu0 %v2006
        %v2417 = vpop.f32.mrf.mxu0
        %v2418 = vadd.f32 0.0, %v2417
        %v2419 = vpop.f32.mrf.mxu0
        %v2420 = vadd.f32 0.0, %v2419
        %2421 = vmatmul.bf16.gmra.mxu0 %v2009
        %v2422 = vpop.f32.mrf.mxu0
        %v2423 = vadd.f32 0.0, %v2422
        %v2424 = vpop.f32.mrf.mxu0
        %v2425 = vadd.f32 0.0, %v2424
        %2426 = vmatmul.bf16.gmra.mxu0 %v2012
        %v2427 = vpop.f32.mrf.mxu0
        %v2428 = vadd.f32 0.0, %v2427
        %v2429 = vpop.f32.mrf.mxu0
        %v2430 = vadd.f32 0.0, %v2429
        %2431 = vmatmul.bf16.gmra.mxu0 %v2346
        %v2432 = vpop.f32.mrf.mxu0
        %v2433 = vadd.f32 0.0, %v2432
        %v2434 = vpop.f32.mrf.mxu0
        %v2435 = vadd.f32 0.0, %v2434
        %2436 = vdwg.mxu0
        %v2437 = vadd.f32 %v2296, %v2358
        %v2438 = vadd.f32 %v2297, %v2360
        %v2439 = vadd.f32 %v2298, %v2363
        %v2440 = vadd.f32 %v2299, %v2365
        %v2441 = vadd.f32 %v2300, %v2368
        %v2442 = vadd.f32 %v2301, %v2370
        %v2443 = vadd.f32 %v2302, %v2373
        %v2444 = vadd.f32 %v2303, %v2375
        %v2445 = vadd.f32 %v2304, %v2378
        %v2446 = vadd.f32 %v2305, %v2380
        %v2447 = vadd.f32 %v2306, %v2383
        %v2448 = vadd.f32 %v2307, %v2385
        %v2449 = vadd.f32 %v2308, %v2388
        %v2450 = vadd.f32 %v2309, %v2390
        %v2451 = vadd.f32 %v2310, %v2393
        %v2452 = vadd.f32 %v2311, %v2395
        %v2453 = vadd.f32 %v2312, %v2398
        %v2454 = vadd.f32 %v2313, %v2400
        %v2455 = vadd.f32 %v2314, %v2403
        %v2456 = vadd.f32 %v2315, %v2405
        %v2457 = vadd.f32 %v2316, %v2408
        %v2458 = vadd.f32 %v2317, %v2410
        %v2459 = vadd.f32 %v2318, %v2413
        %v2460 = vadd.f32 %v2319, %v2415
        %v2461 = vadd.f32 %v2320, %v2418
        %v2462 = vadd.f32 %v2321, %v2420
        %v2463 = vadd.f32 %v2322, %v2423
        %v2464 = vadd.f32 %v2323, %v2425
        %v2465 = vadd.f32 %v2324, %v2428
        %v2466 = vadd.f32 %v2325, %v2430
        %v2467 = vadd.f32 %v2326, %v2433
        %v2468 = vadd.f32 %v2327, %v2435
        %v2469 = vld [vmem:[#allocation4] sm:$0x1]
        %v2471 = vperm.slane %v2469, 0
        %v2473 = vadd.f32 %v2437, %v2471
        %v2474 = vadd.f32 %v2438, %v2471
        %v2475 = vadd.f32 %v2439, %v2471
        %v2476 = vadd.f32 %v2440, %v2471
        %v2477 = vadd.f32 %v2441, %v2471
        %v2478 = vadd.f32 %v2442, %v2471
        %v2479 = vadd.f32 %v2443, %v2471
        %v2480 = vadd.f32 %v2444, %v2471
        %v2481 = vadd.f32 %v2445, %v2471
        %v2482 = vadd.f32 %v2446, %v2471
        %v2483 = vadd.f32 %v2447, %v2471
        %v2484 = vadd.f32 %v2448, %v2471
        %v2485 = vadd.f32 %v2449, %v2471
        %v2486 = vadd.f32 %v2450, %v2471
        %v2487 = vadd.f32 %v2451, %v2471
        %v2488 = vadd.f32 %v2452, %v2471
        %v2489 = vadd.f32 %v2453, %v2471
        %v2490 = vadd.f32 %v2454, %v2471
        %v2491 = vadd.f32 %v2455, %v2471
        %v2492 = vadd.f32 %v2456, %v2471
        %v2493 = vadd.f32 %v2457, %v2471
        %v2494 = vadd.f32 %v2458, %v2471
        %v2495 = vadd.f32 %v2459, %v2471
        %v2496 = vadd.f32 %v2460, %v2471
        %v2497 = vadd.f32 %v2461, %v2471
        %v2498 = vadd.f32 %v2462, %v2471
        %v2499 = vadd.f32 %v2463, %v2471
        %v2500 = vadd.f32 %v2464, %v2471
        %v2501 = vadd.f32 %v2465, %v2471
        %v2502 = vadd.f32 %v2466, %v2471
        %v2503 = vadd.f32 %v2467, %v2471
        %v2504 = vadd.f32 %v2468, %v2471
        %v2505 = vtanh.pop %v2473
        %v2506 = vtanh.pop %v2474
        %v2507 = vtanh.pop %v2475
        %v2508 = vtanh.pop %v2476
        %v2509 = vtanh.pop %v2477
        %v2510 = vtanh.pop %v2478
        %v2511 = vtanh.pop %v2479
        %v2512 = vtanh.pop %v2480
        %v2513 = vtanh.pop %v2481
        %v2514 = vtanh.pop %v2482
        %v2515 = vtanh.pop %v2483
        %v2516 = vtanh.pop %v2484
        %v2517 = vtanh.pop %v2485
        %v2518 = vtanh.pop %v2486
        %v2519 = vtanh.pop %v2487
        %v2520 = vtanh.pop %v2488
        %v2521 = vtanh.pop %v2489
        %v2522 = vtanh.pop %v2490
        %v2523 = vtanh.pop %v2491
        %v2524 = vtanh.pop %v2492
        %v2525 = vtanh.pop %v2493
        %v2526 = vtanh.pop %v2494
        %v2527 = vtanh.pop %v2495
        %v2528 = vtanh.pop %v2496
        %v2529 = vtanh.pop %v2497
        %v2530 = vtanh.pop %v2498
        %v2531 = vtanh.pop %v2499
        %v2532 = vtanh.pop %v2500
        %v2533 = vtanh.pop %v2501
        %v2534 = vtanh.pop %v2502
        %v2535 = vtanh.pop %v2503
        %v2536 = vtanh.pop %v2504
        %s2537 = scalar_lea.vmem %s299, 256 [#allocation6]
        %2538 = vst [vmem:[%s2537] sm:$0xff] %v2505
        %2539 = vst [vmem:[%s2537 + $0x8] sm:$0xff] %v2506
        %2540 = vst [vmem:[%s2537 + $0x10] sm:$0xff] %v2507
        %2541 = vst [vmem:[%s2537 + $0x18] sm:$0xff] %v2508
        %2542 = vst [vmem:[%s2537 + $0x20] sm:$0xff] %v2509
        %2543 = vst [vmem:[%s2537 + $0x28] sm:$0xff] %v2510
        %2544 = vst [vmem:[%s2537 + $0x30] sm:$0xff] %v2511
        %2545 = vst [vmem:[%s2537 + $0x38] sm:$0xff] %v2512
        %2546 = vst [vmem:[%s2537 + $0x40] sm:$0xff] %v2513
        %2547 = vst [vmem:[%s2537 + $0x48] sm:$0xff] %v2514
        %2548 = vst [vmem:[%s2537 + $0x50] sm:$0xff] %v2515
        %2549 = vst [vmem:[%s2537 + $0x58] sm:$0xff] %v2516
        %2550 = vst [vmem:[%s2537 + $0x60] sm:$0xff] %v2517
        %2551 = vst [vmem:[%s2537 + $0x68] sm:$0xff] %v2518
        %2552 = vst [vmem:[%s2537 + $0x70] sm:$0xff] %v2519
        %2553 = vst [vmem:[%s2537 + $0x78] sm:$0xff] %v2520
        %2554 = vst [vmem:[%s2537 + $0x80] sm:$0xff] %v2521
        %2555 = vst [vmem:[%s2537 + $0x88] sm:$0xff] %v2522
        %2556 = vst [vmem:[%s2537 + $0x90] sm:$0xff] %v2523
        %2557 = vst [vmem:[%s2537 + $0x98] sm:$0xff] %v2524
        %2558 = vst [vmem:[%s2537 + $0xa0] sm:$0xff] %v2525
        %2559 = vst [vmem:[%s2537 + $0xa8] sm:$0xff] %v2526
        %2560 = vst [vmem:[%s2537 + $0xb0] sm:$0xff] %v2527
        %2561 = vst [vmem:[%s2537 + $0xb8] sm:$0xff] %v2528
        %2562 = vst [vmem:[%s2537 + $0xc0] sm:$0xff] %v2529
        %2563 = vst [vmem:[%s2537 + $0xc8] sm:$0xff] %v2530
        %2564 = vst [vmem:[%s2537 + $0xd0] sm:$0xff] %v2531
        %2565 = vst [vmem:[%s2537 + $0xd8] sm:$0xff] %v2532
        %2566 = vst [vmem:[%s2537 + $0xe0] sm:$0xff] %v2533
        %2567 = vst [vmem:[%s2537 + $0xe8] sm:$0xff] %v2534
        %2568 = vst [vmem:[%s2537 + $0xf0] sm:$0xff] %v2535
        %2569 = vst [vmem:[%s2537 + $0xf8] sm:$0xff] %v2536
        %s2570 = scalar_lea.vmem [#allocation2], 64
        %v2571 = vld [vmem:[%s2570] sm:$0xf]
        %v2572 = vld [vmem:[%s2570 + $0x4] sm:$0xf]
        %s2573 = scalar_lea.vmem [#allocation2], 72
        %v2574 = vld [vmem:[%s2573] sm:$0xf]
        %v2575 = vld [vmem:[%s2573 + $0x4] sm:$0xf]
        %v2578 = vunpack.c.l.b16 %v2574
        %v2579 = vunpack.c.l.b16 %v2575
        %v2580 = vpack.c.b16 %v2579, %v2578
        %2582 = vmatpush.bf16.msra.mxu0 0
        %2583 = vmatpush.bf16.msra.mxu0 0
        %2584 = vmatpush.bf16.msra.mxu0 0
        %2585 = vmatpush.bf16.msra.mxu0 0
        %2586 = vmatpush.bf16.msra.mxu0 0
        %2587 = vmatpush.bf16.msra.mxu0 0
        %2588 = vmatpush.bf16.msra.mxu0 0
        %2589 = vmatpush.bf16.msra.mxu0 %v2580
        %2590 = vmatmul.bf16.gmra.mxu0 %v1171
        %v2591 = vpop.f32.mrf.mxu0
        %v2592 = vadd.f32 0.0, %v2591
        %v2593 = vpop.f32.mrf.mxu0
        %v2594 = vadd.f32 0.0, %v2593
        %2595 = vmatmul.bf16.gmra.mxu0 %v1174
        %v2596 = vpop.f32.mrf.mxu0
        %v2597 = vadd.f32 0.0, %v2596
        %v2598 = vpop.f32.mrf.mxu0
        %v2599 = vadd.f32 0.0, %v2598
        %2600 = vmatmul.bf16.gmra.mxu0 %v1177
        %v2601 = vpop.f32.mrf.mxu0
        %v2602 = vadd.f32 0.0, %v2601
        %v2603 = vpop.f32.mrf.mxu0
        %v2604 = vadd.f32 0.0, %v2603
        %2605 = vmatmul.bf16.gmra.mxu0 %v1180
        %v2606 = vpop.f32.mrf.mxu0
        %v2607 = vadd.f32 0.0, %v2606
        %v2608 = vpop.f32.mrf.mxu0
        %v2609 = vadd.f32 0.0, %v2608
        %2610 = vmatmul.bf16.gmra.mxu0 %v1183
        %v2611 = vpop.f32.mrf.mxu0
        %v2612 = vadd.f32 0.0, %v2611
        %v2613 = vpop.f32.mrf.mxu0
        %v2614 = vadd.f32 0.0, %v2613
        %2615 = vmatmul.bf16.gmra.mxu0 %v1186
        %v2616 = vpop.f32.mrf.mxu0
        %v2617 = vadd.f32 0.0, %v2616
        %v2618 = vpop.f32.mrf.mxu0
        %v2619 = vadd.f32 0.0, %v2618
        %2620 = vmatmul.bf16.gmra.mxu0 %v1189
        %v2621 = vpop.f32.mrf.mxu0
        %v2622 = vadd.f32 0.0, %v2621
        %v2623 = vpop.f32.mrf.mxu0
        %v2624 = vadd.f32 0.0, %v2623
        %2625 = vmatmul.bf16.gmra.mxu0 %v1192
        %v2626 = vpop.f32.mrf.mxu0
        %v2627 = vadd.f32 0.0, %v2626
        %v2628 = vpop.f32.mrf.mxu0
        %v2629 = vadd.f32 0.0, %v2628
        %2630 = vmatmul.bf16.gmra.mxu0 %v1195
        %v2631 = vpop.f32.mrf.mxu0
        %v2632 = vadd.f32 0.0, %v2631
        %v2633 = vpop.f32.mrf.mxu0
        %v2634 = vadd.f32 0.0, %v2633
        %2635 = vmatmul.bf16.gmra.mxu0 %v1198
        %v2636 = vpop.f32.mrf.mxu0
        %v2637 = vadd.f32 0.0, %v2636
        %v2638 = vpop.f32.mrf.mxu0
        %v2639 = vadd.f32 0.0, %v2638
        %2640 = vmatmul.bf16.gmra.mxu0 %v1201
        %v2641 = vpop.f32.mrf.mxu0
        %v2642 = vadd.f32 0.0, %v2641
        %v2643 = vpop.f32.mrf.mxu0
        %v2644 = vadd.f32 0.0, %v2643
        %2645 = vmatmul.bf16.gmra.mxu0 %v1204
        %v2646 = vpop.f32.mrf.mxu0
        %v2647 = vadd.f32 0.0, %v2646
        %v2648 = vpop.f32.mrf.mxu0
        %v2649 = vadd.f32 0.0, %v2648
        %2650 = vmatmul.bf16.gmra.mxu0 %v1207
        %v2651 = vpop.f32.mrf.mxu0
        %v2652 = vadd.f32 0.0, %v2651
        %v2653 = vpop.f32.mrf.mxu0
        %v2654 = vadd.f32 0.0, %v2653
        %2655 = vmatmul.bf16.gmra.mxu0 %v1210
        %v2656 = vpop.f32.mrf.mxu0
        %v2657 = vadd.f32 0.0, %v2656
        %v2658 = vpop.f32.mrf.mxu0
        %v2659 = vadd.f32 0.0, %v2658
        %2660 = vmatmul.bf16.gmra.mxu0 %v1213
        %v2661 = vpop.f32.mrf.mxu0
        %v2662 = vadd.f32 0.0, %v2661
        %v2663 = vpop.f32.mrf.mxu0
        %v2664 = vadd.f32 0.0, %v2663
        %2665 = vmatmul.bf16.gmra.mxu0 %v1602
        %v2666 = vpop.f32.mrf.mxu0
        %v2667 = vadd.f32 0.0, %v2666
        %v2668 = vpop.f32.mrf.mxu0
        %v2669 = vadd.f32 0.0, %v2668
        %2670 = vdwg.mxu0
        %v2673 = vunpack.c.l.b16 %v2571
        %v2674 = vunpack.c.l.b16 %v2572
        %v2675 = vpack.c.b16 %v2674, %v2673
        %2677 = vmatpush.bf16.msra.mxu0 0
        %2678 = vmatpush.bf16.msra.mxu0 0
        %2679 = vmatpush.bf16.msra.mxu0 0
        %2680 = vmatpush.bf16.msra.mxu0 0
        %2681 = vmatpush.bf16.msra.mxu0 0
        %2682 = vmatpush.bf16.msra.mxu0 0
        %2683 = vmatpush.bf16.msra.mxu0 0
        %2684 = vmatpush.bf16.msra.mxu0 %v2675
        %2685 = vmatmul.bf16.gmra.mxu0 %v1314
        %v2686 = vpop.f32.mrf.mxu0
        %v2687 = vadd.f32 %v2592, %v2686
        %v2688 = vpop.f32.mrf.mxu0
        %v2689 = vadd.f32 %v2594, %v2688
        %2690 = vmatmul.bf16.gmra.mxu0 %v1317
        %v2691 = vpop.f32.mrf.mxu0
        %v2692 = vadd.f32 %v2597, %v2691
        %v2693 = vpop.f32.mrf.mxu0
        %v2694 = vadd.f32 %v2599, %v2693
        %2695 = vmatmul.bf16.gmra.mxu0 %v1320
        %v2696 = vpop.f32.mrf.mxu0
        %v2697 = vadd.f32 %v2602, %v2696
        %v2698 = vpop.f32.mrf.mxu0
        %v2699 = vadd.f32 %v2604, %v2698
        %2700 = vmatmul.bf16.gmra.mxu0 %v1323
        %v2701 = vpop.f32.mrf.mxu0
        %v2702 = vadd.f32 %v2607, %v2701
        %v2703 = vpop.f32.mrf.mxu0
        %v2704 = vadd.f32 %v2609, %v2703
        %2705 = vmatmul.bf16.gmra.mxu0 %v1326
        %v2706 = vpop.f32.mrf.mxu0
        %v2707 = vadd.f32 %v2612, %v2706
        %v2708 = vpop.f32.mrf.mxu0
        %v2709 = vadd.f32 %v2614, %v2708
        %2710 = vmatmul.bf16.gmra.mxu0 %v1329
        %v2711 = vpop.f32.mrf.mxu0
        %v2712 = vadd.f32 %v2617, %v2711
        %v2713 = vpop.f32.mrf.mxu0
        %v2714 = vadd.f32 %v2619, %v2713
        %2715 = vmatmul.bf16.gmra.mxu0 %v1332
        %v2716 = vpop.f32.mrf.mxu0
        %v2717 = vadd.f32 %v2622, %v2716
        %v2718 = vpop.f32.mrf.mxu0
        %v2719 = vadd.f32 %v2624, %v2718
        %2720 = vmatmul.bf16.gmra.mxu0 %v1335
        %v2721 = vpop.f32.mrf.mxu0
        %v2722 = vadd.f32 %v2627, %v2721
        %v2723 = vpop.f32.mrf.mxu0
        %v2724 = vadd.f32 %v2629, %v2723
        %2725 = vmatmul.bf16.gmra.mxu0 %v1338
        %v2726 = vpop.f32.mrf.mxu0
        %v2727 = vadd.f32 %v2632, %v2726
        %v2728 = vpop.f32.mrf.mxu0
        %v2729 = vadd.f32 %v2634, %v2728
        %2730 = vmatmul.bf16.gmra.mxu0 %v1341
        %v2731 = vpop.f32.mrf.mxu0
        %v2732 = vadd.f32 %v2637, %v2731
        %v2733 = vpop.f32.mrf.mxu0
        %v2734 = vadd.f32 %v2639, %v2733
        %2735 = vmatmul.bf16.gmra.mxu0 %v1344
        %v2736 = vpop.f32.mrf.mxu0
        %v2737 = vadd.f32 %v2642, %v2736
        %v2738 = vpop.f32.mrf.mxu0
        %v2739 = vadd.f32 %v2644, %v2738
        %2740 = vmatmul.bf16.gmra.mxu0 %v1347
        %v2741 = vpop.f32.mrf.mxu0
        %v2742 = vadd.f32 %v2647, %v2741
        %v2743 = vpop.f32.mrf.mxu0
        %v2744 = vadd.f32 %v2649, %v2743
        %2745 = vmatmul.bf16.gmra.mxu0 %v1350
        %v2746 = vpop.f32.mrf.mxu0
        %v2747 = vadd.f32 %v2652, %v2746
        %v2748 = vpop.f32.mrf.mxu0
        %v2749 = vadd.f32 %v2654, %v2748
        %2750 = vmatmul.bf16.gmra.mxu0 %v1353
        %v2751 = vpop.f32.mrf.mxu0
        %v2752 = vadd.f32 %v2657, %v2751
        %v2753 = vpop.f32.mrf.mxu0
        %v2754 = vadd.f32 %v2659, %v2753
        %2755 = vmatmul.bf16.gmra.mxu0 %v1356
        %v2756 = vpop.f32.mrf.mxu0
        %v2757 = vadd.f32 %v2662, %v2756
        %v2758 = vpop.f32.mrf.mxu0
        %v2759 = vadd.f32 %v2664, %v2758
        %2760 = vmatmul.bf16.gmra.mxu0 %v1458
        %v2761 = vpop.f32.mrf.mxu0
        %v2762 = vadd.f32 %v2667, %v2761
        %v2763 = vpop.f32.mrf.mxu0
        %v2764 = vadd.f32 %v2669, %v2763
        %2765 = vdwg.mxu0
        %v2766 = vpack.c.bf16 %v960, %v959
        %s2767 = scalar_lea.vmem [#allocation2], 80
        %v2768 = vld [vmem:[%s2767] sm:$0xf]
        %v2769 = vld [vmem:[%s2767 + $0x4] sm:$0xf]
        %v2772 = vunpack.c.l.b16 %v2768
        %v2773 = vunpack.c.l.b16 %v2769
        %v2774 = vpack.c.b16 %v2773, %v2772
        %v2777 = vsel %vm1166, %v2766, 0
        %2779 = vmatpush.bf16.msra.mxu0 0
        %2780 = vmatpush.bf16.msra.mxu0 0
        %2781 = vmatpush.bf16.msra.mxu0 0
        %2782 = vmatpush.bf16.msra.mxu0 0
        %2783 = vmatpush.bf16.msra.mxu0 0
        %2784 = vmatpush.bf16.msra.mxu0 0
        %2785 = vmatpush.bf16.msra.mxu0 0
        %2786 = vmatpush.bf16.msra.mxu0 %v2774
        %2787 = vmatmul.bf16.gmra.mxu0 %v1317
        %v2788 = vpop.f32.mrf.mxu0
        %v2789 = vadd.f32 0.0, %v2788
        %v2790 = vpop.f32.mrf.mxu0
        %v2791 = vadd.f32 0.0, %v2790
        %2792 = vmatmul.bf16.gmra.mxu0 %v1320
        %v2793 = vpop.f32.mrf.mxu0
        %v2794 = vadd.f32 0.0, %v2793
        %v2795 = vpop.f32.mrf.mxu0
        %v2796 = vadd.f32 0.0, %v2795
        %2797 = vmatmul.bf16.gmra.mxu0 %v1323
        %v2798 = vpop.f32.mrf.mxu0
        %v2799 = vadd.f32 0.0, %v2798
        %v2800 = vpop.f32.mrf.mxu0
        %v2801 = vadd.f32 0.0, %v2800
        %2802 = vmatmul.bf16.gmra.mxu0 %v1326
        %v2803 = vpop.f32.mrf.mxu0
        %v2804 = vadd.f32 0.0, %v2803
        %v2805 = vpop.f32.mrf.mxu0
        %v2806 = vadd.f32 0.0, %v2805
        %2807 = vmatmul.bf16.gmra.mxu0 %v1329
        %v2808 = vpop.f32.mrf.mxu0
        %v2809 = vadd.f32 0.0, %v2808
        %v2810 = vpop.f32.mrf.mxu0
        %v2811 = vadd.f32 0.0, %v2810
        %2812 = vmatmul.bf16.gmra.mxu0 %v1332
        %v2813 = vpop.f32.mrf.mxu0
        %v2814 = vadd.f32 0.0, %v2813
        %v2815 = vpop.f32.mrf.mxu0
        %v2816 = vadd.f32 0.0, %v2815
        %2817 = vmatmul.bf16.gmra.mxu0 %v1335
        %v2818 = vpop.f32.mrf.mxu0
        %v2819 = vadd.f32 0.0, %v2818
        %v2820 = vpop.f32.mrf.mxu0
        %v2821 = vadd.f32 0.0, %v2820
        %2822 = vmatmul.bf16.gmra.mxu0 %v1338
        %v2823 = vpop.f32.mrf.mxu0
        %v2824 = vadd.f32 0.0, %v2823
        %v2825 = vpop.f32.mrf.mxu0
        %v2826 = vadd.f32 0.0, %v2825
        %2827 = vmatmul.bf16.gmra.mxu0 %v1341
        %v2828 = vpop.f32.mrf.mxu0
        %v2829 = vadd.f32 0.0, %v2828
        %v2830 = vpop.f32.mrf.mxu0
        %v2831 = vadd.f32 0.0, %v2830
        %2832 = vmatmul.bf16.gmra.mxu0 %v1344
        %v2833 = vpop.f32.mrf.mxu0
        %v2834 = vadd.f32 0.0, %v2833
        %v2835 = vpop.f32.mrf.mxu0
        %v2836 = vadd.f32 0.0, %v2835
        %2837 = vmatmul.bf16.gmra.mxu0 %v1347
        %v2838 = vpop.f32.mrf.mxu0
        %v2839 = vadd.f32 0.0, %v2838
        %v2840 = vpop.f32.mrf.mxu0
        %v2841 = vadd.f32 0.0, %v2840
        %2842 = vmatmul.bf16.gmra.mxu0 %v1350
        %v2843 = vpop.f32.mrf.mxu0
        %v2844 = vadd.f32 0.0, %v2843
        %v2845 = vpop.f32.mrf.mxu0
        %v2846 = vadd.f32 0.0, %v2845
        %2847 = vmatmul.bf16.gmra.mxu0 %v1353
        %v2848 = vpop.f32.mrf.mxu0
        %v2849 = vadd.f32 0.0, %v2848
        %v2850 = vpop.f32.mrf.mxu0
        %v2851 = vadd.f32 0.0, %v2850
        %2852 = vmatmul.bf16.gmra.mxu0 %v1356
        %v2853 = vpop.f32.mrf.mxu0
        %v2854 = vadd.f32 0.0, %v2853
        %v2855 = vpop.f32.mrf.mxu0
        %v2856 = vadd.f32 0.0, %v2855
        %2857 = vmatmul.bf16.gmra.mxu0 %v1458
        %v2858 = vpop.f32.mrf.mxu0
        %v2859 = vadd.f32 0.0, %v2858
        %v2860 = vpop.f32.mrf.mxu0
        %v2861 = vadd.f32 0.0, %v2860
        %2862 = vmatmul.bf16.gmra.mxu0 %v2777
        %v2863 = vpop.f32.mrf.mxu0
        %v2864 = vadd.f32 0.0, %v2863
        %v2865 = vpop.f32.mrf.mxu0
        %v2866 = vadd.f32 0.0, %v2865
        %2867 = vdwg.mxu0
        %v2868 = vadd.f32 %v2687, %v2789
        %v2869 = vadd.f32 %v2689, %v2791
        %v2870 = vadd.f32 %v2692, %v2794
        %v2871 = vadd.f32 %v2694, %v2796
        %v2872 = vadd.f32 %v2697, %v2799
        %v2873 = vadd.f32 %v2699, %v2801
        %v2874 = vadd.f32 %v2702, %v2804
        %v2875 = vadd.f32 %v2704, %v2806
        %v2876 = vadd.f32 %v2707, %v2809
        %v2877 = vadd.f32 %v2709, %v2811
        %v2878 = vadd.f32 %v2712, %v2814
        %v2879 = vadd.f32 %v2714, %v2816
        %v2880 = vadd.f32 %v2717, %v2819
        %v2881 = vadd.f32 %v2719, %v2821
        %v2882 = vadd.f32 %v2722, %v2824
        %v2883 = vadd.f32 %v2724, %v2826
        %v2884 = vadd.f32 %v2727, %v2829
        %v2885 = vadd.f32 %v2729, %v2831
        %v2886 = vadd.f32 %v2732, %v2834
        %v2887 = vadd.f32 %v2734, %v2836
        %v2888 = vadd.f32 %v2737, %v2839
        %v2889 = vadd.f32 %v2739, %v2841
        %v2890 = vadd.f32 %v2742, %v2844
        %v2891 = vadd.f32 %v2744, %v2846
        %v2892 = vadd.f32 %v2747, %v2849
        %v2893 = vadd.f32 %v2749, %v2851
        %v2894 = vadd.f32 %v2752, %v2854
        %v2895 = vadd.f32 %v2754, %v2856
        %v2896 = vadd.f32 %v2757, %v2859
        %v2897 = vadd.f32 %v2759, %v2861
        %v2898 = vadd.f32 %v2762, %v2864
        %v2899 = vadd.f32 %v2764, %v2866
        %v2903 = vrot.slane %v959, 1
        %v2904 = vrot.slane %v960, 1
        %v2905 = vsel %vm1028, %v2903, %v2904
        %v2906 = vrot.slane %v961, 1
        %v2907 = vsel %vm1028, %v2904, %v2906
        %v2910 = vpack.c.bf16 %v2907, %v2905
        %s2911 = scalar_lea.vmem [#allocation2], 88
        %v2912 = vld [vmem:[%s2911] sm:$0xf]
        %v2913 = vld [vmem:[%s2911 + $0x4] sm:$0xf]
        %v2916 = vunpack.c.l.b16 %v2912
        %v2917 = vunpack.c.l.b16 %v2913
        %v2918 = vpack.c.b16 %v2917, %v2916
        %v2921 = vsel %vm1166, %v2910, 0
        %2923 = vmatpush.bf16.msra.mxu0 0
        %2924 = vmatpush.bf16.msra.mxu0 0
        %2925 = vmatpush.bf16.msra.mxu0 0
        %2926 = vmatpush.bf16.msra.mxu0 0
        %2927 = vmatpush.bf16.msra.mxu0 0
        %2928 = vmatpush.bf16.msra.mxu0 0
        %2929 = vmatpush.bf16.msra.mxu0 0
        %2930 = vmatpush.bf16.msra.mxu0 %v2918
        %2931 = vmatmul.bf16.gmra.mxu0 %v1174
        %v2932 = vpop.f32.mrf.mxu0
        %v2933 = vadd.f32 0.0, %v2932
        %v2934 = vpop.f32.mrf.mxu0
        %v2935 = vadd.f32 0.0, %v2934
        %2936 = vmatmul.bf16.gmra.mxu0 %v1177
        %v2937 = vpop.f32.mrf.mxu0
        %v2938 = vadd.f32 0.0, %v2937
        %v2939 = vpop.f32.mrf.mxu0
        %v2940 = vadd.f32 0.0, %v2939
        %2941 = vmatmul.bf16.gmra.mxu0 %v1180
        %v2942 = vpop.f32.mrf.mxu0
        %v2943 = vadd.f32 0.0, %v2942
        %v2944 = vpop.f32.mrf.mxu0
        %v2945 = vadd.f32 0.0, %v2944
        %2946 = vmatmul.bf16.gmra.mxu0 %v1183
        %v2947 = vpop.f32.mrf.mxu0
        %v2948 = vadd.f32 0.0, %v2947
        %v2949 = vpop.f32.mrf.mxu0
        %v2950 = vadd.f32 0.0, %v2949
        %2951 = vmatmul.bf16.gmra.mxu0 %v1186
        %v2952 = vpop.f32.mrf.mxu0
        %v2953 = vadd.f32 0.0, %v2952
        %v2954 = vpop.f32.mrf.mxu0
        %v2955 = vadd.f32 0.0, %v2954
        %2956 = vmatmul.bf16.gmra.mxu0 %v1189
        %v2957 = vpop.f32.mrf.mxu0
        %v2958 = vadd.f32 0.0, %v2957
        %v2959 = vpop.f32.mrf.mxu0
        %v2960 = vadd.f32 0.0, %v2959
        %2961 = vmatmul.bf16.gmra.mxu0 %v1192
        %v2962 = vpop.f32.mrf.mxu0
        %v2963 = vadd.f32 0.0, %v2962
        %v2964 = vpop.f32.mrf.mxu0
        %v2965 = vadd.f32 0.0, %v2964
        %2966 = vmatmul.bf16.gmra.mxu0 %v1195
        %v2967 = vpop.f32.mrf.mxu0
        %v2968 = vadd.f32 0.0, %v2967
        %v2969 = vpop.f32.mrf.mxu0
        %v2970 = vadd.f32 0.0, %v2969
        %2971 = vmatmul.bf16.gmra.mxu0 %v1198
        %v2972 = vpop.f32.mrf.mxu0
        %v2973 = vadd.f32 0.0, %v2972
        %v2974 = vpop.f32.mrf.mxu0
        %v2975 = vadd.f32 0.0, %v2974
        %2976 = vmatmul.bf16.gmra.mxu0 %v1201
        %v2977 = vpop.f32.mrf.mxu0
        %v2978 = vadd.f32 0.0, %v2977
        %v2979 = vpop.f32.mrf.mxu0
        %v2980 = vadd.f32 0.0, %v2979
        %2981 = vmatmul.bf16.gmra.mxu0 %v1204
        %v2982 = vpop.f32.mrf.mxu0
        %v2983 = vadd.f32 0.0, %v2982
        %v2984 = vpop.f32.mrf.mxu0
        %v2985 = vadd.f32 0.0, %v2984
        %2986 = vmatmul.bf16.gmra.mxu0 %v1207
        %v2987 = vpop.f32.mrf.mxu0
        %v2988 = vadd.f32 0.0, %v2987
        %v2989 = vpop.f32.mrf.mxu0
        %v2990 = vadd.f32 0.0, %v2989
        %2991 = vmatmul.bf16.gmra.mxu0 %v1210
        %v2992 = vpop.f32.mrf.mxu0
        %v2993 = vadd.f32 0.0, %v2992
        %v2994 = vpop.f32.mrf.mxu0
        %v2995 = vadd.f32 0.0, %v2994
        %2996 = vmatmul.bf16.gmra.mxu0 %v1213
        %v2997 = vpop.f32.mrf.mxu0
        %v2998 = vadd.f32 0.0, %v2997
        %v2999 = vpop.f32.mrf.mxu0
        %v3000 = vadd.f32 0.0, %v2999
        %3001 = vmatmul.bf16.gmra.mxu0 %v1602
        %v3002 = vpop.f32.mrf.mxu0
        %v3003 = vadd.f32 0.0, %v3002
        %v3004 = vpop.f32.mrf.mxu0
        %v3005 = vadd.f32 0.0, %v3004
        %3006 = vmatmul.bf16.gmra.mxu0 %v2921
        %v3007 = vpop.f32.mrf.mxu0
        %v3008 = vadd.f32 0.0, %v3007
        %v3009 = vpop.f32.mrf.mxu0
        %v3010 = vadd.f32 0.0, %v3009
        %3011 = vdwg.mxu0
        %v3012 = vadd.f32 %v2868, %v2933
        %v3013 = vadd.f32 %v2869, %v2935
        %v3014 = vadd.f32 %v2870, %v2938
        %v3015 = vadd.f32 %v2871, %v2940
        %v3016 = vadd.f32 %v2872, %v2943
        %v3017 = vadd.f32 %v2873, %v2945
        %v3018 = vadd.f32 %v2874, %v2948
        %v3019 = vadd.f32 %v2875, %v2950
        %v3020 = vadd.f32 %v2876, %v2953
        %v3021 = vadd.f32 %v2877, %v2955
        %v3022 = vadd.f32 %v2878, %v2958
        %v3023 = vadd.f32 %v2879, %v2960
        %v3024 = vadd.f32 %v2880, %v2963
        %v3025 = vadd.f32 %v2881, %v2965
        %v3026 = vadd.f32 %v2882, %v2968
        %v3027 = vadd.f32 %v2883, %v2970
        %v3028 = vadd.f32 %v2884, %v2973
        %v3029 = vadd.f32 %v2885, %v2975
        %v3030 = vadd.f32 %v2886, %v2978
        %v3031 = vadd.f32 %v2887, %v2980
        %v3032 = vadd.f32 %v2888, %v2983
        %v3033 = vadd.f32 %v2889, %v2985
        %v3034 = vadd.f32 %v2890, %v2988
        %v3035 = vadd.f32 %v2891, %v2990
        %v3036 = vadd.f32 %v2892, %v2993
        %v3037 = vadd.f32 %v2893, %v2995
        %v3038 = vadd.f32 %v2894, %v2998
        %v3039 = vadd.f32 %v2895, %v3000
        %v3040 = vadd.f32 %v2896, %v3003
        %v3041 = vadd.f32 %v2897, %v3005
        %v3042 = vadd.f32 %v2898, %v3008
        %v3043 = vadd.f32 %v2899, %v3010
        %v3044 = vld [vmem:[#allocation4] sm:$0x1]
        %v3046 = vperm.slane %v3044, 0
        %v3048 = vadd.f32 %v3012, %v3046
        %v3049 = vadd.f32 %v3013, %v3046
        %v3050 = vadd.f32 %v3014, %v3046
        %v3051 = vadd.f32 %v3015, %v3046
        %v3052 = vadd.f32 %v3016, %v3046
        %v3053 = vadd.f32 %v3017, %v3046
        %v3054 = vadd.f32 %v3018, %v3046
        %v3055 = vadd.f32 %v3019, %v3046
        %v3056 = vadd.f32 %v3020, %v3046
        %v3057 = vadd.f32 %v3021, %v3046
        %v3058 = vadd.f32 %v3022, %v3046
        %v3059 = vadd.f32 %v3023, %v3046
        %v3060 = vadd.f32 %v3024, %v3046
        %v3061 = vadd.f32 %v3025, %v3046
        %v3062 = vadd.f32 %v3026, %v3046
        %v3063 = vadd.f32 %v3027, %v3046
        %v3064 = vadd.f32 %v3028, %v3046
        %v3065 = vadd.f32 %v3029, %v3046
        %v3066 = vadd.f32 %v3030, %v3046
        %v3067 = vadd.f32 %v3031, %v3046
        %v3068 = vadd.f32 %v3032, %v3046
        %v3069 = vadd.f32 %v3033, %v3046
        %v3070 = vadd.f32 %v3034, %v3046
        %v3071 = vadd.f32 %v3035, %v3046
        %v3072 = vadd.f32 %v3036, %v3046
        %v3073 = vadd.f32 %v3037, %v3046
        %v3074 = vadd.f32 %v3038, %v3046
        %v3075 = vadd.f32 %v3039, %v3046
        %v3076 = vadd.f32 %v3040, %v3046
        %v3077 = vadd.f32 %v3041, %v3046
        %v3078 = vadd.f32 %v3042, %v3046
        %v3079 = vadd.f32 %v3043, %v3046
        %v3080 = vtanh.pop %v3048
        %v3081 = vtanh.pop %v3049
        %v3082 = vtanh.pop %v3050
        %v3083 = vtanh.pop %v3051
        %v3084 = vtanh.pop %v3052
        %v3085 = vtanh.pop %v3053
        %v3086 = vtanh.pop %v3054
        %v3087 = vtanh.pop %v3055
        %v3088 = vtanh.pop %v3056
        %v3089 = vtanh.pop %v3057
        %v3090 = vtanh.pop %v3058
        %v3091 = vtanh.pop %v3059
        %v3092 = vtanh.pop %v3060
        %v3093 = vtanh.pop %v3061
        %v3094 = vtanh.pop %v3062
        %v3095 = vtanh.pop %v3063
        %v3096 = vtanh.pop %v3064
        %v3097 = vtanh.pop %v3065
        %v3098 = vtanh.pop %v3066
        %v3099 = vtanh.pop %v3067
        %v3100 = vtanh.pop %v3068
        %v3101 = vtanh.pop %v3069
        %v3102 = vtanh.pop %v3070
        %v3103 = vtanh.pop %v3071
        %v3104 = vtanh.pop %v3072
        %v3105 = vtanh.pop %v3073
        %v3106 = vtanh.pop %v3074
        %v3107 = vtanh.pop %v3075
        %v3108 = vtanh.pop %v3076
        %v3109 = vtanh.pop %v3077
        %v3110 = vtanh.pop %v3078
        %v3111 = vtanh.pop %v3079
        %s3112 = scalar_lea.vmem %s299, 512 [#allocation6]
        %3113 = vst [vmem:[%s3112] sm:$0xff] %v3080
        %3114 = vst [vmem:[%s3112 + $0x8] sm:$0xff] %v3081
        %3115 = vst [vmem:[%s3112 + $0x10] sm:$0xff] %v3082
        %3116 = vst [vmem:[%s3112 + $0x18] sm:$0xff] %v3083
        %3117 = vst [vmem:[%s3112 + $0x20] sm:$0xff] %v3084
        %3118 = vst [vmem:[%s3112 + $0x28] sm:$0xff] %v3085
        %3119 = vst [vmem:[%s3112 + $0x30] sm:$0xff] %v3086
        %3120 = vst [vmem:[%s3112 + $0x38] sm:$0xff] %v3087
        %3121 = vst [vmem:[%s3112 + $0x40] sm:$0xff] %v3088
        %3122 = vst [vmem:[%s3112 + $0x48] sm:$0xff] %v3089
        %3123 = vst [vmem:[%s3112 + $0x50] sm:$0xff] %v3090
        %3124 = vst [vmem:[%s3112 + $0x58] sm:$0xff] %v3091
        %3125 = vst [vmem:[%s3112 + $0x60] sm:$0xff] %v3092
        %3126 = vst [vmem:[%s3112 + $0x68] sm:$0xff] %v3093
        %3127 = vst [vmem:[%s3112 + $0x70] sm:$0xff] %v3094
        %3128 = vst [vmem:[%s3112 + $0x78] sm:$0xff] %v3095
        %3129 = vst [vmem:[%s3112 + $0x80] sm:$0xff] %v3096
        %3130 = vst [vmem:[%s3112 + $0x88] sm:$0xff] %v3097
        %3131 = vst [vmem:[%s3112 + $0x90] sm:$0xff] %v3098
        %3132 = vst [vmem:[%s3112 + $0x98] sm:$0xff] %v3099
        %3133 = vst [vmem:[%s3112 + $0xa0] sm:$0xff] %v3100
        %3134 = vst [vmem:[%s3112 + $0xa8] sm:$0xff] %v3101
        %3135 = vst [vmem:[%s3112 + $0xb0] sm:$0xff] %v3102
        %3136 = vst [vmem:[%s3112 + $0xb8] sm:$0xff] %v3103
        %3137 = vst [vmem:[%s3112 + $0xc0] sm:$0xff] %v3104
        %3138 = vst [vmem:[%s3112 + $0xc8] sm:$0xff] %v3105
        %3139 = vst [vmem:[%s3112 + $0xd0] sm:$0xff] %v3106
        %3140 = vst [vmem:[%s3112 + $0xd8] sm:$0xff] %v3107
        %3141 = vst [vmem:[%s3112 + $0xe0] sm:$0xff] %v3108
        %3142 = vst [vmem:[%s3112 + $0xe8] sm:$0xff] %v3109
        %3143 = vst [vmem:[%s3112 + $0xf0] sm:$0xff] %v3110
        %3144 = vst [vmem:[%s3112 + $0xf8] sm:$0xff] %v3111
        %s3145 = scalar_lea.vmem [#allocation2], 96
        %v3146 = vld [vmem:[%s3145] sm:$0xf]
        %v3147 = vld [vmem:[%s3145 + $0x4] sm:$0xf]
        %s3148 = scalar_lea.vmem [#allocation2], 104
        %v3149 = vld [vmem:[%s3148] sm:$0xf]
        %v3150 = vld [vmem:[%s3148 + $0x4] sm:$0xf]
        %v3153 = vunpack.c.l.b16 %v3149
        %v3154 = vunpack.c.l.b16 %v3150
        %v3155 = vpack.c.b16 %v3154, %v3153
        %3157 = vmatpush.bf16.msra.mxu0 0
        %3158 = vmatpush.bf16.msra.mxu0 0
        %3159 = vmatpush.bf16.msra.mxu0 0
        %3160 = vmatpush.bf16.msra.mxu0 0
        %3161 = vmatpush.bf16.msra.mxu0 0
        %3162 = vmatpush.bf16.msra.mxu0 0
        %3163 = vmatpush.bf16.msra.mxu0 0
        %3164 = vmatpush.bf16.msra.mxu0 %v3155
        %3165 = vmatmul.bf16.gmra.mxu0 %v1970
        %v3166 = vpop.f32.mrf.mxu0
        %v3167 = vadd.f32 0.0, %v3166
        %v3168 = vpop.f32.mrf.mxu0
        %v3169 = vadd.f32 0.0, %v3168
        %3170 = vmatmul.bf16.gmra.mxu0 %v1973
        %v3171 = vpop.f32.mrf.mxu0
        %v3172 = vadd.f32 0.0, %v3171
        %v3173 = vpop.f32.mrf.mxu0
        %v3174 = vadd.f32 0.0, %v3173
        %3175 = vmatmul.bf16.gmra.mxu0 %v1976
        %v3176 = vpop.f32.mrf.mxu0
        %v3177 = vadd.f32 0.0, %v3176
        %v3178 = vpop.f32.mrf.mxu0
        %v3179 = vadd.f32 0.0, %v3178
        %3180 = vmatmul.bf16.gmra.mxu0 %v1979
        %v3181 = vpop.f32.mrf.mxu0
        %v3182 = vadd.f32 0.0, %v3181
        %v3183 = vpop.f32.mrf.mxu0
        %v3184 = vadd.f32 0.0, %v3183
        %3185 = vmatmul.bf16.gmra.mxu0 %v1982
        %v3186 = vpop.f32.mrf.mxu0
        %v3187 = vadd.f32 0.0, %v3186
        %v3188 = vpop.f32.mrf.mxu0
        %v3189 = vadd.f32 0.0, %v3188
        %3190 = vmatmul.bf16.gmra.mxu0 %v1985
        %v3191 = vpop.f32.mrf.mxu0
        %v3192 = vadd.f32 0.0, %v3191
        %v3193 = vpop.f32.mrf.mxu0
        %v3194 = vadd.f32 0.0, %v3193
        %3195 = vmatmul.bf16.gmra.mxu0 %v1988
        %v3196 = vpop.f32.mrf.mxu0
        %v3197 = vadd.f32 0.0, %v3196
        %v3198 = vpop.f32.mrf.mxu0
        %v3199 = vadd.f32 0.0, %v3198
        %3200 = vmatmul.bf16.gmra.mxu0 %v1991
        %v3201 = vpop.f32.mrf.mxu0
        %v3202 = vadd.f32 0.0, %v3201
        %v3203 = vpop.f32.mrf.mxu0
        %v3204 = vadd.f32 0.0, %v3203
        %3205 = vmatmul.bf16.gmra.mxu0 %v1994
        %v3206 = vpop.f32.mrf.mxu0
        %v3207 = vadd.f32 0.0, %v3206
        %v3208 = vpop.f32.mrf.mxu0
        %v3209 = vadd.f32 0.0, %v3208
        %3210 = vmatmul.bf16.gmra.mxu0 %v1997
        %v3211 = vpop.f32.mrf.mxu0
        %v3212 = vadd.f32 0.0, %v3211
        %v3213 = vpop.f32.mrf.mxu0
        %v3214 = vadd.f32 0.0, %v3213
        %3215 = vmatmul.bf16.gmra.mxu0 %v2000
        %v3216 = vpop.f32.mrf.mxu0
        %v3217 = vadd.f32 0.0, %v3216
        %v3218 = vpop.f32.mrf.mxu0
        %v3219 = vadd.f32 0.0, %v3218
        %3220 = vmatmul.bf16.gmra.mxu0 %v2003
        %v3221 = vpop.f32.mrf.mxu0
        %v3222 = vadd.f32 0.0, %v3221
        %v3223 = vpop.f32.mrf.mxu0
        %v3224 = vadd.f32 0.0, %v3223
        %3225 = vmatmul.bf16.gmra.mxu0 %v2006
        %v3226 = vpop.f32.mrf.mxu0
        %v3227 = vadd.f32 0.0, %v3226
        %v3228 = vpop.f32.mrf.mxu0
        %v3229 = vadd.f32 0.0, %v3228
        %3230 = vmatmul.bf16.gmra.mxu0 %v2009
        %v3231 = vpop.f32.mrf.mxu0
        %v3232 = vadd.f32 0.0, %v3231
        %v3233 = vpop.f32.mrf.mxu0
        %v3234 = vadd.f32 0.0, %v3233
        %3235 = vmatmul.bf16.gmra.mxu0 %v2012
        %v3236 = vpop.f32.mrf.mxu0
        %v3237 = vadd.f32 0.0, %v3236
        %v3238 = vpop.f32.mrf.mxu0
        %v3239 = vadd.f32 0.0, %v3238
        %3240 = vmatmul.bf16.gmra.mxu0 %v2346
        %v3241 = vpop.f32.mrf.mxu0
        %v3242 = vadd.f32 0.0, %v3241
        %v3243 = vpop.f32.mrf.mxu0
        %v3244 = vadd.f32 0.0, %v3243
        %3245 = vdwg.mxu0
        %v3248 = vunpack.c.l.b16 %v3146
        %v3249 = vunpack.c.l.b16 %v3147
        %v3250 = vpack.c.b16 %v3249, %v3248
        %3252 = vmatpush.bf16.msra.mxu0 0
        %3253 = vmatpush.bf16.msra.mxu0 0
        %3254 = vmatpush.bf16.msra.mxu0 0
        %3255 = vmatpush.bf16.msra.mxu0 0
        %3256 = vmatpush.bf16.msra.mxu0 0
        %3257 = vmatpush.bf16.msra.mxu0 0
        %3258 = vmatpush.bf16.msra.mxu0 0
        %3259 = vmatpush.bf16.msra.mxu0 %v3250
        %3260 = vmatmul.bf16.gmra.mxu0 %v1171
        %v3261 = vpop.f32.mrf.mxu0
        %v3262 = vadd.f32 %v3167, %v3261
        %v3263 = vpop.f32.mrf.mxu0
        %v3264 = vadd.f32 %v3169, %v3263
        %3265 = vmatmul.bf16.gmra.mxu0 %v1174
        %v3266 = vpop.f32.mrf.mxu0
        %v3267 = vadd.f32 %v3172, %v3266
        %v3268 = vpop.f32.mrf.mxu0
        %v3269 = vadd.f32 %v3174, %v3268
        %3270 = vmatmul.bf16.gmra.mxu0 %v1177
        %v3271 = vpop.f32.mrf.mxu0
        %v3272 = vadd.f32 %v3177, %v3271
        %v3273 = vpop.f32.mrf.mxu0
        %v3274 = vadd.f32 %v3179, %v3273
        %3275 = vmatmul.bf16.gmra.mxu0 %v1180
        %v3276 = vpop.f32.mrf.mxu0
        %v3277 = vadd.f32 %v3182, %v3276
        %v3278 = vpop.f32.mrf.mxu0
        %v3279 = vadd.f32 %v3184, %v3278
        %3280 = vmatmul.bf16.gmra.mxu0 %v1183
        %v3281 = vpop.f32.mrf.mxu0
        %v3282 = vadd.f32 %v3187, %v3281
        %v3283 = vpop.f32.mrf.mxu0
        %v3284 = vadd.f32 %v3189, %v3283
        %3285 = vmatmul.bf16.gmra.mxu0 %v1186
        %v3286 = vpop.f32.mrf.mxu0
        %v3287 = vadd.f32 %v3192, %v3286
        %v3288 = vpop.f32.mrf.mxu0
        %v3289 = vadd.f32 %v3194, %v3288
        %3290 = vmatmul.bf16.gmra.mxu0 %v1189
        %v3291 = vpop.f32.mrf.mxu0
        %v3292 = vadd.f32 %v3197, %v3291
        %v3293 = vpop.f32.mrf.mxu0
        %v3294 = vadd.f32 %v3199, %v3293
        %3295 = vmatmul.bf16.gmra.mxu0 %v1192
        %v3296 = vpop.f32.mrf.mxu0
        %v3297 = vadd.f32 %v3202, %v3296
        %v3298 = vpop.f32.mrf.mxu0
        %v3299 = vadd.f32 %v3204, %v3298
        %3300 = vmatmul.bf16.gmra.mxu0 %v1195
        %v3301 = vpop.f32.mrf.mxu0
        %v3302 = vadd.f32 %v3207, %v3301
        %v3303 = vpop.f32.mrf.mxu0
        %v3304 = vadd.f32 %v3209, %v3303
        %3305 = vmatmul.bf16.gmra.mxu0 %v1198
        %v3306 = vpop.f32.mrf.mxu0
        %v3307 = vadd.f32 %v3212, %v3306
        %v3308 = vpop.f32.mrf.mxu0
        %v3309 = vadd.f32 %v3214, %v3308
        %3310 = vmatmul.bf16.gmra.mxu0 %v1201
        %v3311 = vpop.f32.mrf.mxu0
        %v3312 = vadd.f32 %v3217, %v3311
        %v3313 = vpop.f32.mrf.mxu0
        %v3314 = vadd.f32 %v3219, %v3313
        %3315 = vmatmul.bf16.gmra.mxu0 %v1204
        %v3316 = vpop.f32.mrf.mxu0
        %v3317 = vadd.f32 %v3222, %v3316
        %v3318 = vpop.f32.mrf.mxu0
        %v3319 = vadd.f32 %v3224, %v3318
        %3320 = vmatmul.bf16.gmra.mxu0 %v1207
        %v3321 = vpop.f32.mrf.mxu0
        %v3322 = vadd.f32 %v3227, %v3321
        %v3323 = vpop.f32.mrf.mxu0
        %v3324 = vadd.f32 %v3229, %v3323
        %3325 = vmatmul.bf16.gmra.mxu0 %v1210
        %v3326 = vpop.f32.mrf.mxu0
        %v3327 = vadd.f32 %v3232, %v3326
        %v3328 = vpop.f32.mrf.mxu0
        %v3329 = vadd.f32 %v3234, %v3328
        %3330 = vmatmul.bf16.gmra.mxu0 %v1213
        %v3331 = vpop.f32.mrf.mxu0
        %v3332 = vadd.f32 %v3237, %v3331
        %v3333 = vpop.f32.mrf.mxu0
        %v3334 = vadd.f32 %v3239, %v3333
        %3335 = vmatmul.bf16.gmra.mxu0 %v1602
        %v3336 = vpop.f32.mrf.mxu0
        %v3337 = vadd.f32 %v3242, %v3336
        %v3338 = vpop.f32.mrf.mxu0
        %v3339 = vadd.f32 %v3244, %v3338
        %3340 = vdwg.mxu0
        %s3341 = scalar_lea.vmem [#allocation2], 112
        %v3342 = vld [vmem:[%s3341] sm:$0xf]
        %v3343 = vld [vmem:[%s3341 + $0x4] sm:$0xf]
        %v3346 = vunpack.c.l.b16 %v3342
        %v3347 = vunpack.c.l.b16 %v3343
        %v3348 = vpack.c.b16 %v3347, %v3346
        %3350 = vmatpush.bf16.msra.mxu0 0
        %3351 = vmatpush.bf16.msra.mxu0 0
        %3352 = vmatpush.bf16.msra.mxu0 0
        %3353 = vmatpush.bf16.msra.mxu0 0
        %3354 = vmatpush.bf16.msra.mxu0 0
        %3355 = vmatpush.bf16.msra.mxu0 0
        %3356 = vmatpush.bf16.msra.mxu0 0
        %3357 = vmatpush.bf16.msra.mxu0 %v3348
        %3358 = vmatmul.bf16.gmra.mxu0 %v1174
        %v3359 = vpop.f32.mrf.mxu0
        %v3360 = vadd.f32 0.0, %v3359
        %v3361 = vpop.f32.mrf.mxu0
        %v3362 = vadd.f32 0.0, %v3361
        %3363 = vmatmul.bf16.gmra.mxu0 %v1177
        %v3364 = vpop.f32.mrf.mxu0
        %v3365 = vadd.f32 0.0, %v3364
        %v3366 = vpop.f32.mrf.mxu0
        %v3367 = vadd.f32 0.0, %v3366
        %3368 = vmatmul.bf16.gmra.mxu0 %v1180
        %v3369 = vpop.f32.mrf.mxu0
        %v3370 = vadd.f32 0.0, %v3369
        %v3371 = vpop.f32.mrf.mxu0
        %v3372 = vadd.f32 0.0, %v3371
        %3373 = vmatmul.bf16.gmra.mxu0 %v1183
        %v3374 = vpop.f32.mrf.mxu0
        %v3375 = vadd.f32 0.0, %v3374
        %v3376 = vpop.f32.mrf.mxu0
        %v3377 = vadd.f32 0.0, %v3376
        %3378 = vmatmul.bf16.gmra.mxu0 %v1186
        %v3379 = vpop.f32.mrf.mxu0
        %v3380 = vadd.f32 0.0, %v3379
        %v3381 = vpop.f32.mrf.mxu0
        %v3382 = vadd.f32 0.0, %v3381
        %3383 = vmatmul.bf16.gmra.mxu0 %v1189
        %v3384 = vpop.f32.mrf.mxu0
        %v3385 = vadd.f32 0.0, %v3384
        %v3386 = vpop.f32.mrf.mxu0
        %v3387 = vadd.f32 0.0, %v3386
        %3388 = vmatmul.bf16.gmra.mxu0 %v1192
        %v3389 = vpop.f32.mrf.mxu0
        %v3390 = vadd.f32 0.0, %v3389
        %v3391 = vpop.f32.mrf.mxu0
        %v3392 = vadd.f32 0.0, %v3391
        %3393 = vmatmul.bf16.gmra.mxu0 %v1195
        %v3394 = vpop.f32.mrf.mxu0
        %v3395 = vadd.f32 0.0, %v3394
        %v3396 = vpop.f32.mrf.mxu0
        %v3397 = vadd.f32 0.0, %v3396
        %3398 = vmatmul.bf16.gmra.mxu0 %v1198
        %v3399 = vpop.f32.mrf.mxu0
        %v3400 = vadd.f32 0.0, %v3399
        %v3401 = vpop.f32.mrf.mxu0
        %v3402 = vadd.f32 0.0, %v3401
        %3403 = vmatmul.bf16.gmra.mxu0 %v1201
        %v3404 = vpop.f32.mrf.mxu0
        %v3405 = vadd.f32 0.0, %v3404
        %v3406 = vpop.f32.mrf.mxu0
        %v3407 = vadd.f32 0.0, %v3406
        %3408 = vmatmul.bf16.gmra.mxu0 %v1204
        %v3409 = vpop.f32.mrf.mxu0
        %v3410 = vadd.f32 0.0, %v3409
        %v3411 = vpop.f32.mrf.mxu0
        %v3412 = vadd.f32 0.0, %v3411
        %3413 = vmatmul.bf16.gmra.mxu0 %v1207
        %v3414 = vpop.f32.mrf.mxu0
        %v3415 = vadd.f32 0.0, %v3414
        %v3416 = vpop.f32.mrf.mxu0
        %v3417 = vadd.f32 0.0, %v3416
        %3418 = vmatmul.bf16.gmra.mxu0 %v1210
        %v3419 = vpop.f32.mrf.mxu0
        %v3420 = vadd.f32 0.0, %v3419
        %v3421 = vpop.f32.mrf.mxu0
        %v3422 = vadd.f32 0.0, %v3421
        %3423 = vmatmul.bf16.gmra.mxu0 %v1213
        %v3424 = vpop.f32.mrf.mxu0
        %v3425 = vadd.f32 0.0, %v3424
        %v3426 = vpop.f32.mrf.mxu0
        %v3427 = vadd.f32 0.0, %v3426
        %3428 = vmatmul.bf16.gmra.mxu0 %v1602
        %v3429 = vpop.f32.mrf.mxu0
        %v3430 = vadd.f32 0.0, %v3429
        %v3431 = vpop.f32.mrf.mxu0
        %v3432 = vadd.f32 0.0, %v3431
        %3433 = vmatmul.bf16.gmra.mxu0 %v2921
        %v3434 = vpop.f32.mrf.mxu0
        %v3435 = vadd.f32 0.0, %v3434
        %v3436 = vpop.f32.mrf.mxu0
        %v3437 = vadd.f32 0.0, %v3436
        %3438 = vdwg.mxu0
        %v3439 = vadd.f32 %v3262, %v3360
        %v3440 = vadd.f32 %v3264, %v3362
        %v3441 = vadd.f32 %v3267, %v3365
        %v3442 = vadd.f32 %v3269, %v3367
        %v3443 = vadd.f32 %v3272, %v3370
        %v3444 = vadd.f32 %v3274, %v3372
        %v3445 = vadd.f32 %v3277, %v3375
        %v3446 = vadd.f32 %v3279, %v3377
        %v3447 = vadd.f32 %v3282, %v3380
        %v3448 = vadd.f32 %v3284, %v3382
        %v3449 = vadd.f32 %v3287, %v3385
        %v3450 = vadd.f32 %v3289, %v3387
        %v3451 = vadd.f32 %v3292, %v3390
        %v3452 = vadd.f32 %v3294, %v3392
        %v3453 = vadd.f32 %v3297, %v3395
        %v3454 = vadd.f32 %v3299, %v3397
        %v3455 = vadd.f32 %v3302, %v3400
        %v3456 = vadd.f32 %v3304, %v3402
        %v3457 = vadd.f32 %v3307, %v3405
        %v3458 = vadd.f32 %v3309, %v3407
        %v3459 = vadd.f32 %v3312, %v3410
        %v3460 = vadd.f32 %v3314, %v3412
        %v3461 = vadd.f32 %v3317, %v3415
        %v3462 = vadd.f32 %v3319, %v3417
        %v3463 = vadd.f32 %v3322, %v3420
        %v3464 = vadd.f32 %v3324, %v3422
        %v3465 = vadd.f32 %v3327, %v3425
        %v3466 = vadd.f32 %v3329, %v3427
        %v3467 = vadd.f32 %v3332, %v3430
        %v3468 = vadd.f32 %v3334, %v3432
        %v3469 = vadd.f32 %v3337, %v3435
        %v3470 = vadd.f32 %v3339, %v3437
        %v3471 = vrot.slane %v959, 2
        %v3472 = vrot.slane %v960, 2
        %v3473 = vsel %vm1828, %v3471, %v3472
        %v3474 = vrot.slane %v961, 2
        %v3475 = vsel %vm1828, %v3472, %v3474
        %v3478 = vpack.c.bf16 %v3475, %v3473
        %s3479 = scalar_lea.vmem [#allocation2], 120
        %v3480 = vld [vmem:[%s3479] sm:$0xf]
        %v3481 = vld [vmem:[%s3479 + $0x4] sm:$0xf]
        %v3484 = vunpack.c.l.b16 %v3480
        %v3485 = vunpack.c.l.b16 %v3481
        %v3486 = vpack.c.b16 %v3485, %v3484
        %v3489 = vsel %vm1166, %v3478, 0
        %3491 = vmatpush.bf16.msra.mxu0 0
        %3492 = vmatpush.bf16.msra.mxu0 0
        %3493 = vmatpush.bf16.msra.mxu0 0
        %3494 = vmatpush.bf16.msra.mxu0 0
        %3495 = vmatpush.bf16.msra.mxu0 0
        %3496 = vmatpush.bf16.msra.mxu0 0
        %3497 = vmatpush.bf16.msra.mxu0 0
        %3498 = vmatpush.bf16.msra.mxu0 %v3486
        %3499 = vmatmul.bf16.gmra.mxu0 %v1973
        %v3500 = vpop.f32.mrf.mxu0
        %v3501 = vadd.f32 0.0, %v3500
        %v3502 = vpop.f32.mrf.mxu0
        %v3503 = vadd.f32 0.0, %v3502
        %3504 = vmatmul.bf16.gmra.mxu0 %v1976
        %v3505 = vpop.f32.mrf.mxu0
        %v3506 = vadd.f32 0.0, %v3505
        %v3507 = vpop.f32.mrf.mxu0
        %v3508 = vadd.f32 0.0, %v3507
        %3509 = vmatmul.bf16.gmra.mxu0 %v1979
        %v3510 = vpop.f32.mrf.mxu0
        %v3511 = vadd.f32 0.0, %v3510
        %v3512 = vpop.f32.mrf.mxu0
        %v3513 = vadd.f32 0.0, %v3512
        %3514 = vmatmul.bf16.gmra.mxu0 %v1982
        %v3515 = vpop.f32.mrf.mxu0
        %v3516 = vadd.f32 0.0, %v3515
        %v3517 = vpop.f32.mrf.mxu0
        %v3518 = vadd.f32 0.0, %v3517
        %3519 = vmatmul.bf16.gmra.mxu0 %v1985
        %v3520 = vpop.f32.mrf.mxu0
        %v3521 = vadd.f32 0.0, %v3520
        %v3522 = vpop.f32.mrf.mxu0
        %v3523 = vadd.f32 0.0, %v3522
        %3524 = vmatmul.bf16.gmra.mxu0 %v1988
        %v3525 = vpop.f32.mrf.mxu0
        %v3526 = vadd.f32 0.0, %v3525
        %v3527 = vpop.f32.mrf.mxu0
        %v3528 = vadd.f32 0.0, %v3527
        %3529 = vmatmul.bf16.gmra.mxu0 %v1991
        %v3530 = vpop.f32.mrf.mxu0
        %v3531 = vadd.f32 0.0, %v3530
        %v3532 = vpop.f32.mrf.mxu0
        %v3533 = vadd.f32 0.0, %v3532
        %3534 = vmatmul.bf16.gmra.mxu0 %v1994
        %v3535 = vpop.f32.mrf.mxu0
        %v3536 = vadd.f32 0.0, %v3535
        %v3537 = vpop.f32.mrf.mxu0
        %v3538 = vadd.f32 0.0, %v3537
        %3539 = vmatmul.bf16.gmra.mxu0 %v1997
        %v3540 = vpop.f32.mrf.mxu0
        %v3541 = vadd.f32 0.0, %v3540
        %v3542 = vpop.f32.mrf.mxu0
        %v3543 = vadd.f32 0.0, %v3542
        %3544 = vmatmul.bf16.gmra.mxu0 %v2000
        %v3545 = vpop.f32.mrf.mxu0
        %v3546 = vadd.f32 0.0, %v3545
        %v3547 = vpop.f32.mrf.mxu0
        %v3548 = vadd.f32 0.0, %v3547
        %3549 = vmatmul.bf16.gmra.mxu0 %v2003
        %v3550 = vpop.f32.mrf.mxu0
        %v3551 = vadd.f32 0.0, %v3550
        %v3552 = vpop.f32.mrf.mxu0
        %v3553 = vadd.f32 0.0, %v3552
        %3554 = vmatmul.bf16.gmra.mxu0 %v2006
        %v3555 = vpop.f32.mrf.mxu0
        %v3556 = vadd.f32 0.0, %v3555
        %v3557 = vpop.f32.mrf.mxu0
        %v3558 = vadd.f32 0.0, %v3557
        %3559 = vmatmul.bf16.gmra.mxu0 %v2009
        %v3560 = vpop.f32.mrf.mxu0
        %v3561 = vadd.f32 0.0, %v3560
        %v3562 = vpop.f32.mrf.mxu0
        %v3563 = vadd.f32 0.0, %v3562
        %3564 = vmatmul.bf16.gmra.mxu0 %v2012
        %v3565 = vpop.f32.mrf.mxu0
        %v3566 = vadd.f32 0.0, %v3565
        %v3567 = vpop.f32.mrf.mxu0
        %v3568 = vadd.f32 0.0, %v3567
        %3569 = vmatmul.bf16.gmra.mxu0 %v2346
        %v3570 = vpop.f32.mrf.mxu0
        %v3571 = vadd.f32 0.0, %v3570
        %v3572 = vpop.f32.mrf.mxu0
        %v3573 = vadd.f32 0.0, %v3572
        %3574 = vmatmul.bf16.gmra.mxu0 %v3489
        %v3575 = vpop.f32.mrf.mxu0
        %v3576 = vadd.f32 0.0, %v3575
        %v3577 = vpop.f32.mrf.mxu0
        %v3578 = vadd.f32 0.0, %v3577
        %3579 = vdwg.mxu0
        %v3580 = vadd.f32 %v3439, %v3501
        %v3581 = vadd.f32 %v3440, %v3503
        %v3582 = vadd.f32 %v3441, %v3506
        %v3583 = vadd.f32 %v3442, %v3508
        %v3584 = vadd.f32 %v3443, %v3511
        %v3585 = vadd.f32 %v3444, %v3513
        %v3586 = vadd.f32 %v3445, %v3516
        %v3587 = vadd.f32 %v3446, %v3518
        %v3588 = vadd.f32 %v3447, %v3521
        %v3589 = vadd.f32 %v3448, %v3523
        %v3590 = vadd.f32 %v3449, %v3526
        %v3591 = vadd.f32 %v3450, %v3528
        %v3592 = vadd.f32 %v3451, %v3531
        %v3593 = vadd.f32 %v3452, %v3533
        %v3594 = vadd.f32 %v3453, %v3536
        %v3595 = vadd.f32 %v3454, %v3538
        %v3596 = vadd.f32 %v3455, %v3541
        %v3597 = vadd.f32 %v3456, %v3543
        %v3598 = vadd.f32 %v3457, %v3546
        %v3599 = vadd.f32 %v3458, %v3548
        %v3600 = vadd.f32 %v3459, %v3551
        %v3601 = vadd.f32 %v3460, %v3553
        %v3602 = vadd.f32 %v3461, %v3556
        %v3603 = vadd.f32 %v3462, %v3558
        %v3604 = vadd.f32 %v3463, %v3561
        %v3605 = vadd.f32 %v3464, %v3563
        %v3606 = vadd.f32 %v3465, %v3566
        %v3607 = vadd.f32 %v3466, %v3568
        %v3608 = vadd.f32 %v3467, %v3571
        %v3609 = vadd.f32 %v3468, %v3573
        %v3610 = vadd.f32 %v3469, %v3576
        %v3611 = vadd.f32 %v3470, %v3578
        %v3612 = vld [vmem:[#allocation4] sm:$0x1]
        %v3614 = vperm.slane %v3612, 0
        %v3616 = vadd.f32 %v3580, %v3614
        %v3617 = vadd.f32 %v3581, %v3614
        %v3618 = vadd.f32 %v3582, %v3614
        %v3619 = vadd.f32 %v3583, %v3614
        %v3620 = vadd.f32 %v3584, %v3614
        %v3621 = vadd.f32 %v3585, %v3614
        %v3622 = vadd.f32 %v3586, %v3614
        %v3623 = vadd.f32 %v3587, %v3614
        %v3624 = vadd.f32 %v3588, %v3614
        %v3625 = vadd.f32 %v3589, %v3614
        %v3626 = vadd.f32 %v3590, %v3614
        %v3627 = vadd.f32 %v3591, %v3614
        %v3628 = vadd.f32 %v3592, %v3614
        %v3629 = vadd.f32 %v3593, %v3614
        %v3630 = vadd.f32 %v3594, %v3614
        %v3631 = vadd.f32 %v3595, %v3614
        %v3632 = vadd.f32 %v3596, %v3614
        %v3633 = vadd.f32 %v3597, %v3614
        %v3634 = vadd.f32 %v3598, %v3614
        %v3635 = vadd.f32 %v3599, %v3614
        %v3636 = vadd.f32 %v3600, %v3614
        %v3637 = vadd.f32 %v3601, %v3614
        %v3638 = vadd.f32 %v3602, %v3614
        %v3639 = vadd.f32 %v3603, %v3614
        %v3640 = vadd.f32 %v3604, %v3614
        %v3641 = vadd.f32 %v3605, %v3614
        %v3642 = vadd.f32 %v3606, %v3614
        %v3643 = vadd.f32 %v3607, %v3614
        %v3644 = vadd.f32 %v3608, %v3614
        %v3645 = vadd.f32 %v3609, %v3614
        %v3646 = vadd.f32 %v3610, %v3614
        %v3647 = vadd.f32 %v3611, %v3614
        %v3648 = vtanh.pop %v3616
        %v3649 = vtanh.pop %v3617
        %v3650 = vtanh.pop %v3618
        %v3651 = vtanh.pop %v3619
        %v3652 = vtanh.pop %v3620
        %v3653 = vtanh.pop %v3621
        %v3654 = vtanh.pop %v3622
        %v3655 = vtanh.pop %v3623
        %v3656 = vtanh.pop %v3624
        %v3657 = vtanh.pop %v3625
        %v3658 = vtanh.pop %v3626
        %v3659 = vtanh.pop %v3627
        %v3660 = vtanh.pop %v3628
        %v3661 = vtanh.pop %v3629
        %v3662 = vtanh.pop %v3630
        %v3663 = vtanh.pop %v3631
        %v3664 = vtanh.pop %v3632
        %v3665 = vtanh.pop %v3633
        %v3666 = vtanh.pop %v3634
        %v3667 = vtanh.pop %v3635
        %v3668 = vtanh.pop %v3636
        %v3669 = vtanh.pop %v3637
        %v3670 = vtanh.pop %v3638
        %v3671 = vtanh.pop %v3639
        %v3672 = vtanh.pop %v3640
        %v3673 = vtanh.pop %v3641
        %v3674 = vtanh.pop %v3642
        %v3675 = vtanh.pop %v3643
        %v3676 = vtanh.pop %v3644
        %v3677 = vtanh.pop %v3645
        %v3678 = vtanh.pop %v3646
        %v3679 = vtanh.pop %v3647
        %s3680 = scalar_lea.vmem %s299, 768 [#allocation6]
        %3681 = vst [vmem:[%s3680] sm:$0xff] %v3648
        %3682 = vst [vmem:[%s3680 + $0x8] sm:$0xff] %v3649
        %3683 = vst [vmem:[%s3680 + $0x10] sm:$0xff] %v3650
        %3684 = vst [vmem:[%s3680 + $0x18] sm:$0xff] %v3651
        %3685 = vst [vmem:[%s3680 + $0x20] sm:$0xff] %v3652
        %3686 = vst [vmem:[%s3680 + $0x28] sm:$0xff] %v3653
        %3687 = vst [vmem:[%s3680 + $0x30] sm:$0xff] %v3654
        %3688 = vst [vmem:[%s3680 + $0x38] sm:$0xff] %v3655
        %3689 = vst [vmem:[%s3680 + $0x40] sm:$0xff] %v3656
        %3690 = vst [vmem:[%s3680 + $0x48] sm:$0xff] %v3657
        %3691 = vst [vmem:[%s3680 + $0x50] sm:$0xff] %v3658
        %3692 = vst [vmem:[%s3680 + $0x58] sm:$0xff] %v3659
        %3693 = vst [vmem:[%s3680 + $0x60] sm:$0xff] %v3660
        %3694 = vst [vmem:[%s3680 + $0x68] sm:$0xff] %v3661
        %3695 = vst [vmem:[%s3680 + $0x70] sm:$0xff] %v3662
        %3696 = vst [vmem:[%s3680 + $0x78] sm:$0xff] %v3663
        %3697 = vst [vmem:[%s3680 + $0x80] sm:$0xff] %v3664
        %3698 = vst [vmem:[%s3680 + $0x88] sm:$0xff] %v3665
        %3699 = vst [vmem:[%s3680 + $0x90] sm:$0xff] %v3666
        %3700 = vst [vmem:[%s3680 + $0x98] sm:$0xff] %v3667
        %3701 = vst [vmem:[%s3680 + $0xa0] sm:$0xff] %v3668
        %3702 = vst [vmem:[%s3680 + $0xa8] sm:$0xff] %v3669
        %3703 = vst [vmem:[%s3680 + $0xb0] sm:$0xff] %v3670
        %3704 = vst [vmem:[%s3680 + $0xb8] sm:$0xff] %v3671
        %3705 = vst [vmem:[%s3680 + $0xc0] sm:$0xff] %v3672
        %3706 = vst [vmem:[%s3680 + $0xc8] sm:$0xff] %v3673
        %3707 = vst [vmem:[%s3680 + $0xd0] sm:$0xff] %v3674
        %3708 = vst [vmem:[%s3680 + $0xd8] sm:$0xff] %v3675
        %3709 = vst [vmem:[%s3680 + $0xe0] sm:$0xff] %v3676
        %3710 = vst [vmem:[%s3680 + $0xe8] sm:$0xff] %v3677
        %3711 = vst [vmem:[%s3680 + $0xf0] sm:$0xff] %v3678
        %3712 = vst [vmem:[%s3680 + $0xf8] sm:$0xff] %v3679
        %s3713 = sand.u32 %s182, 1
        %s3714 = sand.u32 %s182, 1
        %s3715 = smul.addr %s3714, 1024
        %s3716 = scalar_lea.vmem [#allocation6], %s3715
        // Predicated region
        $region53: #{generator_forward.7} parent=43 // pred_check
          %p3717 = pneg %p192
        $region54: #{generator_forward.7} parent=43 // pred_check_branch
          %3719 = sbr.rel (%p3717) target = $region56
        $region55: #{generator_forward.7} parent=43 // pred_region
          %s3720 = smul.addr %s23, 32
          %s3721 = sadd.s32 %s24, %s3720
          %s3722 = smul.addr %s3721, 8
          %s3723 = scalar_lea.vmem %s6, %s3722
          // Predicated region
          $region57: #{generator_forward.7} parent=55 // pred_check
            _
          $region58: #{generator_forward.7} parent=55 // pred_check_branch
            %3725 = sbr.rel (0) target = $region60
          $region59: #{generator_forward.7} parent=55 // pred_region
            // Predicated region
            $region61: #{generator_forward.7} parent=59 // pred_check
              _
            $region62: #{generator_forward.7} parent=59 // pred_check_branch
              %3727 = sbr.rel (0) target = $region64
            $region63: #{generator_forward.7} parent=59 // pred_region
              // Predicated region
              $region76: #{generator_forward.7} parent=63 // pred_check
                _
              $region77: #{generator_forward.7} parent=63 // pred_check_branch
                %3997 = sbr.rel (0) target = $region79
              $region78: #{generator_forward.7} parent=63 // pred_region
                loop: start=0, step=1, limit=1
                $region80: #{generator_forward.7} parent=78 // loop_pre_header
                  _
                $region81: #{generator_forward.7} parent=78 // loop_header
                  %s3999 = sphi 0, %s4003
                  %p4000 = scmp.ge.s32.totalorder %s3999, 1
                  %s4004 = sphi %s3716, %s3716
                  %s4005 = sphi %s3723, %s3723
                $region82: #{generator_forward.7} parent=78 // loop_header_branch
                  %4002 = sbr.rel (%p4000) target = $region86
                $region83: #{generator_forward.7} parent=78 // loop_body
                  %v4006 = vld [vmem:[%s4004] sm:$0xff]
                  %4007 = vst [vmem:[%s4005] sm:$0xff] %v4006
                  %v4008 = vld [vmem:[%s4004 + $0x8] sm:$0xff]
                  %4009 = vst [vmem:[%s4005 + $0x8] sm:$0xff] %v4008
                  %v4010 = vld [vmem:[%s4004 + $0x10] sm:$0xff]
                  %4011 = vst [vmem:[%s4005 + $0x10] sm:$0xff] %v4010
                  %v4012 = vld [vmem:[%s4004 + $0x18] sm:$0xff]
                  %4013 = vst [vmem:[%s4005 + $0x18] sm:$0xff] %v4012
                  %v4014 = vld [vmem:[%s4004 + $0x20] sm:$0xff]
                  %4015 = vst [vmem:[%s4005 + $0x20] sm:$0xff] %v4014
                  %v4016 = vld [vmem:[%s4004 + $0x28] sm:$0xff]
                  %4017 = vst [vmem:[%s4005 + $0x28] sm:$0xff] %v4016
                  %v4018 = vld [vmem:[%s4004 + $0x30] sm:$0xff]
                  %4019 = vst [vmem:[%s4005 + $0x30] sm:$0xff] %v4018
                  %v4020 = vld [vmem:[%s4004 + $0x38] sm:$0xff]
                  %4021 = vst [vmem:[%s4005 + $0x38] sm:$0xff] %v4020
                  %v4022 = vld [vmem:[%s4004 + $0x40] sm:$0xff]
                  %4023 = vst [vmem:[%s4005 + $0x40] sm:$0xff] %v4022
                  %v4024 = vld [vmem:[%s4004 + $0x48] sm:$0xff]
                  %4025 = vst [vmem:[%s4005 + $0x48] sm:$0xff] %v4024
                  %v4026 = vld [vmem:[%s4004 + $0x50] sm:$0xff]
                  %4027 = vst [vmem:[%s4005 + $0x50] sm:$0xff] %v4026
                  %v4028 = vld [vmem:[%s4004 + $0x58] sm:$0xff]
                  %4029 = vst [vmem:[%s4005 + $0x58] sm:$0xff] %v4028
                  %v4030 = vld [vmem:[%s4004 + $0x60] sm:$0xff]
                  %4031 = vst [vmem:[%s4005 + $0x60] sm:$0xff] %v4030
                  %v4032 = vld [vmem:[%s4004 + $0x68] sm:$0xff]
                  %4033 = vst [vmem:[%s4005 + $0x68] sm:$0xff] %v4032
                  %v4034 = vld [vmem:[%s4004 + $0x70] sm:$0xff]
                  %4035 = vst [vmem:[%s4005 + $0x70] sm:$0xff] %v4034
                  %v4036 = vld [vmem:[%s4004 + $0x78] sm:$0xff]
                  %4037 = vst [vmem:[%s4005 + $0x78] sm:$0xff] %v4036
                  %v4038 = vld [vmem:[%s4004 + $0x80] sm:$0xff]
                  %4039 = vst [vmem:[%s4005 + $0x80] sm:$0xff] %v4038
                  %v4040 = vld [vmem:[%s4004 + $0x88] sm:$0xff]
                  %4041 = vst [vmem:[%s4005 + $0x88] sm:$0xff] %v4040
                  %v4042 = vld [vmem:[%s4004 + $0x90] sm:$0xff]
                  %4043 = vst [vmem:[%s4005 + $0x90] sm:$0xff] %v4042
                  %v4044 = vld [vmem:[%s4004 + $0x98] sm:$0xff]
                  %4045 = vst [vmem:[%s4005 + $0x98] sm:$0xff] %v4044
                  %v4046 = vld [vmem:[%s4004 + $0xa0] sm:$0xff]
                  %4047 = vst [vmem:[%s4005 + $0xa0] sm:$0xff] %v4046
                  %v4048 = vld [vmem:[%s4004 + $0xa8] sm:$0xff]
                  %4049 = vst [vmem:[%s4005 + $0xa8] sm:$0xff] %v4048
                  %v4050 = vld [vmem:[%s4004 + $0xb0] sm:$0xff]
                  %4051 = vst [vmem:[%s4005 + $0xb0] sm:$0xff] %v4050
                  %v4052 = vld [vmem:[%s4004 + $0xb8] sm:$0xff]
                  %4053 = vst [vmem:[%s4005 + $0xb8] sm:$0xff] %v4052
                  %v4054 = vld [vmem:[%s4004 + $0xc0] sm:$0xff]
                  %4055 = vst [vmem:[%s4005 + $0xc0] sm:$0xff] %v4054
                  %v4056 = vld [vmem:[%s4004 + $0xc8] sm:$0xff]
                  %4057 = vst [vmem:[%s4005 + $0xc8] sm:$0xff] %v4056
                  %v4058 = vld [vmem:[%s4004 + $0xd0] sm:$0xff]
                  %4059 = vst [vmem:[%s4005 + $0xd0] sm:$0xff] %v4058
                  %v4060 = vld [vmem:[%s4004 + $0xd8] sm:$0xff]
                  %4061 = vst [vmem:[%s4005 + $0xd8] sm:$0xff] %v4060
                  %v4062 = vld [vmem:[%s4004 + $0xe0] sm:$0xff]
                  %4063 = vst [vmem:[%s4005 + $0xe0] sm:$0xff] %v4062
                  %v4064 = vld [vmem:[%s4004 + $0xe8] sm:$0xff]
                  %4065 = vst [vmem:[%s4005 + $0xe8] sm:$0xff] %v4064
                  %v4066 = vld [vmem:[%s4004 + $0xf0] sm:$0xff]
                  %4067 = vst [vmem:[%s4005 + $0xf0] sm:$0xff] %v4066
                  %v4068 = vld [vmem:[%s4004 + $0xf8] sm:$0xff]
                  %4069 = vst [vmem:[%s4005 + $0xf8] sm:$0xff] %v4068
                  %v4070 = vld [vmem:[%s4004 + $0x100] sm:$0xff]
                  %4071 = vst [vmem:[%s4005 + $0x200] sm:$0xff] %v4070
                  %v4072 = vld [vmem:[%s4004 + $0x108] sm:$0xff]
                  %4073 = vst [vmem:[%s4005 + $0x208] sm:$0xff] %v4072
                  %v4074 = vld [vmem:[%s4004 + $0x110] sm:$0xff]
                  %4075 = vst [vmem:[%s4005 + $0x210] sm:$0xff] %v4074
                  %v4076 = vld [vmem:[%s4004 + $0x118] sm:$0xff]
                  %4077 = vst [vmem:[%s4005 + $0x218] sm:$0xff] %v4076
                  %v4078 = vld [vmem:[%s4004 + $0x120] sm:$0xff]
                  %4079 = vst [vmem:[%s4005 + $0x220] sm:$0xff] %v4078
                  %v4080 = vld [vmem:[%s4004 + $0x128] sm:$0xff]
                  %4081 = vst [vmem:[%s4005 + $0x228] sm:$0xff] %v4080
                  %v4082 = vld [vmem:[%s4004 + $0x130] sm:$0xff]
                  %4083 = vst [vmem:[%s4005 + $0x230] sm:$0xff] %v4082
                  %v4084 = vld [vmem:[%s4004 + $0x138] sm:$0xff]
                  %4085 = vst [vmem:[%s4005 + $0x238] sm:$0xff] %v4084
                  %v4086 = vld [vmem:[%s4004 + $0x140] sm:$0xff]
                  %4087 = vst [vmem:[%s4005 + $0x240] sm:$0xff] %v4086
                  %v4088 = vld [vmem:[%s4004 + $0x148] sm:$0xff]
                  %4089 = vst [vmem:[%s4005 + $0x248] sm:$0xff] %v4088
                  %v4090 = vld [vmem:[%s4004 + $0x150] sm:$0xff]
                  %4091 = vst [vmem:[%s4005 + $0x250] sm:$0xff] %v4090
                  %v4092 = vld [vmem:[%s4004 + $0x158] sm:$0xff]
                  %4093 = vst [vmem:[%s4005 + $0x258] sm:$0xff] %v4092
                  %v4094 = vld [vmem:[%s4004 + $0x160] sm:$0xff]
                  %4095 = vst [vmem:[%s4005 + $0x260] sm:$0xff] %v4094
                  %v4096 = vld [vmem:[%s4004 + $0x168] sm:$0xff]
                  %4097 = vst [vmem:[%s4005 + $0x268] sm:$0xff] %v4096
                  %v4098 = vld [vmem:[%s4004 + $0x170] sm:$0xff]
                  %4099 = vst [vmem:[%s4005 + $0x270] sm:$0xff] %v4098
                  %v4100 = vld [vmem:[%s4004 + $0x178] sm:$0xff]
                  %4101 = vst [vmem:[%s4005 + $0x278] sm:$0xff] %v4100
                  %v4102 = vld [vmem:[%s4004 + $0x180] sm:$0xff]
                  %4103 = vst [vmem:[%s4005 + $0x280] sm:$0xff] %v4102
                  %v4104 = vld [vmem:[%s4004 + $0x188] sm:$0xff]
                  %4105 = vst [vmem:[%s4005 + $0x288] sm:$0xff] %v4104
                  %v4106 = vld [vmem:[%s4004 + $0x190] sm:$0xff]
                  %4107 = vst [vmem:[%s4005 + $0x290] sm:$0xff] %v4106
                  %v4108 = vld [vmem:[%s4004 + $0x198] sm:$0xff]
                  %4109 = vst [vmem:[%s4005 + $0x298] sm:$0xff] %v4108
                  %v4110 = vld [vmem:[%s4004 + $0x1a0] sm:$0xff]
                  %4111 = vst [vmem:[%s4005 + $0x2a0] sm:$0xff] %v4110
                  %v4112 = vld [vmem:[%s4004 + $0x1a8] sm:$0xff]
                  %4113 = vst [vmem:[%s4005 + $0x2a8] sm:$0xff] %v4112
                  %v4114 = vld [vmem:[%s4004 + $0x1b0] sm:$0xff]
                  %4115 = vst [vmem:[%s4005 + $0x2b0] sm:$0xff] %v4114
                  %v4116 = vld [vmem:[%s4004 + $0x1b8] sm:$0xff]
                  %4117 = vst [vmem:[%s4005 + $0x2b8] sm:$0xff] %v4116
                  %v4118 = vld [vmem:[%s4004 + $0x1c0] sm:$0xff]
                  %4119 = vst [vmem:[%s4005 + $0x2c0] sm:$0xff] %v4118
                  %v4120 = vld [vmem:[%s4004 + $0x1c8] sm:$0xff]
                  %4121 = vst [vmem:[%s4005 + $0x2c8] sm:$0xff] %v4120
                  %v4122 = vld [vmem:[%s4004 + $0x1d0] sm:$0xff]
                  %4123 = vst [vmem:[%s4005 + $0x2d0] sm:$0xff] %v4122
                  %v4124 = vld [vmem:[%s4004 + $0x1d8] sm:$0xff]
                  %4125 = vst [vmem:[%s4005 + $0x2d8] sm:$0xff] %v4124
                  %v4126 = vld [vmem:[%s4004 + $0x1e0] sm:$0xff]
                  %4127 = vst [vmem:[%s4005 + $0x2e0] sm:$0xff] %v4126
                  %v4128 = vld [vmem:[%s4004 + $0x1e8] sm:$0xff]
                  %4129 = vst [vmem:[%s4005 + $0x2e8] sm:$0xff] %v4128
                  %v4130 = vld [vmem:[%s4004 + $0x1f0] sm:$0xff]
                  %4131 = vst [vmem:[%s4005 + $0x2f0] sm:$0xff] %v4130
                  %v4132 = vld [vmem:[%s4004 + $0x1f8] sm:$0xff]
                  %4133 = vst [vmem:[%s4005 + $0x2f8] sm:$0xff] %v4132
                  %v4134 = vld [vmem:[%s4004 + $0x200] sm:$0xff]
                  %4135 = vst [vmem:[%s4005 + $0x400] sm:$0xff] %v4134
                  %v4136 = vld [vmem:[%s4004 + $0x208] sm:$0xff]
                  %4137 = vst [vmem:[%s4005 + $0x408] sm:$0xff] %v4136
                  %v4138 = vld [vmem:[%s4004 + $0x210] sm:$0xff]
                  %4139 = vst [vmem:[%s4005 + $0x410] sm:$0xff] %v4138
                  %v4140 = vld [vmem:[%s4004 + $0x218] sm:$0xff]
                  %4141 = vst [vmem:[%s4005 + $0x418] sm:$0xff] %v4140
                  %v4142 = vld [vmem:[%s4004 + $0x220] sm:$0xff]
                  %4143 = vst [vmem:[%s4005 + $0x420] sm:$0xff] %v4142
                  %v4144 = vld [vmem:[%s4004 + $0x228] sm:$0xff]
                  %4145 = vst [vmem:[%s4005 + $0x428] sm:$0xff] %v4144
                  %v4146 = vld [vmem:[%s4004 + $0x230] sm:$0xff]
                  %4147 = vst [vmem:[%s4005 + $0x430] sm:$0xff] %v4146
                  %v4148 = vld [vmem:[%s4004 + $0x238] sm:$0xff]
                  %4149 = vst [vmem:[%s4005 + $0x438] sm:$0xff] %v4148
                  %v4150 = vld [vmem:[%s4004 + $0x240] sm:$0xff]
                  %4151 = vst [vmem:[%s4005 + $0x440] sm:$0xff] %v4150
                  %v4152 = vld [vmem:[%s4004 + $0x248] sm:$0xff]
                  %4153 = vst [vmem:[%s4005 + $0x448] sm:$0xff] %v4152
                  %v4154 = vld [vmem:[%s4004 + $0x250] sm:$0xff]
                  %4155 = vst [vmem:[%s4005 + $0x450] sm:$0xff] %v4154
                  %v4156 = vld [vmem:[%s4004 + $0x258] sm:$0xff]
                  %4157 = vst [vmem:[%s4005 + $0x458] sm:$0xff] %v4156
                  %v4158 = vld [vmem:[%s4004 + $0x260] sm:$0xff]
                  %4159 = vst [vmem:[%s4005 + $0x460] sm:$0xff] %v4158
                  %v4160 = vld [vmem:[%s4004 + $0x268] sm:$0xff]
                  %4161 = vst [vmem:[%s4005 + $0x468] sm:$0xff] %v4160
                  %v4162 = vld [vmem:[%s4004 + $0x270] sm:$0xff]
                  %4163 = vst [vmem:[%s4005 + $0x470] sm:$0xff] %v4162
                  %v4164 = vld [vmem:[%s4004 + $0x278] sm:$0xff]
                  %4165 = vst [vmem:[%s4005 + $0x478] sm:$0xff] %v4164
                  %v4166 = vld [vmem:[%s4004 + $0x280] sm:$0xff]
                  %4167 = vst [vmem:[%s4005 + $0x480] sm:$0xff] %v4166
                  %v4168 = vld [vmem:[%s4004 + $0x288] sm:$0xff]
                  %4169 = vst [vmem:[%s4005 + $0x488] sm:$0xff] %v4168
                  %v4170 = vld [vmem:[%s4004 + $0x290] sm:$0xff]
                  %4171 = vst [vmem:[%s4005 + $0x490] sm:$0xff] %v4170
                  %v4172 = vld [vmem:[%s4004 + $0x298] sm:$0xff]
                  %4173 = vst [vmem:[%s4005 + $0x498] sm:$0xff] %v4172
                  %v4174 = vld [vmem:[%s4004 + $0x2a0] sm:$0xff]
                  %4175 = vst [vmem:[%s4005 + $0x4a0] sm:$0xff] %v4174
                  %v4176 = vld [vmem:[%s4004 + $0x2a8] sm:$0xff]
                  %4177 = vst [vmem:[%s4005 + $0x4a8] sm:$0xff] %v4176
                  %v4178 = vld [vmem:[%s4004 + $0x2b0] sm:$0xff]
                  %4179 = vst [vmem:[%s4005 + $0x4b0] sm:$0xff] %v4178
                  %v4180 = vld [vmem:[%s4004 + $0x2b8] sm:$0xff]
                  %4181 = vst [vmem:[%s4005 + $0x4b8] sm:$0xff] %v4180
                  %v4182 = vld [vmem:[%s4004 + $0x2c0] sm:$0xff]
                  %4183 = vst [vmem:[%s4005 + $0x4c0] sm:$0xff] %v4182
                  %v4184 = vld [vmem:[%s4004 + $0x2c8] sm:$0xff]
                  %4185 = vst [vmem:[%s4005 + $0x4c8] sm:$0xff] %v4184
                  %v4186 = vld [vmem:[%s4004 + $0x2d0] sm:$0xff]
                  %4187 = vst [vmem:[%s4005 + $0x4d0] sm:$0xff] %v4186
                  %v4188 = vld [vmem:[%s4004 + $0x2d8] sm:$0xff]
                  %4189 = vst [vmem:[%s4005 + $0x4d8] sm:$0xff] %v4188
                  %v4190 = vld [vmem:[%s4004 + $0x2e0] sm:$0xff]
                  %4191 = vst [vmem:[%s4005 + $0x4e0] sm:$0xff] %v4190
                  %v4192 = vld [vmem:[%s4004 + $0x2e8] sm:$0xff]
                  %4193 = vst [vmem:[%s4005 + $0x4e8] sm:$0xff] %v4192
                  %v4194 = vld [vmem:[%s4004 + $0x2f0] sm:$0xff]
                  %4195 = vst [vmem:[%s4005 + $0x4f0] sm:$0xff] %v4194
                  %v4196 = vld [vmem:[%s4004 + $0x2f8] sm:$0xff]
                  %4197 = vst [vmem:[%s4005 + $0x4f8] sm:$0xff] %v4196
                  %v4198 = vld [vmem:[%s4004 + $0x300] sm:$0xff]
                  %4199 = vst [vmem:[%s4005 + $0x600] sm:$0xff] %v4198
                  %v4200 = vld [vmem:[%s4004 + $0x308] sm:$0xff]
                  %4201 = vst [vmem:[%s4005 + $0x608] sm:$0xff] %v4200
                  %v4202 = vld [vmem:[%s4004 + $0x310] sm:$0xff]
                  %4203 = vst [vmem:[%s4005 + $0x610] sm:$0xff] %v4202
                  %v4204 = vld [vmem:[%s4004 + $0x318] sm:$0xff]
                  %4205 = vst [vmem:[%s4005 + $0x618] sm:$0xff] %v4204
                  %v4206 = vld [vmem:[%s4004 + $0x320] sm:$0xff]
                  %4207 = vst [vmem:[%s4005 + $0x620] sm:$0xff] %v4206
                  %v4208 = vld [vmem:[%s4004 + $0x328] sm:$0xff]
                  %4209 = vst [vmem:[%s4005 + $0x628] sm:$0xff] %v4208
                  %v4210 = vld [vmem:[%s4004 + $0x330] sm:$0xff]
                  %4211 = vst [vmem:[%s4005 + $0x630] sm:$0xff] %v4210
                  %v4212 = vld [vmem:[%s4004 + $0x338] sm:$0xff]
                  %4213 = vst [vmem:[%s4005 + $0x638] sm:$0xff] %v4212
                  %v4214 = vld [vmem:[%s4004 + $0x340] sm:$0xff]
                  %4215 = vst [vmem:[%s4005 + $0x640] sm:$0xff] %v4214
                  %v4216 = vld [vmem:[%s4004 + $0x348] sm:$0xff]
                  %4217 = vst [vmem:[%s4005 + $0x648] sm:$0xff] %v4216
                  %v4218 = vld [vmem:[%s4004 + $0x350] sm:$0xff]
                  %4219 = vst [vmem:[%s4005 + $0x650] sm:$0xff] %v4218
                  %v4220 = vld [vmem:[%s4004 + $0x358] sm:$0xff]
                  %4221 = vst [vmem:[%s4005 + $0x658] sm:$0xff] %v4220
                  %v4222 = vld [vmem:[%s4004 + $0x360] sm:$0xff]
                  %4223 = vst [vmem:[%s4005 + $0x660] sm:$0xff] %v4222
                  %v4224 = vld [vmem:[%s4004 + $0x368] sm:$0xff]
                  %4225 = vst [vmem:[%s4005 + $0x668] sm:$0xff] %v4224
                  %v4226 = vld [vmem:[%s4004 + $0x370] sm:$0xff]
                  %4227 = vst [vmem:[%s4005 + $0x670] sm:$0xff] %v4226
                  %v4228 = vld [vmem:[%s4004 + $0x378] sm:$0xff]
                  %4229 = vst [vmem:[%s4005 + $0x678] sm:$0xff] %v4228
                  %v4230 = vld [vmem:[%s4004 + $0x380] sm:$0xff]
                  %4231 = vst [vmem:[%s4005 + $0x680] sm:$0xff] %v4230
                  %v4232 = vld [vmem:[%s4004 + $0x388] sm:$0xff]
                  %4233 = vst [vmem:[%s4005 + $0x688] sm:$0xff] %v4232
                  %v4234 = vld [vmem:[%s4004 + $0x390] sm:$0xff]
                  %4235 = vst [vmem:[%s4005 + $0x690] sm:$0xff] %v4234
                  %v4236 = vld [vmem:[%s4004 + $0x398] sm:$0xff]
                  %4237 = vst [vmem:[%s4005 + $0x698] sm:$0xff] %v4236
                  %v4238 = vld [vmem:[%s4004 + $0x3a0] sm:$0xff]
                  %4239 = vst [vmem:[%s4005 + $0x6a0] sm:$0xff] %v4238
                  %v4240 = vld [vmem:[%s4004 + $0x3a8] sm:$0xff]
                  %4241 = vst [vmem:[%s4005 + $0x6a8] sm:$0xff] %v4240
                  %v4242 = vld [vmem:[%s4004 + $0x3b0] sm:$0xff]
                  %4243 = vst [vmem:[%s4005 + $0x6b0] sm:$0xff] %v4242
                  %v4244 = vld [vmem:[%s4004 + $0x3b8] sm:$0xff]
                  %4245 = vst [vmem:[%s4005 + $0x6b8] sm:$0xff] %v4244
                  %v4246 = vld [vmem:[%s4004 + $0x3c0] sm:$0xff]
                  %4247 = vst [vmem:[%s4005 + $0x6c0] sm:$0xff] %v4246
                  %v4248 = vld [vmem:[%s4004 + $0x3c8] sm:$0xff]
                  %4249 = vst [vmem:[%s4005 + $0x6c8] sm:$0xff] %v4248
                  %v4250 = vld [vmem:[%s4004 + $0x3d0] sm:$0xff]
                  %4251 = vst [vmem:[%s4005 + $0x6d0] sm:$0xff] %v4250
                  %v4252 = vld [vmem:[%s4004 + $0x3d8] sm:$0xff]
                  %4253 = vst [vmem:[%s4005 + $0x6d8] sm:$0xff] %v4252
                  %v4254 = vld [vmem:[%s4004 + $0x3e0] sm:$0xff]
                  %4255 = vst [vmem:[%s4005 + $0x6e0] sm:$0xff] %v4254
                  %v4256 = vld [vmem:[%s4004 + $0x3e8] sm:$0xff]
                  %4257 = vst [vmem:[%s4005 + $0x6e8] sm:$0xff] %v4256
                  %v4258 = vld [vmem:[%s4004 + $0x3f0] sm:$0xff]
                  %4259 = vst [vmem:[%s4005 + $0x6f0] sm:$0xff] %v4258
                  %v4260 = vld [vmem:[%s4004 + $0x3f8] sm:$0xff]
                  %4261 = vst [vmem:[%s4005 + $0x6f8] sm:$0xff] %v4260
                $region84: #{generator_forward.7} parent=78 // loop_footer
                  %s4003 = sadd.s32 1, %s3999
                $region85: #{generator_forward.7} parent=78 // loop_footer_branch
                  %3998 = sbr.rel target = $region81
                $region86: #{generator_forward.7} parent=78 // loop_exit
                  _
              $region79: #{generator_forward.7} parent=63 // pred_fallthru
                _
              // Predicated region
              $region87: #{generator_forward.7} parent=63 // pred_check
                _
              $region88: #{generator_forward.7} parent=63 // pred_check_branch
                %4263 = sbr.rel target = $region90
              $region89: #{generator_forward.7} parent=63 // pred_region
                _
              $region90: #{generator_forward.7} parent=63 // pred_fallthru
                _
            $region64: #{generator_forward.7} parent=59 // pred_fallthru
              _
            // Predicated region
            $region65: #{generator_forward.7} parent=59 // pred_check
              _
            $region66: #{generator_forward.7} parent=59 // pred_check_branch
              %3729 = sbr.rel target = $region68
            $region67: #{generator_forward.7} parent=59 // pred_region
              %s3731 = ssub.s32 256, 1
              loop: start=0, step=1, limit=1
              $region69: #{generator_forward.7} parent=67 // loop_pre_header
                _
              $region70: #{generator_forward.7} parent=67 // loop_header
                %s3733 = sphi 0, %s3737
                %p3734 = scmp.ge.s32.totalorder %s3733, 1
                %s3738 = sphi %s3716, %s3716
                %s3739 = sphi %s3723, %s3723
              $region71: #{generator_forward.7} parent=67 // loop_header_branch
                %3736 = sbr.rel (%p3734) target = $region75
              $region72: #{generator_forward.7} parent=67 // loop_body
                %v3740 = vld [vmem:[%s3738] sm:%s3731]
                %3741 = vst [vmem:[%s3739] sm:%s3731] %v3740
                %v3742 = vld [vmem:[%s3738 + $0x8] sm:%s3731]
                %3743 = vst [vmem:[%s3739 + $0x8] sm:%s3731] %v3742
                %v3744 = vld [vmem:[%s3738 + $0x10] sm:%s3731]
                %3745 = vst [vmem:[%s3739 + $0x10] sm:%s3731] %v3744
                %v3746 = vld [vmem:[%s3738 + $0x18] sm:%s3731]
                %3747 = vst [vmem:[%s3739 + $0x18] sm:%s3731] %v3746
                %v3748 = vld [vmem:[%s3738 + $0x20] sm:%s3731]
                %3749 = vst [vmem:[%s3739 + $0x20] sm:%s3731] %v3748
                %v3750 = vld [vmem:[%s3738 + $0x28] sm:%s3731]
                %3751 = vst [vmem:[%s3739 + $0x28] sm:%s3731] %v3750
                %v3752 = vld [vmem:[%s3738 + $0x30] sm:%s3731]
                %3753 = vst [vmem:[%s3739 + $0x30] sm:%s3731] %v3752
                %v3754 = vld [vmem:[%s3738 + $0x38] sm:%s3731]
                %3755 = vst [vmem:[%s3739 + $0x38] sm:%s3731] %v3754
                %v3756 = vld [vmem:[%s3738 + $0x40] sm:%s3731]
                %3757 = vst [vmem:[%s3739 + $0x40] sm:%s3731] %v3756
                %v3758 = vld [vmem:[%s3738 + $0x48] sm:%s3731]
                %3759 = vst [vmem:[%s3739 + $0x48] sm:%s3731] %v3758
                %v3760 = vld [vmem:[%s3738 + $0x50] sm:%s3731]
                %3761 = vst [vmem:[%s3739 + $0x50] sm:%s3731] %v3760
                %v3762 = vld [vmem:[%s3738 + $0x58] sm:%s3731]
                %3763 = vst [vmem:[%s3739 + $0x58] sm:%s3731] %v3762
                %v3764 = vld [vmem:[%s3738 + $0x60] sm:%s3731]
                %3765 = vst [vmem:[%s3739 + $0x60] sm:%s3731] %v3764
                %v3766 = vld [vmem:[%s3738 + $0x68] sm:%s3731]
                %3767 = vst [vmem:[%s3739 + $0x68] sm:%s3731] %v3766
                %v3768 = vld [vmem:[%s3738 + $0x70] sm:%s3731]
                %3769 = vst [vmem:[%s3739 + $0x70] sm:%s3731] %v3768
                %v3770 = vld [vmem:[%s3738 + $0x78] sm:%s3731]
                %3771 = vst [vmem:[%s3739 + $0x78] sm:%s3731] %v3770
                %v3772 = vld [vmem:[%s3738 + $0x80] sm:%s3731]
                %3773 = vst [vmem:[%s3739 + $0x80] sm:%s3731] %v3772
                %v3774 = vld [vmem:[%s3738 + $0x88] sm:%s3731]
                %3775 = vst [vmem:[%s3739 + $0x88] sm:%s3731] %v3774
                %v3776 = vld [vmem:[%s3738 + $0x90] sm:%s3731]
                %3777 = vst [vmem:[%s3739 + $0x90] sm:%s3731] %v3776
                %v3778 = vld [vmem:[%s3738 + $0x98] sm:%s3731]
                %3779 = vst [vmem:[%s3739 + $0x98] sm:%s3731] %v3778
                %v3780 = vld [vmem:[%s3738 + $0xa0] sm:%s3731]
                %3781 = vst [vmem:[%s3739 + $0xa0] sm:%s3731] %v3780
                %v3782 = vld [vmem:[%s3738 + $0xa8] sm:%s3731]
                %3783 = vst [vmem:[%s3739 + $0xa8] sm:%s3731] %v3782
                %v3784 = vld [vmem:[%s3738 + $0xb0] sm:%s3731]
                %3785 = vst [vmem:[%s3739 + $0xb0] sm:%s3731] %v3784
                %v3786 = vld [vmem:[%s3738 + $0xb8] sm:%s3731]
                %3787 = vst [vmem:[%s3739 + $0xb8] sm:%s3731] %v3786
                %v3788 = vld [vmem:[%s3738 + $0xc0] sm:%s3731]
                %3789 = vst [vmem:[%s3739 + $0xc0] sm:%s3731] %v3788
                %v3790 = vld [vmem:[%s3738 + $0xc8] sm:%s3731]
                %3791 = vst [vmem:[%s3739 + $0xc8] sm:%s3731] %v3790
                %v3792 = vld [vmem:[%s3738 + $0xd0] sm:%s3731]
                %3793 = vst [vmem:[%s3739 + $0xd0] sm:%s3731] %v3792
                %v3794 = vld [vmem:[%s3738 + $0xd8] sm:%s3731]
                %3795 = vst [vmem:[%s3739 + $0xd8] sm:%s3731] %v3794
                %v3796 = vld [vmem:[%s3738 + $0xe0] sm:%s3731]
                %3797 = vst [vmem:[%s3739 + $0xe0] sm:%s3731] %v3796
                %v3798 = vld [vmem:[%s3738 + $0xe8] sm:%s3731]
                %3799 = vst [vmem:[%s3739 + $0xe8] sm:%s3731] %v3798
                %v3800 = vld [vmem:[%s3738 + $0xf0] sm:%s3731]
                %3801 = vst [vmem:[%s3739 + $0xf0] sm:%s3731] %v3800
                %v3802 = vld [vmem:[%s3738 + $0xf8] sm:%s3731]
                %3803 = vst [vmem:[%s3739 + $0xf8] sm:%s3731] %v3802
                %v3804 = vld [vmem:[%s3738 + $0x100] sm:%s3731]
                %3805 = vst [vmem:[%s3739 + $0x200] sm:%s3731] %v3804
                %v3806 = vld [vmem:[%s3738 + $0x108] sm:%s3731]
                %3807 = vst [vmem:[%s3739 + $0x208] sm:%s3731] %v3806
                %v3808 = vld [vmem:[%s3738 + $0x110] sm:%s3731]
                %3809 = vst [vmem:[%s3739 + $0x210] sm:%s3731] %v3808
                %v3810 = vld [vmem:[%s3738 + $0x118] sm:%s3731]
                %3811 = vst [vmem:[%s3739 + $0x218] sm:%s3731] %v3810
                %v3812 = vld [vmem:[%s3738 + $0x120] sm:%s3731]
                %3813 = vst [vmem:[%s3739 + $0x220] sm:%s3731] %v3812
                %v3814 = vld [vmem:[%s3738 + $0x128] sm:%s3731]
                %3815 = vst [vmem:[%s3739 + $0x228] sm:%s3731] %v3814
                %v3816 = vld [vmem:[%s3738 + $0x130] sm:%s3731]
                %3817 = vst [vmem:[%s3739 + $0x230] sm:%s3731] %v3816
                %v3818 = vld [vmem:[%s3738 + $0x138] sm:%s3731]
                %3819 = vst [vmem:[%s3739 + $0x238] sm:%s3731] %v3818
                %v3820 = vld [vmem:[%s3738 + $0x140] sm:%s3731]
                %3821 = vst [vmem:[%s3739 + $0x240] sm:%s3731] %v3820
                %v3822 = vld [vmem:[%s3738 + $0x148] sm:%s3731]
                %3823 = vst [vmem:[%s3739 + $0x248] sm:%s3731] %v3822
                %v3824 = vld [vmem:[%s3738 + $0x150] sm:%s3731]
                %3825 = vst [vmem:[%s3739 + $0x250] sm:%s3731] %v3824
                %v3826 = vld [vmem:[%s3738 + $0x158] sm:%s3731]
                %3827 = vst [vmem:[%s3739 + $0x258] sm:%s3731] %v3826
                %v3828 = vld [vmem:[%s3738 + $0x160] sm:%s3731]
                %3829 = vst [vmem:[%s3739 + $0x260] sm:%s3731] %v3828
                %v3830 = vld [vmem:[%s3738 + $0x168] sm:%s3731]
                %3831 = vst [vmem:[%s3739 + $0x268] sm:%s3731] %v3830
                %v3832 = vld [vmem:[%s3738 + $0x170] sm:%s3731]
                %3833 = vst [vmem:[%s3739 + $0x270] sm:%s3731] %v3832
                %v3834 = vld [vmem:[%s3738 + $0x178] sm:%s3731]
                %3835 = vst [vmem:[%s3739 + $0x278] sm:%s3731] %v3834
                %v3836 = vld [vmem:[%s3738 + $0x180] sm:%s3731]
                %3837 = vst [vmem:[%s3739 + $0x280] sm:%s3731] %v3836
                %v3838 = vld [vmem:[%s3738 + $0x188] sm:%s3731]
                %3839 = vst [vmem:[%s3739 + $0x288] sm:%s3731] %v3838
                %v3840 = vld [vmem:[%s3738 + $0x190] sm:%s3731]
                %3841 = vst [vmem:[%s3739 + $0x290] sm:%s3731] %v3840
                %v3842 = vld [vmem:[%s3738 + $0x198] sm:%s3731]
                %3843 = vst [vmem:[%s3739 + $0x298] sm:%s3731] %v3842
                %v3844 = vld [vmem:[%s3738 + $0x1a0] sm:%s3731]
                %3845 = vst [vmem:[%s3739 + $0x2a0] sm:%s3731] %v3844
                %v3846 = vld [vmem:[%s3738 + $0x1a8] sm:%s3731]
                %3847 = vst [vmem:[%s3739 + $0x2a8] sm:%s3731] %v3846
                %v3848 = vld [vmem:[%s3738 + $0x1b0] sm:%s3731]
                %3849 = vst [vmem:[%s3739 + $0x2b0] sm:%s3731] %v3848
                %v3850 = vld [vmem:[%s3738 + $0x1b8] sm:%s3731]
                %3851 = vst [vmem:[%s3739 + $0x2b8] sm:%s3731] %v3850
                %v3852 = vld [vmem:[%s3738 + $0x1c0] sm:%s3731]
                %3853 = vst [vmem:[%s3739 + $0x2c0] sm:%s3731] %v3852
                %v3854 = vld [vmem:[%s3738 + $0x1c8] sm:%s3731]
                %3855 = vst [vmem:[%s3739 + $0x2c8] sm:%s3731] %v3854
                %v3856 = vld [vmem:[%s3738 + $0x1d0] sm:%s3731]
                %3857 = vst [vmem:[%s3739 + $0x2d0] sm:%s3731] %v3856
                %v3858 = vld [vmem:[%s3738 + $0x1d8] sm:%s3731]
                %3859 = vst [vmem:[%s3739 + $0x2d8] sm:%s3731] %v3858
                %v3860 = vld [vmem:[%s3738 + $0x1e0] sm:%s3731]
                %3861 = vst [vmem:[%s3739 + $0x2e0] sm:%s3731] %v3860
                %v3862 = vld [vmem:[%s3738 + $0x1e8] sm:%s3731]
                %3863 = vst [vmem:[%s3739 + $0x2e8] sm:%s3731] %v3862
                %v3864 = vld [vmem:[%s3738 + $0x1f0] sm:%s3731]
                %3865 = vst [vmem:[%s3739 + $0x2f0] sm:%s3731] %v3864
                %v3866 = vld [vmem:[%s3738 + $0x1f8] sm:%s3731]
                %3867 = vst [vmem:[%s3739 + $0x2f8] sm:%s3731] %v3866
                %v3868 = vld [vmem:[%s3738 + $0x200] sm:%s3731]
                %3869 = vst [vmem:[%s3739 + $0x400] sm:%s3731] %v3868
                %v3870 = vld [vmem:[%s3738 + $0x208] sm:%s3731]
                %3871 = vst [vmem:[%s3739 + $0x408] sm:%s3731] %v3870
                %v3872 = vld [vmem:[%s3738 + $0x210] sm:%s3731]
                %3873 = vst [vmem:[%s3739 + $0x410] sm:%s3731] %v3872
                %v3874 = vld [vmem:[%s3738 + $0x218] sm:%s3731]
                %3875 = vst [vmem:[%s3739 + $0x418] sm:%s3731] %v3874
                %v3876 = vld [vmem:[%s3738 + $0x220] sm:%s3731]
                %3877 = vst [vmem:[%s3739 + $0x420] sm:%s3731] %v3876
                %v3878 = vld [vmem:[%s3738 + $0x228] sm:%s3731]
                %3879 = vst [vmem:[%s3739 + $0x428] sm:%s3731] %v3878
                %v3880 = vld [vmem:[%s3738 + $0x230] sm:%s3731]
                %3881 = vst [vmem:[%s3739 + $0x430] sm:%s3731] %v3880
                %v3882 = vld [vmem:[%s3738 + $0x238] sm:%s3731]
                %3883 = vst [vmem:[%s3739 + $0x438] sm:%s3731] %v3882
                %v3884 = vld [vmem:[%s3738 + $0x240] sm:%s3731]
                %3885 = vst [vmem:[%s3739 + $0x440] sm:%s3731] %v3884
                %v3886 = vld [vmem:[%s3738 + $0x248] sm:%s3731]
                %3887 = vst [vmem:[%s3739 + $0x448] sm:%s3731] %v3886
                %v3888 = vld [vmem:[%s3738 + $0x250] sm:%s3731]
                %3889 = vst [vmem:[%s3739 + $0x450] sm:%s3731] %v3888
                %v3890 = vld [vmem:[%s3738 + $0x258] sm:%s3731]
                %3891 = vst [vmem:[%s3739 + $0x458] sm:%s3731] %v3890
                %v3892 = vld [vmem:[%s3738 + $0x260] sm:%s3731]
                %3893 = vst [vmem:[%s3739 + $0x460] sm:%s3731] %v3892
                %v3894 = vld [vmem:[%s3738 + $0x268] sm:%s3731]
                %3895 = vst [vmem:[%s3739 + $0x468] sm:%s3731] %v3894
                %v3896 = vld [vmem:[%s3738 + $0x270] sm:%s3731]
                %3897 = vst [vmem:[%s3739 + $0x470] sm:%s3731] %v3896
                %v3898 = vld [vmem:[%s3738 + $0x278] sm:%s3731]
                %3899 = vst [vmem:[%s3739 + $0x478] sm:%s3731] %v3898
                %v3900 = vld [vmem:[%s3738 + $0x280] sm:%s3731]
                %3901 = vst [vmem:[%s3739 + $0x480] sm:%s3731] %v3900
                %v3902 = vld [vmem:[%s3738 + $0x288] sm:%s3731]
                %3903 = vst [vmem:[%s3739 + $0x488] sm:%s3731] %v3902
                %v3904 = vld [vmem:[%s3738 + $0x290] sm:%s3731]
                %3905 = vst [vmem:[%s3739 + $0x490] sm:%s3731] %v3904
                %v3906 = vld [vmem:[%s3738 + $0x298] sm:%s3731]
                %3907 = vst [vmem:[%s3739 + $0x498] sm:%s3731] %v3906
                %v3908 = vld [vmem:[%s3738 + $0x2a0] sm:%s3731]
                %3909 = vst [vmem:[%s3739 + $0x4a0] sm:%s3731] %v3908
                %v3910 = vld [vmem:[%s3738 + $0x2a8] sm:%s3731]
                %3911 = vst [vmem:[%s3739 + $0x4a8] sm:%s3731] %v3910
                %v3912 = vld [vmem:[%s3738 + $0x2b0] sm:%s3731]
                %3913 = vst [vmem:[%s3739 + $0x4b0] sm:%s3731] %v3912
                %v3914 = vld [vmem:[%s3738 + $0x2b8] sm:%s3731]
                %3915 = vst [vmem:[%s3739 + $0x4b8] sm:%s3731] %v3914
                %v3916 = vld [vmem:[%s3738 + $0x2c0] sm:%s3731]
                %3917 = vst [vmem:[%s3739 + $0x4c0] sm:%s3731] %v3916
                %v3918 = vld [vmem:[%s3738 + $0x2c8] sm:%s3731]
                %3919 = vst [vmem:[%s3739 + $0x4c8] sm:%s3731] %v3918
                %v3920 = vld [vmem:[%s3738 + $0x2d0] sm:%s3731]
                %3921 = vst [vmem:[%s3739 + $0x4d0] sm:%s3731] %v3920
                %v3922 = vld [vmem:[%s3738 + $0x2d8] sm:%s3731]
                %3923 = vst [vmem:[%s3739 + $0x4d8] sm:%s3731] %v3922
                %v3924 = vld [vmem:[%s3738 + $0x2e0] sm:%s3731]
                %3925 = vst [vmem:[%s3739 + $0x4e0] sm:%s3731] %v3924
                %v3926 = vld [vmem:[%s3738 + $0x2e8] sm:%s3731]
                %3927 = vst [vmem:[%s3739 + $0x4e8] sm:%s3731] %v3926
                %v3928 = vld [vmem:[%s3738 + $0x2f0] sm:%s3731]
                %3929 = vst [vmem:[%s3739 + $0x4f0] sm:%s3731] %v3928
                %v3930 = vld [vmem:[%s3738 + $0x2f8] sm:%s3731]
                %3931 = vst [vmem:[%s3739 + $0x4f8] sm:%s3731] %v3930
                %v3932 = vld [vmem:[%s3738 + $0x300] sm:%s3731]
                %3933 = vst [vmem:[%s3739 + $0x600] sm:%s3731] %v3932
                %v3934 = vld [vmem:[%s3738 + $0x308] sm:%s3731]
                %3935 = vst [vmem:[%s3739 + $0x608] sm:%s3731] %v3934
                %v3936 = vld [vmem:[%s3738 + $0x310] sm:%s3731]
                %3937 = vst [vmem:[%s3739 + $0x610] sm:%s3731] %v3936
                %v3938 = vld [vmem:[%s3738 + $0x318] sm:%s3731]
                %3939 = vst [vmem:[%s3739 + $0x618] sm:%s3731] %v3938
                %v3940 = vld [vmem:[%s3738 + $0x320] sm:%s3731]
                %3941 = vst [vmem:[%s3739 + $0x620] sm:%s3731] %v3940
                %v3942 = vld [vmem:[%s3738 + $0x328] sm:%s3731]
                %3943 = vst [vmem:[%s3739 + $0x628] sm:%s3731] %v3942
                %v3944 = vld [vmem:[%s3738 + $0x330] sm:%s3731]
                %3945 = vst [vmem:[%s3739 + $0x630] sm:%s3731] %v3944
                %v3946 = vld [vmem:[%s3738 + $0x338] sm:%s3731]
                %3947 = vst [vmem:[%s3739 + $0x638] sm:%s3731] %v3946
                %v3948 = vld [vmem:[%s3738 + $0x340] sm:%s3731]
                %3949 = vst [vmem:[%s3739 + $0x640] sm:%s3731] %v3948
                %v3950 = vld [vmem:[%s3738 + $0x348] sm:%s3731]
                %3951 = vst [vmem:[%s3739 + $0x648] sm:%s3731] %v3950
                %v3952 = vld [vmem:[%s3738 + $0x350] sm:%s3731]
                %3953 = vst [vmem:[%s3739 + $0x650] sm:%s3731] %v3952
                %v3954 = vld [vmem:[%s3738 + $0x358] sm:%s3731]
                %3955 = vst [vmem:[%s3739 + $0x658] sm:%s3731] %v3954
                %v3956 = vld [vmem:[%s3738 + $0x360] sm:%s3731]
                %3957 = vst [vmem:[%s3739 + $0x660] sm:%s3731] %v3956
                %v3958 = vld [vmem:[%s3738 + $0x368] sm:%s3731]
                %3959 = vst [vmem:[%s3739 + $0x668] sm:%s3731] %v3958
                %v3960 = vld [vmem:[%s3738 + $0x370] sm:%s3731]
                %3961 = vst [vmem:[%s3739 + $0x670] sm:%s3731] %v3960
                %v3962 = vld [vmem:[%s3738 + $0x378] sm:%s3731]
                %3963 = vst [vmem:[%s3739 + $0x678] sm:%s3731] %v3962
                %v3964 = vld [vmem:[%s3738 + $0x380] sm:%s3731]
                %3965 = vst [vmem:[%s3739 + $0x680] sm:%s3731] %v3964
                %v3966 = vld [vmem:[%s3738 + $0x388] sm:%s3731]
                %3967 = vst [vmem:[%s3739 + $0x688] sm:%s3731] %v3966
                %v3968 = vld [vmem:[%s3738 + $0x390] sm:%s3731]
                %3969 = vst [vmem:[%s3739 + $0x690] sm:%s3731] %v3968
                %v3970 = vld [vmem:[%s3738 + $0x398] sm:%s3731]
                %3971 = vst [vmem:[%s3739 + $0x698] sm:%s3731] %v3970
                %v3972 = vld [vmem:[%s3738 + $0x3a0] sm:%s3731]
                %3973 = vst [vmem:[%s3739 + $0x6a0] sm:%s3731] %v3972
                %v3974 = vld [vmem:[%s3738 + $0x3a8] sm:%s3731]
                %3975 = vst [vmem:[%s3739 + $0x6a8] sm:%s3731] %v3974
                %v3976 = vld [vmem:[%s3738 + $0x3b0] sm:%s3731]
                %3977 = vst [vmem:[%s3739 + $0x6b0] sm:%s3731] %v3976
                %v3978 = vld [vmem:[%s3738 + $0x3b8] sm:%s3731]
                %3979 = vst [vmem:[%s3739 + $0x6b8] sm:%s3731] %v3978
                %v3980 = vld [vmem:[%s3738 + $0x3c0] sm:%s3731]
                %3981 = vst [vmem:[%s3739 + $0x6c0] sm:%s3731] %v3980
                %v3982 = vld [vmem:[%s3738 + $0x3c8] sm:%s3731]
                %3983 = vst [vmem:[%s3739 + $0x6c8] sm:%s3731] %v3982
                %v3984 = vld [vmem:[%s3738 + $0x3d0] sm:%s3731]
                %3985 = vst [vmem:[%s3739 + $0x6d0] sm:%s3731] %v3984
                %v3986 = vld [vmem:[%s3738 + $0x3d8] sm:%s3731]
                %3987 = vst [vmem:[%s3739 + $0x6d8] sm:%s3731] %v3986
                %v3988 = vld [vmem:[%s3738 + $0x3e0] sm:%s3731]
                %3989 = vst [vmem:[%s3739 + $0x6e0] sm:%s3731] %v3988
                %v3990 = vld [vmem:[%s3738 + $0x3e8] sm:%s3731]
                %3991 = vst [vmem:[%s3739 + $0x6e8] sm:%s3731] %v3990
                %v3992 = vld [vmem:[%s3738 + $0x3f0] sm:%s3731]
                %3993 = vst [vmem:[%s3739 + $0x6f0] sm:%s3731] %v3992
                %v3994 = vld [vmem:[%s3738 + $0x3f8] sm:%s3731]
                %3995 = vst [vmem:[%s3739 + $0x6f8] sm:%s3731] %v3994
              $region73: #{generator_forward.7} parent=67 // loop_footer
                %s3737 = sadd.s32 1, %s3733
              $region74: #{generator_forward.7} parent=67 // loop_footer_branch
                %3732 = sbr.rel target = $region70
              $region75: #{generator_forward.7} parent=67 // loop_exit
                _
            $region68: #{generator_forward.7} parent=59 // pred_fallthru
              _
          $region60: #{generator_forward.7} parent=55 // pred_fallthru
            _
          %4264 = vnop
        $region56: #{generator_forward.7} parent=43 // pred_fallthru
          _
      $region44: #{generator_forward.7} parent=5 // pred_fallthru
        _
      %p4265 = scmp.le.s32.totalorder 2, %s14
      // Predicated region
      $region91: #{generator_forward.7} parent=5 // pred_check
        %p4266 = pneg %p4265
      $region92: #{generator_forward.7} parent=5 // pred_check_branch
        %4268 = sbr.rel (%p4266) target = $region94
      $region93: #{generator_forward.7} parent=5 // pred_region
        %s4269 = ssub.s32 %s14, 2
        // Predicated region
        $region95: #{generator_forward.7} parent=93 // pred_check
          %p4270 = pneg %p198
        $region96: #{generator_forward.7} parent=93 // pred_check_branch
          %4272 = sbr.rel (%p4270) target = $region98
        $region97: #{generator_forward.7} parent=93 // pred_region
          %s4273 = sand.u32 %s183, 1
          %s4274 = sand.u32 %s183, 1
          %s4275 = smul.addr %s4274, 1024
          %s4276 = scalar_lea.vmem [#allocation6], %s4275
        $region98: #{generator_forward.7} parent=93 // pred_fallthru
          _
      $region94: #{generator_forward.7} parent=5 // pred_fallthru
        _
    $region6: #{generator_forward.7} parent=1 // loop_footer
      %s18 = sadd.s32 1, %s14
    $region7: #{generator_forward.7} parent=1 // loop_footer_branch
      %13 = sbr.rel target = $region3
    $region8: #{generator_forward.7} parent=1 // loop_exit
      _
    %4277 = vsyncpa [#allocation3], 1
    %s4278 = scalar_lea.sflag [#allocation3], 1
    %4279 = vsyncpa %s4278, 1
    %4280 = vsyncpa [#allocation5], 1

</llo_original>
